<compile_context>
chip_gen: v7x
topology: tpu7x:2x2x1
jax: 0.10.0
libtpu: 0.0.40
codegen_flags: <defaults>
</compile_context>

<pallas_src>
import math
import functools

import numpy as np
import jax
import jax.numpy as jnp
from jax.experimental import pallas as pl
from jax.experimental.pallas import tpu as pltpu

# Everything is tiny (<2 MiB total): whole-array VMEM blocks, no grid.
VMEM = pl.BlockSpec(memory_space=pltpu.MemorySpace.VMEM)


# ------------------------------ fused kernel --------------------------------

def _encoder_kernel(x_ref,
                    g1_ref, cw1_ref, cb1_ref,
                    g2_ref, cw2_ref, cb2_ref,
                    g3_ref, cw3_ref, cb3_ref,
                    pe_ref, mask_ref,
                    wqkv_ref, bqkv_ref, wo_ref, bo_ref,
                    w1_ref, b1_ref, w2_ref, b2_ref,
                    ln1g_ref, ln1b_ref, ln2g_ref, ln2b_ref,
                    o_ref, *, num_layers, num_heads, conv_dims, eps):
    f32 = jnp.float32
    bf16 = jnp.bfloat16

    # ---------------- conv stack: Conv(k=3,s=2,p=1) + ReLU, x3 --------------
    # Each layer: taps_t = G_t @ h  (0/1 selection matrix == im2col gather,
    # zero rows implement the zero padding), then acc += taps_t @ W_t.
    def conv_layer(h, g_ref, w_ref, b_ref, rows, cin):
        hb = h.astype(bf16)
        acc = b_ref[...]                                       # [1, cout] f32
        if cin == 1:
            # Cin == 1: per-tap selection matmul + VPU broadcast multiply.
            for t in range(9):
                tap = jnp.dot(g_ref[t * rows:(t + 1) * rows, :], hb,
                              preferred_element_type=f32)      # [rows, 1]
                wt = w_ref[t:t + 1, :].astype(f32)             # [1, cout]
                acc = acc + tap * wt
        else:
            taps = jnp.dot(g_ref[...], hb,
                           preferred_element_type=f32)         # [9*rows, cin]
            for t in range(9):
                tap = taps[t * rows:(t + 1) * rows, :].astype(bf16)
                wt = w_ref[t * cin:(t + 1) * cin, :]           # [cin, cout] bf16
                acc = acc + jnp.dot(tap, wt, preferred_element_type=f32)
        return jnp.maximum(acc, 0.0)                           # fused ReLU

    (r1, c1), (r2, c2), (r3, c3) = conv_dims
    h = x_ref[...]                                             # [B*H*W, 1]
    h = conv_layer(h, g1_ref, cw1_ref, cb1_ref, r1, c1)
    h = conv_layer(h, g2_ref, cw2_ref, cb2_ref, r2, c2)
    h = conv_layer(h, g3_ref, cw3_ref, cb3_ref, r3, c3)        # [B*S, D] tokens

    # ---------------- positional encoding + transformer stack ---------------
    BS, D = h.shape
    Dh = D // num_heads

    x = h + pe_ref[...]                     # PE add (dropout = identity, eval)
    mask_add = mask_ref[...]                # [BS, BS]: 0 same-batch, -1e30 off

    lane = jax.lax.broadcasted_iota(jnp.int32, (1, D), 1)
    head_masks = [((lane >= hd * Dh) & (lane < (hd + 1) * Dh)).astype(f32)
                  for hd in range(num_heads)]

    def layernorm(y, g, b):
        mu = jnp.mean(y, axis=-1, keepdims=True)
        cen = y - mu
        var = jnp.mean(cen * cen, axis=-1, keepdims=True)
        return cen * jax.lax.rsqrt(var + eps) * g + b

    for l in range(num_layers):                                # unrolled, L=3
        # fused QKV projection (scale already folded into the q block)
        xb = x.astype(bf16)
        qkv = jnp.dot(xb, wqkv_ref[l], preferred_element_type=f32) + bqkv_ref[l]
        q = qkv[:, 0:D]
        k = qkv[:, D:2 * D].astype(bf16)
        v = qkv[:, 2 * D:3 * D].astype(bf16)

        # multi-head attention via lane masks (no head reshapes / transposes)
        ctx = jnp.zeros((BS, D), f32)
        for hm in head_masks:
            qh = (q * hm).astype(bf16)
            s = jax.lax.dot_general(qh, k, (((1,), (1,)), ((), ())),
                                    preferred_element_type=f32)
            s = s + mask_add                        # no cross-batch attention
            m = jnp.max(s, axis=-1, keepdims=True)
            p = jnp.exp(s - m)
            denom = jnp.sum(p, axis=-1, keepdims=True)
            p = p * pl.reciprocal(denom, approx=True)
            ctx = ctx + jnp.dot(p.astype(bf16), v,
                                preferred_element_type=f32) * hm

        attn = jnp.dot(ctx.astype(bf16), wo_ref[l],
                       preferred_element_type=f32) + bo_ref[l]
        x = layernorm(x + attn, ln1g_ref[l], ln1b_ref[l])      # dropout = id

        ff = jnp.dot(x.astype(bf16), w1_ref[l],
                     preferred_element_type=f32) + b1_ref[l]
        ff = jnp.maximum(ff, 0.0)
        ff = jnp.dot(ff.astype(bf16), w2_ref[l],
                     preferred_element_type=f32) + b2_ref[l]
        x = layernorm(x + ff, ln2g_ref[l], ln2b_ref[l])        # dropout = id

    o_ref[...] = x.astype(o_ref.dtype)


# --------------------------- compile-time constants --------------------------

def _build_gather(B, H, W, k=3, stride=2, pad=1):
    """0/1 selection matrix: rows = (tap, b, oh, ow), cols = (b, iy, ix).

    Zero rows (out-of-range taps) implement the zero padding."""
    OH = (H + 2 * pad - k) // stride + 1
    OW = (W + 2 * pad - k) // stride + 1
    M = OH * OW
    G = np.zeros((k * k * B * M, B * H * W), np.float32)
    for t in range(k * k):
        kh, kw = divmod(t, k)
        for b in range(B):
            for oh in range(OH):
                for ow in range(OW):
                    iy = stride * oh + kh - pad
                    ix = stride * ow + kw - pad
                    if 0 <= iy < H and 0 <= ix < W:
                        G[t * (B * M) + b * M + oh * OW + ow,
                          b * (H * W) + iy * W + ix] = 1.0
    return G, OH, OW


def _positional_encoding(dim, length):
    pos = np.arange(length, dtype=np.float32)[:, None]
    div = np.exp(np.arange(0, dim, 2, dtype=np.float32)
                 * (-math.log(10000.0) / dim))
    pe = np.zeros((length, dim), np.float32)
    pe[:, 0::2] = np.sin(pos * div)
    pe[:, 1::2] = np.cos(pos * div)
    return pe


# --------------------------------- params ------------------------------------

def init_params(key, dim, num_heads, num_layers):
    """All weights stored pre-transposed / pre-fused in kernel layout (bf16)."""
    def normal(k, shape, scale=0.05):
        return scale * jax.random.normal(k, shape, jnp.float32)

    kconv, klyr = jax.random.split(key)

    # conv stack (torch layout generated, reshaped ONCE to [9*Cin, Cout])
    conv_cfg = [(1, 32), (32, 64), (64, dim)]
    conv = []
    ckeys = jax.random.split(kconv, 2 * len(conv_cfg))
    for i, (cin, cout) in enumerate(conv_cfg):
        w = normal(ckeys[2 * i], (cout, cin, 3, 3))            # [OC, IC, KH, KW]
        b = normal(ckeys[2 * i + 1], (cout,))
        wmat = w.transpose(2, 3, 1, 0).reshape(9 * cin, cout)   # (kh, kw, c) rows
        conv.append(dict(w=wmat.astype(jnp.bfloat16), b=b[None, :]))

    # transformer layers, stacked over the layer axis; QKV fused, scale folded
    L, D = num_layers, dim
    scale = 1.0 / math.sqrt(D // num_heads)
    lk = jax.random.split(klyr, 12)
    wq = normal(lk[0], (L, D, D)) * scale
    bq = normal(lk[1], (L, 1, D)) * scale
    wk = normal(lk[2], (L, D, D))
    bk = normal(lk[3], (L, 1, D))
    wv = normal(lk[4], (L, D, D))
    bv = normal(lk[5], (L, 1, D))
    layers = dict(
        wqkv=jnp.concatenate([wq, wk, wv], axis=-1).astype(jnp.bfloat16),
        bqkv=jnp.concatenate([bq, bk, bv], axis=-1),
        wo=normal(lk[6], (L, D, D)).astype(jnp.bfloat16),
        bo=normal(lk[7], (L, 1, D)),
        w1=normal(lk[8], (L, D, 4 * D)).astype(jnp.bfloat16),
        b1=normal(lk[9], (L, 1, 4 * D)),
        w2=normal(lk[10], (L, 4 * D, D)).astype(jnp.bfloat16),
        b2=normal(lk[11], (L, 1, D)),
        ln1_g=jnp.ones((L, 1, D), jnp.float32),
        ln1_b=jnp.zeros((L, 1, D), jnp.float32),
        ln2_g=jnp.ones((L, 1, D), jnp.float32),
        ln2_b=jnp.zeros((L, 1, D), jnp.float32),
    )
    return dict(conv=conv, layers=layers)


# --------------------------------- forward -----------------------------------

def encoder_forward(params, x, *, num_heads):
    """x: NCHW [B, 1, H, W] float32 (matching the PyTorch module's input)."""
    B, C, H, W = x.shape
    lp = params["layers"]
    num_layers, D = lp["wo"].shape[0], lp["wo"].shape[-1]

    # NCHW with C == 1 flattens directly to (b, y, x)-major token rows.
    x2d = x.reshape(B * H * W, C)

    # Compile-time constants (numpy, built at trace time -> folded by XLA):
    G1, H1, W1 = _build_gather(B, H, W)
    G2, H2, W2 = _build_gather(B, H1, W1)
    G3, H3, W3 = _build_gather(B, H2, W2)
    S = H3 * W3

    pe_bs = np.tile(_positional_encoding(D, S), (B, 1))         # [B*S, D]
    row = np.arange(B * S)
    mask_add = np.where((row[:, None] // S) == (row[None, :] // S),
                        0.0, -1e30).astype(np.float32)          # [B*S, B*S]

    rows = (B * H1 * W1, B * H2 * W2, B * H3 * W3)
    conv_dims = tuple((r, cp["w"].shape[0] // 9)
                      for r, cp in zip(rows, params["conv"]))

    kernel = functools.partial(_encoder_kernel,
                               num_layers=num_layers, num_heads=num_heads,
                               conv_dims=conv_dims, eps=1e-5)

    args = (x2d,
            jnp.asarray(G1, jnp.bfloat16), params["conv"][0]["w"], params["conv"][0]["b"],
            jnp.asarray(G2, jnp.bfloat16), params["conv"][1]["w"], params["conv"][1]["b"],
            jnp.asarray(G3, jnp.bfloat16), params["conv"][2]["w"], params["conv"][2]["b"],
            jnp.asarray(pe_bs), jnp.asarray(mask_add),
            lp["wqkv"], lp["bqkv"], lp["wo"], lp["bo"],
            lp["w1"], lp["b1"], lp["w2"], lp["b2"],
            lp["ln1_g"], lp["ln1_b"], lp["ln2_g"], lp["ln2_b"])

    out2d = pl.pallas_call(
        kernel,
        out_shape=jax.ShapeDtypeStruct((B * S, D), jnp.float32),
        in_specs=[VMEM] * len(args),
        out_specs=VMEM,
    )(*args)
    return out2d.reshape(B, S, D)


if __name__ == "__main__":
    dim_size, num_heads, num_layers = 32, 4, 3
    key = jax.random.PRNGKey(0)
    pkey, xkey = jax.random.split(key)

    params = init_params(pkey, dim_size, num_heads, num_layers)
    # NCHW, single channel (MNIST-like), spatial 16 -> 8 -> 4 -> 2  (S = 4)
    x = jax.random.normal(xkey, (2, 1, 16, 16), jnp.float32)

    fwd = jax.jit(functools.partial(encoder_forward, num_heads=num_heads))
    out = fwd(params, x)
    jax.block_until_ready(out)

    assert out.shape == (2, 4, dim_size), out.shape
    assert bool(jnp.all(jnp.isfinite(out)))
    print("KERNEL_OK")
</pallas_src>

<mosaic_0001>
module attributes {stable_mosaic.version = 11 : i64} {
  func.func @_encoder_kernel(%arg0: memref<512x1xf32, #tpu.memory_space<vmem>>, %arg1: memref<1152x512xbf16, #tpu.memory_space<vmem>>, %arg2: memref<9x32xbf16, #tpu.memory_space<vmem>>, %arg3: memref<1x32xf32, #tpu.memory_space<vmem>>, %arg4: memref<288x128xbf16, #tpu.memory_space<vmem>>, %arg5: memref<288x64xbf16, #tpu.memory_space<vmem>>, %arg6: memref<1x64xf32, #tpu.memory_space<vmem>>, %arg7: memref<72x32xbf16, #tpu.memory_space<vmem>>, %arg8: memref<576x32xbf16, #tpu.memory_space<vmem>>, %arg9: memref<1x32xf32, #tpu.memory_space<vmem>>, %arg10: memref<8x32xf32, #tpu.memory_space<vmem>>, %arg11: memref<8x8xf32, #tpu.memory_space<vmem>>, %arg12: memref<3x32x96xbf16, #tpu.memory_space<vmem>>, %arg13: memref<3x1x96xf32, #tpu.memory_space<vmem>>, %arg14: memref<3x32x32xbf16, #tpu.memory_space<vmem>>, %arg15: memref<3x1x32xf32, #tpu.memory_space<vmem>>, %arg16: memref<3x32x128xbf16, #tpu.memory_space<vmem>>, %arg17: memref<3x1x128xf32, #tpu.memory_space<vmem>>, %arg18: memref<3x128x32xbf16, #tpu.memory_space<vmem>>, %arg19: memref<3x1x32xf32, #tpu.memory_space<vmem>>, %arg20: memref<3x1x32xf32, #tpu.memory_space<vmem>>, %arg21: memref<3x1x32xf32, #tpu.memory_space<vmem>>, %arg22: memref<3x1x32xf32, #tpu.memory_space<vmem>>, %arg23: memref<3x1x32xf32, #tpu.memory_space<vmem>>, %arg24: memref<8x32xf32, #tpu.memory_space<vmem>>) attributes {dimension_semantics = [], scalar_prefetch = 0 : i64, scratch_operands = 0 : i64, tpu.core_type = #tpu.core_type<tc>} {
    %c0 = arith.constant 0 : index
    %c0_0 = arith.constant 0 : index
    %0 = vector.load %arg0[%c0, %c0_0] : memref<512x1xf32, #tpu.memory_space<vmem>>, vector<512x1xf32>
    %1 = arith.truncf %0 : vector<512x1xf32> to vector<512x1xbf16>
    %c0_1 = arith.constant 0 : index
    %c0_2 = arith.constant 0 : index
    %2 = vector.load %arg3[%c0_1, %c0_2] : memref<1x32xf32, #tpu.memory_space<vmem>>, vector<1x32xf32>
    %c0_3 = arith.constant 0 : index
    %c0_4 = arith.constant 0 : index
    %3 = vector.load %arg1[%c0_3, %c0_4] : memref<1152x512xbf16, #tpu.memory_space<vmem>>, vector<128x512xbf16>
    %cst = arith.constant dense<0.000000e+00> : vector<128x1xf32>
    %4 = tpu.matmul %3, %1, %cst {dimension_numbers = #tpu.dot_dimension_numbers<[1], [0], [0], [1], [0, 0, 1, 1], [], []>} : vector<128x512xbf16>, vector<512x1xbf16>, vector<128x1xf32> -> vector<128x1xf32>
    %c0_5 = arith.constant 0 : index
    %c0_6 = arith.constant 0 : index
    %5 = vector.load %arg2[%c0_5, %c0_6] : memref<9x32xbf16, #tpu.memory_space<vmem>>, vector<1x32xbf16>
    %6 = arith.extf %5 : vector<1x32xbf16> to vector<1x32xf32>
    %7 = vector.broadcast %4 : vector<128x1xf32> to vector<128x32xf32>
    %8 = vector.broadcast %6 : vector<1x32xf32> to vector<128x32xf32>
    %9 = arith.mulf %7, %8 : vector<128x32xf32>
    %10 = vector.broadcast %2 : vector<1x32xf32> to vector<128x32xf32>
    %11 = arith.addf %10, %9 : vector<128x32xf32>
    %c128 = arith.constant 128 : index
    %c0_7 = arith.constant 0 : index
    %12 = vector.load %arg1[%c128, %c0_7] : memref<1152x512xbf16, #tpu.memory_space<vmem>>, vector<128x512xbf16>
    %cst_8 = arith.constant dense<0.000000e+00> : vector<128x1xf32>
    %13 = tpu.matmul %12, %1, %cst_8 {dimension_numbers = #tpu.dot_dimension_numbers<[1], [0], [0], [1], [0, 0, 1, 1], [], []>} : vector<128x512xbf16>, vector<512x1xbf16>, vector<128x1xf32> -> vector<128x1xf32>
    %c1 = arith.constant 1 : index
    %c0_9 = arith.constant 0 : index
    %14 = vector.load %arg2[%c1, %c0_9] : memref<9x32xbf16, #tpu.memory_space<vmem>>, vector<1x32xbf16>
    %15 = arith.extf %14 : vector<1x32xbf16> to vector<1x32xf32>
    %16 = vector.broadcast %13 : vector<128x1xf32> to vector<128x32xf32>
    %17 = vector.broadcast %15 : vector<1x32xf32> to vector<128x32xf32>
    %18 = arith.mulf %16, %17 : vector<128x32xf32>
    %19 = arith.addf %11, %18 : vector<128x32xf32>
    %c256 = arith.constant 256 : index
    %c0_10 = arith.constant 0 : index
    %20 = vector.load %arg1[%c256, %c0_10] : memref<1152x512xbf16, #tpu.memory_space<vmem>>, vector<128x512xbf16>
    %cst_11 = arith.constant dense<0.000000e+00> : vector<128x1xf32>
    %21 = tpu.matmul %20, %1, %cst_11 {dimension_numbers = #tpu.dot_dimension_numbers<[1], [0], [0], [1], [0, 0, 1, 1], [], []>} : vector<128x512xbf16>, vector<512x1xbf16>, vector<128x1xf32> -> vector<128x1xf32>
    %c2 = arith.constant 2 : index
    %c0_12 = arith.constant 0 : index
    %22 = vector.load %arg2[%c2, %c0_12] : memref<9x32xbf16, #tpu.memory_space<vmem>>, vector<1x32xbf16>
    %23 = arith.extf %22 : vector<1x32xbf16> to vector<1x32xf32>
    %24 = vector.broadcast %21 : vector<128x1xf32> to vector<128x32xf32>
    %25 = vector.broadcast %23 : vector<1x32xf32> to vector<128x32xf32>
    %26 = arith.mulf %24, %25 : vector<128x32xf32>
    %27 = arith.addf %19, %26 : vector<128x32xf32>
    %c384 = arith.constant 384 : index
    %c0_13 = arith.constant 0 : index
    %28 = vector.load %arg1[%c384, %c0_13] : memref<1152x512xbf16, #tpu.memory_space<vmem>>, vector<128x512xbf16>
    %cst_14 = arith.constant dense<0.000000e+00> : vector<128x1xf32>
    %29 = tpu.matmul %28, %1, %cst_14 {dimension_numbers = #tpu.dot_dimension_numbers<[1], [0], [0], [1], [0, 0, 1, 1], [], []>} : vector<128x512xbf16>, vector<512x1xbf16>, vector<128x1xf32> -> vector<128x1xf32>
    %c3 = arith.constant 3 : index
    %c0_15 = arith.constant 0 : index
    %30 = vector.load %arg2[%c3, %c0_15] : memref<9x32xbf16, #tpu.memory_space<vmem>>, vector<1x32xbf16>
    %31 = arith.extf %30 : vector<1x32xbf16> to vector<1x32xf32>
    %32 = vector.broadcast %29 : vector<128x1xf32> to vector<128x32xf32>
    %33 = vector.broadcast %31 : vector<1x32xf32> to vector<128x32xf32>
    %34 = arith.mulf %32, %33 : vector<128x32xf32>
    %35 = arith.addf %27, %34 : vector<128x32xf32>
    %c512 = arith.constant 512 : index
    %c0_16 = arith.constant 0 : index
    %36 = vector.load %arg1[%c512, %c0_16] : memref<1152x512xbf16, #tpu.memory_space<vmem>>, vector<128x512xbf16>
    %cst_17 = arith.constant dense<0.000000e+00> : vector<128x1xf32>
    %37 = tpu.matmul %36, %1, %cst_17 {dimension_numbers = #tpu.dot_dimension_numbers<[1], [0], [0], [1], [0, 0, 1, 1], [], []>} : vector<128x512xbf16>, vector<512x1xbf16>, vector<128x1xf32> -> vector<128x1xf32>
    %c4 = arith.constant 4 : index
    %c0_18 = arith.constant 0 : index
    %38 = vector.load %arg2[%c4, %c0_18] : memref<9x32xbf16, #tpu.memory_space<vmem>>, vector<1x32xbf16>
    %39 = arith.extf %38 : vector<1x32xbf16> to vector<1x32xf32>
    %40 = vector.broadcast %37 : vector<128x1xf32> to vector<128x32xf32>
    %41 = vector.broadcast %39 : vector<1x32xf32> to vector<128x32xf32>
    %42 = arith.mulf %40, %41 : vector<128x32xf32>
    %43 = arith.addf %35, %42 : vector<128x32xf32>
    %c640 = arith.constant 640 : index
    %c0_19 = arith.constant 0 : index
    %44 = vector.load %arg1[%c640, %c0_19] : memref<1152x512xbf16, #tpu.memory_space<vmem>>, vector<128x512xbf16>
    %cst_20 = arith.constant dense<0.000000e+00> : vector<128x1xf32>
    %45 = tpu.matmul %44, %1, %cst_20 {dimension_numbers = #tpu.dot_dimension_numbers<[1], [0], [0], [1], [0, 0, 1, 1], [], []>} : vector<128x512xbf16>, vector<512x1xbf16>, vector<128x1xf32> -> vector<128x1xf32>
    %c5 = arith.constant 5 : index
    %c0_21 = arith.constant 0 : index
    %46 = vector.load %arg2[%c5, %c0_21] : memref<9x32xbf16, #tpu.memory_space<vmem>>, vector<1x32xbf16>
    %47 = arith.extf %46 : vector<1x32xbf16> to vector<1x32xf32>
    %48 = vector.broadcast %45 : vector<128x1xf32> to vector<128x32xf32>
    %49 = vector.broadcast %47 : vector<1x32xf32> to vector<128x32xf32>
    %50 = arith.mulf %48, %49 : vector<128x32xf32>
    %51 = arith.addf %43, %50 : vector<128x32xf32>
    %c768 = arith.constant 768 : index
    %c0_22 = arith.constant 0 : index
    %52 = vector.load %arg1[%c768, %c0_22] : memref<1152x512xbf16, #tpu.memory_space<vmem>>, vector<128x512xbf16>
    %cst_23 = arith.constant dense<0.000000e+00> : vector<128x1xf32>
    %53 = tpu.matmul %52, %1, %cst_23 {dimension_numbers = #tpu.dot_dimension_numbers<[1], [0], [0], [1], [0, 0, 1, 1], [], []>} : vector<128x512xbf16>, vector<512x1xbf16>, vector<128x1xf32> -> vector<128x1xf32>
    %c6 = arith.constant 6 : index
    %c0_24 = arith.constant 0 : index
    %54 = vector.load %arg2[%c6, %c0_24] : memref<9x32xbf16, #tpu.memory_space<vmem>>, vector<1x32xbf16>
    %55 = arith.extf %54 : vector<1x32xbf16> to vector<1x32xf32>
    %56 = vector.broadcast %53 : vector<128x1xf32> to vector<128x32xf32>
    %57 = vector.broadcast %55 : vector<1x32xf32> to vector<128x32xf32>
    %58 = arith.mulf %56, %57 : vector<128x32xf32>
    %59 = arith.addf %51, %58 : vector<128x32xf32>
    %c896 = arith.constant 896 : index
    %c0_25 = arith.constant 0 : index
    %60 = vector.load %arg1[%c896, %c0_25] : memref<1152x512xbf16, #tpu.memory_space<vmem>>, vector<128x512xbf16>
    %cst_26 = arith.constant dense<0.000000e+00> : vector<128x1xf32>
    %61 = tpu.matmul %60, %1, %cst_26 {dimension_numbers = #tpu.dot_dimension_numbers<[1], [0], [0], [1], [0, 0, 1, 1], [], []>} : vector<128x512xbf16>, vector<512x1xbf16>, vector<128x1xf32> -> vector<128x1xf32>
    %c7 = arith.constant 7 : index
    %c0_27 = arith.constant 0 : index
    %62 = vector.load %arg2[%c7, %c0_27] : memref<9x32xbf16, #tpu.memory_space<vmem>>, vector<1x32xbf16>
    %63 = arith.extf %62 : vector<1x32xbf16> to vector<1x32xf32>
    %64 = vector.broadcast %61 : vector<128x1xf32> to vector<128x32xf32>
    %65 = vector.broadcast %63 : vector<1x32xf32> to vector<128x32xf32>
    %66 = arith.mulf %64, %65 : vector<128x32xf32>
    %67 = arith.addf %59, %66 : vector<128x32xf32>
    %c1024 = arith.constant 1024 : index
    %c0_28 = arith.constant 0 : index
    %68 = vector.load %arg1[%c1024, %c0_28] : memref<1152x512xbf16, #tpu.memory_space<vmem>>, vector<128x512xbf16>
    %cst_29 = arith.constant dense<0.000000e+00> : vector<128x1xf32>
    %69 = tpu.matmul %68, %1, %cst_29 {dimension_numbers = #tpu.dot_dimension_numbers<[1], [0], [0], [1], [0, 0, 1, 1], [], []>} : vector<128x512xbf16>, vector<512x1xbf16>, vector<128x1xf32> -> vector<128x1xf32>
    %c8 = arith.constant 8 : index
    %c0_30 = arith.constant 0 : index
    %70 = vector.load %arg2[%c8, %c0_30] : memref<9x32xbf16, #tpu.memory_space<vmem>>, vector<1x32xbf16>
    %71 = arith.extf %70 : vector<1x32xbf16> to vector<1x32xf32>
    %72 = vector.broadcast %69 : vector<128x1xf32> to vector<128x32xf32>
    %73 = vector.broadcast %71 : vector<1x32xf32> to vector<128x32xf32>
    %74 = arith.mulf %72, %73 : vector<128x32xf32>
    %75 = arith.addf %67, %74 : vector<128x32xf32>
    %cst_31 = arith.constant 0.000000e+00 : f32
    %76 = vector.broadcast %cst_31 : f32 to vector<128x32xf32>
    %77 = arith.maximumf %75, %76 : vector<128x32xf32>
    %78 = arith.truncf %77 : vector<128x32xf32> to vector<128x32xbf16>
    %c0_32 = arith.constant 0 : index
    %c0_33 = arith.constant 0 : index
    %79 = vector.load %arg6[%c0_32, %c0_33] : memref<1x64xf32, #tpu.memory_space<vmem>>, vector<1x64xf32>
    %c0_34 = arith.constant 0 : index
    %c0_35 = arith.constant 0 : index
    %80 = vector.load %arg4[%c0_34, %c0_35] : memref<288x128xbf16, #tpu.memory_space<vmem>>, vector<288x128xbf16>
    %cst_36 = arith.constant dense<0.000000e+00> : vector<288x32xf32>
    %81 = tpu.matmul %80, %78, %cst_36 {dimension_numbers = #tpu.dot_dimension_numbers<[1], [0], [0], [1], [0, 0, 1, 1], [], []>} : vector<288x128xbf16>, vector<128x32xbf16>, vector<288x32xf32> -> vector<288x32xf32>
    %82 = vector.extract_strided_slice %81 {offsets = [0, 0], sizes = [32, 32], strides = [1, 1]} : vector<288x32xf32> to vector<32x32xf32>
    %83 = arith.truncf %82 : vector<32x32xf32> to vector<32x32xbf16>
    %c0_37 = arith.constant 0 : index
    %c0_38 = arith.constant 0 : index
    %84 = vector.load %arg5[%c0_37, %c0_38] : memref<288x64xbf16, #tpu.memory_space<vmem>>, vector<32x64xbf16>
    %cst_39 = arith.constant dense<0.000000e+00> : vector<32x64xf32>
    %85 = tpu.matmul %83, %84, %cst_39 {dimension_numbers = #tpu.dot_dimension_numbers<[1], [0], [0], [1], [0, 0, 1, 1], [], []>} : vector<32x32xbf16>, vector<32x64xbf16>, vector<32x64xf32> -> vector<32x64xf32>
    %86 = vector.broadcast %79 : vector<1x64xf32> to vector<32x64xf32>
    %87 = arith.addf %86, %85 : vector<32x64xf32>
    %88 = vector.extract_strided_slice %81 {offsets = [32, 0], sizes = [32, 32], strides = [1, 1]} : vector<288x32xf32> to vector<32x32xf32>
    %89 = arith.truncf %88 : vector<32x32xf32> to vector<32x32xbf16>
    %c32 = arith.constant 32 : index
    %c0_40 = arith.constant 0 : index
    %90 = vector.load %arg5[%c32, %c0_40] : memref<288x64xbf16, #tpu.memory_space<vmem>>, vector<32x64xbf16>
    %cst_41 = arith.constant dense<0.000000e+00> : vector<32x64xf32>
    %91 = tpu.matmul %89, %90, %cst_41 {dimension_numbers = #tpu.dot_dimension_numbers<[1], [0], [0], [1], [0, 0, 1, 1], [], []>} : vector<32x32xbf16>, vector<32x64xbf16>, vector<32x64xf32> -> vector<32x64xf32>
    %92 = arith.addf %87, %91 : vector<32x64xf32>
    %93 = vector.extract_strided_slice %81 {offsets = [64, 0], sizes = [32, 32], strides = [1, 1]} : vector<288x32xf32> to vector<32x32xf32>
    %94 = arith.truncf %93 : vector<32x32xf32> to vector<32x32xbf16>
    %c64 = arith.constant 64 : index
    %c0_42 = arith.constant 0 : index
    %95 = vector.load %arg5[%c64, %c0_42] : memref<288x64xbf16, #tpu.memory_space<vmem>>, vector<32x64xbf16>
    %cst_43 = arith.constant dense<0.000000e+00> : vector<32x64xf32>
    %96 = tpu.matmul %94, %95, %cst_43 {dimension_numbers = #tpu.dot_dimension_numbers<[1], [0], [0], [1], [0, 0, 1, 1], [], []>} : vector<32x32xbf16>, vector<32x64xbf16>, vector<32x64xf32> -> vector<32x64xf32>
    %97 = arith.addf %92, %96 : vector<32x64xf32>
    %98 = vector.extract_strided_slice %81 {offsets = [96, 0], sizes = [32, 32], strides = [1, 1]} : vector<288x32xf32> to vector<32x32xf32>
    %99 = arith.truncf %98 : vector<32x32xf32> to vector<32x32xbf16>
    %c96 = arith.constant 96 : index
    %c0_44 = arith.constant 0 : index
    %100 = vector.load %arg5[%c96, %c0_44] : memref<288x64xbf16, #tpu.memory_space<vmem>>, vector<32x64xbf16>
    %cst_45 = arith.constant dense<0.000000e+00> : vector<32x64xf32>
    %101 = tpu.matmul %99, %100, %cst_45 {dimension_numbers = #tpu.dot_dimension_numbers<[1], [0], [0], [1], [0, 0, 1, 1], [], []>} : vector<32x32xbf16>, vector<32x64xbf16>, vector<32x64xf32> -> vector<32x64xf32>
    %102 = arith.addf %97, %101 : vector<32x64xf32>
    %103 = vector.extract_strided_slice %81 {offsets = [128, 0], sizes = [32, 32], strides = [1, 1]} : vector<288x32xf32> to vector<32x32xf32>
    %104 = arith.truncf %103 : vector<32x32xf32> to vector<32x32xbf16>
    %c128_46 = arith.constant 128 : index
    %c0_47 = arith.constant 0 : index
    %105 = vector.load %arg5[%c128_46, %c0_47] : memref<288x64xbf16, #tpu.memory_space<vmem>>, vector<32x64xbf16>
    %cst_48 = arith.constant dense<0.000000e+00> : vector<32x64xf32>
    %106 = tpu.matmul %104, %105, %cst_48 {dimension_numbers = #tpu.dot_dimension_numbers<[1], [0], [0], [1], [0, 0, 1, 1], [], []>} : vector<32x32xbf16>, vector<32x64xbf16>, vector<32x64xf32> -> vector<32x64xf32>
    %107 = arith.addf %102, %106 : vector<32x64xf32>
    %108 = vector.extract_strided_slice %81 {offsets = [160, 0], sizes = [32, 32], strides = [1, 1]} : vector<288x32xf32> to vector<32x32xf32>
    %109 = arith.truncf %108 : vector<32x32xf32> to vector<32x32xbf16>
    %c160 = arith.constant 160 : index
    %c0_49 = arith.constant 0 : index
    %110 = vector.load %arg5[%c160, %c0_49] : memref<288x64xbf16, #tpu.memory_space<vmem>>, vector<32x64xbf16>
    %cst_50 = arith.constant dense<0.000000e+00> : vector<32x64xf32>
    %111 = tpu.matmul %109, %110, %cst_50 {dimension_numbers = #tpu.dot_dimension_numbers<[1], [0], [0], [1], [0, 0, 1, 1], [], []>} : vector<32x32xbf16>, vector<32x64xbf16>, vector<32x64xf32> -> vector<32x64xf32>
    %112 = arith.addf %107, %111 : vector<32x64xf32>
    %113 = vector.extract_strided_slice %81 {offsets = [192, 0], sizes = [32, 32], strides = [1, 1]} : vector<288x32xf32> to vector<32x32xf32>
    %114 = arith.truncf %113 : vector<32x32xf32> to vector<32x32xbf16>
    %c192 = arith.constant 192 : index
    %c0_51 = arith.constant 0 : index
    %115 = vector.load %arg5[%c192, %c0_51] : memref<288x64xbf16, #tpu.memory_space<vmem>>, vector<32x64xbf16>
    %cst_52 = arith.constant dense<0.000000e+00> : vector<32x64xf32>
    %116 = tpu.matmul %114, %115, %cst_52 {dimension_numbers = #tpu.dot_dimension_numbers<[1], [0], [0], [1], [0, 0, 1, 1], [], []>} : vector<32x32xbf16>, vector<32x64xbf16>, vector<32x64xf32> -> vector<32x64xf32>
    %117 = arith.addf %112, %116 : vector<32x64xf32>
    %118 = vector.extract_strided_slice %81 {offsets = [224, 0], sizes = [32, 32], strides = [1, 1]} : vector<288x32xf32> to vector<32x32xf32>
    %119 = arith.truncf %118 : vector<32x32xf32> to vector<32x32xbf16>
    %c224 = arith.constant 224 : index
    %c0_53 = arith.constant 0 : index
    %120 = vector.load %arg5[%c224, %c0_53] : memref<288x64xbf16, #tpu.memory_space<vmem>>, vector<32x64xbf16>
    %cst_54 = arith.constant dense<0.000000e+00> : vector<32x64xf32>
    %121 = tpu.matmul %119, %120, %cst_54 {dimension_numbers = #tpu.dot_dimension_numbers<[1], [0], [0], [1], [0, 0, 1, 1], [], []>} : vector<32x32xbf16>, vector<32x64xbf16>, vector<32x64xf32> -> vector<32x64xf32>
    %122 = arith.addf %117, %121 : vector<32x64xf32>
    %123 = vector.extract_strided_slice %81 {offsets = [256, 0], sizes = [32, 32], strides = [1, 1]} : vector<288x32xf32> to vector<32x32xf32>
    %124 = arith.truncf %123 : vector<32x32xf32> to vector<32x32xbf16>
    %c256_55 = arith.constant 256 : index
    %c0_56 = arith.constant 0 : index
    %125 = vector.load %arg5[%c256_55, %c0_56] : memref<288x64xbf16, #tpu.memory_space<vmem>>, vector<32x64xbf16>
    %cst_57 = arith.constant dense<0.000000e+00> : vector<32x64xf32>
    %126 = tpu.matmul %124, %125, %cst_57 {dimension_numbers = #tpu.dot_dimension_numbers<[1], [0], [0], [1], [0, 0, 1, 1], [], []>} : vector<32x32xbf16>, vector<32x64xbf16>, vector<32x64xf32> -> vector<32x64xf32>
    %127 = arith.addf %122, %126 : vector<32x64xf32>
    %cst_58 = arith.constant 0.000000e+00 : f32
    %128 = vector.broadcast %cst_58 : f32 to vector<32x64xf32>
    %129 = arith.maximumf %127, %128 : vector<32x64xf32>
    %130 = arith.truncf %129 : vector<32x64xf32> to vector<32x64xbf16>
    %c0_59 = arith.constant 0 : index
    %c0_60 = arith.constant 0 : index
    %131 = vector.load %arg9[%c0_59, %c0_60] : memref<1x32xf32, #tpu.memory_space<vmem>>, vector<1x32xf32>
    %c0_61 = arith.constant 0 : index
    %c0_62 = arith.constant 0 : index
    %132 = vector.load %arg7[%c0_61, %c0_62] : memref<72x32xbf16, #tpu.memory_space<vmem>>, vector<72x32xbf16>
    %cst_63 = arith.constant dense<0.000000e+00> : vector<72x64xf32>
    %133 = tpu.matmul %132, %130, %cst_63 {dimension_numbers = #tpu.dot_dimension_numbers<[1], [0], [0], [1], [0, 0, 1, 1], [], []>} : vector<72x32xbf16>, vector<32x64xbf16>, vector<72x64xf32> -> vector<72x64xf32>
    %134 = vector.extract_strided_slice %133 {offsets = [0, 0], sizes = [8, 64], strides = [1, 1]} : vector<72x64xf32> to vector<8x64xf32>
    %135 = arith.truncf %134 : vector<8x64xf32> to vector<8x64xbf16>
    %c0_64 = arith.constant 0 : index
    %c0_65 = arith.constant 0 : index
    %136 = vector.load %arg8[%c0_64, %c0_65] : memref<576x32xbf16, #tpu.memory_space<vmem>>, vector<64x32xbf16>
    %cst_66 = arith.constant dense<0.000000e+00> : vector<8x32xf32>
    %137 = tpu.matmul %135, %136, %cst_66 {dimension_numbers = #tpu.dot_dimension_numbers<[1], [0], [0], [1], [0, 0, 1, 1], [], []>} : vector<8x64xbf16>, vector<64x32xbf16>, vector<8x32xf32> -> vector<8x32xf32>
    %138 = vector.broadcast %131 : vector<1x32xf32> to vector<8x32xf32>
    %139 = arith.addf %138, %137 : vector<8x32xf32>
    %140 = vector.extract_strided_slice %133 {offsets = [8, 0], sizes = [8, 64], strides = [1, 1]} : vector<72x64xf32> to vector<8x64xf32>
    %141 = arith.truncf %140 : vector<8x64xf32> to vector<8x64xbf16>
    %c64_67 = arith.constant 64 : index
    %c0_68 = arith.constant 0 : index
    %142 = vector.load %arg8[%c64_67, %c0_68] : memref<576x32xbf16, #tpu.memory_space<vmem>>, vector<64x32xbf16>
    %cst_69 = arith.constant dense<0.000000e+00> : vector<8x32xf32>
    %143 = tpu.matmul %141, %142, %cst_69 {dimension_numbers = #tpu.dot_dimension_numbers<[1], [0], [0], [1], [0, 0, 1, 1], [], []>} : vector<8x64xbf16>, vector<64x32xbf16>, vector<8x32xf32> -> vector<8x32xf32>
    %144 = arith.addf %139, %143 : vector<8x32xf32>
    %145 = vector.extract_strided_slice %133 {offsets = [16, 0], sizes = [8, 64], strides = [1, 1]} : vector<72x64xf32> to vector<8x64xf32>
    %146 = arith.truncf %145 : vector<8x64xf32> to vector<8x64xbf16>
    %c128_70 = arith.constant 128 : index
    %c0_71 = arith.constant 0 : index
    %147 = vector.load %arg8[%c128_70, %c0_71] : memref<576x32xbf16, #tpu.memory_space<vmem>>, vector<64x32xbf16>
    %cst_72 = arith.constant dense<0.000000e+00> : vector<8x32xf32>
    %148 = tpu.matmul %146, %147, %cst_72 {dimension_numbers = #tpu.dot_dimension_numbers<[1], [0], [0], [1], [0, 0, 1, 1], [], []>} : vector<8x64xbf16>, vector<64x32xbf16>, vector<8x32xf32> -> vector<8x32xf32>
    %149 = arith.addf %144, %148 : vector<8x32xf32>
    %150 = vector.extract_strided_slice %133 {offsets = [24, 0], sizes = [8, 64], strides = [1, 1]} : vector<72x64xf32> to vector<8x64xf32>
    %151 = arith.truncf %150 : vector<8x64xf32> to vector<8x64xbf16>
    %c192_73 = arith.constant 192 : index
    %c0_74 = arith.constant 0 : index
    %152 = vector.load %arg8[%c192_73, %c0_74] : memref<576x32xbf16, #tpu.memory_space<vmem>>, vector<64x32xbf16>
    %cst_75 = arith.constant dense<0.000000e+00> : vector<8x32xf32>
    %153 = tpu.matmul %151, %152, %cst_75 {dimension_numbers = #tpu.dot_dimension_numbers<[1], [0], [0], [1], [0, 0, 1, 1], [], []>} : vector<8x64xbf16>, vector<64x32xbf16>, vector<8x32xf32> -> vector<8x32xf32>
    %154 = arith.addf %149, %153 : vector<8x32xf32>
    %155 = vector.extract_strided_slice %133 {offsets = [32, 0], sizes = [8, 64], strides = [1, 1]} : vector<72x64xf32> to vector<8x64xf32>
    %156 = arith.truncf %155 : vector<8x64xf32> to vector<8x64xbf16>
    %c256_76 = arith.constant 256 : index
    %c0_77 = arith.constant 0 : index
    %157 = vector.load %arg8[%c256_76, %c0_77] : memref<576x32xbf16, #tpu.memory_space<vmem>>, vector<64x32xbf16>
    %cst_78 = arith.constant dense<0.000000e+00> : vector<8x32xf32>
    %158 = tpu.matmul %156, %157, %cst_78 {dimension_numbers = #tpu.dot_dimension_numbers<[1], [0], [0], [1], [0, 0, 1, 1], [], []>} : vector<8x64xbf16>, vector<64x32xbf16>, vector<8x32xf32> -> vector<8x32xf32>
    %159 = arith.addf %154, %158 : vector<8x32xf32>
    %160 = vector.extract_strided_slice %133 {offsets = [40, 0], sizes = [8, 64], strides = [1, 1]} : vector<72x64xf32> to vector<8x64xf32>
    %161 = arith.truncf %160 : vector<8x64xf32> to vector<8x64xbf16>
    %c320 = arith.constant 320 : index
    %c0_79 = arith.constant 0 : index
    %162 = vector.load %arg8[%c320, %c0_79] : memref<576x32xbf16, #tpu.memory_space<vmem>>, vector<64x32xbf16>
    %cst_80 = arith.constant dense<0.000000e+00> : vector<8x32xf32>
    %163 = tpu.matmul %161, %162, %cst_80 {dimension_numbers = #tpu.dot_dimension_numbers<[1], [0], [0], [1], [0, 0, 1, 1], [], []>} : vector<8x64xbf16>, vector<64x32xbf16>, vector<8x32xf32> -> vector<8x32xf32>
    %164 = arith.addf %159, %163 : vector<8x32xf32>
    %165 = vector.extract_strided_slice %133 {offsets = [48, 0], sizes = [8, 64], strides = [1, 1]} : vector<72x64xf32> to vector<8x64xf32>
    %166 = arith.truncf %165 : vector<8x64xf32> to vector<8x64xbf16>
    %c384_81 = arith.constant 384 : index
    %c0_82 = arith.constant 0 : index
    %167 = vector.load %arg8[%c384_81, %c0_82] : memref<576x32xbf16, #tpu.memory_space<vmem>>, vector<64x32xbf16>
    %cst_83 = arith.constant dense<0.000000e+00> : vector<8x32xf32>
    %168 = tpu.matmul %166, %167, %cst_83 {dimension_numbers = #tpu.dot_dimension_numbers<[1], [0], [0], [1], [0, 0, 1, 1], [], []>} : vector<8x64xbf16>, vector<64x32xbf16>, vector<8x32xf32> -> vector<8x32xf32>
    %169 = arith.addf %164, %168 : vector<8x32xf32>
    %170 = vector.extract_strided_slice %133 {offsets = [56, 0], sizes = [8, 64], strides = [1, 1]} : vector<72x64xf32> to vector<8x64xf32>
    %171 = arith.truncf %170 : vector<8x64xf32> to vector<8x64xbf16>
    %c448 = arith.constant 448 : index
    %c0_84 = arith.constant 0 : index
    %172 = vector.load %arg8[%c448, %c0_84] : memref<576x32xbf16, #tpu.memory_space<vmem>>, vector<64x32xbf16>
    %cst_85 = arith.constant dense<0.000000e+00> : vector<8x32xf32>
    %173 = tpu.matmul %171, %172, %cst_85 {dimension_numbers = #tpu.dot_dimension_numbers<[1], [0], [0], [1], [0, 0, 1, 1], [], []>} : vector<8x64xbf16>, vector<64x32xbf16>, vector<8x32xf32> -> vector<8x32xf32>
    %174 = arith.addf %169, %173 : vector<8x32xf32>
    %175 = vector.extract_strided_slice %133 {offsets = [64, 0], sizes = [8, 64], strides = [1, 1]} : vector<72x64xf32> to vector<8x64xf32>
    %176 = arith.truncf %175 : vector<8x64xf32> to vector<8x64xbf16>
    %c512_86 = arith.constant 512 : index
    %c0_87 = arith.constant 0 : index
    %177 = vector.load %arg8[%c512_86, %c0_87] : memref<576x32xbf16, #tpu.memory_space<vmem>>, vector<64x32xbf16>
    %cst_88 = arith.constant dense<0.000000e+00> : vector<8x32xf32>
    %178 = tpu.matmul %176, %177, %cst_88 {dimension_numbers = #tpu.dot_dimension_numbers<[1], [0], [0], [1], [0, 0, 1, 1], [], []>} : vector<8x64xbf16>, vector<64x32xbf16>, vector<8x32xf32> -> vector<8x32xf32>
    %179 = arith.addf %174, %178 : vector<8x32xf32>
    %cst_89 = arith.constant 0.000000e+00 : f32
    %180 = vector.broadcast %cst_89 : f32 to vector<8x32xf32>
    %181 = arith.maximumf %179, %180 : vector<8x32xf32>
    %c0_90 = arith.constant 0 : index
    %c0_91 = arith.constant 0 : index
    %182 = vector.load %arg10[%c0_90, %c0_91] : memref<8x32xf32, #tpu.memory_space<vmem>>, vector<8x32xf32>
    %183 = arith.addf %181, %182 : vector<8x32xf32>
    %c0_92 = arith.constant 0 : index
    %c0_93 = arith.constant 0 : index
    %184 = vector.load %arg11[%c0_92, %c0_93] : memref<8x8xf32, #tpu.memory_space<vmem>>, vector<8x8xf32>
    %185 = tpu.iota {dimensions = array<i32: 1>} : vector<1x32xi32>
    %c0_i32 = arith.constant 0 : i32
    %186 = vector.broadcast %c0_i32 : i32 to vector<1x32xi32>
    %187 = arith.cmpi sge, %185, %186 : vector<1x32xi32>
    %c8_i32 = arith.constant 8 : i32
    %188 = vector.broadcast %c8_i32 : i32 to vector<1x32xi32>
    %189 = arith.cmpi slt, %185, %188 : vector<1x32xi32>
    %190 = arith.andi %187, %189 : vector<1x32xi1>
    %191 = arith.extui %190 : vector<1x32xi1> to vector<1x32xi32>
    %192 = arith.sitofp %191 : vector<1x32xi32> to vector<1x32xf32>
    %c8_i32_94 = arith.constant 8 : i32
    %193 = vector.broadcast %c8_i32_94 : i32 to vector<1x32xi32>
    %194 = arith.cmpi sge, %185, %193 : vector<1x32xi32>
    %c16_i32 = arith.constant 16 : i32
    %195 = vector.broadcast %c16_i32 : i32 to vector<1x32xi32>
    %196 = arith.cmpi slt, %185, %195 : vector<1x32xi32>
    %197 = arith.andi %194, %196 : vector<1x32xi1>
    %198 = arith.extui %197 : vector<1x32xi1> to vector<1x32xi32>
    %199 = arith.sitofp %198 : vector<1x32xi32> to vector<1x32xf32>
    %c16_i32_95 = arith.constant 16 : i32
    %200 = vector.broadcast %c16_i32_95 : i32 to vector<1x32xi32>
    %201 = arith.cmpi sge, %185, %200 : vector<1x32xi32>
    %c24_i32 = arith.constant 24 : i32
    %202 = vector.broadcast %c24_i32 : i32 to vector<1x32xi32>
    %203 = arith.cmpi slt, %185, %202 : vector<1x32xi32>
    %204 = arith.andi %201, %203 : vector<1x32xi1>
    %205 = arith.extui %204 : vector<1x32xi1> to vector<1x32xi32>
    %206 = arith.sitofp %205 : vector<1x32xi32> to vector<1x32xf32>
    %c24_i32_96 = arith.constant 24 : i32
    %207 = vector.broadcast %c24_i32_96 : i32 to vector<1x32xi32>
    %208 = arith.cmpi sge, %185, %207 : vector<1x32xi32>
    %c32_i32 = arith.constant 32 : i32
    %209 = vector.broadcast %c32_i32 : i32 to vector<1x32xi32>
    %210 = arith.cmpi slt, %185, %209 : vector<1x32xi32>
    %211 = arith.andi %208, %210 : vector<1x32xi1>
    %212 = arith.extui %211 : vector<1x32xi1> to vector<1x32xi32>
    %213 = arith.sitofp %212 : vector<1x32xi32> to vector<1x32xf32>
    %214 = arith.truncf %183 : vector<8x32xf32> to vector<8x32xbf16>
    %c0_97 = arith.constant 0 : index
    %c0_98 = arith.constant 0 : index
    %c0_99 = arith.constant 0 : index
    %215 = vector.load %arg12[%c0_97, %c0_98, %c0_99] : memref<3x32x96xbf16, #tpu.memory_space<vmem>>, vector<1x32x96xbf16>
    %216 = vector.shape_cast %215 : vector<1x32x96xbf16> to vector<32x96xbf16>
    %cst_100 = arith.constant dense<0.000000e+00> : vector<8x96xf32>
    %217 = tpu.matmul %214, %216, %cst_100 {dimension_numbers = #tpu.dot_dimension_numbers<[1], [0], [0], [1], [0, 0, 1, 1], [], []>} : vector<8x32xbf16>, vector<32x96xbf16>, vector<8x96xf32> -> vector<8x96xf32>
    %c0_101 = arith.constant 0 : index
    %c0_102 = arith.constant 0 : index
    %c0_103 = arith.constant 0 : index
    %218 = vector.load %arg13[%c0_101, %c0_102, %c0_103] : memref<3x1x96xf32, #tpu.memory_space<vmem>>, vector<1x1x96xf32>
    %219 = vector.shape_cast %218 : vector<1x1x96xf32> to vector<1x96xf32>
    %220 = vector.broadcast %219 : vector<1x96xf32> to vector<8x96xf32>
    %221 = arith.addf %217, %220 : vector<8x96xf32>
    %222 = vector.extract_strided_slice %221 {offsets = [0, 0], sizes = [8, 32], strides = [1, 1]} : vector<8x96xf32> to vector<8x32xf32>
    %223 = vector.extract_strided_slice %221 {offsets = [0, 32], sizes = [8, 32], strides = [1, 1]} : vector<8x96xf32> to vector<8x32xf32>
    %224 = arith.truncf %223 : vector<8x32xf32> to vector<8x32xbf16>
    %225 = vector.extract_strided_slice %221 {offsets = [0, 64], sizes = [8, 32], strides = [1, 1]} : vector<8x96xf32> to vector<8x32xf32>
    %226 = arith.truncf %225 : vector<8x32xf32> to vector<8x32xbf16>
    %cst_104 = arith.constant 0.000000e+00 : f32
    %227 = vector.broadcast %cst_104 : f32 to vector<8x32xf32>
    %228 = vector.broadcast %192 : vector<1x32xf32> to vector<8x32xf32>
    %229 = arith.mulf %222, %228 : vector<8x32xf32>
    %230 = arith.truncf %229 : vector<8x32xf32> to vector<8x32xbf16>
    %cst_105 = arith.constant dense<0.000000e+00> : vector<8x8xf32>
    %231 = tpu.matmul %230, %224, %cst_105 {dimension_numbers = #tpu.dot_dimension_numbers<[1], [1], [0], [0], [0, 0, 1, 0], [], []>} : vector<8x32xbf16>, vector<8x32xbf16>, vector<8x8xf32> -> vector<8x8xf32>
    %232 = arith.addf %231, %184 : vector<8x8xf32>
    %cst_106 = arith.constant dense<0xFF800000> : vector<8xf32>
    %233 = vector.multi_reduction <maximumf>, %232, %cst_106 [1] : vector<8x8xf32> to vector<8xf32>
    %234 = vector.shape_cast %233 : vector<8xf32> to vector<8x1xf32>
    %235 = vector.broadcast %234 : vector<8x1xf32> to vector<8x8xf32>
    %236 = arith.subf %232, %235 : vector<8x8xf32>
    %237 = math.exp %236 : vector<8x8xf32>
    %cst_107 = arith.constant dense<0.000000e+00> : vector<8xf32>
    %238 = vector.multi_reduction <add>, %237, %cst_107 [1] : vector<8x8xf32> to vector<8xf32>
    %239 = vector.shape_cast %238 : vector<8xf32> to vector<8x1xf32>
    %240 = tpu.reciprocal %239 {approx = true} : vector<8x1xf32> -> vector<8x1xf32>
    %241 = vector.broadcast %240 : vector<8x1xf32> to vector<8x8xf32>
    %242 = arith.mulf %237, %241 : vector<8x8xf32>
    %243 = arith.truncf %242 : vector<8x8xf32> to vector<8x8xbf16>
    %cst_108 = arith.constant dense<0.000000e+00> : vector<8x32xf32>
    %244 = tpu.matmul %243, %226, %cst_108 {dimension_numbers = #tpu.dot_dimension_numbers<[1], [0], [0], [1], [0, 0, 1, 1], [], []>} : vector<8x8xbf16>, vector<8x32xbf16>, vector<8x32xf32> -> vector<8x32xf32>
    %245 = vector.broadcast %192 : vector<1x32xf32> to vector<8x32xf32>
    %246 = arith.mulf %244, %245 : vector<8x32xf32>
    %247 = arith.addf %227, %246 : vector<8x32xf32>
    %248 = vector.broadcast %199 : vector<1x32xf32> to vector<8x32xf32>
    %249 = arith.mulf %222, %248 : vector<8x32xf32>
    %250 = arith.truncf %249 : vector<8x32xf32> to vector<8x32xbf16>
    %cst_109 = arith.constant dense<0.000000e+00> : vector<8x8xf32>
    %251 = tpu.matmul %250, %224, %cst_109 {dimension_numbers = #tpu.dot_dimension_numbers<[1], [1], [0], [0], [0, 0, 1, 0], [], []>} : vector<8x32xbf16>, vector<8x32xbf16>, vector<8x8xf32> -> vector<8x8xf32>
    %252 = arith.addf %251, %184 : vector<8x8xf32>
    %cst_110 = arith.constant dense<0xFF800000> : vector<8xf32>
    %253 = vector.multi_reduction <maximumf>, %252, %cst_110 [1] : vector<8x8xf32> to vector<8xf32>
    %254 = vector.shape_cast %253 : vector<8xf32> to vector<8x1xf32>
    %255 = vector.broadcast %254 : vector<8x1xf32> to vector<8x8xf32>
    %256 = arith.subf %252, %255 : vector<8x8xf32>
    %257 = math.exp %256 : vector<8x8xf32>
    %cst_111 = arith.constant dense<0.000000e+00> : vector<8xf32>
    %258 = vector.multi_reduction <add>, %257, %cst_111 [1] : vector<8x8xf32> to vector<8xf32>
    %259 = vector.shape_cast %258 : vector<8xf32> to vector<8x1xf32>
    %260 = tpu.reciprocal %259 {approx = true} : vector<8x1xf32> -> vector<8x1xf32>
    %261 = vector.broadcast %260 : vector<8x1xf32> to vector<8x8xf32>
    %262 = arith.mulf %257, %261 : vector<8x8xf32>
    %263 = arith.truncf %262 : vector<8x8xf32> to vector<8x8xbf16>
    %cst_112 = arith.constant dense<0.000000e+00> : vector<8x32xf32>
    %264 = tpu.matmul %263, %226, %cst_112 {dimension_numbers = #tpu.dot_dimension_numbers<[1], [0], [0], [1], [0, 0, 1, 1], [], []>} : vector<8x8xbf16>, vector<8x32xbf16>, vector<8x32xf32> -> vector<8x32xf32>
    %265 = vector.broadcast %199 : vector<1x32xf32> to vector<8x32xf32>
    %266 = arith.mulf %264, %265 : vector<8x32xf32>
    %267 = arith.addf %247, %266 : vector<8x32xf32>
    %268 = vector.broadcast %206 : vector<1x32xf32> to vector<8x32xf32>
    %269 = arith.mulf %222, %268 : vector<8x32xf32>
    %270 = arith.truncf %269 : vector<8x32xf32> to vector<8x32xbf16>
    %cst_113 = arith.constant dense<0.000000e+00> : vector<8x8xf32>
    %271 = tpu.matmul %270, %224, %cst_113 {dimension_numbers = #tpu.dot_dimension_numbers<[1], [1], [0], [0], [0, 0, 1, 0], [], []>} : vector<8x32xbf16>, vector<8x32xbf16>, vector<8x8xf32> -> vector<8x8xf32>
    %272 = arith.addf %271, %184 : vector<8x8xf32>
    %cst_114 = arith.constant dense<0xFF800000> : vector<8xf32>
    %273 = vector.multi_reduction <maximumf>, %272, %cst_114 [1] : vector<8x8xf32> to vector<8xf32>
    %274 = vector.shape_cast %273 : vector<8xf32> to vector<8x1xf32>
    %275 = vector.broadcast %274 : vector<8x1xf32> to vector<8x8xf32>
    %276 = arith.subf %272, %275 : vector<8x8xf32>
    %277 = math.exp %276 : vector<8x8xf32>
    %cst_115 = arith.constant dense<0.000000e+00> : vector<8xf32>
    %278 = vector.multi_reduction <add>, %277, %cst_115 [1] : vector<8x8xf32> to vector<8xf32>
    %279 = vector.shape_cast %278 : vector<8xf32> to vector<8x1xf32>
    %280 = tpu.reciprocal %279 {approx = true} : vector<8x1xf32> -> vector<8x1xf32>
    %281 = vector.broadcast %280 : vector<8x1xf32> to vector<8x8xf32>
    %282 = arith.mulf %277, %281 : vector<8x8xf32>
    %283 = arith.truncf %282 : vector<8x8xf32> to vector<8x8xbf16>
    %cst_116 = arith.constant dense<0.000000e+00> : vector<8x32xf32>
    %284 = tpu.matmul %283, %226, %cst_116 {dimension_numbers = #tpu.dot_dimension_numbers<[1], [0], [0], [1], [0, 0, 1, 1], [], []>} : vector<8x8xbf16>, vector<8x32xbf16>, vector<8x32xf32> -> vector<8x32xf32>
    %285 = vector.broadcast %206 : vector<1x32xf32> to vector<8x32xf32>
    %286 = arith.mulf %284, %285 : vector<8x32xf32>
    %287 = arith.addf %267, %286 : vector<8x32xf32>
    %288 = vector.broadcast %213 : vector<1x32xf32> to vector<8x32xf32>
    %289 = arith.mulf %222, %288 : vector<8x32xf32>
    %290 = arith.truncf %289 : vector<8x32xf32> to vector<8x32xbf16>
    %cst_117 = arith.constant dense<0.000000e+00> : vector<8x8xf32>
    %291 = tpu.matmul %290, %224, %cst_117 {dimension_numbers = #tpu.dot_dimension_numbers<[1], [1], [0], [0], [0, 0, 1, 0], [], []>} : vector<8x32xbf16>, vector<8x32xbf16>, vector<8x8xf32> -> vector<8x8xf32>
    %292 = arith.addf %291, %184 : vector<8x8xf32>
    %cst_118 = arith.constant dense<0xFF800000> : vector<8xf32>
    %293 = vector.multi_reduction <maximumf>, %292, %cst_118 [1] : vector<8x8xf32> to vector<8xf32>
    %294 = vector.shape_cast %293 : vector<8xf32> to vector<8x1xf32>
    %295 = vector.broadcast %294 : vector<8x1xf32> to vector<8x8xf32>
    %296 = arith.subf %292, %295 : vector<8x8xf32>
    %297 = math.exp %296 : vector<8x8xf32>
    %cst_119 = arith.constant dense<0.000000e+00> : vector<8xf32>
    %298 = vector.multi_reduction <add>, %297, %cst_119 [1] : vector<8x8xf32> to vector<8xf32>
    %299 = vector.shape_cast %298 : vector<8xf32> to vector<8x1xf32>
    %300 = tpu.reciprocal %299 {approx = true} : vector<8x1xf32> -> vector<8x1xf32>
    %301 = vector.broadcast %300 : vector<8x1xf32> to vector<8x8xf32>
    %302 = arith.mulf %297, %301 : vector<8x8xf32>
    %303 = arith.truncf %302 : vector<8x8xf32> to vector<8x8xbf16>
    %cst_120 = arith.constant dense<0.000000e+00> : vector<8x32xf32>
    %304 = tpu.matmul %303, %226, %cst_120 {dimension_numbers = #tpu.dot_dimension_numbers<[1], [0], [0], [1], [0, 0, 1, 1], [], []>} : vector<8x8xbf16>, vector<8x32xbf16>, vector<8x32xf32> -> vector<8x32xf32>
    %305 = vector.broadcast %213 : vector<1x32xf32> to vector<8x32xf32>
    %306 = arith.mulf %304, %305 : vector<8x32xf32>
    %307 = arith.addf %287, %306 : vector<8x32xf32>
    %308 = arith.truncf %307 : vector<8x32xf32> to vector<8x32xbf16>
    %c0_121 = arith.constant 0 : index
    %c0_122 = arith.constant 0 : index
    %c0_123 = arith.constant 0 : index
    %309 = vector.load %arg14[%c0_121, %c0_122, %c0_123] : memref<3x32x32xbf16, #tpu.memory_space<vmem>>, vector<1x32x32xbf16>
    %310 = vector.shape_cast %309 : vector<1x32x32xbf16> to vector<32x32xbf16>
    %cst_124 = arith.constant dense<0.000000e+00> : vector<8x32xf32>
    %311 = tpu.matmul %308, %310, %cst_124 {dimension_numbers = #tpu.dot_dimension_numbers<[1], [0], [0], [1], [0, 0, 1, 1], [], []>} : vector<8x32xbf16>, vector<32x32xbf16>, vector<8x32xf32> -> vector<8x32xf32>
    %c0_125 = arith.constant 0 : index
    %c0_126 = arith.constant 0 : index
    %c0_127 = arith.constant 0 : index
    %312 = vector.load %arg15[%c0_125, %c0_126, %c0_127] : memref<3x1x32xf32, #tpu.memory_space<vmem>>, vector<1x1x32xf32>
    %313 = vector.shape_cast %312 : vector<1x1x32xf32> to vector<1x32xf32>
    %314 = vector.broadcast %313 : vector<1x32xf32> to vector<8x32xf32>
    %315 = arith.addf %311, %314 : vector<8x32xf32>
    %316 = arith.addf %183, %315 : vector<8x32xf32>
    %c0_128 = arith.constant 0 : index
    %c0_129 = arith.constant 0 : index
    %c0_130 = arith.constant 0 : index
    %317 = vector.load %arg20[%c0_128, %c0_129, %c0_130] : memref<3x1x32xf32, #tpu.memory_space<vmem>>, vector<1x1x32xf32>
    %318 = vector.shape_cast %317 : vector<1x1x32xf32> to vector<1x32xf32>
    %c0_131 = arith.constant 0 : index
    %c0_132 = arith.constant 0 : index
    %c0_133 = arith.constant 0 : index
    %319 = vector.load %arg21[%c0_131, %c0_132, %c0_133] : memref<3x1x32xf32, #tpu.memory_space<vmem>>, vector<1x1x32xf32>
    %320 = vector.shape_cast %319 : vector<1x1x32xf32> to vector<1x32xf32>
    %cst_134 = arith.constant dense<0.000000e+00> : vector<8xf32>
    %321 = vector.multi_reduction <add>, %316, %cst_134 [1] : vector<8x32xf32> to vector<8xf32>
    %322 = vector.shape_cast %321 : vector<8xf32> to vector<8x1xf32>
    %cst_135 = arith.constant 3.200000e+01 : f32
    %323 = vector.broadcast %cst_135 : f32 to vector<8x1xf32>
    %324 = arith.divf %322, %323 : vector<8x1xf32>
    %325 = vector.broadcast %324 : vector<8x1xf32> to vector<8x32xf32>
    %326 = arith.subf %316, %325 : vector<8x32xf32>
    %327 = arith.mulf %326, %326 : vector<8x32xf32>
    %cst_136 = arith.constant dense<0.000000e+00> : vector<8xf32>
    %328 = vector.multi_reduction <add>, %327, %cst_136 [1] : vector<8x32xf32> to vector<8xf32>
    %329 = vector.shape_cast %328 : vector<8xf32> to vector<8x1xf32>
    %cst_137 = arith.constant 3.200000e+01 : f32
    %330 = vector.broadcast %cst_137 : f32 to vector<8x1xf32>
    %331 = arith.divf %329, %330 : vector<8x1xf32>
    %cst_138 = arith.constant 9.99999974E-6 : f32
    %332 = vector.broadcast %cst_138 : f32 to vector<8x1xf32>
    %333 = arith.addf %331, %332 : vector<8x1xf32>
    %334 = math.rsqrt %333 : vector<8x1xf32>
    %335 = vector.broadcast %334 : vector<8x1xf32> to vector<8x32xf32>
    %336 = arith.mulf %326, %335 : vector<8x32xf32>
    %337 = vector.broadcast %318 : vector<1x32xf32> to vector<8x32xf32>
    %338 = arith.mulf %336, %337 : vector<8x32xf32>
    %339 = vector.broadcast %320 : vector<1x32xf32> to vector<8x32xf32>
    %340 = arith.addf %338, %339 : vector<8x32xf32>
    %341 = arith.truncf %340 : vector<8x32xf32> to vector<8x32xbf16>
    %c0_139 = arith.constant 0 : index
    %c0_140 = arith.constant 0 : index
    %c0_141 = arith.constant 0 : index
    %342 = vector.load %arg16[%c0_139, %c0_140, %c0_141] : memref<3x32x128xbf16, #tpu.memory_space<vmem>>, vector<1x32x128xbf16>
    %343 = vector.shape_cast %342 : vector<1x32x128xbf16> to vector<32x128xbf16>
    %cst_142 = arith.constant dense<0.000000e+00> : vector<8x128xf32>
    %344 = tpu.matmul %341, %343, %cst_142 {dimension_numbers = #tpu.dot_dimension_numbers<[1], [0], [0], [1], [0, 0, 1, 1], [], []>} : vector<8x32xbf16>, vector<32x128xbf16>, vector<8x128xf32> -> vector<8x128xf32>
    %c0_143 = arith.constant 0 : index
    %c0_144 = arith.constant 0 : index
    %c0_145 = arith.constant 0 : index
    %345 = vector.load %arg17[%c0_143, %c0_144, %c0_145] : memref<3x1x128xf32, #tpu.memory_space<vmem>>, vector<1x1x128xf32>
    %346 = vector.shape_cast %345 : vector<1x1x128xf32> to vector<1x128xf32>
    %347 = vector.broadcast %346 : vector<1x128xf32> to vector<8x128xf32>
    %348 = arith.addf %344, %347 : vector<8x128xf32>
    %cst_146 = arith.constant 0.000000e+00 : f32
    %349 = vector.broadcast %cst_146 : f32 to vector<8x128xf32>
    %350 = arith.maximumf %348, %349 : vector<8x128xf32>
    %351 = arith.truncf %350 : vector<8x128xf32> to vector<8x128xbf16>
    %c0_147 = arith.constant 0 : index
    %c0_148 = arith.constant 0 : index
    %c0_149 = arith.constant 0 : index
    %352 = vector.load %arg18[%c0_147, %c0_148, %c0_149] : memref<3x128x32xbf16, #tpu.memory_space<vmem>>, vector<1x128x32xbf16>
    %353 = vector.shape_cast %352 : vector<1x128x32xbf16> to vector<128x32xbf16>
    %cst_150 = arith.constant dense<0.000000e+00> : vector<8x32xf32>
    %354 = tpu.matmul %351, %353, %cst_150 {dimension_numbers = #tpu.dot_dimension_numbers<[1], [0], [0], [1], [0, 0, 1, 1], [], []>} : vector<8x128xbf16>, vector<128x32xbf16>, vector<8x32xf32> -> vector<8x32xf32>
    %c0_151 = arith.constant 0 : index
    %c0_152 = arith.constant 0 : index
    %c0_153 = arith.constant 0 : index
    %355 = vector.load %arg19[%c0_151, %c0_152, %c0_153] : memref<3x1x32xf32, #tpu.memory_space<vmem>>, vector<1x1x32xf32>
    %356 = vector.shape_cast %355 : vector<1x1x32xf32> to vector<1x32xf32>
    %357 = vector.broadcast %356 : vector<1x32xf32> to vector<8x32xf32>
    %358 = arith.addf %354, %357 : vector<8x32xf32>
    %359 = arith.addf %340, %358 : vector<8x32xf32>
    %c0_154 = arith.constant 0 : index
    %c0_155 = arith.constant 0 : index
    %c0_156 = arith.constant 0 : index
    %360 = vector.load %arg22[%c0_154, %c0_155, %c0_156] : memref<3x1x32xf32, #tpu.memory_space<vmem>>, vector<1x1x32xf32>
    %361 = vector.shape_cast %360 : vector<1x1x32xf32> to vector<1x32xf32>
    %c0_157 = arith.constant 0 : index
    %c0_158 = arith.constant 0 : index
    %c0_159 = arith.constant 0 : index
    %362 = vector.load %arg23[%c0_157, %c0_158, %c0_159] : memref<3x1x32xf32, #tpu.memory_space<vmem>>, vector<1x1x32xf32>
    %363 = vector.shape_cast %362 : vector<1x1x32xf32> to vector<1x32xf32>
    %cst_160 = arith.constant dense<0.000000e+00> : vector<8xf32>
    %364 = vector.multi_reduction <add>, %359, %cst_160 [1] : vector<8x32xf32> to vector<8xf32>
    %365 = vector.shape_cast %364 : vector<8xf32> to vector<8x1xf32>
    %cst_161 = arith.constant 3.200000e+01 : f32
    %366 = vector.broadcast %cst_161 : f32 to vector<8x1xf32>
    %367 = arith.divf %365, %366 : vector<8x1xf32>
    %368 = vector.broadcast %367 : vector<8x1xf32> to vector<8x32xf32>
    %369 = arith.subf %359, %368 : vector<8x32xf32>
    %370 = arith.mulf %369, %369 : vector<8x32xf32>
    %cst_162 = arith.constant dense<0.000000e+00> : vector<8xf32>
    %371 = vector.multi_reduction <add>, %370, %cst_162 [1] : vector<8x32xf32> to vector<8xf32>
    %372 = vector.shape_cast %371 : vector<8xf32> to vector<8x1xf32>
    %cst_163 = arith.constant 3.200000e+01 : f32
    %373 = vector.broadcast %cst_163 : f32 to vector<8x1xf32>
    %374 = arith.divf %372, %373 : vector<8x1xf32>
    %cst_164 = arith.constant 9.99999974E-6 : f32
    %375 = vector.broadcast %cst_164 : f32 to vector<8x1xf32>
    %376 = arith.addf %374, %375 : vector<8x1xf32>
    %377 = math.rsqrt %376 : vector<8x1xf32>
    %378 = vector.broadcast %377 : vector<8x1xf32> to vector<8x32xf32>
    %379 = arith.mulf %369, %378 : vector<8x32xf32>
    %380 = vector.broadcast %361 : vector<1x32xf32> to vector<8x32xf32>
    %381 = arith.mulf %379, %380 : vector<8x32xf32>
    %382 = vector.broadcast %363 : vector<1x32xf32> to vector<8x32xf32>
    %383 = arith.addf %381, %382 : vector<8x32xf32>
    %384 = arith.truncf %383 : vector<8x32xf32> to vector<8x32xbf16>
    %c1_165 = arith.constant 1 : index
    %c0_166 = arith.constant 0 : index
    %c0_167 = arith.constant 0 : index
    %385 = vector.load %arg12[%c1_165, %c0_166, %c0_167] : memref<3x32x96xbf16, #tpu.memory_space<vmem>>, vector<1x32x96xbf16>
    %386 = vector.shape_cast %385 : vector<1x32x96xbf16> to vector<32x96xbf16>
    %cst_168 = arith.constant dense<0.000000e+00> : vector<8x96xf32>
    %387 = tpu.matmul %384, %386, %cst_168 {dimension_numbers = #tpu.dot_dimension_numbers<[1], [0], [0], [1], [0, 0, 1, 1], [], []>} : vector<8x32xbf16>, vector<32x96xbf16>, vector<8x96xf32> -> vector<8x96xf32>
    %c1_169 = arith.constant 1 : index
    %c0_170 = arith.constant 0 : index
    %c0_171 = arith.constant 0 : index
    %388 = vector.load %arg13[%c1_169, %c0_170, %c0_171] : memref<3x1x96xf32, #tpu.memory_space<vmem>>, vector<1x1x96xf32>
    %389 = vector.shape_cast %388 : vector<1x1x96xf32> to vector<1x96xf32>
    %390 = vector.broadcast %389 : vector<1x96xf32> to vector<8x96xf32>
    %391 = arith.addf %387, %390 : vector<8x96xf32>
    %392 = vector.extract_strided_slice %391 {offsets = [0, 0], sizes = [8, 32], strides = [1, 1]} : vector<8x96xf32> to vector<8x32xf32>
    %393 = vector.extract_strided_slice %391 {offsets = [0, 32], sizes = [8, 32], strides = [1, 1]} : vector<8x96xf32> to vector<8x32xf32>
    %394 = arith.truncf %393 : vector<8x32xf32> to vector<8x32xbf16>
    %395 = vector.extract_strided_slice %391 {offsets = [0, 64], sizes = [8, 32], strides = [1, 1]} : vector<8x96xf32> to vector<8x32xf32>
    %396 = arith.truncf %395 : vector<8x32xf32> to vector<8x32xbf16>
    %cst_172 = arith.constant 0.000000e+00 : f32
    %397 = vector.broadcast %cst_172 : f32 to vector<8x32xf32>
    %398 = vector.broadcast %192 : vector<1x32xf32> to vector<8x32xf32>
    %399 = arith.mulf %392, %398 : vector<8x32xf32>
    %400 = arith.truncf %399 : vector<8x32xf32> to vector<8x32xbf16>
    %cst_173 = arith.constant dense<0.000000e+00> : vector<8x8xf32>
    %401 = tpu.matmul %400, %394, %cst_173 {dimension_numbers = #tpu.dot_dimension_numbers<[1], [1], [0], [0], [0, 0, 1, 0], [], []>} : vector<8x32xbf16>, vector<8x32xbf16>, vector<8x8xf32> -> vector<8x8xf32>
    %402 = arith.addf %401, %184 : vector<8x8xf32>
    %cst_174 = arith.constant dense<0xFF800000> : vector<8xf32>
    %403 = vector.multi_reduction <maximumf>, %402, %cst_174 [1] : vector<8x8xf32> to vector<8xf32>
    %404 = vector.shape_cast %403 : vector<8xf32> to vector<8x1xf32>
    %405 = vector.broadcast %404 : vector<8x1xf32> to vector<8x8xf32>
    %406 = arith.subf %402, %405 : vector<8x8xf32>
    %407 = math.exp %406 : vector<8x8xf32>
    %cst_175 = arith.constant dense<0.000000e+00> : vector<8xf32>
    %408 = vector.multi_reduction <add>, %407, %cst_175 [1] : vector<8x8xf32> to vector<8xf32>
    %409 = vector.shape_cast %408 : vector<8xf32> to vector<8x1xf32>
    %410 = tpu.reciprocal %409 {approx = true} : vector<8x1xf32> -> vector<8x1xf32>
    %411 = vector.broadcast %410 : vector<8x1xf32> to vector<8x8xf32>
    %412 = arith.mulf %407, %411 : vector<8x8xf32>
    %413 = arith.truncf %412 : vector<8x8xf32> to vector<8x8xbf16>
    %cst_176 = arith.constant dense<0.000000e+00> : vector<8x32xf32>
    %414 = tpu.matmul %413, %396, %cst_176 {dimension_numbers = #tpu.dot_dimension_numbers<[1], [0], [0], [1], [0, 0, 1, 1], [], []>} : vector<8x8xbf16>, vector<8x32xbf16>, vector<8x32xf32> -> vector<8x32xf32>
    %415 = vector.broadcast %192 : vector<1x32xf32> to vector<8x32xf32>
    %416 = arith.mulf %414, %415 : vector<8x32xf32>
    %417 = arith.addf %397, %416 : vector<8x32xf32>
    %418 = vector.broadcast %199 : vector<1x32xf32> to vector<8x32xf32>
    %419 = arith.mulf %392, %418 : vector<8x32xf32>
    %420 = arith.truncf %419 : vector<8x32xf32> to vector<8x32xbf16>
    %cst_177 = arith.constant dense<0.000000e+00> : vector<8x8xf32>
    %421 = tpu.matmul %420, %394, %cst_177 {dimension_numbers = #tpu.dot_dimension_numbers<[1], [1], [0], [0], [0, 0, 1, 0], [], []>} : vector<8x32xbf16>, vector<8x32xbf16>, vector<8x8xf32> -> vector<8x8xf32>
    %422 = arith.addf %421, %184 : vector<8x8xf32>
    %cst_178 = arith.constant dense<0xFF800000> : vector<8xf32>
    %423 = vector.multi_reduction <maximumf>, %422, %cst_178 [1] : vector<8x8xf32> to vector<8xf32>
    %424 = vector.shape_cast %423 : vector<8xf32> to vector<8x1xf32>
    %425 = vector.broadcast %424 : vector<8x1xf32> to vector<8x8xf32>
    %426 = arith.subf %422, %425 : vector<8x8xf32>
    %427 = math.exp %426 : vector<8x8xf32>
    %cst_179 = arith.constant dense<0.000000e+00> : vector<8xf32>
    %428 = vector.multi_reduction <add>, %427, %cst_179 [1] : vector<8x8xf32> to vector<8xf32>
    %429 = vector.shape_cast %428 : vector<8xf32> to vector<8x1xf32>
    %430 = tpu.reciprocal %429 {approx = true} : vector<8x1xf32> -> vector<8x1xf32>
    %431 = vector.broadcast %430 : vector<8x1xf32> to vector<8x8xf32>
    %432 = arith.mulf %427, %431 : vector<8x8xf32>
    %433 = arith.truncf %432 : vector<8x8xf32> to vector<8x8xbf16>
    %cst_180 = arith.constant dense<0.000000e+00> : vector<8x32xf32>
    %434 = tpu.matmul %433, %396, %cst_180 {dimension_numbers = #tpu.dot_dimension_numbers<[1], [0], [0], [1], [0, 0, 1, 1], [], []>} : vector<8x8xbf16>, vector<8x32xbf16>, vector<8x32xf32> -> vector<8x32xf32>
    %435 = vector.broadcast %199 : vector<1x32xf32> to vector<8x32xf32>
    %436 = arith.mulf %434, %435 : vector<8x32xf32>
    %437 = arith.addf %417, %436 : vector<8x32xf32>
    %438 = vector.broadcast %206 : vector<1x32xf32> to vector<8x32xf32>
    %439 = arith.mulf %392, %438 : vector<8x32xf32>
    %440 = arith.truncf %439 : vector<8x32xf32> to vector<8x32xbf16>
    %cst_181 = arith.constant dense<0.000000e+00> : vector<8x8xf32>
    %441 = tpu.matmul %440, %394, %cst_181 {dimension_numbers = #tpu.dot_dimension_numbers<[1], [1], [0], [0], [0, 0, 1, 0], [], []>} : vector<8x32xbf16>, vector<8x32xbf16>, vector<8x8xf32> -> vector<8x8xf32>
    %442 = arith.addf %441, %184 : vector<8x8xf32>
    %cst_182 = arith.constant dense<0xFF800000> : vector<8xf32>
    %443 = vector.multi_reduction <maximumf>, %442, %cst_182 [1] : vector<8x8xf32> to vector<8xf32>
    %444 = vector.shape_cast %443 : vector<8xf32> to vector<8x1xf32>
    %445 = vector.broadcast %444 : vector<8x1xf32> to vector<8x8xf32>
    %446 = arith.subf %442, %445 : vector<8x8xf32>
    %447 = math.exp %446 : vector<8x8xf32>
    %cst_183 = arith.constant dense<0.000000e+00> : vector<8xf32>
    %448 = vector.multi_reduction <add>, %447, %cst_183 [1] : vector<8x8xf32> to vector<8xf32>
    %449 = vector.shape_cast %448 : vector<8xf32> to vector<8x1xf32>
    %450 = tpu.reciprocal %449 {approx = true} : vector<8x1xf32> -> vector<8x1xf32>
    %451 = vector.broadcast %450 : vector<8x1xf32> to vector<8x8xf32>
    %452 = arith.mulf %447, %451 : vector<8x8xf32>
    %453 = arith.truncf %452 : vector<8x8xf32> to vector<8x8xbf16>
    %cst_184 = arith.constant dense<0.000000e+00> : vector<8x32xf32>
    %454 = tpu.matmul %453, %396, %cst_184 {dimension_numbers = #tpu.dot_dimension_numbers<[1], [0], [0], [1], [0, 0, 1, 1], [], []>} : vector<8x8xbf16>, vector<8x32xbf16>, vector<8x32xf32> -> vector<8x32xf32>
    %455 = vector.broadcast %206 : vector<1x32xf32> to vector<8x32xf32>
    %456 = arith.mulf %454, %455 : vector<8x32xf32>
    %457 = arith.addf %437, %456 : vector<8x32xf32>
    %458 = vector.broadcast %213 : vector<1x32xf32> to vector<8x32xf32>
    %459 = arith.mulf %392, %458 : vector<8x32xf32>
    %460 = arith.truncf %459 : vector<8x32xf32> to vector<8x32xbf16>
    %cst_185 = arith.constant dense<0.000000e+00> : vector<8x8xf32>
    %461 = tpu.matmul %460, %394, %cst_185 {dimension_numbers = #tpu.dot_dimension_numbers<[1], [1], [0], [0], [0, 0, 1, 0], [], []>} : vector<8x32xbf16>, vector<8x32xbf16>, vector<8x8xf32> -> vector<8x8xf32>
    %462 = arith.addf %461, %184 : vector<8x8xf32>
    %cst_186 = arith.constant dense<0xFF800000> : vector<8xf32>
    %463 = vector.multi_reduction <maximumf>, %462, %cst_186 [1] : vector<8x8xf32> to vector<8xf32>
    %464 = vector.shape_cast %463 : vector<8xf32> to vector<8x1xf32>
    %465 = vector.broadcast %464 : vector<8x1xf32> to vector<8x8xf32>
    %466 = arith.subf %462, %465 : vector<8x8xf32>
    %467 = math.exp %466 : vector<8x8xf32>
    %cst_187 = arith.constant dense<0.000000e+00> : vector<8xf32>
    %468 = vector.multi_reduction <add>, %467, %cst_187 [1] : vector<8x8xf32> to vector<8xf32>
    %469 = vector.shape_cast %468 : vector<8xf32> to vector<8x1xf32>
    %470 = tpu.reciprocal %469 {approx = true} : vector<8x1xf32> -> vector<8x1xf32>
    %471 = vector.broadcast %470 : vector<8x1xf32> to vector<8x8xf32>
    %472 = arith.mulf %467, %471 : vector<8x8xf32>
    %473 = arith.truncf %472 : vector<8x8xf32> to vector<8x8xbf16>
    %cst_188 = arith.constant dense<0.000000e+00> : vector<8x32xf32>
    %474 = tpu.matmul %473, %396, %cst_188 {dimension_numbers = #tpu.dot_dimension_numbers<[1], [0], [0], [1], [0, 0, 1, 1], [], []>} : vector<8x8xbf16>, vector<8x32xbf16>, vector<8x32xf32> -> vector<8x32xf32>
    %475 = vector.broadcast %213 : vector<1x32xf32> to vector<8x32xf32>
    %476 = arith.mulf %474, %475 : vector<8x32xf32>
    %477 = arith.addf %457, %476 : vector<8x32xf32>
    %478 = arith.truncf %477 : vector<8x32xf32> to vector<8x32xbf16>
    %c1_189 = arith.constant 1 : index
    %c0_190 = arith.constant 0 : index
    %c0_191 = arith.constant 0 : index
    %479 = vector.load %arg14[%c1_189, %c0_190, %c0_191] : memref<3x32x32xbf16, #tpu.memory_space<vmem>>, vector<1x32x32xbf16>
    %480 = vector.shape_cast %479 : vector<1x32x32xbf16> to vector<32x32xbf16>
    %cst_192 = arith.constant dense<0.000000e+00> : vector<8x32xf32>
    %481 = tpu.matmul %478, %480, %cst_192 {dimension_numbers = #tpu.dot_dimension_numbers<[1], [0], [0], [1], [0, 0, 1, 1], [], []>} : vector<8x32xbf16>, vector<32x32xbf16>, vector<8x32xf32> -> vector<8x32xf32>
    %c1_193 = arith.constant 1 : index
    %c0_194 = arith.constant 0 : index
    %c0_195 = arith.constant 0 : index
    %482 = vector.load %arg15[%c1_193, %c0_194, %c0_195] : memref<3x1x32xf32, #tpu.memory_space<vmem>>, vector<1x1x32xf32>
    %483 = vector.shape_cast %482 : vector<1x1x32xf32> to vector<1x32xf32>
    %484 = vector.broadcast %483 : vector<1x32xf32> to vector<8x32xf32>
    %485 = arith.addf %481, %484 : vector<8x32xf32>
    %486 = arith.addf %383, %485 : vector<8x32xf32>
    %c1_196 = arith.constant 1 : index
    %c0_197 = arith.constant 0 : index
    %c0_198 = arith.constant 0 : index
    %487 = vector.load %arg20[%c1_196, %c0_197, %c0_198] : memref<3x1x32xf32, #tpu.memory_space<vmem>>, vector<1x1x32xf32>
    %488 = vector.shape_cast %487 : vector<1x1x32xf32> to vector<1x32xf32>
    %c1_199 = arith.constant 1 : index
    %c0_200 = arith.constant 0 : index
    %c0_201 = arith.constant 0 : index
    %489 = vector.load %arg21[%c1_199, %c0_200, %c0_201] : memref<3x1x32xf32, #tpu.memory_space<vmem>>, vector<1x1x32xf32>
    %490 = vector.shape_cast %489 : vector<1x1x32xf32> to vector<1x32xf32>
    %cst_202 = arith.constant dense<0.000000e+00> : vector<8xf32>
    %491 = vector.multi_reduction <add>, %486, %cst_202 [1] : vector<8x32xf32> to vector<8xf32>
    %492 = vector.shape_cast %491 : vector<8xf32> to vector<8x1xf32>
    %cst_203 = arith.constant 3.200000e+01 : f32
    %493 = vector.broadcast %cst_203 : f32 to vector<8x1xf32>
    %494 = arith.divf %492, %493 : vector<8x1xf32>
    %495 = vector.broadcast %494 : vector<8x1xf32> to vector<8x32xf32>
    %496 = arith.subf %486, %495 : vector<8x32xf32>
    %497 = arith.mulf %496, %496 : vector<8x32xf32>
    %cst_204 = arith.constant dense<0.000000e+00> : vector<8xf32>
    %498 = vector.multi_reduction <add>, %497, %cst_204 [1] : vector<8x32xf32> to vector<8xf32>
    %499 = vector.shape_cast %498 : vector<8xf32> to vector<8x1xf32>
    %cst_205 = arith.constant 3.200000e+01 : f32
    %500 = vector.broadcast %cst_205 : f32 to vector<8x1xf32>
    %501 = arith.divf %499, %500 : vector<8x1xf32>
    %cst_206 = arith.constant 9.99999974E-6 : f32
    %502 = vector.broadcast %cst_206 : f32 to vector<8x1xf32>
    %503 = arith.addf %501, %502 : vector<8x1xf32>
    %504 = math.rsqrt %503 : vector<8x1xf32>
    %505 = vector.broadcast %504 : vector<8x1xf32> to vector<8x32xf32>
    %506 = arith.mulf %496, %505 : vector<8x32xf32>
    %507 = vector.broadcast %488 : vector<1x32xf32> to vector<8x32xf32>
    %508 = arith.mulf %506, %507 : vector<8x32xf32>
    %509 = vector.broadcast %490 : vector<1x32xf32> to vector<8x32xf32>
    %510 = arith.addf %508, %509 : vector<8x32xf32>
    %511 = arith.truncf %510 : vector<8x32xf32> to vector<8x32xbf16>
    %c1_207 = arith.constant 1 : index
    %c0_208 = arith.constant 0 : index
    %c0_209 = arith.constant 0 : index
    %512 = vector.load %arg16[%c1_207, %c0_208, %c0_209] : memref<3x32x128xbf16, #tpu.memory_space<vmem>>, vector<1x32x128xbf16>
    %513 = vector.shape_cast %512 : vector<1x32x128xbf16> to vector<32x128xbf16>
    %cst_210 = arith.constant dense<0.000000e+00> : vector<8x128xf32>
    %514 = tpu.matmul %511, %513, %cst_210 {dimension_numbers = #tpu.dot_dimension_numbers<[1], [0], [0], [1], [0, 0, 1, 1], [], []>} : vector<8x32xbf16>, vector<32x128xbf16>, vector<8x128xf32> -> vector<8x128xf32>
    %c1_211 = arith.constant 1 : index
    %c0_212 = arith.constant 0 : index
    %c0_213 = arith.constant 0 : index
    %515 = vector.load %arg17[%c1_211, %c0_212, %c0_213] : memref<3x1x128xf32, #tpu.memory_space<vmem>>, vector<1x1x128xf32>
    %516 = vector.shape_cast %515 : vector<1x1x128xf32> to vector<1x128xf32>
    %517 = vector.broadcast %516 : vector<1x128xf32> to vector<8x128xf32>
    %518 = arith.addf %514, %517 : vector<8x128xf32>
    %cst_214 = arith.constant 0.000000e+00 : f32
    %519 = vector.broadcast %cst_214 : f32 to vector<8x128xf32>
    %520 = arith.maximumf %518, %519 : vector<8x128xf32>
    %521 = arith.truncf %520 : vector<8x128xf32> to vector<8x128xbf16>
    %c1_215 = arith.constant 1 : index
    %c0_216 = arith.constant 0 : index
    %c0_217 = arith.constant 0 : index
    %522 = vector.load %arg18[%c1_215, %c0_216, %c0_217] : memref<3x128x32xbf16, #tpu.memory_space<vmem>>, vector<1x128x32xbf16>
    %523 = vector.shape_cast %522 : vector<1x128x32xbf16> to vector<128x32xbf16>
    %cst_218 = arith.constant dense<0.000000e+00> : vector<8x32xf32>
    %524 = tpu.matmul %521, %523, %cst_218 {dimension_numbers = #tpu.dot_dimension_numbers<[1], [0], [0], [1], [0, 0, 1, 1], [], []>} : vector<8x128xbf16>, vector<128x32xbf16>, vector<8x32xf32> -> vector<8x32xf32>
    %c1_219 = arith.constant 1 : index
    %c0_220 = arith.constant 0 : index
    %c0_221 = arith.constant 0 : index
    %525 = vector.load %arg19[%c1_219, %c0_220, %c0_221] : memref<3x1x32xf32, #tpu.memory_space<vmem>>, vector<1x1x32xf32>
    %526 = vector.shape_cast %525 : vector<1x1x32xf32> to vector<1x32xf32>
    %527 = vector.broadcast %526 : vector<1x32xf32> to vector<8x32xf32>
    %528 = arith.addf %524, %527 : vector<8x32xf32>
    %529 = arith.addf %510, %528 : vector<8x32xf32>
    %c1_222 = arith.constant 1 : index
    %c0_223 = arith.constant 0 : index
    %c0_224 = arith.constant 0 : index
    %530 = vector.load %arg22[%c1_222, %c0_223, %c0_224] : memref<3x1x32xf32, #tpu.memory_space<vmem>>, vector<1x1x32xf32>
    %531 = vector.shape_cast %530 : vector<1x1x32xf32> to vector<1x32xf32>
    %c1_225 = arith.constant 1 : index
    %c0_226 = arith.constant 0 : index
    %c0_227 = arith.constant 0 : index
    %532 = vector.load %arg23[%c1_225, %c0_226, %c0_227] : memref<3x1x32xf32, #tpu.memory_space<vmem>>, vector<1x1x32xf32>
    %533 = vector.shape_cast %532 : vector<1x1x32xf32> to vector<1x32xf32>
    %cst_228 = arith.constant dense<0.000000e+00> : vector<8xf32>
    %534 = vector.multi_reduction <add>, %529, %cst_228 [1] : vector<8x32xf32> to vector<8xf32>
    %535 = vector.shape_cast %534 : vector<8xf32> to vector<8x1xf32>
    %cst_229 = arith.constant 3.200000e+01 : f32
    %536 = vector.broadcast %cst_229 : f32 to vector<8x1xf32>
    %537 = arith.divf %535, %536 : vector<8x1xf32>
    %538 = vector.broadcast %537 : vector<8x1xf32> to vector<8x32xf32>
    %539 = arith.subf %529, %538 : vector<8x32xf32>
    %540 = arith.mulf %539, %539 : vector<8x32xf32>
    %cst_230 = arith.constant dense<0.000000e+00> : vector<8xf32>
    %541 = vector.multi_reduction <add>, %540, %cst_230 [1] : vector<8x32xf32> to vector<8xf32>
    %542 = vector.shape_cast %541 : vector<8xf32> to vector<8x1xf32>
    %cst_231 = arith.constant 3.200000e+01 : f32
    %543 = vector.broadcast %cst_231 : f32 to vector<8x1xf32>
    %544 = arith.divf %542, %543 : vector<8x1xf32>
    %cst_232 = arith.constant 9.99999974E-6 : f32
    %545 = vector.broadcast %cst_232 : f32 to vector<8x1xf32>
    %546 = arith.addf %544, %545 : vector<8x1xf32>
    %547 = math.rsqrt %546 : vector<8x1xf32>
    %548 = vector.broadcast %547 : vector<8x1xf32> to vector<8x32xf32>
    %549 = arith.mulf %539, %548 : vector<8x32xf32>
    %550 = vector.broadcast %531 : vector<1x32xf32> to vector<8x32xf32>
    %551 = arith.mulf %549, %550 : vector<8x32xf32>
    %552 = vector.broadcast %533 : vector<1x32xf32> to vector<8x32xf32>
    %553 = arith.addf %551, %552 : vector<8x32xf32>
    %554 = arith.truncf %553 : vector<8x32xf32> to vector<8x32xbf16>
    %c2_233 = arith.constant 2 : index
    %c0_234 = arith.constant 0 : index
    %c0_235 = arith.constant 0 : index
    %555 = vector.load %arg12[%c2_233, %c0_234, %c0_235] : memref<3x32x96xbf16, #tpu.memory_space<vmem>>, vector<1x32x96xbf16>
    %556 = vector.shape_cast %555 : vector<1x32x96xbf16> to vector<32x96xbf16>
    %cst_236 = arith.constant dense<0.000000e+00> : vector<8x96xf32>
    %557 = tpu.matmul %554, %556, %cst_236 {dimension_numbers = #tpu.dot_dimension_numbers<[1], [0], [0], [1], [0, 0, 1, 1], [], []>} : vector<8x32xbf16>, vector<32x96xbf16>, vector<8x96xf32> -> vector<8x96xf32>
    %c2_237 = arith.constant 2 : index
    %c0_238 = arith.constant 0 : index
    %c0_239 = arith.constant 0 : index
    %558 = vector.load %arg13[%c2_237, %c0_238, %c0_239] : memref<3x1x96xf32, #tpu.memory_space<vmem>>, vector<1x1x96xf32>
    %559 = vector.shape_cast %558 : vector<1x1x96xf32> to vector<1x96xf32>
    %560 = vector.broadcast %559 : vector<1x96xf32> to vector<8x96xf32>
    %561 = arith.addf %557, %560 : vector<8x96xf32>
    %562 = vector.extract_strided_slice %561 {offsets = [0, 0], sizes = [8, 32], strides = [1, 1]} : vector<8x96xf32> to vector<8x32xf32>
    %563 = vector.extract_strided_slice %561 {offsets = [0, 32], sizes = [8, 32], strides = [1, 1]} : vector<8x96xf32> to vector<8x32xf32>
    %564 = arith.truncf %563 : vector<8x32xf32> to vector<8x32xbf16>
    %565 = vector.extract_strided_slice %561 {offsets = [0, 64], sizes = [8, 32], strides = [1, 1]} : vector<8x96xf32> to vector<8x32xf32>
    %566 = arith.truncf %565 : vector<8x32xf32> to vector<8x32xbf16>
    %cst_240 = arith.constant 0.000000e+00 : f32
    %567 = vector.broadcast %cst_240 : f32 to vector<8x32xf32>
    %568 = vector.broadcast %192 : vector<1x32xf32> to vector<8x32xf32>
    %569 = arith.mulf %562, %568 : vector<8x32xf32>
    %570 = arith.truncf %569 : vector<8x32xf32> to vector<8x32xbf16>
    %cst_241 = arith.constant dense<0.000000e+00> : vector<8x8xf32>
    %571 = tpu.matmul %570, %564, %cst_241 {dimension_numbers = #tpu.dot_dimension_numbers<[1], [1], [0], [0], [0, 0, 1, 0], [], []>} : vector<8x32xbf16>, vector<8x32xbf16>, vector<8x8xf32> -> vector<8x8xf32>
    %572 = arith.addf %571, %184 : vector<8x8xf32>
    %cst_242 = arith.constant dense<0xFF800000> : vector<8xf32>
    %573 = vector.multi_reduction <maximumf>, %572, %cst_242 [1] : vector<8x8xf32> to vector<8xf32>
    %574 = vector.shape_cast %573 : vector<8xf32> to vector<8x1xf32>
    %575 = vector.broadcast %574 : vector<8x1xf32> to vector<8x8xf32>
    %576 = arith.subf %572, %575 : vector<8x8xf32>
    %577 = math.exp %576 : vector<8x8xf32>
    %cst_243 = arith.constant dense<0.000000e+00> : vector<8xf32>
    %578 = vector.multi_reduction <add>, %577, %cst_243 [1] : vector<8x8xf32> to vector<8xf32>
    %579 = vector.shape_cast %578 : vector<8xf32> to vector<8x1xf32>
    %580 = tpu.reciprocal %579 {approx = true} : vector<8x1xf32> -> vector<8x1xf32>
    %581 = vector.broadcast %580 : vector<8x1xf32> to vector<8x8xf32>
    %582 = arith.mulf %577, %581 : vector<8x8xf32>
    %583 = arith.truncf %582 : vector<8x8xf32> to vector<8x8xbf16>
    %cst_244 = arith.constant dense<0.000000e+00> : vector<8x32xf32>
    %584 = tpu.matmul %583, %566, %cst_244 {dimension_numbers = #tpu.dot_dimension_numbers<[1], [0], [0], [1], [0, 0, 1, 1], [], []>} : vector<8x8xbf16>, vector<8x32xbf16>, vector<8x32xf32> -> vector<8x32xf32>
    %585 = vector.broadcast %192 : vector<1x32xf32> to vector<8x32xf32>
    %586 = arith.mulf %584, %585 : vector<8x32xf32>
    %587 = arith.addf %567, %586 : vector<8x32xf32>
    %588 = vector.broadcast %199 : vector<1x32xf32> to vector<8x32xf32>
    %589 = arith.mulf %562, %588 : vector<8x32xf32>
    %590 = arith.truncf %589 : vector<8x32xf32> to vector<8x32xbf16>
    %cst_245 = arith.constant dense<0.000000e+00> : vector<8x8xf32>
    %591 = tpu.matmul %590, %564, %cst_245 {dimension_numbers = #tpu.dot_dimension_numbers<[1], [1], [0], [0], [0, 0, 1, 0], [], []>} : vector<8x32xbf16>, vector<8x32xbf16>, vector<8x8xf32> -> vector<8x8xf32>
    %592 = arith.addf %591, %184 : vector<8x8xf32>
    %cst_246 = arith.constant dense<0xFF800000> : vector<8xf32>
    %593 = vector.multi_reduction <maximumf>, %592, %cst_246 [1] : vector<8x8xf32> to vector<8xf32>
    %594 = vector.shape_cast %593 : vector<8xf32> to vector<8x1xf32>
    %595 = vector.broadcast %594 : vector<8x1xf32> to vector<8x8xf32>
    %596 = arith.subf %592, %595 : vector<8x8xf32>
    %597 = math.exp %596 : vector<8x8xf32>
    %cst_247 = arith.constant dense<0.000000e+00> : vector<8xf32>
    %598 = vector.multi_reduction <add>, %597, %cst_247 [1] : vector<8x8xf32> to vector<8xf32>
    %599 = vector.shape_cast %598 : vector<8xf32> to vector<8x1xf32>
    %600 = tpu.reciprocal %599 {approx = true} : vector<8x1xf32> -> vector<8x1xf32>
    %601 = vector.broadcast %600 : vector<8x1xf32> to vector<8x8xf32>
    %602 = arith.mulf %597, %601 : vector<8x8xf32>
    %603 = arith.truncf %602 : vector<8x8xf32> to vector<8x8xbf16>
    %cst_248 = arith.constant dense<0.000000e+00> : vector<8x32xf32>
    %604 = tpu.matmul %603, %566, %cst_248 {dimension_numbers = #tpu.dot_dimension_numbers<[1], [0], [0], [1], [0, 0, 1, 1], [], []>} : vector<8x8xbf16>, vector<8x32xbf16>, vector<8x32xf32> -> vector<8x32xf32>
    %605 = vector.broadcast %199 : vector<1x32xf32> to vector<8x32xf32>
    %606 = arith.mulf %604, %605 : vector<8x32xf32>
    %607 = arith.addf %587, %606 : vector<8x32xf32>
    %608 = vector.broadcast %206 : vector<1x32xf32> to vector<8x32xf32>
    %609 = arith.mulf %562, %608 : vector<8x32xf32>
    %610 = arith.truncf %609 : vector<8x32xf32> to vector<8x32xbf16>
    %cst_249 = arith.constant dense<0.000000e+00> : vector<8x8xf32>
    %611 = tpu.matmul %610, %564, %cst_249 {dimension_numbers = #tpu.dot_dimension_numbers<[1], [1], [0], [0], [0, 0, 1, 0], [], []>} : vector<8x32xbf16>, vector<8x32xbf16>, vector<8x8xf32> -> vector<8x8xf32>
    %612 = arith.addf %611, %184 : vector<8x8xf32>
    %cst_250 = arith.constant dense<0xFF800000> : vector<8xf32>
    %613 = vector.multi_reduction <maximumf>, %612, %cst_250 [1] : vector<8x8xf32> to vector<8xf32>
    %614 = vector.shape_cast %613 : vector<8xf32> to vector<8x1xf32>
    %615 = vector.broadcast %614 : vector<8x1xf32> to vector<8x8xf32>
    %616 = arith.subf %612, %615 : vector<8x8xf32>
    %617 = math.exp %616 : vector<8x8xf32>
    %cst_251 = arith.constant dense<0.000000e+00> : vector<8xf32>
    %618 = vector.multi_reduction <add>, %617, %cst_251 [1] : vector<8x8xf32> to vector<8xf32>
    %619 = vector.shape_cast %618 : vector<8xf32> to vector<8x1xf32>
    %620 = tpu.reciprocal %619 {approx = true} : vector<8x1xf32> -> vector<8x1xf32>
    %621 = vector.broadcast %620 : vector<8x1xf32> to vector<8x8xf32>
    %622 = arith.mulf %617, %621 : vector<8x8xf32>
    %623 = arith.truncf %622 : vector<8x8xf32> to vector<8x8xbf16>
    %cst_252 = arith.constant dense<0.000000e+00> : vector<8x32xf32>
    %624 = tpu.matmul %623, %566, %cst_252 {dimension_numbers = #tpu.dot_dimension_numbers<[1], [0], [0], [1], [0, 0, 1, 1], [], []>} : vector<8x8xbf16>, vector<8x32xbf16>, vector<8x32xf32> -> vector<8x32xf32>
    %625 = vector.broadcast %206 : vector<1x32xf32> to vector<8x32xf32>
    %626 = arith.mulf %624, %625 : vector<8x32xf32>
    %627 = arith.addf %607, %626 : vector<8x32xf32>
    %628 = vector.broadcast %213 : vector<1x32xf32> to vector<8x32xf32>
    %629 = arith.mulf %562, %628 : vector<8x32xf32>
    %630 = arith.truncf %629 : vector<8x32xf32> to vector<8x32xbf16>
    %cst_253 = arith.constant dense<0.000000e+00> : vector<8x8xf32>
    %631 = tpu.matmul %630, %564, %cst_253 {dimension_numbers = #tpu.dot_dimension_numbers<[1], [1], [0], [0], [0, 0, 1, 0], [], []>} : vector<8x32xbf16>, vector<8x32xbf16>, vector<8x8xf32> -> vector<8x8xf32>
    %632 = arith.addf %631, %184 : vector<8x8xf32>
    %cst_254 = arith.constant dense<0xFF800000> : vector<8xf32>
    %633 = vector.multi_reduction <maximumf>, %632, %cst_254 [1] : vector<8x8xf32> to vector<8xf32>
    %634 = vector.shape_cast %633 : vector<8xf32> to vector<8x1xf32>
    %635 = vector.broadcast %634 : vector<8x1xf32> to vector<8x8xf32>
    %636 = arith.subf %632, %635 : vector<8x8xf32>
    %637 = math.exp %636 : vector<8x8xf32>
    %cst_255 = arith.constant dense<0.000000e+00> : vector<8xf32>
    %638 = vector.multi_reduction <add>, %637, %cst_255 [1] : vector<8x8xf32> to vector<8xf32>
    %639 = vector.shape_cast %638 : vector<8xf32> to vector<8x1xf32>
    %640 = tpu.reciprocal %639 {approx = true} : vector<8x1xf32> -> vector<8x1xf32>
    %641 = vector.broadcast %640 : vector<8x1xf32> to vector<8x8xf32>
    %642 = arith.mulf %637, %641 : vector<8x8xf32>
    %643 = arith.truncf %642 : vector<8x8xf32> to vector<8x8xbf16>
    %cst_256 = arith.constant dense<0.000000e+00> : vector<8x32xf32>
    %644 = tpu.matmul %643, %566, %cst_256 {dimension_numbers = #tpu.dot_dimension_numbers<[1], [0], [0], [1], [0, 0, 1, 1], [], []>} : vector<8x8xbf16>, vector<8x32xbf16>, vector<8x32xf32> -> vector<8x32xf32>
    %645 = vector.broadcast %213 : vector<1x32xf32> to vector<8x32xf32>
    %646 = arith.mulf %644, %645 : vector<8x32xf32>
    %647 = arith.addf %627, %646 : vector<8x32xf32>
    %648 = arith.truncf %647 : vector<8x32xf32> to vector<8x32xbf16>
    %c2_257 = arith.constant 2 : index
    %c0_258 = arith.constant 0 : index
    %c0_259 = arith.constant 0 : index
    %649 = vector.load %arg14[%c2_257, %c0_258, %c0_259] : memref<3x32x32xbf16, #tpu.memory_space<vmem>>, vector<1x32x32xbf16>
    %650 = vector.shape_cast %649 : vector<1x32x32xbf16> to vector<32x32xbf16>
    %cst_260 = arith.constant dense<0.000000e+00> : vector<8x32xf32>
    %651 = tpu.matmul %648, %650, %cst_260 {dimension_numbers = #tpu.dot_dimension_numbers<[1], [0], [0], [1], [0, 0, 1, 1], [], []>} : vector<8x32xbf16>, vector<32x32xbf16>, vector<8x32xf32> -> vector<8x32xf32>
    %c2_261 = arith.constant 2 : index
    %c0_262 = arith.constant 0 : index
    %c0_263 = arith.constant 0 : index
    %652 = vector.load %arg15[%c2_261, %c0_262, %c0_263] : memref<3x1x32xf32, #tpu.memory_space<vmem>>, vector<1x1x32xf32>
    %653 = vector.shape_cast %652 : vector<1x1x32xf32> to vector<1x32xf32>
    %654 = vector.broadcast %653 : vector<1x32xf32> to vector<8x32xf32>
    %655 = arith.addf %651, %654 : vector<8x32xf32>
    %656 = arith.addf %553, %655 : vector<8x32xf32>
    %c2_264 = arith.constant 2 : index
    %c0_265 = arith.constant 0 : index
    %c0_266 = arith.constant 0 : index
    %657 = vector.load %arg20[%c2_264, %c0_265, %c0_266] : memref<3x1x32xf32, #tpu.memory_space<vmem>>, vector<1x1x32xf32>
    %658 = vector.shape_cast %657 : vector<1x1x32xf32> to vector<1x32xf32>
    %c2_267 = arith.constant 2 : index
    %c0_268 = arith.constant 0 : index
    %c0_269 = arith.constant 0 : index
    %659 = vector.load %arg21[%c2_267, %c0_268, %c0_269] : memref<3x1x32xf32, #tpu.memory_space<vmem>>, vector<1x1x32xf32>
    %660 = vector.shape_cast %659 : vector<1x1x32xf32> to vector<1x32xf32>
    %cst_270 = arith.constant dense<0.000000e+00> : vector<8xf32>
    %661 = vector.multi_reduction <add>, %656, %cst_270 [1] : vector<8x32xf32> to vector<8xf32>
    %662 = vector.shape_cast %661 : vector<8xf32> to vector<8x1xf32>
    %cst_271 = arith.constant 3.200000e+01 : f32
    %663 = vector.broadcast %cst_271 : f32 to vector<8x1xf32>
    %664 = arith.divf %662, %663 : vector<8x1xf32>
    %665 = vector.broadcast %664 : vector<8x1xf32> to vector<8x32xf32>
    %666 = arith.subf %656, %665 : vector<8x32xf32>
    %667 = arith.mulf %666, %666 : vector<8x32xf32>
    %cst_272 = arith.constant dense<0.000000e+00> : vector<8xf32>
    %668 = vector.multi_reduction <add>, %667, %cst_272 [1] : vector<8x32xf32> to vector<8xf32>
    %669 = vector.shape_cast %668 : vector<8xf32> to vector<8x1xf32>
    %cst_273 = arith.constant 3.200000e+01 : f32
    %670 = vector.broadcast %cst_273 : f32 to vector<8x1xf32>
    %671 = arith.divf %669, %670 : vector<8x1xf32>
    %cst_274 = arith.constant 9.99999974E-6 : f32
    %672 = vector.broadcast %cst_274 : f32 to vector<8x1xf32>
    %673 = arith.addf %671, %672 : vector<8x1xf32>
    %674 = math.rsqrt %673 : vector<8x1xf32>
    %675 = vector.broadcast %674 : vector<8x1xf32> to vector<8x32xf32>
    %676 = arith.mulf %666, %675 : vector<8x32xf32>
    %677 = vector.broadcast %658 : vector<1x32xf32> to vector<8x32xf32>
    %678 = arith.mulf %676, %677 : vector<8x32xf32>
    %679 = vector.broadcast %660 : vector<1x32xf32> to vector<8x32xf32>
    %680 = arith.addf %678, %679 : vector<8x32xf32>
    %681 = arith.truncf %680 : vector<8x32xf32> to vector<8x32xbf16>
    %c2_275 = arith.constant 2 : index
    %c0_276 = arith.constant 0 : index
    %c0_277 = arith.constant 0 : index
    %682 = vector.load %arg16[%c2_275, %c0_276, %c0_277] : memref<3x32x128xbf16, #tpu.memory_space<vmem>>, vector<1x32x128xbf16>
    %683 = vector.shape_cast %682 : vector<1x32x128xbf16> to vector<32x128xbf16>
    %cst_278 = arith.constant dense<0.000000e+00> : vector<8x128xf32>
    %684 = tpu.matmul %681, %683, %cst_278 {dimension_numbers = #tpu.dot_dimension_numbers<[1], [0], [0], [1], [0, 0, 1, 1], [], []>} : vector<8x32xbf16>, vector<32x128xbf16>, vector<8x128xf32> -> vector<8x128xf32>
    %c2_279 = arith.constant 2 : index
    %c0_280 = arith.constant 0 : index
    %c0_281 = arith.constant 0 : index
    %685 = vector.load %arg17[%c2_279, %c0_280, %c0_281] : memref<3x1x128xf32, #tpu.memory_space<vmem>>, vector<1x1x128xf32>
    %686 = vector.shape_cast %685 : vector<1x1x128xf32> to vector<1x128xf32>
    %687 = vector.broadcast %686 : vector<1x128xf32> to vector<8x128xf32>
    %688 = arith.addf %684, %687 : vector<8x128xf32>
    %cst_282 = arith.constant 0.000000e+00 : f32
    %689 = vector.broadcast %cst_282 : f32 to vector<8x128xf32>
    %690 = arith.maximumf %688, %689 : vector<8x128xf32>
    %691 = arith.truncf %690 : vector<8x128xf32> to vector<8x128xbf16>
    %c2_283 = arith.constant 2 : index
    %c0_284 = arith.constant 0 : index
    %c0_285 = arith.constant 0 : index
    %692 = vector.load %arg18[%c2_283, %c0_284, %c0_285] : memref<3x128x32xbf16, #tpu.memory_space<vmem>>, vector<1x128x32xbf16>
    %693 = vector.shape_cast %692 : vector<1x128x32xbf16> to vector<128x32xbf16>
    %cst_286 = arith.constant dense<0.000000e+00> : vector<8x32xf32>
    %694 = tpu.matmul %691, %693, %cst_286 {dimension_numbers = #tpu.dot_dimension_numbers<[1], [0], [0], [1], [0, 0, 1, 1], [], []>} : vector<8x128xbf16>, vector<128x32xbf16>, vector<8x32xf32> -> vector<8x32xf32>
    %c2_287 = arith.constant 2 : index
    %c0_288 = arith.constant 0 : index
    %c0_289 = arith.constant 0 : index
    %695 = vector.load %arg19[%c2_287, %c0_288, %c0_289] : memref<3x1x32xf32, #tpu.memory_space<vmem>>, vector<1x1x32xf32>
    %696 = vector.shape_cast %695 : vector<1x1x32xf32> to vector<1x32xf32>
    %697 = vector.broadcast %696 : vector<1x32xf32> to vector<8x32xf32>
    %698 = arith.addf %694, %697 : vector<8x32xf32>
    %699 = arith.addf %680, %698 : vector<8x32xf32>
    %c2_290 = arith.constant 2 : index
    %c0_291 = arith.constant 0 : index
    %c0_292 = arith.constant 0 : index
    %700 = vector.load %arg22[%c2_290, %c0_291, %c0_292] : memref<3x1x32xf32, #tpu.memory_space<vmem>>, vector<1x1x32xf32>
    %701 = vector.shape_cast %700 : vector<1x1x32xf32> to vector<1x32xf32>
    %c2_293 = arith.constant 2 : index
    %c0_294 = arith.constant 0 : index
    %c0_295 = arith.constant 0 : index
    %702 = vector.load %arg23[%c2_293, %c0_294, %c0_295] : memref<3x1x32xf32, #tpu.memory_space<vmem>>, vector<1x1x32xf32>
    %703 = vector.shape_cast %702 : vector<1x1x32xf32> to vector<1x32xf32>
    %cst_296 = arith.constant dense<0.000000e+00> : vector<8xf32>
    %704 = vector.multi_reduction <add>, %699, %cst_296 [1] : vector<8x32xf32> to vector<8xf32>
    %705 = vector.shape_cast %704 : vector<8xf32> to vector<8x1xf32>
    %cst_297 = arith.constant 3.200000e+01 : f32
    %706 = vector.broadcast %cst_297 : f32 to vector<8x1xf32>
    %707 = arith.divf %705, %706 : vector<8x1xf32>
    %708 = vector.broadcast %707 : vector<8x1xf32> to vector<8x32xf32>
    %709 = arith.subf %699, %708 : vector<8x32xf32>
    %710 = arith.mulf %709, %709 : vector<8x32xf32>
    %cst_298 = arith.constant dense<0.000000e+00> : vector<8xf32>
    %711 = vector.multi_reduction <add>, %710, %cst_298 [1] : vector<8x32xf32> to vector<8xf32>
    %712 = vector.shape_cast %711 : vector<8xf32> to vector<8x1xf32>
    %cst_299 = arith.constant 3.200000e+01 : f32
    %713 = vector.broadcast %cst_299 : f32 to vector<8x1xf32>
    %714 = arith.divf %712, %713 : vector<8x1xf32>
    %cst_300 = arith.constant 9.99999974E-6 : f32
    %715 = vector.broadcast %cst_300 : f32 to vector<8x1xf32>
    %716 = arith.addf %714, %715 : vector<8x1xf32>
    %717 = math.rsqrt %716 : vector<8x1xf32>
    %718 = vector.broadcast %717 : vector<8x1xf32> to vector<8x32xf32>
    %719 = arith.mulf %709, %718 : vector<8x32xf32>
    %720 = vector.broadcast %701 : vector<1x32xf32> to vector<8x32xf32>
    %721 = arith.mulf %719, %720 : vector<8x32xf32>
    %722 = vector.broadcast %703 : vector<1x32xf32> to vector<8x32xf32>
    %723 = arith.addf %721, %722 : vector<8x32xf32>
    %c0_301 = arith.constant 0 : index
    %c0_302 = arith.constant 0 : index
    %724 = vector.load %arg24[%c0_301, %c0_302] : memref<8x32xf32, #tpu.memory_space<vmem>>, vector<8x32xf32>
    tpu.vector_store %arg24[%c0_301, %c0_302], %723 {strides = array<i32>} : memref<8x32xf32, #tpu.memory_space<vmem>>, vector<8x32xf32>,
    return
  }
}

</mosaic_0001>

<llo_original>
// kernel: encoder_forward.1
$region0: #{encoder_forward.1}
  #allocation0 [shape = 'u32[]', space=smem, size = 0x4, offset = 0x4, fixed_abs, tag = 'smem constant byte address 0x4 - core index']
  #allocation1 [shape = 'u32[144,128]{1,0:T(1,128)}', space=vmem, size = 0x12000, scoped, tag = 'internal scratch']
  %s0 = inlined_call_operand.vmem [shape: f32[512,1], index: 0, kind: input, shape index: {}]
  %s1 = inlined_call_operand.vmem [shape: bf16[1152,512], index: 1, kind: input, shape index: {}]
  %s2 = inlined_call_operand.vmem [shape: bf16[9,32], index: 2, kind: input, shape index: {}]
  %s3 = inlined_call_operand.vmem [shape: f32[1,32], index: 3, kind: input, shape index: {}]
  %s4 = inlined_call_operand.vmem [shape: bf16[288,128], index: 4, kind: input, shape index: {}]
  %s5 = inlined_call_operand.vmem [shape: bf16[288,64], index: 5, kind: input, shape index: {}]
  %s6 = inlined_call_operand.vmem [shape: f32[1,64], index: 6, kind: input, shape index: {}]
  %s7 = inlined_call_operand.vmem [shape: bf16[72,32], index: 7, kind: input, shape index: {}]
  %s8 = inlined_call_operand.vmem [shape: bf16[576,32], index: 8, kind: input, shape index: {}]
  %s9 = inlined_call_operand.vmem [shape: f32[1,32], index: 9, kind: input, shape index: {}]
  %s10 = inlined_call_operand.vmem [shape: f32[8,32], index: 10, kind: input, shape index: {}]
  %s11 = inlined_call_operand.vmem [shape: f32[8,8], index: 11, kind: input, shape index: {}]
  %s12 = inlined_call_operand.vmem [shape: bf16[3,32,96], index: 12, kind: input, shape index: {}]
  %s13 = inlined_call_operand.vmem [shape: f32[3,1,96], index: 13, kind: input, shape index: {}]
  %s14 = inlined_call_operand.vmem [shape: bf16[3,32,32], index: 14, kind: input, shape index: {}]
  %s15 = inlined_call_operand.vmem [shape: f32[3,1,32], index: 15, kind: input, shape index: {}]
  %s16 = inlined_call_operand.vmem [shape: bf16[3,32,128], index: 16, kind: input, shape index: {}]
  %s17 = inlined_call_operand.vmem [shape: f32[3,1,128], index: 17, kind: input, shape index: {}]
  %s18 = inlined_call_operand.vmem [shape: bf16[3,128,32], index: 18, kind: input, shape index: {}]
  %s19 = inlined_call_operand.vmem [shape: f32[3,1,32], index: 19, kind: input, shape index: {}]
  %s20 = inlined_call_operand.vmem [shape: f32[3,1,32], index: 20, kind: input, shape index: {}]
  %s21 = inlined_call_operand.vmem [shape: f32[3,1,32], index: 21, kind: input, shape index: {}]
  %s22 = inlined_call_operand.vmem [shape: f32[3,1,32], index: 22, kind: input, shape index: {}]
  %s23 = inlined_call_operand.vmem [shape: f32[3,1,32], index: 23, kind: input, shape index: {}]
  %s24 = inlined_call_operand.hbm [shape: f32[8,32], index: 24, kind: output, shape index: {}]
  %s25 = sld [smem:[#allocation0]]
  $region106: #{encoder_forward.1} parent=0
    _
  %s27 = ssub.s32 1, %s25
  %s28 = scalar_select 0, %s27, %s25
  $region1: #{encoder_forward.1} parent=0
    #allocation2 [shape = 'u8[4096]{0}', space=vmem, size = 0x1000, scoped, tag = 'output window, operand 0, single buffered']
    #allocation3 [shape = 's32[1]{0}', space=sflag, size = 0x4, scoped, tag = 'scoped memory for encoder_forward.1']
    %29 = vsyncpa [#allocation3], 0
    // Predicated region
    $region2: #{encoder_forward.1} parent=1 // pred_check
      _
    $region3: #{encoder_forward.1} parent=1 // pred_check_branch
      %31 = sbr.rel (0) target = $region5
    $region4: #{encoder_forward.1} parent=1 // pred_region
      _
    $region5: #{encoder_forward.1} parent=1 // pred_fallthru
      _
    // Predicated region
    $region6: #{encoder_forward.1} parent=1 // pred_check
      _
    $region7: #{encoder_forward.1} parent=1 // pred_check_branch
      %33 = sbr.rel (0) target = $region9
    $region8: #{encoder_forward.1} parent=1 // pred_region
      _
    $region9: #{encoder_forward.1} parent=1 // pred_fallthru
      _
    // Predicated region
    $region10: #{encoder_forward.1} parent=1 // pred_check
      _
    $region11: #{encoder_forward.1} parent=1 // pred_check_branch
      %35 = sbr.rel (0) target = $region13
    $region12: #{encoder_forward.1} parent=1 // pred_region
      _
    $region13: #{encoder_forward.1} parent=1 // pred_fallthru
      _
    // Predicated region
    $region14: #{encoder_forward.1} parent=1 // pred_check
      _
    $region15: #{encoder_forward.1} parent=1 // pred_check_branch
      %37 = sbr.rel (0) target = $region17
    $region16: #{encoder_forward.1} parent=1 // pred_region
      _
    $region17: #{encoder_forward.1} parent=1 // pred_fallthru
      _
    // Predicated region
    $region18: #{encoder_forward.1} parent=1 // pred_check
      _
    $region19: #{encoder_forward.1} parent=1 // pred_check_branch
      %39 = sbr.rel (0) target = $region21
    $region20: #{encoder_forward.1} parent=1 // pred_region
      _
    $region21: #{encoder_forward.1} parent=1 // pred_fallthru
      _
    // Predicated region
    $region22: #{encoder_forward.1} parent=1 // pred_check
      _
    $region23: #{encoder_forward.1} parent=1 // pred_check_branch
      %41 = sbr.rel (0) target = $region25
    $region24: #{encoder_forward.1} parent=1 // pred_region
      _
    $region25: #{encoder_forward.1} parent=1 // pred_fallthru
      _
    // Predicated region
    $region26: #{encoder_forward.1} parent=1 // pred_check
      _
    $region27: #{encoder_forward.1} parent=1 // pred_check_branch
      %43 = sbr.rel (0) target = $region29
    $region28: #{encoder_forward.1} parent=1 // pred_region
      _
    $region29: #{encoder_forward.1} parent=1 // pred_fallthru
      _
    // Predicated region
    $region30: #{encoder_forward.1} parent=1 // pred_check
      _
    $region31: #{encoder_forward.1} parent=1 // pred_check_branch
      %45 = sbr.rel (0) target = $region33
    $region32: #{encoder_forward.1} parent=1 // pred_region
      _
    $region33: #{encoder_forward.1} parent=1 // pred_fallthru
      _
    // Predicated region
    $region34: #{encoder_forward.1} parent=1 // pred_check
      _
    $region35: #{encoder_forward.1} parent=1 // pred_check_branch
      %47 = sbr.rel (0) target = $region37
    $region36: #{encoder_forward.1} parent=1 // pred_region
      _
    $region37: #{encoder_forward.1} parent=1 // pred_fallthru
      _
    // Predicated region
    $region38: #{encoder_forward.1} parent=1 // pred_check
      _
    $region39: #{encoder_forward.1} parent=1 // pred_check_branch
      %49 = sbr.rel (0) target = $region41
    $region40: #{encoder_forward.1} parent=1 // pred_region
      _
    $region41: #{encoder_forward.1} parent=1 // pred_fallthru
      _
    // Predicated region
    $region42: #{encoder_forward.1} parent=1 // pred_check
      _
    $region43: #{encoder_forward.1} parent=1 // pred_check_branch
      %51 = sbr.rel (0) target = $region45
    $region44: #{encoder_forward.1} parent=1 // pred_region
      _
    $region45: #{encoder_forward.1} parent=1 // pred_fallthru
      _
    // Predicated region
    $region46: #{encoder_forward.1} parent=1 // pred_check
      _
    $region47: #{encoder_forward.1} parent=1 // pred_check_branch
      %53 = sbr.rel (0) target = $region49
    $region48: #{encoder_forward.1} parent=1 // pred_region
      _
    $region49: #{encoder_forward.1} parent=1 // pred_fallthru
      _
    // Predicated region
    $region50: #{encoder_forward.1} parent=1 // pred_check
      _
    $region51: #{encoder_forward.1} parent=1 // pred_check_branch
      %55 = sbr.rel (0) target = $region53
    $region52: #{encoder_forward.1} parent=1 // pred_region
      _
    $region53: #{encoder_forward.1} parent=1 // pred_fallthru
      _
    // Predicated region
    $region54: #{encoder_forward.1} parent=1 // pred_check
      _
    $region55: #{encoder_forward.1} parent=1 // pred_check_branch
      %57 = sbr.rel (0) target = $region57
    $region56: #{encoder_forward.1} parent=1 // pred_region
      _
    $region57: #{encoder_forward.1} parent=1 // pred_fallthru
      _
    // Predicated region
    $region58: #{encoder_forward.1} parent=1 // pred_check
      _
    $region59: #{encoder_forward.1} parent=1 // pred_check_branch
      %59 = sbr.rel (0) target = $region61
    $region60: #{encoder_forward.1} parent=1 // pred_region
      _
    $region61: #{encoder_forward.1} parent=1 // pred_fallthru
      _
    // Predicated region
    $region62: #{encoder_forward.1} parent=1 // pred_check
      _
    $region63: #{encoder_forward.1} parent=1 // pred_check_branch
      %61 = sbr.rel (0) target = $region65
    $region64: #{encoder_forward.1} parent=1 // pred_region
      _
    $region65: #{encoder_forward.1} parent=1 // pred_fallthru
      _
    // Predicated region
    $region66: #{encoder_forward.1} parent=1 // pred_check
      _
    $region67: #{encoder_forward.1} parent=1 // pred_check_branch
      %63 = sbr.rel (0) target = $region69
    $region68: #{encoder_forward.1} parent=1 // pred_region
      _
    $region69: #{encoder_forward.1} parent=1 // pred_fallthru
      _
    // Predicated region
    $region70: #{encoder_forward.1} parent=1 // pred_check
      _
    $region71: #{encoder_forward.1} parent=1 // pred_check_branch
      %65 = sbr.rel (0) target = $region73
    $region72: #{encoder_forward.1} parent=1 // pred_region
      _
    $region73: #{encoder_forward.1} parent=1 // pred_fallthru
      _
    // Predicated region
    $region74: #{encoder_forward.1} parent=1 // pred_check
      _
    $region75: #{encoder_forward.1} parent=1 // pred_check_branch
      %67 = sbr.rel (0) target = $region77
    $region76: #{encoder_forward.1} parent=1 // pred_region
      _
    $region77: #{encoder_forward.1} parent=1 // pred_fallthru
      _
    // Predicated region
    $region78: #{encoder_forward.1} parent=1 // pred_check
      _
    $region79: #{encoder_forward.1} parent=1 // pred_check_branch
      %69 = sbr.rel (0) target = $region81
    $region80: #{encoder_forward.1} parent=1 // pred_region
      _
    $region81: #{encoder_forward.1} parent=1 // pred_fallthru
      _
    // Predicated region
    $region82: #{encoder_forward.1} parent=1 // pred_check
      _
    $region83: #{encoder_forward.1} parent=1 // pred_check_branch
      %71 = sbr.rel (0) target = $region85
    $region84: #{encoder_forward.1} parent=1 // pred_region
      _
    $region85: #{encoder_forward.1} parent=1 // pred_fallthru
      _
    // Predicated region
    $region86: #{encoder_forward.1} parent=1 // pred_check
      _
    $region87: #{encoder_forward.1} parent=1 // pred_check_branch
      %73 = sbr.rel (0) target = $region89
    $region88: #{encoder_forward.1} parent=1 // pred_region
      _
    $region89: #{encoder_forward.1} parent=1 // pred_fallthru
      _
    // Predicated region
    $region90: #{encoder_forward.1} parent=1 // pred_check
      _
    $region91: #{encoder_forward.1} parent=1 // pred_check_branch
      %75 = sbr.rel (0) target = $region93
    $region92: #{encoder_forward.1} parent=1 // pred_region
      _
    $region93: #{encoder_forward.1} parent=1 // pred_fallthru
      _
    // Predicated region
    $region94: #{encoder_forward.1} parent=1 // pred_check
      _
    $region95: #{encoder_forward.1} parent=1 // pred_check_branch
      %77 = sbr.rel (0) target = $region97
    $region96: #{encoder_forward.1} parent=1 // pred_region
      _
    $region97: #{encoder_forward.1} parent=1 // pred_fallthru
      _
    %v79 = vld [vmem:[%s0] sm:$0xff]
    %v80 = vld [vmem:[%s0 + $0x8] sm:$0xff]
    %v81 = vld [vmem:[%s0 + $0x10] sm:$0xff]
    %v82 = vld [vmem:[%s0 + $0x18] sm:$0xff]
    %v83 = vld [vmem:[%s0 + $0x20] sm:$0xff]
    %v84 = vld [vmem:[%s0 + $0x28] sm:$0xff]
    %v85 = vld [vmem:[%s0 + $0x30] sm:$0xff]
    %v86 = vld [vmem:[%s0 + $0x38] sm:$0xff]
    %v87 = vld [vmem:[%s0 + $0x40] sm:$0xff]
    %v88 = vld [vmem:[%s0 + $0x48] sm:$0xff]
    %v89 = vld [vmem:[%s0 + $0x50] sm:$0xff]
    %v90 = vld [vmem:[%s0 + $0x58] sm:$0xff]
    %v91 = vld [vmem:[%s0 + $0x60] sm:$0xff]
    %v92 = vld [vmem:[%s0 + $0x68] sm:$0xff]
    %v93 = vld [vmem:[%s0 + $0x70] sm:$0xff]
    %v94 = vld [vmem:[%s0 + $0x78] sm:$0xff]
    %v95 = vld [vmem:[%s0 + $0x80] sm:$0xff]
    %v96 = vld [vmem:[%s0 + $0x88] sm:$0xff]
    %v97 = vld [vmem:[%s0 + $0x90] sm:$0xff]
    %v98 = vld [vmem:[%s0 + $0x98] sm:$0xff]
    %v99 = vld [vmem:[%s0 + $0xa0] sm:$0xff]
    %v100 = vld [vmem:[%s0 + $0xa8] sm:$0xff]
    %v101 = vld [vmem:[%s0 + $0xb0] sm:$0xff]
    %v102 = vld [vmem:[%s0 + $0xb8] sm:$0xff]
    %v103 = vld [vmem:[%s0 + $0xc0] sm:$0xff]
    %v104 = vld [vmem:[%s0 + $0xc8] sm:$0xff]
    %v105 = vld [vmem:[%s0 + $0xd0] sm:$0xff]
    %v106 = vld [vmem:[%s0 + $0xd8] sm:$0xff]
    %v107 = vld [vmem:[%s0 + $0xe0] sm:$0xff]
    %v108 = vld [vmem:[%s0 + $0xe8] sm:$0xff]
    %v109 = vld [vmem:[%s0 + $0xf0] sm:$0xff]
    %v110 = vld [vmem:[%s0 + $0xf8] sm:$0xff]
    %v111 = vld [vmem:[%s0 + $0x100] sm:$0xff]
    %v112 = vld [vmem:[%s0 + $0x108] sm:$0xff]
    %v113 = vld [vmem:[%s0 + $0x110] sm:$0xff]
    %v114 = vld [vmem:[%s0 + $0x118] sm:$0xff]
    %v115 = vld [vmem:[%s0 + $0x120] sm:$0xff]
    %v116 = vld [vmem:[%s0 + $0x128] sm:$0xff]
    %v117 = vld [vmem:[%s0 + $0x130] sm:$0xff]
    %v118 = vld [vmem:[%s0 + $0x138] sm:$0xff]
    %v119 = vld [vmem:[%s0 + $0x140] sm:$0xff]
    %v120 = vld [vmem:[%s0 + $0x148] sm:$0xff]
    %v121 = vld [vmem:[%s0 + $0x150] sm:$0xff]
    %v122 = vld [vmem:[%s0 + $0x158] sm:$0xff]
    %v123 = vld [vmem:[%s0 + $0x160] sm:$0xff]
    %v124 = vld [vmem:[%s0 + $0x168] sm:$0xff]
    %v125 = vld [vmem:[%s0 + $0x170] sm:$0xff]
    %v126 = vld [vmem:[%s0 + $0x178] sm:$0xff]
    %v127 = vld [vmem:[%s0 + $0x180] sm:$0xff]
    %v128 = vld [vmem:[%s0 + $0x188] sm:$0xff]
    %v129 = vld [vmem:[%s0 + $0x190] sm:$0xff]
    %v130 = vld [vmem:[%s0 + $0x198] sm:$0xff]
    %v131 = vld [vmem:[%s0 + $0x1a0] sm:$0xff]
    %v132 = vld [vmem:[%s0 + $0x1a8] sm:$0xff]
    %v133 = vld [vmem:[%s0 + $0x1b0] sm:$0xff]
    %v134 = vld [vmem:[%s0 + $0x1b8] sm:$0xff]
    %v135 = vld [vmem:[%s0 + $0x1c0] sm:$0xff]
    %v136 = vld [vmem:[%s0 + $0x1c8] sm:$0xff]
    %v137 = vld [vmem:[%s0 + $0x1d0] sm:$0xff]
    %v138 = vld [vmem:[%s0 + $0x1d8] sm:$0xff]
    %v139 = vld [vmem:[%s0 + $0x1e0] sm:$0xff]
    %v140 = vld [vmem:[%s0 + $0x1e8] sm:$0xff]
    %v141 = vld [vmem:[%s0 + $0x1f0] sm:$0xff]
    %v142 = vld [vmem:[%s0 + $0x1f8] sm:$0xff]
    %v143 = vpack.c.bf16 %v80, %v79
    %v144 = vpack.c.bf16 %v82, %v81
    %v145 = vpack.c.bf16 %v84, %v83
    %v146 = vpack.c.bf16 %v86, %v85
    %v147 = vpack.c.bf16 %v88, %v87
    %v148 = vpack.c.bf16 %v90, %v89
    %v149 = vpack.c.bf16 %v92, %v91
    %v150 = vpack.c.bf16 %v94, %v93
    %v151 = vpack.c.bf16 %v96, %v95
    %v152 = vpack.c.bf16 %v98, %v97
    %v153 = vpack.c.bf16 %v100, %v99
    %v154 = vpack.c.bf16 %v102, %v101
    %v155 = vpack.c.bf16 %v104, %v103
    %v156 = vpack.c.bf16 %v106, %v105
    %v157 = vpack.c.bf16 %v108, %v107
    %v158 = vpack.c.bf16 %v110, %v109
    %v159 = vpack.c.bf16 %v112, %v111
    %v160 = vpack.c.bf16 %v114, %v113
    %v161 = vpack.c.bf16 %v116, %v115
    %v162 = vpack.c.bf16 %v118, %v117
    %v163 = vpack.c.bf16 %v120, %v119
    %v164 = vpack.c.bf16 %v122, %v121
    %v165 = vpack.c.bf16 %v124, %v123
    %v166 = vpack.c.bf16 %v126, %v125
    %v167 = vpack.c.bf16 %v128, %v127
    %v168 = vpack.c.bf16 %v130, %v129
    %v169 = vpack.c.bf16 %v132, %v131
    %v170 = vpack.c.bf16 %v134, %v133
    %v171 = vpack.c.bf16 %v136, %v135
    %v172 = vpack.c.bf16 %v138, %v137
    %v173 = vpack.c.bf16 %v140, %v139
    %v174 = vpack.c.bf16 %v142, %v141
    %v175 = vld [vmem:[%s3] sm:$0x1]
    %v176 = vld [vmem:[%s1] sm:$0xff]
    %v177 = vld [vmem:[%s1 + $0x8] sm:$0xff]
    %v178 = vld [vmem:[%s1 + $0x10] sm:$0xff]
    %v179 = vld [vmem:[%s1 + $0x18] sm:$0xff]
    %v180 = vld [vmem:[%s1 + $0x20] sm:$0xff]
    %v181 = vld [vmem:[%s1 + $0x28] sm:$0xff]
    %v182 = vld [vmem:[%s1 + $0x30] sm:$0xff]
    %v183 = vld [vmem:[%s1 + $0x38] sm:$0xff]
    %v184 = vld [vmem:[%s1 + $0x40] sm:$0xff]
    %v185 = vld [vmem:[%s1 + $0x48] sm:$0xff]
    %v186 = vld [vmem:[%s1 + $0x50] sm:$0xff]
    %v187 = vld [vmem:[%s1 + $0x58] sm:$0xff]
    %v188 = vld [vmem:[%s1 + $0x60] sm:$0xff]
    %v189 = vld [vmem:[%s1 + $0x68] sm:$0xff]
    %v190 = vld [vmem:[%s1 + $0x70] sm:$0xff]
    %v191 = vld [vmem:[%s1 + $0x78] sm:$0xff]
    %v192 = vld [vmem:[%s1 + $0x80] sm:$0xff]
    %v193 = vld [vmem:[%s1 + $0x88] sm:$0xff]
    %v194 = vld [vmem:[%s1 + $0x90] sm:$0xff]
    %v195 = vld [vmem:[%s1 + $0x98] sm:$0xff]
    %v196 = vld [vmem:[%s1 + $0xa0] sm:$0xff]
    %v197 = vld [vmem:[%s1 + $0xa8] sm:$0xff]
    %v198 = vld [vmem:[%s1 + $0xb0] sm:$0xff]
    %v199 = vld [vmem:[%s1 + $0xb8] sm:$0xff]
    %v200 = vld [vmem:[%s1 + $0xc0] sm:$0xff]
    %v201 = vld [vmem:[%s1 + $0xc8] sm:$0xff]
    %v202 = vld [vmem:[%s1 + $0xd0] sm:$0xff]
    %v203 = vld [vmem:[%s1 + $0xd8] sm:$0xff]
    %v204 = vld [vmem:[%s1 + $0xe0] sm:$0xff]
    %v205 = vld [vmem:[%s1 + $0xe8] sm:$0xff]
    %v206 = vld [vmem:[%s1 + $0xf0] sm:$0xff]
    %v207 = vld [vmem:[%s1 + $0xf8] sm:$0xff]
    %v240 = vunpack.c.l.b16 %v176
    %v241 = vunpack.c.h.b16 %v176
    %v242 = vunpack.c.l.b16 %v177
    %v243 = vunpack.c.h.b16 %v177
    %v244 = vunpack.c.l.b16 %v178
    %v245 = vunpack.c.h.b16 %v178
    %v246 = vunpack.c.l.b16 %v179
    %v247 = vunpack.c.h.b16 %v179
    %v248 = vunpack.c.l.b16 %v180
    %v249 = vunpack.c.h.b16 %v180
    %v250 = vunpack.c.l.b16 %v181
    %v251 = vunpack.c.h.b16 %v181
    %v252 = vunpack.c.l.b16 %v182
    %v253 = vunpack.c.h.b16 %v182
    %v254 = vunpack.c.l.b16 %v183
    %v255 = vunpack.c.h.b16 %v183
    %v256 = vunpack.c.l.b16 %v184
    %v257 = vunpack.c.h.b16 %v184
    %v258 = vunpack.c.l.b16 %v185
    %v259 = vunpack.c.h.b16 %v185
    %v260 = vunpack.c.l.b16 %v186
    %v261 = vunpack.c.h.b16 %v186
    %v262 = vunpack.c.l.b16 %v187
    %v263 = vunpack.c.h.b16 %v187
    %v264 = vunpack.c.l.b16 %v188
    %v265 = vunpack.c.h.b16 %v188
    %v266 = vunpack.c.l.b16 %v189
    %v267 = vunpack.c.h.b16 %v189
    %v268 = vunpack.c.l.b16 %v190
    %v269 = vunpack.c.h.b16 %v190
    %v270 = vunpack.c.l.b16 %v191
    %v271 = vunpack.c.h.b16 %v191
    %v272 = vunpack.c.l.b16 %v192
    %v273 = vunpack.c.h.b16 %v192
    %v274 = vunpack.c.l.b16 %v193
    %v275 = vunpack.c.h.b16 %v193
    %v276 = vunpack.c.l.b16 %v194
    %v277 = vunpack.c.h.b16 %v194
    %v278 = vunpack.c.l.b16 %v195
    %v279 = vunpack.c.h.b16 %v195
    %v280 = vunpack.c.l.b16 %v196
    %v281 = vunpack.c.h.b16 %v196
    %v282 = vunpack.c.l.b16 %v197
    %v283 = vunpack.c.h.b16 %v197
    %v284 = vunpack.c.l.b16 %v198
    %v285 = vunpack.c.h.b16 %v198
    %v286 = vunpack.c.l.b16 %v199
    %v287 = vunpack.c.h.b16 %v199
    %v288 = vunpack.c.l.b16 %v200
    %v289 = vunpack.c.h.b16 %v200
    %v290 = vunpack.c.l.b16 %v201
    %v291 = vunpack.c.h.b16 %v201
    %v292 = vunpack.c.l.b16 %v202
    %v293 = vunpack.c.h.b16 %v202
    %v294 = vunpack.c.l.b16 %v203
    %v295 = vunpack.c.h.b16 %v203
    %v296 = vunpack.c.l.b16 %v204
    %v297 = vunpack.c.h.b16 %v204
    %v298 = vunpack.c.l.b16 %v205
    %v299 = vunpack.c.h.b16 %v205
    %v300 = vunpack.c.l.b16 %v206
    %v301 = vunpack.c.h.b16 %v206
    %v302 = vunpack.c.l.b16 %v207
    %v303 = vunpack.c.h.b16 %v207
    %v304 = vpack.c.b16 %v244, %v240
    %v305 = vpack.c.b16 %v245, %v241
    %v306 = vpack.c.b16 %v246, %v242
    %v307 = vpack.c.b16 %v247, %v243
    %v308 = vpack.c.b16 %v252, %v248
    %v309 = vpack.c.b16 %v253, %v249
    %v310 = vpack.c.b16 %v254, %v250
    %v311 = vpack.c.b16 %v255, %v251
    %v312 = vpack.c.b16 %v260, %v256
    %v313 = vpack.c.b16 %v261, %v257
    %v314 = vpack.c.b16 %v262, %v258
    %v315 = vpack.c.b16 %v263, %v259
    %v316 = vpack.c.b16 %v268, %v264
    %v317 = vpack.c.b16 %v269, %v265
    %v318 = vpack.c.b16 %v270, %v266
    %v319 = vpack.c.b16 %v271, %v267
    %v320 = vpack.c.b16 %v276, %v272
    %v321 = vpack.c.b16 %v277, %v273
    %v322 = vpack.c.b16 %v278, %v274
    %v323 = vpack.c.b16 %v279, %v275
    %v324 = vpack.c.b16 %v284, %v280
    %v325 = vpack.c.b16 %v285, %v281
    %v326 = vpack.c.b16 %v286, %v282
    %v327 = vpack.c.b16 %v287, %v283
    %v328 = vpack.c.b16 %v292, %v288
    %v329 = vpack.c.b16 %v293, %v289
    %v330 = vpack.c.b16 %v294, %v290
    %v331 = vpack.c.b16 %v295, %v291
    %v332 = vpack.c.b16 %v300, %v296
    %v333 = vpack.c.b16 %v301, %v297
    %v334 = vpack.c.b16 %v302, %v298
    %v335 = vpack.c.b16 %v303, %v299
    %368 = vmatprep.subr.bf16.mxu0 0
    %369 = vmatpush1.bf16.msra.mxu0 %v143
    %370 = vmatprep.subr.bf16.mxu0 0
    %371 = vmatpush1.bf16.msra.mxu0 %v144
    %372 = vmatprep.subr.bf16.mxu0 0
    %373 = vmatpush1.bf16.msra.mxu0 %v145
    %374 = vmatprep.subr.bf16.mxu0 0
    %375 = vmatpush1.bf16.msra.mxu0 %v146
    %376 = vmatprep.subr.bf16.mxu0 0
    %377 = vmatpush1.bf16.msra.mxu0 %v147
    %378 = vmatprep.subr.bf16.mxu0 0
    %379 = vmatpush1.bf16.msra.mxu0 %v148
    %380 = vmatprep.subr.bf16.mxu0 0
    %381 = vmatpush1.bf16.msra.mxu0 %v149
    %382 = vmatprep.subr.bf16.mxu0 0
    %383 = vmatpush1.bf16.msra.mxu0 %v150
    %384 = vmatprep.subr.bf16.mxu0 0
    %385 = vmatpush1.bf16.msra.mxu0 %v151
    %386 = vmatprep.subr.bf16.mxu0 0
    %387 = vmatpush1.bf16.msra.mxu0 %v152
    %388 = vmatprep.subr.bf16.mxu0 0
    %389 = vmatpush1.bf16.msra.mxu0 %v153
    %390 = vmatprep.subr.bf16.mxu0 0
    %391 = vmatpush1.bf16.msra.mxu0 %v154
    %392 = vmatprep.subr.bf16.mxu0 0
    %393 = vmatpush1.bf16.msra.mxu0 %v155
    %394 = vmatprep.subr.bf16.mxu0 0
    %395 = vmatpush1.bf16.msra.mxu0 %v156
    %396 = vmatprep.subr.bf16.mxu0 0
    %397 = vmatpush1.bf16.msra.mxu0 %v157
    %398 = vmatprep.subr.bf16.mxu0 0
    %399 = vmatpush1.bf16.msra.mxu0 %v158
    %400 = vmatprep.mubr.bf16.mxu0 %v305
    %401 = vmatmul.mubr.bf16.gmra.mrb[0].mxu0 %v304
    %v402 = vpop.f32.mrb[0].mxu0
    %v403 = vadd.f32 0.0, %v402
    %v404 = vpop.f32.mrb[0].mxu0
    %v405 = vpop.f32.mrb[0].mxu0
    %v406 = vadd.f32 0.0, %v405
    %v407 = vpop.f32.mrb[0].mxu0
    %408 = vmatprep.mubr.bf16.mxu0 %v309
    %409 = vmatmul.mubr.bf16.gmra.mrb[0].mxu0 %v308
    %v410 = vpop.f32.mrb[0].mxu0
    %v411 = vadd.f32 0.0, %v410
    %v412 = vpop.f32.mrb[0].mxu0
    %v413 = vpop.f32.mrb[0].mxu0
    %v414 = vadd.f32 0.0, %v413
    %v415 = vpop.f32.mrb[0].mxu0
    %416 = vmatprep.mubr.bf16.mxu0 %v313
    %417 = vmatmul.mubr.bf16.gmra.mrb[0].mxu0 %v312
    %v418 = vpop.f32.mrb[0].mxu0
    %v419 = vadd.f32 0.0, %v418
    %v420 = vpop.f32.mrb[0].mxu0
    %v421 = vpop.f32.mrb[0].mxu0
    %v422 = vadd.f32 0.0, %v421
    %v423 = vpop.f32.mrb[0].mxu0
    %424 = vmatprep.mubr.bf16.mxu0 %v317
    %425 = vmatmul.mubr.bf16.gmra.mrb[0].mxu0 %v316
    %v426 = vpop.f32.mrb[0].mxu0
    %v427 = vadd.f32 0.0, %v426
    %v428 = vpop.f32.mrb[0].mxu0
    %v429 = vpop.f32.mrb[0].mxu0
    %v430 = vadd.f32 0.0, %v429
    %v431 = vpop.f32.mrb[0].mxu0
    %432 = vmatprep.mubr.bf16.mxu0 %v321
    %433 = vmatmul.mubr.bf16.gmra.mrb[0].mxu0 %v320
    %v434 = vpop.f32.mrb[0].mxu0
    %v435 = vadd.f32 0.0, %v434
    %v436 = vpop.f32.mrb[0].mxu0
    %v437 = vpop.f32.mrb[0].mxu0
    %v438 = vadd.f32 0.0, %v437
    %v439 = vpop.f32.mrb[0].mxu0
    %440 = vmatprep.mubr.bf16.mxu0 %v325
    %441 = vmatmul.mubr.bf16.gmra.mrb[0].mxu0 %v324
    %v442 = vpop.f32.mrb[0].mxu0
    %v443 = vadd.f32 0.0, %v442
    %v444 = vpop.f32.mrb[0].mxu0
    %v445 = vpop.f32.mrb[0].mxu0
    %v446 = vadd.f32 0.0, %v445
    %v447 = vpop.f32.mrb[0].mxu0
    %448 = vmatprep.mubr.bf16.mxu0 %v329
    %449 = vmatmul.mubr.bf16.gmra.mrb[0].mxu0 %v328
    %v450 = vpop.f32.mrb[0].mxu0
    %v451 = vadd.f32 0.0, %v450
    %v452 = vpop.f32.mrb[0].mxu0
    %v453 = vpop.f32.mrb[0].mxu0
    %v454 = vadd.f32 0.0, %v453
    %v455 = vpop.f32.mrb[0].mxu0
    %456 = vmatprep.mubr.bf16.mxu0 %v333
    %457 = vmatmul.mubr.bf16.gmra.mrb[0].mxu0 %v332
    %v458 = vpop.f32.mrb[0].mxu0
    %v459 = vadd.f32 0.0, %v458
    %v460 = vpop.f32.mrb[0].mxu0
    %v461 = vpop.f32.mrb[0].mxu0
    %v462 = vadd.f32 0.0, %v461
    %v463 = vpop.f32.mrb[0].mxu0
    %464 = vdwg.mxu0
    %465 = vmatprep.subr.bf16.mxu0 0
    %466 = vmatpush1.bf16.msra.mxu0 %v159
    %467 = vmatprep.subr.bf16.mxu0 0
    %468 = vmatpush1.bf16.msra.mxu0 %v160
    %469 = vmatprep.subr.bf16.mxu0 0
    %470 = vmatpush1.bf16.msra.mxu0 %v161
    %471 = vmatprep.subr.bf16.mxu0 0
    %472 = vmatpush1.bf16.msra.mxu0 %v162
    %473 = vmatprep.subr.bf16.mxu0 0
    %474 = vmatpush1.bf16.msra.mxu0 %v163
    %475 = vmatprep.subr.bf16.mxu0 0
    %476 = vmatpush1.bf16.msra.mxu0 %v164
    %477 = vmatprep.subr.bf16.mxu0 0
    %478 = vmatpush1.bf16.msra.mxu0 %v165
    %479 = vmatprep.subr.bf16.mxu0 0
    %480 = vmatpush1.bf16.msra.mxu0 %v166
    %481 = vmatprep.subr.bf16.mxu0 0
    %482 = vmatpush1.bf16.msra.mxu0 %v167
    %483 = vmatprep.subr.bf16.mxu0 0
    %484 = vmatpush1.bf16.msra.mxu0 %v168
    %485 = vmatprep.subr.bf16.mxu0 0
    %486 = vmatpush1.bf16.msra.mxu0 %v169
    %487 = vmatprep.subr.bf16.mxu0 0
    %488 = vmatpush1.bf16.msra.mxu0 %v170
    %489 = vmatprep.subr.bf16.mxu0 0
    %490 = vmatpush1.bf16.msra.mxu0 %v171
    %491 = vmatprep.subr.bf16.mxu0 0
    %492 = vmatpush1.bf16.msra.mxu0 %v172
    %493 = vmatprep.subr.bf16.mxu0 0
    %494 = vmatpush1.bf16.msra.mxu0 %v173
    %495 = vmatprep.subr.bf16.mxu0 0
    %496 = vmatpush1.bf16.msra.mxu0 %v174
    %497 = vmatprep.mubr.bf16.mxu0 %v307
    %498 = vmatmul.mubr.bf16.gmra.mrb[0].mxu0 %v306
    %v499 = vpop.f32.mrb[0].mxu0
    %v500 = vadd.f32 %v403, %v499
    %v501 = vpop.f32.mrb[0].mxu0
    %v502 = vpop.f32.mrb[0].mxu0
    %v503 = vadd.f32 %v406, %v502
    %v504 = vpop.f32.mrb[0].mxu0
    %505 = vmatprep.mubr.bf16.mxu0 %v311
    %506 = vmatmul.mubr.bf16.gmra.mrb[0].mxu0 %v310
    %v507 = vpop.f32.mrb[0].mxu0
    %v508 = vadd.f32 %v411, %v507
    %v509 = vpop.f32.mrb[0].mxu0
    %v510 = vpop.f32.mrb[0].mxu0
    %v511 = vadd.f32 %v414, %v510
    %v512 = vpop.f32.mrb[0].mxu0
    %513 = vmatprep.mubr.bf16.mxu0 %v315
    %514 = vmatmul.mubr.bf16.gmra.mrb[0].mxu0 %v314
    %v515 = vpop.f32.mrb[0].mxu0
    %v516 = vadd.f32 %v419, %v515
    %v517 = vpop.f32.mrb[0].mxu0
    %v518 = vpop.f32.mrb[0].mxu0
    %v519 = vadd.f32 %v422, %v518
    %v520 = vpop.f32.mrb[0].mxu0
    %521 = vmatprep.mubr.bf16.mxu0 %v319
    %522 = vmatmul.mubr.bf16.gmra.mrb[0].mxu0 %v318
    %v523 = vpop.f32.mrb[0].mxu0
    %v524 = vadd.f32 %v427, %v523
    %v525 = vpop.f32.mrb[0].mxu0
    %v526 = vpop.f32.mrb[0].mxu0
    %v527 = vadd.f32 %v430, %v526
    %v528 = vpop.f32.mrb[0].mxu0
    %529 = vmatprep.mubr.bf16.mxu0 %v323
    %530 = vmatmul.mubr.bf16.gmra.mrb[0].mxu0 %v322
    %v531 = vpop.f32.mrb[0].mxu0
    %v532 = vadd.f32 %v435, %v531
    %v533 = vpop.f32.mrb[0].mxu0
    %v534 = vpop.f32.mrb[0].mxu0
    %v535 = vadd.f32 %v438, %v534
    %v536 = vpop.f32.mrb[0].mxu0
    %537 = vmatprep.mubr.bf16.mxu0 %v327
    %538 = vmatmul.mubr.bf16.gmra.mrb[0].mxu0 %v326
    %v539 = vpop.f32.mrb[0].mxu0
    %v540 = vadd.f32 %v443, %v539
    %v541 = vpop.f32.mrb[0].mxu0
    %v542 = vpop.f32.mrb[0].mxu0
    %v543 = vadd.f32 %v446, %v542
    %v544 = vpop.f32.mrb[0].mxu0
    %545 = vmatprep.mubr.bf16.mxu0 %v331
    %546 = vmatmul.mubr.bf16.gmra.mrb[0].mxu0 %v330
    %v547 = vpop.f32.mrb[0].mxu0
    %v548 = vadd.f32 %v451, %v547
    %v549 = vpop.f32.mrb[0].mxu0
    %v550 = vpop.f32.mrb[0].mxu0
    %v551 = vadd.f32 %v454, %v550
    %v552 = vpop.f32.mrb[0].mxu0
    %553 = vmatprep.mubr.bf16.mxu0 %v335
    %554 = vmatmul.mubr.bf16.gmra.mrb[0].mxu0 %v334
    %v555 = vpop.f32.mrb[0].mxu0
    %v556 = vadd.f32 %v459, %v555
    %v557 = vpop.f32.mrb[0].mxu0
    %v558 = vpop.f32.mrb[0].mxu0
    %v559 = vadd.f32 %v462, %v558
    %v560 = vpop.f32.mrb[0].mxu0
    %561 = vdwg.mxu0
    %v562 = vld [vmem:[%s2] sm:$0x1]
    %v563 = vunpack.c.l.bf16 %v562
    %565 = vset.pattern.permute.xlu0 0
    %566 = vperm.xlu0 %565, %v500
    %v567 = vpop.permute.xlu0 %566
    %570 = vset.pattern.permute.xlu0 0
    %571 = vperm.xlu0 %570, %v503
    %v572 = vpop.permute.xlu0 %571
    %575 = vset.pattern.permute.xlu0 0
    %576 = vperm.xlu0 %575, %v508
    %v577 = vpop.permute.xlu0 %576
    %580 = vset.pattern.permute.xlu0 0
    %581 = vperm.xlu0 %580, %v511
    %v582 = vpop.permute.xlu0 %581
    %585 = vset.pattern.permute.xlu0 0
    %586 = vperm.xlu0 %585, %v516
    %v587 = vpop.permute.xlu0 %586
    %590 = vset.pattern.permute.xlu0 0
    %591 = vperm.xlu0 %590, %v519
    %v592 = vpop.permute.xlu0 %591
    %595 = vset.pattern.permute.xlu0 0
    %596 = vperm.xlu0 %595, %v524
    %v597 = vpop.permute.xlu0 %596
    %600 = vset.pattern.permute.xlu0 0
    %601 = vperm.xlu0 %600, %v527
    %v602 = vpop.permute.xlu0 %601
    %605 = vset.pattern.permute.xlu0 0
    %606 = vperm.xlu0 %605, %v532
    %v607 = vpop.permute.xlu0 %606
    %610 = vset.pattern.permute.xlu0 0
    %611 = vperm.xlu0 %610, %v535
    %v612 = vpop.permute.xlu0 %611
    %615 = vset.pattern.permute.xlu0 0
    %616 = vperm.xlu0 %615, %v540
    %v617 = vpop.permute.xlu0 %616
    %620 = vset.pattern.permute.xlu0 0
    %621 = vperm.xlu0 %620, %v543
    %v622 = vpop.permute.xlu0 %621
    %625 = vset.pattern.permute.xlu0 0
    %626 = vperm.xlu0 %625, %v548
    %v627 = vpop.permute.xlu0 %626
    %630 = vset.pattern.permute.xlu0 0
    %631 = vperm.xlu0 %630, %v551
    %v632 = vpop.permute.xlu0 %631
    %635 = vset.pattern.permute.xlu0 0
    %636 = vperm.xlu0 %635, %v556
    %v637 = vpop.permute.xlu0 %636
    %640 = vset.pattern.permute.xlu0 0
    %641 = vperm.xlu0 %640, %v559
    %v642 = vpop.permute.xlu0 %641
    %v644 = vlaneseq
    %v645 = vshrl.u32 %v644, 7
    %v646 = vsub.s32 0, %v645
    %v647 = vrot.slane %v563, %v646
    %v648 = vmul.f32 %v567, %v647
    %v649 = vmul.f32 %v572, %v647
    %v650 = vmul.f32 %v577, %v647
    %v651 = vmul.f32 %v582, %v647
    %v652 = vmul.f32 %v587, %v647
    %v653 = vmul.f32 %v592, %v647
    %v654 = vmul.f32 %v597, %v647
    %v655 = vmul.f32 %v602, %v647
    %v656 = vmul.f32 %v607, %v647
    %v657 = vmul.f32 %v612, %v647
    %v658 = vmul.f32 %v617, %v647
    %v659 = vmul.f32 %v622, %v647
    %v660 = vmul.f32 %v627, %v647
    %v661 = vmul.f32 %v632, %v647
    %v662 = vmul.f32 %v637, %v647
    %v663 = vmul.f32 %v642, %v647
    %v665 = vlaneseq
    %v666 = vshrl.u32 %v665, 7
    %v667 = vsub.s32 0, %v666
    %v668 = vrot.slane %v175, %v667
    %v670 = vadd.f32 %v668, %v648
    %v671 = vadd.f32 %v668, %v649
    %v672 = vadd.f32 %v668, %v650
    %v673 = vadd.f32 %v668, %v651
    %v674 = vadd.f32 %v668, %v652
    %v675 = vadd.f32 %v668, %v653
    %v676 = vadd.f32 %v668, %v654
    %v677 = vadd.f32 %v668, %v655
    %v678 = vadd.f32 %v668, %v656
    %v679 = vadd.f32 %v668, %v657
    %v680 = vadd.f32 %v668, %v658
    %v681 = vadd.f32 %v668, %v659
    %v682 = vadd.f32 %v668, %v660
    %v683 = vadd.f32 %v668, %v661
    %v684 = vadd.f32 %v668, %v662
    %v685 = vadd.f32 %v668, %v663
    %v686 = vld [vmem:[%s1 + $0x100] sm:$0xff]
    %v687 = vld [vmem:[%s1 + $0x108] sm:$0xff]
    %v688 = vld [vmem:[%s1 + $0x110] sm:$0xff]
    %v689 = vld [vmem:[%s1 + $0x118] sm:$0xff]
    %v690 = vld [vmem:[%s1 + $0x120] sm:$0xff]
    %v691 = vld [vmem:[%s1 + $0x128] sm:$0xff]
    %v692 = vld [vmem:[%s1 + $0x130] sm:$0xff]
    %v693 = vld [vmem:[%s1 + $0x138] sm:$0xff]
    %v694 = vld [vmem:[%s1 + $0x140] sm:$0xff]
    %v695 = vld [vmem:[%s1 + $0x148] sm:$0xff]
    %v696 = vld [vmem:[%s1 + $0x150] sm:$0xff]
    %v697 = vld [vmem:[%s1 + $0x158] sm:$0xff]
    %v698 = vld [vmem:[%s1 + $0x160] sm:$0xff]
    %v699 = vld [vmem:[%s1 + $0x168] sm:$0xff]
    %v700 = vld [vmem:[%s1 + $0x170] sm:$0xff]
    %v701 = vld [vmem:[%s1 + $0x178] sm:$0xff]
    %v702 = vld [vmem:[%s1 + $0x180] sm:$0xff]
    %v703 = vld [vmem:[%s1 + $0x188] sm:$0xff]
    %v704 = vld [vmem:[%s1 + $0x190] sm:$0xff]
    %v705 = vld [vmem:[%s1 + $0x198] sm:$0xff]
    %v706 = vld [vmem:[%s1 + $0x1a0] sm:$0xff]
    %v707 = vld [vmem:[%s1 + $0x1a8] sm:$0xff]
    %v708 = vld [vmem:[%s1 + $0x1b0] sm:$0xff]
    %v709 = vld [vmem:[%s1 + $0x1b8] sm:$0xff]
    %v710 = vld [vmem:[%s1 + $0x1c0] sm:$0xff]
    %v711 = vld [vmem:[%s1 + $0x1c8] sm:$0xff]
    %v712 = vld [vmem:[%s1 + $0x1d0] sm:$0xff]
    %v713 = vld [vmem:[%s1 + $0x1d8] sm:$0xff]
    %v714 = vld [vmem:[%s1 + $0x1e0] sm:$0xff]
    %v715 = vld [vmem:[%s1 + $0x1e8] sm:$0xff]
    %v716 = vld [vmem:[%s1 + $0x1f0] sm:$0xff]
    %v717 = vld [vmem:[%s1 + $0x1f8] sm:$0xff]
    %v750 = vunpack.c.l.b16 %v686
    %v751 = vunpack.c.h.b16 %v686
    %v752 = vunpack.c.l.b16 %v687
    %v753 = vunpack.c.h.b16 %v687
    %v754 = vunpack.c.l.b16 %v688
    %v755 = vunpack.c.h.b16 %v688
    %v756 = vunpack.c.l.b16 %v689
    %v757 = vunpack.c.h.b16 %v689
    %v758 = vunpack.c.l.b16 %v690
    %v759 = vunpack.c.h.b16 %v690
    %v760 = vunpack.c.l.b16 %v691
    %v761 = vunpack.c.h.b16 %v691
    %v762 = vunpack.c.l.b16 %v692
    %v763 = vunpack.c.h.b16 %v692
    %v764 = vunpack.c.l.b16 %v693
    %v765 = vunpack.c.h.b16 %v693
    %v766 = vunpack.c.l.b16 %v694
    %v767 = vunpack.c.h.b16 %v694
    %v768 = vunpack.c.l.b16 %v695
    %v769 = vunpack.c.h.b16 %v695
    %v770 = vunpack.c.l.b16 %v696
    %v771 = vunpack.c.h.b16 %v696
    %v772 = vunpack.c.l.b16 %v697
    %v773 = vunpack.c.h.b16 %v697
    %v774 = vunpack.c.l.b16 %v698
    %v775 = vunpack.c.h.b16 %v698
    %v776 = vunpack.c.l.b16 %v699
    %v777 = vunpack.c.h.b16 %v699
    %v778 = vunpack.c.l.b16 %v700
    %v779 = vunpack.c.h.b16 %v700
    %v780 = vunpack.c.l.b16 %v701
    %v781 = vunpack.c.h.b16 %v701
    %v782 = vunpack.c.l.b16 %v702
    %v783 = vunpack.c.h.b16 %v702
    %v784 = vunpack.c.l.b16 %v703
    %v785 = vunpack.c.h.b16 %v703
    %v786 = vunpack.c.l.b16 %v704
    %v787 = vunpack.c.h.b16 %v704
    %v788 = vunpack.c.l.b16 %v705
    %v789 = vunpack.c.h.b16 %v705
    %v790 = vunpack.c.l.b16 %v706
    %v791 = vunpack.c.h.b16 %v706
    %v792 = vunpack.c.l.b16 %v707
    %v793 = vunpack.c.h.b16 %v707
    %v794 = vunpack.c.l.b16 %v708
    %v795 = vunpack.c.h.b16 %v708
    %v796 = vunpack.c.l.b16 %v709
    %v797 = vunpack.c.h.b16 %v709
    %v798 = vunpack.c.l.b16 %v710
    %v799 = vunpack.c.h.b16 %v710
    %v800 = vunpack.c.l.b16 %v711
    %v801 = vunpack.c.h.b16 %v711
    %v802 = vunpack.c.l.b16 %v712
    %v803 = vunpack.c.h.b16 %v712
    %v804 = vunpack.c.l.b16 %v713
    %v805 = vunpack.c.h.b16 %v713
    %v806 = vunpack.c.l.b16 %v714
    %v807 = vunpack.c.h.b16 %v714
    %v808 = vunpack.c.l.b16 %v715
    %v809 = vunpack.c.h.b16 %v715
    %v810 = vunpack.c.l.b16 %v716
    %v811 = vunpack.c.h.b16 %v716
    %v812 = vunpack.c.l.b16 %v717
    %v813 = vunpack.c.h.b16 %v717
    %v814 = vpack.c.b16 %v754, %v750
    %v815 = vpack.c.b16 %v755, %v751
    %v816 = vpack.c.b16 %v756, %v752
    %v817 = vpack.c.b16 %v757, %v753
    %v818 = vpack.c.b16 %v762, %v758
    %v819 = vpack.c.b16 %v763, %v759
    %v820 = vpack.c.b16 %v764, %v760
    %v821 = vpack.c.b16 %v765, %v761
    %v822 = vpack.c.b16 %v770, %v766
    %v823 = vpack.c.b16 %v771, %v767
    %v824 = vpack.c.b16 %v772, %v768
    %v825 = vpack.c.b16 %v773, %v769
    %v826 = vpack.c.b16 %v778, %v774
    %v827 = vpack.c.b16 %v779, %v775
    %v828 = vpack.c.b16 %v780, %v776
    %v829 = vpack.c.b16 %v781, %v777
    %v830 = vpack.c.b16 %v786, %v782
    %v831 = vpack.c.b16 %v787, %v783
    %v832 = vpack.c.b16 %v788, %v784
    %v833 = vpack.c.b16 %v789, %v785
    %v834 = vpack.c.b16 %v794, %v790
    %v835 = vpack.c.b16 %v795, %v791
    %v836 = vpack.c.b16 %v796, %v792
    %v837 = vpack.c.b16 %v797, %v793
    %v838 = vpack.c.b16 %v802, %v798
    %v839 = vpack.c.b16 %v803, %v799
    %v840 = vpack.c.b16 %v804, %v800
    %v841 = vpack.c.b16 %v805, %v801
    %v842 = vpack.c.b16 %v810, %v806
    %v843 = vpack.c.b16 %v811, %v807
    %v844 = vpack.c.b16 %v812, %v808
    %v845 = vpack.c.b16 %v813, %v809
    %878 = vmatprep.subr.bf16.mxu0 0
    %879 = vmatpush1.bf16.msra.mxu0 %v143
    %880 = vmatprep.subr.bf16.mxu0 0
    %881 = vmatpush1.bf16.msra.mxu0 %v144
    %882 = vmatprep.subr.bf16.mxu0 0
    %883 = vmatpush1.bf16.msra.mxu0 %v145
    %884 = vmatprep.subr.bf16.mxu0 0
    %885 = vmatpush1.bf16.msra.mxu0 %v146
    %886 = vmatprep.subr.bf16.mxu0 0
    %887 = vmatpush1.bf16.msra.mxu0 %v147
    %888 = vmatprep.subr.bf16.mxu0 0
    %889 = vmatpush1.bf16.msra.mxu0 %v148
    %890 = vmatprep.subr.bf16.mxu0 0
    %891 = vmatpush1.bf16.msra.mxu0 %v149
    %892 = vmatprep.subr.bf16.mxu0 0
    %893 = vmatpush1.bf16.msra.mxu0 %v150
    %894 = vmatprep.subr.bf16.mxu0 0
    %895 = vmatpush1.bf16.msra.mxu0 %v151
    %896 = vmatprep.subr.bf16.mxu0 0
    %897 = vmatpush1.bf16.msra.mxu0 %v152
    %898 = vmatprep.subr.bf16.mxu0 0
    %899 = vmatpush1.bf16.msra.mxu0 %v153
    %900 = vmatprep.subr.bf16.mxu0 0
    %901 = vmatpush1.bf16.msra.mxu0 %v154
    %902 = vmatprep.subr.bf16.mxu0 0
    %903 = vmatpush1.bf16.msra.mxu0 %v155
    %904 = vmatprep.subr.bf16.mxu0 0
    %905 = vmatpush1.bf16.msra.mxu0 %v156
    %906 = vmatprep.subr.bf16.mxu0 0
    %907 = vmatpush1.bf16.msra.mxu0 %v157
    %908 = vmatprep.subr.bf16.mxu0 0
    %909 = vmatpush1.bf16.msra.mxu0 %v158
    %910 = vmatprep.mubr.bf16.mxu0 %v815
    %911 = vmatmul.mubr.bf16.gmra.mrb[0].mxu0 %v814
    %v912 = vpop.f32.mrb[0].mxu0
    %v913 = vadd.f32 0.0, %v912
    %v914 = vpop.f32.mrb[0].mxu0
    %v915 = vpop.f32.mrb[0].mxu0
    %v916 = vadd.f32 0.0, %v915
    %v917 = vpop.f32.mrb[0].mxu0
    %918 = vmatprep.mubr.bf16.mxu0 %v819
    %919 = vmatmul.mubr.bf16.gmra.mrb[0].mxu0 %v818
    %v920 = vpop.f32.mrb[0].mxu0
    %v921 = vadd.f32 0.0, %v920
    %v922 = vpop.f32.mrb[0].mxu0
    %v923 = vpop.f32.mrb[0].mxu0
    %v924 = vadd.f32 0.0, %v923
    %v925 = vpop.f32.mrb[0].mxu0
    %926 = vmatprep.mubr.bf16.mxu0 %v823
    %927 = vmatmul.mubr.bf16.gmra.mrb[0].mxu0 %v822
    %v928 = vpop.f32.mrb[0].mxu0
    %v929 = vadd.f32 0.0, %v928
    %v930 = vpop.f32.mrb[0].mxu0
    %v931 = vpop.f32.mrb[0].mxu0
    %v932 = vadd.f32 0.0, %v931
    %v933 = vpop.f32.mrb[0].mxu0
    %934 = vmatprep.mubr.bf16.mxu0 %v827
    %935 = vmatmul.mubr.bf16.gmra.mrb[0].mxu0 %v826
    %v936 = vpop.f32.mrb[0].mxu0
    %v937 = vadd.f32 0.0, %v936
    %v938 = vpop.f32.mrb[0].mxu0
    %v939 = vpop.f32.mrb[0].mxu0
    %v940 = vadd.f32 0.0, %v939
    %v941 = vpop.f32.mrb[0].mxu0
    %942 = vmatprep.mubr.bf16.mxu0 %v831
    %943 = vmatmul.mubr.bf16.gmra.mrb[0].mxu0 %v830
    %v944 = vpop.f32.mrb[0].mxu0
    %v945 = vadd.f32 0.0, %v944
    %v946 = vpop.f32.mrb[0].mxu0
    %v947 = vpop.f32.mrb[0].mxu0
    %v948 = vadd.f32 0.0, %v947
    %v949 = vpop.f32.mrb[0].mxu0
    %950 = vmatprep.mubr.bf16.mxu0 %v835
    %951 = vmatmul.mubr.bf16.gmra.mrb[0].mxu0 %v834
    %v952 = vpop.f32.mrb[0].mxu0
    %v953 = vadd.f32 0.0, %v952
    %v954 = vpop.f32.mrb[0].mxu0
    %v955 = vpop.f32.mrb[0].mxu0
    %v956 = vadd.f32 0.0, %v955
    %v957 = vpop.f32.mrb[0].mxu0
    %958 = vmatprep.mubr.bf16.mxu0 %v839
    %959 = vmatmul.mubr.bf16.gmra.mrb[0].mxu0 %v838
    %v960 = vpop.f32.mrb[0].mxu0
    %v961 = vadd.f32 0.0, %v960
    %v962 = vpop.f32.mrb[0].mxu0
    %v963 = vpop.f32.mrb[0].mxu0
    %v964 = vadd.f32 0.0, %v963
    %v965 = vpop.f32.mrb[0].mxu0
    %966 = vmatprep.mubr.bf16.mxu0 %v843
    %967 = vmatmul.mubr.bf16.gmra.mrb[0].mxu0 %v842
    %v968 = vpop.f32.mrb[0].mxu0
    %v969 = vadd.f32 0.0, %v968
    %v970 = vpop.f32.mrb[0].mxu0
    %v971 = vpop.f32.mrb[0].mxu0
    %v972 = vadd.f32 0.0, %v971
    %v973 = vpop.f32.mrb[0].mxu0
    %974 = vdwg.mxu0
    %975 = vmatprep.subr.bf16.mxu0 0
    %976 = vmatpush1.bf16.msra.mxu0 %v159
    %977 = vmatprep.subr.bf16.mxu0 0
    %978 = vmatpush1.bf16.msra.mxu0 %v160
    %979 = vmatprep.subr.bf16.mxu0 0
    %980 = vmatpush1.bf16.msra.mxu0 %v161
    %981 = vmatprep.subr.bf16.mxu0 0
    %982 = vmatpush1.bf16.msra.mxu0 %v162
    %983 = vmatprep.subr.bf16.mxu0 0
    %984 = vmatpush1.bf16.msra.mxu0 %v163
    %985 = vmatprep.subr.bf16.mxu0 0
    %986 = vmatpush1.bf16.msra.mxu0 %v164
    %987 = vmatprep.subr.bf16.mxu0 0
    %988 = vmatpush1.bf16.msra.mxu0 %v165
    %989 = vmatprep.subr.bf16.mxu0 0
    %990 = vmatpush1.bf16.msra.mxu0 %v166
    %991 = vmatprep.subr.bf16.mxu0 0
    %992 = vmatpush1.bf16.msra.mxu0 %v167
    %993 = vmatprep.subr.bf16.mxu0 0
    %994 = vmatpush1.bf16.msra.mxu0 %v168
    %995 = vmatprep.subr.bf16.mxu0 0
    %996 = vmatpush1.bf16.msra.mxu0 %v169
    %997 = vmatprep.subr.bf16.mxu0 0
    %998 = vmatpush1.bf16.msra.mxu0 %v170
    %999 = vmatprep.subr.bf16.mxu0 0
    %1000 = vmatpush1.bf16.msra.mxu0 %v171
    %1001 = vmatprep.subr.bf16.mxu0 0
    %1002 = vmatpush1.bf16.msra.mxu0 %v172
    %1003 = vmatprep.subr.bf16.mxu0 0
    %1004 = vmatpush1.bf16.msra.mxu0 %v173
    %1005 = vmatprep.subr.bf16.mxu0 0
    %1006 = vmatpush1.bf16.msra.mxu0 %v174
    %1007 = vmatprep.mubr.bf16.mxu0 %v817
    %1008 = vmatmul.mubr.bf16.gmra.mrb[0].mxu0 %v816
    %v1009 = vpop.f32.mrb[0].mxu0
    %v1010 = vadd.f32 %v913, %v1009
    %v1011 = vpop.f32.mrb[0].mxu0
    %v1012 = vpop.f32.mrb[0].mxu0
    %v1013 = vadd.f32 %v916, %v1012
    %v1014 = vpop.f32.mrb[0].mxu0
    %1015 = vmatprep.mubr.bf16.mxu0 %v821
    %1016 = vmatmul.mubr.bf16.gmra.mrb[0].mxu0 %v820
    %v1017 = vpop.f32.mrb[0].mxu0
    %v1018 = vadd.f32 %v921, %v1017
    %v1019 = vpop.f32.mrb[0].mxu0
    %v1020 = vpop.f32.mrb[0].mxu0
    %v1021 = vadd.f32 %v924, %v1020
    %v1022 = vpop.f32.mrb[0].mxu0
    %1023 = vmatprep.mubr.bf16.mxu0 %v825
    %1024 = vmatmul.mubr.bf16.gmra.mrb[0].mxu0 %v824
    %v1025 = vpop.f32.mrb[0].mxu0
    %v1026 = vadd.f32 %v929, %v1025
    %v1027 = vpop.f32.mrb[0].mxu0
    %v1028 = vpop.f32.mrb[0].mxu0
    %v1029 = vadd.f32 %v932, %v1028
    %v1030 = vpop.f32.mrb[0].mxu0
    %1031 = vmatprep.mubr.bf16.mxu0 %v829
    %1032 = vmatmul.mubr.bf16.gmra.mrb[0].mxu0 %v828
    %v1033 = vpop.f32.mrb[0].mxu0
    %v1034 = vadd.f32 %v937, %v1033
    %v1035 = vpop.f32.mrb[0].mxu0
    %v1036 = vpop.f32.mrb[0].mxu0
    %v1037 = vadd.f32 %v940, %v1036
    %v1038 = vpop.f32.mrb[0].mxu0
    %1039 = vmatprep.mubr.bf16.mxu0 %v833
    %1040 = vmatmul.mubr.bf16.gmra.mrb[0].mxu0 %v832
    %v1041 = vpop.f32.mrb[0].mxu0
    %v1042 = vadd.f32 %v945, %v1041
    %v1043 = vpop.f32.mrb[0].mxu0
    %v1044 = vpop.f32.mrb[0].mxu0
    %v1045 = vadd.f32 %v948, %v1044
    %v1046 = vpop.f32.mrb[0].mxu0
    %1047 = vmatprep.mubr.bf16.mxu0 %v837
    %1048 = vmatmul.mubr.bf16.gmra.mrb[0].mxu0 %v836
    %v1049 = vpop.f32.mrb[0].mxu0
    %v1050 = vadd.f32 %v953, %v1049
    %v1051 = vpop.f32.mrb[0].mxu0
    %v1052 = vpop.f32.mrb[0].mxu0
    %v1053 = vadd.f32 %v956, %v1052
    %v1054 = vpop.f32.mrb[0].mxu0
    %1055 = vmatprep.mubr.bf16.mxu0 %v841
    %1056 = vmatmul.mubr.bf16.gmra.mrb[0].mxu0 %v840
    %v1057 = vpop.f32.mrb[0].mxu0
    %v1058 = vadd.f32 %v961, %v1057
    %v1059 = vpop.f32.mrb[0].mxu0
    %v1060 = vpop.f32.mrb[0].mxu0
    %v1061 = vadd.f32 %v964, %v1060
    %v1062 = vpop.f32.mrb[0].mxu0
    %1063 = vmatprep.mubr.bf16.mxu0 %v845
    %1064 = vmatmul.mubr.bf16.gmra.mrb[0].mxu0 %v844
    %v1065 = vpop.f32.mrb[0].mxu0
    %v1066 = vadd.f32 %v969, %v1065
    %v1067 = vpop.f32.mrb[0].mxu0
    %v1068 = vpop.f32.mrb[0].mxu0
    %v1069 = vadd.f32 %v972, %v1068
    %v1070 = vpop.f32.mrb[0].mxu0
    %1071 = vdwg.mxu0
    %1073 = vset.pattern.permute.xlu0 0
    %1074 = vperm.xlu0 %1073, %v1010
    %v1075 = vpop.permute.xlu0 %1074
    %1078 = vset.pattern.permute.xlu0 0
    %1079 = vperm.xlu0 %1078, %v1013
    %v1080 = vpop.permute.xlu0 %1079
    %1083 = vset.pattern.permute.xlu0 0
    %1084 = vperm.xlu0 %1083, %v1018
    %v1085 = vpop.permute.xlu0 %1084
    %1088 = vset.pattern.permute.xlu0 0
    %1089 = vperm.xlu0 %1088, %v1021
    %v1090 = vpop.permute.xlu0 %1089
    %1093 = vset.pattern.permute.xlu0 0
    %1094 = vperm.xlu0 %1093, %v1026
    %v1095 = vpop.permute.xlu0 %1094
    %1098 = vset.pattern.permute.xlu0 0
    %1099 = vperm.xlu0 %1098, %v1029
    %v1100 = vpop.permute.xlu0 %1099
    %1103 = vset.pattern.permute.xlu0 0
    %1104 = vperm.xlu0 %1103, %v1034
    %v1105 = vpop.permute.xlu0 %1104
    %1108 = vset.pattern.permute.xlu0 0
    %1109 = vperm.xlu0 %1108, %v1037
    %v1110 = vpop.permute.xlu0 %1109
    %1113 = vset.pattern.permute.xlu0 0
    %1114 = vperm.xlu0 %1113, %v1042
    %v1115 = vpop.permute.xlu0 %1114
    %1118 = vset.pattern.permute.xlu0 0
    %1119 = vperm.xlu0 %1118, %v1045
    %v1120 = vpop.permute.xlu0 %1119
    %1123 = vset.pattern.permute.xlu0 0
    %1124 = vperm.xlu0 %1123, %v1050
    %v1125 = vpop.permute.xlu0 %1124
    %1128 = vset.pattern.permute.xlu0 0
    %1129 = vperm.xlu0 %1128, %v1053
    %v1130 = vpop.permute.xlu0 %1129
    %1133 = vset.pattern.permute.xlu0 0
    %1134 = vperm.xlu0 %1133, %v1058
    %v1135 = vpop.permute.xlu0 %1134
    %1138 = vset.pattern.permute.xlu0 0
    %1139 = vperm.xlu0 %1138, %v1061
    %v1140 = vpop.permute.xlu0 %1139
    %1143 = vset.pattern.permute.xlu0 0
    %1144 = vperm.xlu0 %1143, %v1066
    %v1145 = vpop.permute.xlu0 %1144
    %1148 = vset.pattern.permute.xlu0 0
    %1149 = vperm.xlu0 %1148, %v1069
    %v1150 = vpop.permute.xlu0 %1149
    %v1152 = vlaneseq
    %v1153 = vshrl.u32 %v1152, 7
    %v1154 = vsub.s32 1, %v1153
    %v1155 = vrot.slane %v563, %v1154
    %v1156 = vmul.f32 %v1075, %v1155
    %v1157 = vmul.f32 %v1080, %v1155
    %v1158 = vmul.f32 %v1085, %v1155
    %v1159 = vmul.f32 %v1090, %v1155
    %v1160 = vmul.f32 %v1095, %v1155
    %v1161 = vmul.f32 %v1100, %v1155
    %v1162 = vmul.f32 %v1105, %v1155
    %v1163 = vmul.f32 %v1110, %v1155
    %v1164 = vmul.f32 %v1115, %v1155
    %v1165 = vmul.f32 %v1120, %v1155
    %v1166 = vmul.f32 %v1125, %v1155
    %v1167 = vmul.f32 %v1130, %v1155
    %v1168 = vmul.f32 %v1135, %v1155
    %v1169 = vmul.f32 %v1140, %v1155
    %v1170 = vmul.f32 %v1145, %v1155
    %v1171 = vmul.f32 %v1150, %v1155
    %v1172 = vadd.f32 %v670, %v1156
    %v1173 = vadd.f32 %v671, %v1157
    %v1174 = vadd.f32 %v672, %v1158
    %v1175 = vadd.f32 %v673, %v1159
    %v1176 = vadd.f32 %v674, %v1160
    %v1177 = vadd.f32 %v675, %v1161
    %v1178 = vadd.f32 %v676, %v1162
    %v1179 = vadd.f32 %v677, %v1163
    %v1180 = vadd.f32 %v678, %v1164
    %v1181 = vadd.f32 %v679, %v1165
    %v1182 = vadd.f32 %v680, %v1166
    %v1183 = vadd.f32 %v681, %v1167
    %v1184 = vadd.f32 %v682, %v1168
    %v1185 = vadd.f32 %v683, %v1169
    %v1186 = vadd.f32 %v684, %v1170
    %v1187 = vadd.f32 %v685, %v1171
    %v1188 = vld [vmem:[%s1 + $0x200] sm:$0xff]
    %v1189 = vld [vmem:[%s1 + $0x208] sm:$0xff]
    %v1190 = vld [vmem:[%s1 + $0x210] sm:$0xff]
    %v1191 = vld [vmem:[%s1 + $0x218] sm:$0xff]
    %v1192 = vld [vmem:[%s1 + $0x220] sm:$0xff]
    %v1193 = vld [vmem:[%s1 + $0x228] sm:$0xff]
    %v1194 = vld [vmem:[%s1 + $0x230] sm:$0xff]
    %v1195 = vld [vmem:[%s1 + $0x238] sm:$0xff]
    %v1196 = vld [vmem:[%s1 + $0x240] sm:$0xff]
    %v1197 = vld [vmem:[%s1 + $0x248] sm:$0xff]
    %v1198 = vld [vmem:[%s1 + $0x250] sm:$0xff]
    %v1199 = vld [vmem:[%s1 + $0x258] sm:$0xff]
    %v1200 = vld [vmem:[%s1 + $0x260] sm:$0xff]
    %v1201 = vld [vmem:[%s1 + $0x268] sm:$0xff]
    %v1202 = vld [vmem:[%s1 + $0x270] sm:$0xff]
    %v1203 = vld [vmem:[%s1 + $0x278] sm:$0xff]
    %v1204 = vld [vmem:[%s1 + $0x280] sm:$0xff]
    %v1205 = vld [vmem:[%s1 + $0x288] sm:$0xff]
    %v1206 = vld [vmem:[%s1 + $0x290] sm:$0xff]
    %v1207 = vld [vmem:[%s1 + $0x298] sm:$0xff]
    %v1208 = vld [vmem:[%s1 + $0x2a0] sm:$0xff]
    %v1209 = vld [vmem:[%s1 + $0x2a8] sm:$0xff]
    %v1210 = vld [vmem:[%s1 + $0x2b0] sm:$0xff]
    %v1211 = vld [vmem:[%s1 + $0x2b8] sm:$0xff]
    %v1212 = vld [vmem:[%s1 + $0x2c0] sm:$0xff]
    %v1213 = vld [vmem:[%s1 + $0x2c8] sm:$0xff]
    %v1214 = vld [vmem:[%s1 + $0x2d0] sm:$0xff]
    %v1215 = vld [vmem:[%s1 + $0x2d8] sm:$0xff]
    %v1216 = vld [vmem:[%s1 + $0x2e0] sm:$0xff]
    %v1217 = vld [vmem:[%s1 + $0x2e8] sm:$0xff]
    %v1218 = vld [vmem:[%s1 + $0x2f0] sm:$0xff]
    %v1219 = vld [vmem:[%s1 + $0x2f8] sm:$0xff]
    %v1252 = vunpack.c.l.b16 %v1188
    %v1253 = vunpack.c.h.b16 %v1188
    %v1254 = vunpack.c.l.b16 %v1189
    %v1255 = vunpack.c.h.b16 %v1189
    %v1256 = vunpack.c.l.b16 %v1190
    %v1257 = vunpack.c.h.b16 %v1190
    %v1258 = vunpack.c.l.b16 %v1191
    %v1259 = vunpack.c.h.b16 %v1191
    %v1260 = vunpack.c.l.b16 %v1192
    %v1261 = vunpack.c.h.b16 %v1192
    %v1262 = vunpack.c.l.b16 %v1193
    %v1263 = vunpack.c.h.b16 %v1193
    %v1264 = vunpack.c.l.b16 %v1194
    %v1265 = vunpack.c.h.b16 %v1194
    %v1266 = vunpack.c.l.b16 %v1195
    %v1267 = vunpack.c.h.b16 %v1195
    %v1268 = vunpack.c.l.b16 %v1196
    %v1269 = vunpack.c.h.b16 %v1196
    %v1270 = vunpack.c.l.b16 %v1197
    %v1271 = vunpack.c.h.b16 %v1197
    %v1272 = vunpack.c.l.b16 %v1198
    %v1273 = vunpack.c.h.b16 %v1198
    %v1274 = vunpack.c.l.b16 %v1199
    %v1275 = vunpack.c.h.b16 %v1199
    %v1276 = vunpack.c.l.b16 %v1200
    %v1277 = vunpack.c.h.b16 %v1200
    %v1278 = vunpack.c.l.b16 %v1201
    %v1279 = vunpack.c.h.b16 %v1201
    %v1280 = vunpack.c.l.b16 %v1202
    %v1281 = vunpack.c.h.b16 %v1202
    %v1282 = vunpack.c.l.b16 %v1203
    %v1283 = vunpack.c.h.b16 %v1203
    %v1284 = vunpack.c.l.b16 %v1204
    %v1285 = vunpack.c.h.b16 %v1204
    %v1286 = vunpack.c.l.b16 %v1205
    %v1287 = vunpack.c.h.b16 %v1205
    %v1288 = vunpack.c.l.b16 %v1206
    %v1289 = vunpack.c.h.b16 %v1206
    %v1290 = vunpack.c.l.b16 %v1207
    %v1291 = vunpack.c.h.b16 %v1207
    %v1292 = vunpack.c.l.b16 %v1208
    %v1293 = vunpack.c.h.b16 %v1208
    %v1294 = vunpack.c.l.b16 %v1209
    %v1295 = vunpack.c.h.b16 %v1209
    %v1296 = vunpack.c.l.b16 %v1210
    %v1297 = vunpack.c.h.b16 %v1210
    %v1298 = vunpack.c.l.b16 %v1211
    %v1299 = vunpack.c.h.b16 %v1211
    %v1300 = vunpack.c.l.b16 %v1212
    %v1301 = vunpack.c.h.b16 %v1212
    %v1302 = vunpack.c.l.b16 %v1213
    %v1303 = vunpack.c.h.b16 %v1213
    %v1304 = vunpack.c.l.b16 %v1214
    %v1305 = vunpack.c.h.b16 %v1214
    %v1306 = vunpack.c.l.b16 %v1215
    %v1307 = vunpack.c.h.b16 %v1215
    %v1308 = vunpack.c.l.b16 %v1216
    %v1309 = vunpack.c.h.b16 %v1216
    %v1310 = vunpack.c.l.b16 %v1217
    %v1311 = vunpack.c.h.b16 %v1217
    %v1312 = vunpack.c.l.b16 %v1218
    %v1313 = vunpack.c.h.b16 %v1218
    %v1314 = vunpack.c.l.b16 %v1219
    %v1315 = vunpack.c.h.b16 %v1219
    %v1316 = vpack.c.b16 %v1256, %v1252
    %v1317 = vpack.c.b16 %v1257, %v1253
    %v1318 = vpack.c.b16 %v1258, %v1254
    %v1319 = vpack.c.b16 %v1259, %v1255
    %v1320 = vpack.c.b16 %v1264, %v1260
    %v1321 = vpack.c.b16 %v1265, %v1261
    %v1322 = vpack.c.b16 %v1266, %v1262
    %v1323 = vpack.c.b16 %v1267, %v1263
    %v1324 = vpack.c.b16 %v1272, %v1268
    %v1325 = vpack.c.b16 %v1273, %v1269
    %v1326 = vpack.c.b16 %v1274, %v1270
    %v1327 = vpack.c.b16 %v1275, %v1271
    %v1328 = vpack.c.b16 %v1280, %v1276
    %v1329 = vpack.c.b16 %v1281, %v1277
    %v1330 = vpack.c.b16 %v1282, %v1278
    %v1331 = vpack.c.b16 %v1283, %v1279
    %v1332 = vpack.c.b16 %v1288, %v1284
    %v1333 = vpack.c.b16 %v1289, %v1285
    %v1334 = vpack.c.b16 %v1290, %v1286
    %v1335 = vpack.c.b16 %v1291, %v1287
    %v1336 = vpack.c.b16 %v1296, %v1292
    %v1337 = vpack.c.b16 %v1297, %v1293
    %v1338 = vpack.c.b16 %v1298, %v1294
    %v1339 = vpack.c.b16 %v1299, %v1295
    %v1340 = vpack.c.b16 %v1304, %v1300
    %v1341 = vpack.c.b16 %v1305, %v1301
    %v1342 = vpack.c.b16 %v1306, %v1302
    %v1343 = vpack.c.b16 %v1307, %v1303
    %v1344 = vpack.c.b16 %v1312, %v1308
    %v1345 = vpack.c.b16 %v1313, %v1309
    %v1346 = vpack.c.b16 %v1314, %v1310
    %v1347 = vpack.c.b16 %v1315, %v1311
    %1380 = vmatprep.subr.bf16.mxu0 0
    %1381 = vmatpush1.bf16.msra.mxu0 %v143
    %1382 = vmatprep.subr.bf16.mxu0 0
    %1383 = vmatpush1.bf16.msra.mxu0 %v144
    %1384 = vmatprep.subr.bf16.mxu0 0
    %1385 = vmatpush1.bf16.msra.mxu0 %v145
    %1386 = vmatprep.subr.bf16.mxu0 0
    %1387 = vmatpush1.bf16.msra.mxu0 %v146
    %1388 = vmatprep.subr.bf16.mxu0 0
    %1389 = vmatpush1.bf16.msra.mxu0 %v147
    %1390 = vmatprep.subr.bf16.mxu0 0
    %1391 = vmatpush1.bf16.msra.mxu0 %v148
    %1392 = vmatprep.subr.bf16.mxu0 0
    %1393 = vmatpush1.bf16.msra.mxu0 %v149
    %1394 = vmatprep.subr.bf16.mxu0 0
    %1395 = vmatpush1.bf16.msra.mxu0 %v150
    %1396 = vmatprep.subr.bf16.mxu0 0
    %1397 = vmatpush1.bf16.msra.mxu0 %v151
    %1398 = vmatprep.subr.bf16.mxu0 0
    %1399 = vmatpush1.bf16.msra.mxu0 %v152
    %1400 = vmatprep.subr.bf16.mxu0 0
    %1401 = vmatpush1.bf16.msra.mxu0 %v153
    %1402 = vmatprep.subr.bf16.mxu0 0
    %1403 = vmatpush1.bf16.msra.mxu0 %v154
    %1404 = vmatprep.subr.bf16.mxu0 0
    %1405 = vmatpush1.bf16.msra.mxu0 %v155
    %1406 = vmatprep.subr.bf16.mxu0 0
    %1407 = vmatpush1.bf16.msra.mxu0 %v156
    %1408 = vmatprep.subr.bf16.mxu0 0
    %1409 = vmatpush1.bf16.msra.mxu0 %v157
    %1410 = vmatprep.subr.bf16.mxu0 0
    %1411 = vmatpush1.bf16.msra.mxu0 %v158
    %1412 = vmatprep.mubr.bf16.mxu0 %v1317
    %1413 = vmatmul.mubr.bf16.gmra.mrb[0].mxu0 %v1316
    %v1414 = vpop.f32.mrb[0].mxu0
    %v1415 = vadd.f32 0.0, %v1414
    %v1416 = vpop.f32.mrb[0].mxu0
    %v1417 = vpop.f32.mrb[0].mxu0
    %v1418 = vadd.f32 0.0, %v1417
    %v1419 = vpop.f32.mrb[0].mxu0
    %1420 = vmatprep.mubr.bf16.mxu0 %v1321
    %1421 = vmatmul.mubr.bf16.gmra.mrb[0].mxu0 %v1320
    %v1422 = vpop.f32.mrb[0].mxu0
    %v1423 = vadd.f32 0.0, %v1422
    %v1424 = vpop.f32.mrb[0].mxu0
    %v1425 = vpop.f32.mrb[0].mxu0
    %v1426 = vadd.f32 0.0, %v1425
    %v1427 = vpop.f32.mrb[0].mxu0
    %1428 = vmatprep.mubr.bf16.mxu0 %v1325
    %1429 = vmatmul.mubr.bf16.gmra.mrb[0].mxu0 %v1324
    %v1430 = vpop.f32.mrb[0].mxu0
    %v1431 = vadd.f32 0.0, %v1430
    %v1432 = vpop.f32.mrb[0].mxu0
    %v1433 = vpop.f32.mrb[0].mxu0
    %v1434 = vadd.f32 0.0, %v1433
    %v1435 = vpop.f32.mrb[0].mxu0
    %1436 = vmatprep.mubr.bf16.mxu0 %v1329
    %1437 = vmatmul.mubr.bf16.gmra.mrb[0].mxu0 %v1328
    %v1438 = vpop.f32.mrb[0].mxu0
    %v1439 = vadd.f32 0.0, %v1438
    %v1440 = vpop.f32.mrb[0].mxu0
    %v1441 = vpop.f32.mrb[0].mxu0
    %v1442 = vadd.f32 0.0, %v1441
    %v1443 = vpop.f32.mrb[0].mxu0
    %1444 = vmatprep.mubr.bf16.mxu0 %v1333
    %1445 = vmatmul.mubr.bf16.gmra.mrb[0].mxu0 %v1332
    %v1446 = vpop.f32.mrb[0].mxu0
    %v1447 = vadd.f32 0.0, %v1446
    %v1448 = vpop.f32.mrb[0].mxu0
    %v1449 = vpop.f32.mrb[0].mxu0
    %v1450 = vadd.f32 0.0, %v1449
    %v1451 = vpop.f32.mrb[0].mxu0
    %1452 = vmatprep.mubr.bf16.mxu0 %v1337
    %1453 = vmatmul.mubr.bf16.gmra.mrb[0].mxu0 %v1336
    %v1454 = vpop.f32.mrb[0].mxu0
    %v1455 = vadd.f32 0.0, %v1454
    %v1456 = vpop.f32.mrb[0].mxu0
    %v1457 = vpop.f32.mrb[0].mxu0
    %v1458 = vadd.f32 0.0, %v1457
    %v1459 = vpop.f32.mrb[0].mxu0
    %1460 = vmatprep.mubr.bf16.mxu0 %v1341
    %1461 = vmatmul.mubr.bf16.gmra.mrb[0].mxu0 %v1340
    %v1462 = vpop.f32.mrb[0].mxu0
    %v1463 = vadd.f32 0.0, %v1462
    %v1464 = vpop.f32.mrb[0].mxu0
    %v1465 = vpop.f32.mrb[0].mxu0
    %v1466 = vadd.f32 0.0, %v1465
    %v1467 = vpop.f32.mrb[0].mxu0
    %1468 = vmatprep.mubr.bf16.mxu0 %v1345
    %1469 = vmatmul.mubr.bf16.gmra.mrb[0].mxu0 %v1344
    %v1470 = vpop.f32.mrb[0].mxu0
    %v1471 = vadd.f32 0.0, %v1470
    %v1472 = vpop.f32.mrb[0].mxu0
    %v1473 = vpop.f32.mrb[0].mxu0
    %v1474 = vadd.f32 0.0, %v1473
    %v1475 = vpop.f32.mrb[0].mxu0
    %1476 = vdwg.mxu0
    %1477 = vmatprep.subr.bf16.mxu0 0
    %1478 = vmatpush1.bf16.msra.mxu0 %v159
    %1479 = vmatprep.subr.bf16.mxu0 0
    %1480 = vmatpush1.bf16.msra.mxu0 %v160
    %1481 = vmatprep.subr.bf16.mxu0 0
    %1482 = vmatpush1.bf16.msra.mxu0 %v161
    %1483 = vmatprep.subr.bf16.mxu0 0
    %1484 = vmatpush1.bf16.msra.mxu0 %v162
    %1485 = vmatprep.subr.bf16.mxu0 0
    %1486 = vmatpush1.bf16.msra.mxu0 %v163
    %1487 = vmatprep.subr.bf16.mxu0 0
    %1488 = vmatpush1.bf16.msra.mxu0 %v164
    %1489 = vmatprep.subr.bf16.mxu0 0
    %1490 = vmatpush1.bf16.msra.mxu0 %v165
    %1491 = vmatprep.subr.bf16.mxu0 0
    %1492 = vmatpush1.bf16.msra.mxu0 %v166
    %1493 = vmatprep.subr.bf16.mxu0 0
    %1494 = vmatpush1.bf16.msra.mxu0 %v167
    %1495 = vmatprep.subr.bf16.mxu0 0
    %1496 = vmatpush1.bf16.msra.mxu0 %v168
    %1497 = vmatprep.subr.bf16.mxu0 0
    %1498 = vmatpush1.bf16.msra.mxu0 %v169
    %1499 = vmatprep.subr.bf16.mxu0 0
    %1500 = vmatpush1.bf16.msra.mxu0 %v170
    %1501 = vmatprep.subr.bf16.mxu0 0
    %1502 = vmatpush1.bf16.msra.mxu0 %v171
    %1503 = vmatprep.subr.bf16.mxu0 0
    %1504 = vmatpush1.bf16.msra.mxu0 %v172
    %1505 = vmatprep.subr.bf16.mxu0 0
    %1506 = vmatpush1.bf16.msra.mxu0 %v173
    %1507 = vmatprep.subr.bf16.mxu0 0
    %1508 = vmatpush1.bf16.msra.mxu0 %v174
    %1509 = vmatprep.mubr.bf16.mxu0 %v1319
    %1510 = vmatmul.mubr.bf16.gmra.mrb[0].mxu0 %v1318
    %v1511 = vpop.f32.mrb[0].mxu0
    %v1512 = vadd.f32 %v1415, %v1511
    %v1513 = vpop.f32.mrb[0].mxu0
    %v1514 = vpop.f32.mrb[0].mxu0
    %v1515 = vadd.f32 %v1418, %v1514
    %v1516 = vpop.f32.mrb[0].mxu0
    %1517 = vmatprep.mubr.bf16.mxu0 %v1323
    %1518 = vmatmul.mubr.bf16.gmra.mrb[0].mxu0 %v1322
    %v1519 = vpop.f32.mrb[0].mxu0
    %v1520 = vadd.f32 %v1423, %v1519
    %v1521 = vpop.f32.mrb[0].mxu0
    %v1522 = vpop.f32.mrb[0].mxu0
    %v1523 = vadd.f32 %v1426, %v1522
    %v1524 = vpop.f32.mrb[0].mxu0
    %1525 = vmatprep.mubr.bf16.mxu0 %v1327
    %1526 = vmatmul.mubr.bf16.gmra.mrb[0].mxu0 %v1326
    %v1527 = vpop.f32.mrb[0].mxu0
    %v1528 = vadd.f32 %v1431, %v1527
    %v1529 = vpop.f32.mrb[0].mxu0
    %v1530 = vpop.f32.mrb[0].mxu0
    %v1531 = vadd.f32 %v1434, %v1530
    %v1532 = vpop.f32.mrb[0].mxu0
    %1533 = vmatprep.mubr.bf16.mxu0 %v1331
    %1534 = vmatmul.mubr.bf16.gmra.mrb[0].mxu0 %v1330
    %v1535 = vpop.f32.mrb[0].mxu0
    %v1536 = vadd.f32 %v1439, %v1535
    %v1537 = vpop.f32.mrb[0].mxu0
    %v1538 = vpop.f32.mrb[0].mxu0
    %v1539 = vadd.f32 %v1442, %v1538
    %v1540 = vpop.f32.mrb[0].mxu0
    %1541 = vmatprep.mubr.bf16.mxu0 %v1335
    %1542 = vmatmul.mubr.bf16.gmra.mrb[0].mxu0 %v1334
    %v1543 = vpop.f32.mrb[0].mxu0
    %v1544 = vadd.f32 %v1447, %v1543
    %v1545 = vpop.f32.mrb[0].mxu0
    %v1546 = vpop.f32.mrb[0].mxu0
    %v1547 = vadd.f32 %v1450, %v1546
    %v1548 = vpop.f32.mrb[0].mxu0
    %1549 = vmatprep.mubr.bf16.mxu0 %v1339
    %1550 = vmatmul.mubr.bf16.gmra.mrb[0].mxu0 %v1338
    %v1551 = vpop.f32.mrb[0].mxu0
    %v1552 = vadd.f32 %v1455, %v1551
    %v1553 = vpop.f32.mrb[0].mxu0
    %v1554 = vpop.f32.mrb[0].mxu0
    %v1555 = vadd.f32 %v1458, %v1554
    %v1556 = vpop.f32.mrb[0].mxu0
    %1557 = vmatprep.mubr.bf16.mxu0 %v1343
    %1558 = vmatmul.mubr.bf16.gmra.mrb[0].mxu0 %v1342
    %v1559 = vpop.f32.mrb[0].mxu0
    %v1560 = vadd.f32 %v1463, %v1559
    %v1561 = vpop.f32.mrb[0].mxu0
    %v1562 = vpop.f32.mrb[0].mxu0
    %v1563 = vadd.f32 %v1466, %v1562
    %v1564 = vpop.f32.mrb[0].mxu0
    %1565 = vmatprep.mubr.bf16.mxu0 %v1347
    %1566 = vmatmul.mubr.bf16.gmra.mrb[0].mxu0 %v1346
    %v1567 = vpop.f32.mrb[0].mxu0
    %v1568 = vadd.f32 %v1471, %v1567
    %v1569 = vpop.f32.mrb[0].mxu0
    %v1570 = vpop.f32.mrb[0].mxu0
    %v1571 = vadd.f32 %v1474, %v1570
    %v1572 = vpop.f32.mrb[0].mxu0
    %1573 = vdwg.mxu0
    %v1574 = vld [vmem:[%s2] sm:$0x2]
    %v1575 = vunpack.c.l.bf16 %v1574
    %1577 = vset.pattern.permute.xlu0 0
    %1578 = vperm.xlu0 %1577, %v1512
    %v1579 = vpop.permute.xlu0 %1578
    %1582 = vset.pattern.permute.xlu0 0
    %1583 = vperm.xlu0 %1582, %v1515
    %v1584 = vpop.permute.xlu0 %1583
    %1587 = vset.pattern.permute.xlu0 0
    %1588 = vperm.xlu0 %1587, %v1520
    %v1589 = vpop.permute.xlu0 %1588
    %1592 = vset.pattern.permute.xlu0 0
    %1593 = vperm.xlu0 %1592, %v1523
    %v1594 = vpop.permute.xlu0 %1593
    %1597 = vset.pattern.permute.xlu0 0
    %1598 = vperm.xlu0 %1597, %v1528
    %v1599 = vpop.permute.xlu0 %1598
    %1602 = vset.pattern.permute.xlu0 0
    %1603 = vperm.xlu0 %1602, %v1531
    %v1604 = vpop.permute.xlu0 %1603
    %1607 = vset.pattern.permute.xlu0 0
    %1608 = vperm.xlu0 %1607, %v1536
    %v1609 = vpop.permute.xlu0 %1608
    %1612 = vset.pattern.permute.xlu0 0
    %1613 = vperm.xlu0 %1612, %v1539
    %v1614 = vpop.permute.xlu0 %1613
    %1617 = vset.pattern.permute.xlu0 0
    %1618 = vperm.xlu0 %1617, %v1544
    %v1619 = vpop.permute.xlu0 %1618
    %1622 = vset.pattern.permute.xlu0 0
    %1623 = vperm.xlu0 %1622, %v1547
    %v1624 = vpop.permute.xlu0 %1623
    %1627 = vset.pattern.permute.xlu0 0
    %1628 = vperm.xlu0 %1627, %v1552
    %v1629 = vpop.permute.xlu0 %1628
    %1632 = vset.pattern.permute.xlu0 0
    %1633 = vperm.xlu0 %1632, %v1555
    %v1634 = vpop.permute.xlu0 %1633
    %1637 = vset.pattern.permute.xlu0 0
    %1638 = vperm.xlu0 %1637, %v1560
    %v1639 = vpop.permute.xlu0 %1638
    %1642 = vset.pattern.permute.xlu0 0
    %1643 = vperm.xlu0 %1642, %v1563
    %v1644 = vpop.permute.xlu0 %1643
    %1647 = vset.pattern.permute.xlu0 0
    %1648 = vperm.xlu0 %1647, %v1568
    %v1649 = vpop.permute.xlu0 %1648
    %1652 = vset.pattern.permute.xlu0 0
    %1653 = vperm.xlu0 %1652, %v1571
    %v1654 = vpop.permute.xlu0 %1653
    %v1656 = vlaneseq
    %v1657 = vshrl.u32 %v1656, 7
    %v1658 = vsub.s32 2, %v1657
    %v1659 = vrot.slane %v1575, %v1658
    %v1660 = vmul.f32 %v1579, %v1659
    %v1661 = vmul.f32 %v1584, %v1659
    %v1662 = vmul.f32 %v1589, %v1659
    %v1663 = vmul.f32 %v1594, %v1659
    %v1664 = vmul.f32 %v1599, %v1659
    %v1665 = vmul.f32 %v1604, %v1659
    %v1666 = vmul.f32 %v1609, %v1659
    %v1667 = vmul.f32 %v1614, %v1659
    %v1668 = vmul.f32 %v1619, %v1659
    %v1669 = vmul.f32 %v1624, %v1659
    %v1670 = vmul.f32 %v1629, %v1659
    %v1671 = vmul.f32 %v1634, %v1659
    %v1672 = vmul.f32 %v1639, %v1659
    %v1673 = vmul.f32 %v1644, %v1659
    %v1674 = vmul.f32 %v1649, %v1659
    %v1675 = vmul.f32 %v1654, %v1659
    %v1676 = vadd.f32 %v1172, %v1660
    %v1677 = vadd.f32 %v1173, %v1661
    %v1678 = vadd.f32 %v1174, %v1662
    %v1679 = vadd.f32 %v1175, %v1663
    %v1680 = vadd.f32 %v1176, %v1664
    %v1681 = vadd.f32 %v1177, %v1665
    %v1682 = vadd.f32 %v1178, %v1666
    %v1683 = vadd.f32 %v1179, %v1667
    %v1684 = vadd.f32 %v1180, %v1668
    %v1685 = vadd.f32 %v1181, %v1669
    %v1686 = vadd.f32 %v1182, %v1670
    %v1687 = vadd.f32 %v1183, %v1671
    %v1688 = vadd.f32 %v1184, %v1672
    %v1689 = vadd.f32 %v1185, %v1673
    %v1690 = vadd.f32 %v1186, %v1674
    %v1691 = vadd.f32 %v1187, %v1675
    %v1692 = vld [vmem:[%s1 + $0x300] sm:$0xff]
    %v1693 = vld [vmem:[%s1 + $0x308] sm:$0xff]
    %v1694 = vld [vmem:[%s1 + $0x310] sm:$0xff]
    %v1695 = vld [vmem:[%s1 + $0x318] sm:$0xff]
    %v1696 = vld [vmem:[%s1 + $0x320] sm:$0xff]
    %v1697 = vld [vmem:[%s1 + $0x328] sm:$0xff]
    %v1698 = vld [vmem:[%s1 + $0x330] sm:$0xff]
    %v1699 = vld [vmem:[%s1 + $0x338] sm:$0xff]
    %v1700 = vld [vmem:[%s1 + $0x340] sm:$0xff]
    %v1701 = vld [vmem:[%s1 + $0x348] sm:$0xff]
    %v1702 = vld [vmem:[%s1 + $0x350] sm:$0xff]
    %v1703 = vld [vmem:[%s1 + $0x358] sm:$0xff]
    %v1704 = vld [vmem:[%s1 + $0x360] sm:$0xff]
    %v1705 = vld [vmem:[%s1 + $0x368] sm:$0xff]
    %v1706 = vld [vmem:[%s1 + $0x370] sm:$0xff]
    %v1707 = vld [vmem:[%s1 + $0x378] sm:$0xff]
    %v1708 = vld [vmem:[%s1 + $0x380] sm:$0xff]
    %v1709 = vld [vmem:[%s1 + $0x388] sm:$0xff]
    %v1710 = vld [vmem:[%s1 + $0x390] sm:$0xff]
    %v1711 = vld [vmem:[%s1 + $0x398] sm:$0xff]
    %v1712 = vld [vmem:[%s1 + $0x3a0] sm:$0xff]
    %v1713 = vld [vmem:[%s1 + $0x3a8] sm:$0xff]
    %v1714 = vld [vmem:[%s1 + $0x3b0] sm:$0xff]
    %v1715 = vld [vmem:[%s1 + $0x3b8] sm:$0xff]
    %v1716 = vld [vmem:[%s1 + $0x3c0] sm:$0xff]
    %v1717 = vld [vmem:[%s1 + $0x3c8] sm:$0xff]
    %v1718 = vld [vmem:[%s1 + $0x3d0] sm:$0xff]
    %v1719 = vld [vmem:[%s1 + $0x3d8] sm:$0xff]
    %v1720 = vld [vmem:[%s1 + $0x3e0] sm:$0xff]
    %v1721 = vld [vmem:[%s1 + $0x3e8] sm:$0xff]
    %v1722 = vld [vmem:[%s1 + $0x3f0] sm:$0xff]
    %v1723 = vld [vmem:[%s1 + $0x3f8] sm:$0xff]
    %v1756 = vunpack.c.l.b16 %v1692
    %v1757 = vunpack.c.h.b16 %v1692
    %v1758 = vunpack.c.l.b16 %v1693
    %v1759 = vunpack.c.h.b16 %v1693
    %v1760 = vunpack.c.l.b16 %v1694
    %v1761 = vunpack.c.h.b16 %v1694
    %v1762 = vunpack.c.l.b16 %v1695
    %v1763 = vunpack.c.h.b16 %v1695
    %v1764 = vunpack.c.l.b16 %v1696
    %v1765 = vunpack.c.h.b16 %v1696
    %v1766 = vunpack.c.l.b16 %v1697
    %v1767 = vunpack.c.h.b16 %v1697
    %v1768 = vunpack.c.l.b16 %v1698
    %v1769 = vunpack.c.h.b16 %v1698
    %v1770 = vunpack.c.l.b16 %v1699
    %v1771 = vunpack.c.h.b16 %v1699
    %v1772 = vunpack.c.l.b16 %v1700
    %v1773 = vunpack.c.h.b16 %v1700
    %v1774 = vunpack.c.l.b16 %v1701
    %v1775 = vunpack.c.h.b16 %v1701
    %v1776 = vunpack.c.l.b16 %v1702
    %v1777 = vunpack.c.h.b16 %v1702
    %v1778 = vunpack.c.l.b16 %v1703
    %v1779 = vunpack.c.h.b16 %v1703
    %v1780 = vunpack.c.l.b16 %v1704
    %v1781 = vunpack.c.h.b16 %v1704
    %v1782 = vunpack.c.l.b16 %v1705
    %v1783 = vunpack.c.h.b16 %v1705
    %v1784 = vunpack.c.l.b16 %v1706
    %v1785 = vunpack.c.h.b16 %v1706
    %v1786 = vunpack.c.l.b16 %v1707
    %v1787 = vunpack.c.h.b16 %v1707
    %v1788 = vunpack.c.l.b16 %v1708
    %v1789 = vunpack.c.h.b16 %v1708
    %v1790 = vunpack.c.l.b16 %v1709
    %v1791 = vunpack.c.h.b16 %v1709
    %v1792 = vunpack.c.l.b16 %v1710
    %v1793 = vunpack.c.h.b16 %v1710
    %v1794 = vunpack.c.l.b16 %v1711
    %v1795 = vunpack.c.h.b16 %v1711
    %v1796 = vunpack.c.l.b16 %v1712
    %v1797 = vunpack.c.h.b16 %v1712
    %v1798 = vunpack.c.l.b16 %v1713
    %v1799 = vunpack.c.h.b16 %v1713
    %v1800 = vunpack.c.l.b16 %v1714
    %v1801 = vunpack.c.h.b16 %v1714
    %v1802 = vunpack.c.l.b16 %v1715
    %v1803 = vunpack.c.h.b16 %v1715
    %v1804 = vunpack.c.l.b16 %v1716
    %v1805 = vunpack.c.h.b16 %v1716
    %v1806 = vunpack.c.l.b16 %v1717
    %v1807 = vunpack.c.h.b16 %v1717
    %v1808 = vunpack.c.l.b16 %v1718
    %v1809 = vunpack.c.h.b16 %v1718
    %v1810 = vunpack.c.l.b16 %v1719
    %v1811 = vunpack.c.h.b16 %v1719
    %v1812 = vunpack.c.l.b16 %v1720
    %v1813 = vunpack.c.h.b16 %v1720
    %v1814 = vunpack.c.l.b16 %v1721
    %v1815 = vunpack.c.h.b16 %v1721
    %v1816 = vunpack.c.l.b16 %v1722
    %v1817 = vunpack.c.h.b16 %v1722
    %v1818 = vunpack.c.l.b16 %v1723
    %v1819 = vunpack.c.h.b16 %v1723
    %v1820 = vpack.c.b16 %v1760, %v1756
    %v1821 = vpack.c.b16 %v1761, %v1757
    %v1822 = vpack.c.b16 %v1762, %v1758
    %v1823 = vpack.c.b16 %v1763, %v1759
    %v1824 = vpack.c.b16 %v1768, %v1764
    %v1825 = vpack.c.b16 %v1769, %v1765
    %v1826 = vpack.c.b16 %v1770, %v1766
    %v1827 = vpack.c.b16 %v1771, %v1767
    %v1828 = vpack.c.b16 %v1776, %v1772
    %v1829 = vpack.c.b16 %v1777, %v1773
    %v1830 = vpack.c.b16 %v1778, %v1774
    %v1831 = vpack.c.b16 %v1779, %v1775
    %v1832 = vpack.c.b16 %v1784, %v1780
    %v1833 = vpack.c.b16 %v1785, %v1781
    %v1834 = vpack.c.b16 %v1786, %v1782
    %v1835 = vpack.c.b16 %v1787, %v1783
    %v1836 = vpack.c.b16 %v1792, %v1788
    %v1837 = vpack.c.b16 %v1793, %v1789
    %v1838 = vpack.c.b16 %v1794, %v1790
    %v1839 = vpack.c.b16 %v1795, %v1791
    %v1840 = vpack.c.b16 %v1800, %v1796
    %v1841 = vpack.c.b16 %v1801, %v1797
    %v1842 = vpack.c.b16 %v1802, %v1798
    %v1843 = vpack.c.b16 %v1803, %v1799
    %v1844 = vpack.c.b16 %v1808, %v1804
    %v1845 = vpack.c.b16 %v1809, %v1805
    %v1846 = vpack.c.b16 %v1810, %v1806
    %v1847 = vpack.c.b16 %v1811, %v1807
    %v1848 = vpack.c.b16 %v1816, %v1812
    %v1849 = vpack.c.b16 %v1817, %v1813
    %v1850 = vpack.c.b16 %v1818, %v1814
    %v1851 = vpack.c.b16 %v1819, %v1815
    %1884 = vmatprep.subr.bf16.mxu0 0
    %1885 = vmatpush1.bf16.msra.mxu0 %v143
    %1886 = vmatprep.subr.bf16.mxu0 0
    %1887 = vmatpush1.bf16.msra.mxu0 %v144
    %1888 = vmatprep.subr.bf16.mxu0 0
    %1889 = vmatpush1.bf16.msra.mxu0 %v145
    %1890 = vmatprep.subr.bf16.mxu0 0
    %1891 = vmatpush1.bf16.msra.mxu0 %v146
    %1892 = vmatprep.subr.bf16.mxu0 0
    %1893 = vmatpush1.bf16.msra.mxu0 %v147
    %1894 = vmatprep.subr.bf16.mxu0 0
    %1895 = vmatpush1.bf16.msra.mxu0 %v148
    %1896 = vmatprep.subr.bf16.mxu0 0
    %1897 = vmatpush1.bf16.msra.mxu0 %v149
    %1898 = vmatprep.subr.bf16.mxu0 0
    %1899 = vmatpush1.bf16.msra.mxu0 %v150
    %1900 = vmatprep.subr.bf16.mxu0 0
    %1901 = vmatpush1.bf16.msra.mxu0 %v151
    %1902 = vmatprep.subr.bf16.mxu0 0
    %1903 = vmatpush1.bf16.msra.mxu0 %v152
    %1904 = vmatprep.subr.bf16.mxu0 0
    %1905 = vmatpush1.bf16.msra.mxu0 %v153
    %1906 = vmatprep.subr.bf16.mxu0 0
    %1907 = vmatpush1.bf16.msra.mxu0 %v154
    %1908 = vmatprep.subr.bf16.mxu0 0
    %1909 = vmatpush1.bf16.msra.mxu0 %v155
    %1910 = vmatprep.subr.bf16.mxu0 0
    %1911 = vmatpush1.bf16.msra.mxu0 %v156
    %1912 = vmatprep.subr.bf16.mxu0 0
    %1913 = vmatpush1.bf16.msra.mxu0 %v157
    %1914 = vmatprep.subr.bf16.mxu0 0
    %1915 = vmatpush1.bf16.msra.mxu0 %v158
    %1916 = vmatprep.mubr.bf16.mxu0 %v1821
    %1917 = vmatmul.mubr.bf16.gmra.mrb[0].mxu0 %v1820
    %v1918 = vpop.f32.mrb[0].mxu0
    %v1919 = vadd.f32 0.0, %v1918
    %v1920 = vpop.f32.mrb[0].mxu0
    %v1921 = vpop.f32.mrb[0].mxu0
    %v1922 = vadd.f32 0.0, %v1921
    %v1923 = vpop.f32.mrb[0].mxu0
    %1924 = vmatprep.mubr.bf16.mxu0 %v1825
    %1925 = vmatmul.mubr.bf16.gmra.mrb[0].mxu0 %v1824
    %v1926 = vpop.f32.mrb[0].mxu0
    %v1927 = vadd.f32 0.0, %v1926
    %v1928 = vpop.f32.mrb[0].mxu0
    %v1929 = vpop.f32.mrb[0].mxu0
    %v1930 = vadd.f32 0.0, %v1929
    %v1931 = vpop.f32.mrb[0].mxu0
    %1932 = vmatprep.mubr.bf16.mxu0 %v1829
    %1933 = vmatmul.mubr.bf16.gmra.mrb[0].mxu0 %v1828
    %v1934 = vpop.f32.mrb[0].mxu0
    %v1935 = vadd.f32 0.0, %v1934
    %v1936 = vpop.f32.mrb[0].mxu0
    %v1937 = vpop.f32.mrb[0].mxu0
    %v1938 = vadd.f32 0.0, %v1937
    %v1939 = vpop.f32.mrb[0].mxu0
    %1940 = vmatprep.mubr.bf16.mxu0 %v1833
    %1941 = vmatmul.mubr.bf16.gmra.mrb[0].mxu0 %v1832
    %v1942 = vpop.f32.mrb[0].mxu0
    %v1943 = vadd.f32 0.0, %v1942
    %v1944 = vpop.f32.mrb[0].mxu0
    %v1945 = vpop.f32.mrb[0].mxu0
    %v1946 = vadd.f32 0.0, %v1945
    %v1947 = vpop.f32.mrb[0].mxu0
    %1948 = vmatprep.mubr.bf16.mxu0 %v1837
    %1949 = vmatmul.mubr.bf16.gmra.mrb[0].mxu0 %v1836
    %v1950 = vpop.f32.mrb[0].mxu0
    %v1951 = vadd.f32 0.0, %v1950
    %v1952 = vpop.f32.mrb[0].mxu0
    %v1953 = vpop.f32.mrb[0].mxu0
    %v1954 = vadd.f32 0.0, %v1953
    %v1955 = vpop.f32.mrb[0].mxu0
    %1956 = vmatprep.mubr.bf16.mxu0 %v1841
    %1957 = vmatmul.mubr.bf16.gmra.mrb[0].mxu0 %v1840
    %v1958 = vpop.f32.mrb[0].mxu0
    %v1959 = vadd.f32 0.0, %v1958
    %v1960 = vpop.f32.mrb[0].mxu0
    %v1961 = vpop.f32.mrb[0].mxu0
    %v1962 = vadd.f32 0.0, %v1961
    %v1963 = vpop.f32.mrb[0].mxu0
    %1964 = vmatprep.mubr.bf16.mxu0 %v1845
    %1965 = vmatmul.mubr.bf16.gmra.mrb[0].mxu0 %v1844
    %v1966 = vpop.f32.mrb[0].mxu0
    %v1967 = vadd.f32 0.0, %v1966
    %v1968 = vpop.f32.mrb[0].mxu0
    %v1969 = vpop.f32.mrb[0].mxu0
    %v1970 = vadd.f32 0.0, %v1969
    %v1971 = vpop.f32.mrb[0].mxu0
    %1972 = vmatprep.mubr.bf16.mxu0 %v1849
    %1973 = vmatmul.mubr.bf16.gmra.mrb[0].mxu0 %v1848
    %v1974 = vpop.f32.mrb[0].mxu0
    %v1975 = vadd.f32 0.0, %v1974
    %v1976 = vpop.f32.mrb[0].mxu0
    %v1977 = vpop.f32.mrb[0].mxu0
    %v1978 = vadd.f32 0.0, %v1977
    %v1979 = vpop.f32.mrb[0].mxu0
    %1980 = vdwg.mxu0
    %1981 = vmatprep.subr.bf16.mxu0 0
    %1982 = vmatpush1.bf16.msra.mxu0 %v159
    %1983 = vmatprep.subr.bf16.mxu0 0
    %1984 = vmatpush1.bf16.msra.mxu0 %v160
    %1985 = vmatprep.subr.bf16.mxu0 0
    %1986 = vmatpush1.bf16.msra.mxu0 %v161
    %1987 = vmatprep.subr.bf16.mxu0 0
    %1988 = vmatpush1.bf16.msra.mxu0 %v162
    %1989 = vmatprep.subr.bf16.mxu0 0
    %1990 = vmatpush1.bf16.msra.mxu0 %v163
    %1991 = vmatprep.subr.bf16.mxu0 0
    %1992 = vmatpush1.bf16.msra.mxu0 %v164
    %1993 = vmatprep.subr.bf16.mxu0 0
    %1994 = vmatpush1.bf16.msra.mxu0 %v165
    %1995 = vmatprep.subr.bf16.mxu0 0
    %1996 = vmatpush1.bf16.msra.mxu0 %v166
    %1997 = vmatprep.subr.bf16.mxu0 0
    %1998 = vmatpush1.bf16.msra.mxu0 %v167
    %1999 = vmatprep.subr.bf16.mxu0 0
    %2000 = vmatpush1.bf16.msra.mxu0 %v168
    %2001 = vmatprep.subr.bf16.mxu0 0
    %2002 = vmatpush1.bf16.msra.mxu0 %v169
    %2003 = vmatprep.subr.bf16.mxu0 0
    %2004 = vmatpush1.bf16.msra.mxu0 %v170
    %2005 = vmatprep.subr.bf16.mxu0 0
    %2006 = vmatpush1.bf16.msra.mxu0 %v171
    %2007 = vmatprep.subr.bf16.mxu0 0
    %2008 = vmatpush1.bf16.msra.mxu0 %v172
    %2009 = vmatprep.subr.bf16.mxu0 0
    %2010 = vmatpush1.bf16.msra.mxu0 %v173
    %2011 = vmatprep.subr.bf16.mxu0 0
    %2012 = vmatpush1.bf16.msra.mxu0 %v174
    %2013 = vmatprep.mubr.bf16.mxu0 %v1823
    %2014 = vmatmul.mubr.bf16.gmra.mrb[0].mxu0 %v1822
    %v2015 = vpop.f32.mrb[0].mxu0
    %v2016 = vadd.f32 %v1919, %v2015
    %v2017 = vpop.f32.mrb[0].mxu0
    %v2018 = vpop.f32.mrb[0].mxu0
    %v2019 = vadd.f32 %v1922, %v2018
    %v2020 = vpop.f32.mrb[0].mxu0
    %2021 = vmatprep.mubr.bf16.mxu0 %v1827
    %2022 = vmatmul.mubr.bf16.gmra.mrb[0].mxu0 %v1826
    %v2023 = vpop.f32.mrb[0].mxu0
    %v2024 = vadd.f32 %v1927, %v2023
    %v2025 = vpop.f32.mrb[0].mxu0
    %v2026 = vpop.f32.mrb[0].mxu0
    %v2027 = vadd.f32 %v1930, %v2026
    %v2028 = vpop.f32.mrb[0].mxu0
    %2029 = vmatprep.mubr.bf16.mxu0 %v1831
    %2030 = vmatmul.mubr.bf16.gmra.mrb[0].mxu0 %v1830
    %v2031 = vpop.f32.mrb[0].mxu0
    %v2032 = vadd.f32 %v1935, %v2031
    %v2033 = vpop.f32.mrb[0].mxu0
    %v2034 = vpop.f32.mrb[0].mxu0
    %v2035 = vadd.f32 %v1938, %v2034
    %v2036 = vpop.f32.mrb[0].mxu0
    %2037 = vmatprep.mubr.bf16.mxu0 %v1835
    %2038 = vmatmul.mubr.bf16.gmra.mrb[0].mxu0 %v1834
    %v2039 = vpop.f32.mrb[0].mxu0
    %v2040 = vadd.f32 %v1943, %v2039
    %v2041 = vpop.f32.mrb[0].mxu0
    %v2042 = vpop.f32.mrb[0].mxu0
    %v2043 = vadd.f32 %v1946, %v2042
    %v2044 = vpop.f32.mrb[0].mxu0
    %2045 = vmatprep.mubr.bf16.mxu0 %v1839
    %2046 = vmatmul.mubr.bf16.gmra.mrb[0].mxu0 %v1838
    %v2047 = vpop.f32.mrb[0].mxu0
    %v2048 = vadd.f32 %v1951, %v2047
    %v2049 = vpop.f32.mrb[0].mxu0
    %v2050 = vpop.f32.mrb[0].mxu0
    %v2051 = vadd.f32 %v1954, %v2050
    %v2052 = vpop.f32.mrb[0].mxu0
    %2053 = vmatprep.mubr.bf16.mxu0 %v1843
    %2054 = vmatmul.mubr.bf16.gmra.mrb[0].mxu0 %v1842
    %v2055 = vpop.f32.mrb[0].mxu0
    %v2056 = vadd.f32 %v1959, %v2055
    %v2057 = vpop.f32.mrb[0].mxu0
    %v2058 = vpop.f32.mrb[0].mxu0
    %v2059 = vadd.f32 %v1962, %v2058
    %v2060 = vpop.f32.mrb[0].mxu0
    %2061 = vmatprep.mubr.bf16.mxu0 %v1847
    %2062 = vmatmul.mubr.bf16.gmra.mrb[0].mxu0 %v1846
    %v2063 = vpop.f32.mrb[0].mxu0
    %v2064 = vadd.f32 %v1967, %v2063
    %v2065 = vpop.f32.mrb[0].mxu0
    %v2066 = vpop.f32.mrb[0].mxu0
    %v2067 = vadd.f32 %v1970, %v2066
    %v2068 = vpop.f32.mrb[0].mxu0
    %2069 = vmatprep.mubr.bf16.mxu0 %v1851
    %2070 = vmatmul.mubr.bf16.gmra.mrb[0].mxu0 %v1850
    %v2071 = vpop.f32.mrb[0].mxu0
    %v2072 = vadd.f32 %v1975, %v2071
    %v2073 = vpop.f32.mrb[0].mxu0
    %v2074 = vpop.f32.mrb[0].mxu0
    %v2075 = vadd.f32 %v1978, %v2074
    %v2076 = vpop.f32.mrb[0].mxu0
    %2077 = vdwg.mxu0
    %2079 = vset.pattern.permute.xlu0 0
    %2080 = vperm.xlu0 %2079, %v2016
    %v2081 = vpop.permute.xlu0 %2080
    %2084 = vset.pattern.permute.xlu0 0
    %2085 = vperm.xlu0 %2084, %v2019
    %v2086 = vpop.permute.xlu0 %2085
    %2089 = vset.pattern.permute.xlu0 0
    %2090 = vperm.xlu0 %2089, %v2024
    %v2091 = vpop.permute.xlu0 %2090
    %2094 = vset.pattern.permute.xlu0 0
    %2095 = vperm.xlu0 %2094, %v2027
    %v2096 = vpop.permute.xlu0 %2095
    %2099 = vset.pattern.permute.xlu0 0
    %2100 = vperm.xlu0 %2099, %v2032
    %v2101 = vpop.permute.xlu0 %2100
    %2104 = vset.pattern.permute.xlu0 0
    %2105 = vperm.xlu0 %2104, %v2035
    %v2106 = vpop.permute.xlu0 %2105
    %2109 = vset.pattern.permute.xlu0 0
    %2110 = vperm.xlu0 %2109, %v2040
    %v2111 = vpop.permute.xlu0 %2110
    %2114 = vset.pattern.permute.xlu0 0
    %2115 = vperm.xlu0 %2114, %v2043
    %v2116 = vpop.permute.xlu0 %2115
    %2119 = vset.pattern.permute.xlu0 0
    %2120 = vperm.xlu0 %2119, %v2048
    %v2121 = vpop.permute.xlu0 %2120
    %2124 = vset.pattern.permute.xlu0 0
    %2125 = vperm.xlu0 %2124, %v2051
    %v2126 = vpop.permute.xlu0 %2125
    %2129 = vset.pattern.permute.xlu0 0
    %2130 = vperm.xlu0 %2129, %v2056
    %v2131 = vpop.permute.xlu0 %2130
    %2134 = vset.pattern.permute.xlu0 0
    %2135 = vperm.xlu0 %2134, %v2059
    %v2136 = vpop.permute.xlu0 %2135
    %2139 = vset.pattern.permute.xlu0 0
    %2140 = vperm.xlu0 %2139, %v2064
    %v2141 = vpop.permute.xlu0 %2140
    %2144 = vset.pattern.permute.xlu0 0
    %2145 = vperm.xlu0 %2144, %v2067
    %v2146 = vpop.permute.xlu0 %2145
    %2149 = vset.pattern.permute.xlu0 0
    %2150 = vperm.xlu0 %2149, %v2072
    %v2151 = vpop.permute.xlu0 %2150
    %2154 = vset.pattern.permute.xlu0 0
    %2155 = vperm.xlu0 %2154, %v2075
    %v2156 = vpop.permute.xlu0 %2155
    %v2158 = vlaneseq
    %v2159 = vshrl.u32 %v2158, 7
    %v2160 = vsub.s32 3, %v2159
    %v2161 = vrot.slane %v1575, %v2160
    %v2162 = vmul.f32 %v2081, %v2161
    %v2163 = vmul.f32 %v2086, %v2161
    %v2164 = vmul.f32 %v2091, %v2161
    %v2165 = vmul.f32 %v2096, %v2161
    %v2166 = vmul.f32 %v2101, %v2161
    %v2167 = vmul.f32 %v2106, %v2161
    %v2168 = vmul.f32 %v2111, %v2161
    %v2169 = vmul.f32 %v2116, %v2161
    %v2170 = vmul.f32 %v2121, %v2161
    %v2171 = vmul.f32 %v2126, %v2161
    %v2172 = vmul.f32 %v2131, %v2161
    %v2173 = vmul.f32 %v2136, %v2161
    %v2174 = vmul.f32 %v2141, %v2161
    %v2175 = vmul.f32 %v2146, %v2161
    %v2176 = vmul.f32 %v2151, %v2161
    %v2177 = vmul.f32 %v2156, %v2161
    %v2178 = vadd.f32 %v1676, %v2162
    %v2179 = vadd.f32 %v1677, %v2163
    %v2180 = vadd.f32 %v1678, %v2164
    %v2181 = vadd.f32 %v1679, %v2165
    %v2182 = vadd.f32 %v1680, %v2166
    %v2183 = vadd.f32 %v1681, %v2167
    %v2184 = vadd.f32 %v1682, %v2168
    %v2185 = vadd.f32 %v1683, %v2169
    %v2186 = vadd.f32 %v1684, %v2170
    %v2187 = vadd.f32 %v1685, %v2171
    %v2188 = vadd.f32 %v1686, %v2172
    %v2189 = vadd.f32 %v1687, %v2173
    %v2190 = vadd.f32 %v1688, %v2174
    %v2191 = vadd.f32 %v1689, %v2175
    %v2192 = vadd.f32 %v1690, %v2176
    %v2193 = vadd.f32 %v1691, %v2177
    %v2194 = vld [vmem:[%s1 + $0x400] sm:$0xff]
    %v2195 = vld [vmem:[%s1 + $0x408] sm:$0xff]
    %v2196 = vld [vmem:[%s1 + $0x410] sm:$0xff]
    %v2197 = vld [vmem:[%s1 + $0x418] sm:$0xff]
    %v2198 = vld [vmem:[%s1 + $0x420] sm:$0xff]
    %v2199 = vld [vmem:[%s1 + $0x428] sm:$0xff]
    %v2200 = vld [vmem:[%s1 + $0x430] sm:$0xff]
    %v2201 = vld [vmem:[%s1 + $0x438] sm:$0xff]
    %v2202 = vld [vmem:[%s1 + $0x440] sm:$0xff]
    %v2203 = vld [vmem:[%s1 + $0x448] sm:$0xff]
    %v2204 = vld [vmem:[%s1 + $0x450] sm:$0xff]
    %v2205 = vld [vmem:[%s1 + $0x458] sm:$0xff]
    %v2206 = vld [vmem:[%s1 + $0x460] sm:$0xff]
    %v2207 = vld [vmem:[%s1 + $0x468] sm:$0xff]
    %v2208 = vld [vmem:[%s1 + $0x470] sm:$0xff]
    %v2209 = vld [vmem:[%s1 + $0x478] sm:$0xff]
    %v2210 = vld [vmem:[%s1 + $0x480] sm:$0xff]
    %v2211 = vld [vmem:[%s1 + $0x488] sm:$0xff]
    %v2212 = vld [vmem:[%s1 + $0x490] sm:$0xff]
    %v2213 = vld [vmem:[%s1 + $0x498] sm:$0xff]
    %v2214 = vld [vmem:[%s1 + $0x4a0] sm:$0xff]
    %v2215 = vld [vmem:[%s1 + $0x4a8] sm:$0xff]
    %v2216 = vld [vmem:[%s1 + $0x4b0] sm:$0xff]
    %v2217 = vld [vmem:[%s1 + $0x4b8] sm:$0xff]
    %v2218 = vld [vmem:[%s1 + $0x4c0] sm:$0xff]
    %v2219 = vld [vmem:[%s1 + $0x4c8] sm:$0xff]
    %v2220 = vld [vmem:[%s1 + $0x4d0] sm:$0xff]
    %v2221 = vld [vmem:[%s1 + $0x4d8] sm:$0xff]
    %v2222 = vld [vmem:[%s1 + $0x4e0] sm:$0xff]
    %v2223 = vld [vmem:[%s1 + $0x4e8] sm:$0xff]
    %v2224 = vld [vmem:[%s1 + $0x4f0] sm:$0xff]
    %v2225 = vld [vmem:[%s1 + $0x4f8] sm:$0xff]
    %v2258 = vunpack.c.l.b16 %v2194
    %v2259 = vunpack.c.h.b16 %v2194
    %v2260 = vunpack.c.l.b16 %v2195
    %v2261 = vunpack.c.h.b16 %v2195
    %v2262 = vunpack.c.l.b16 %v2196
    %v2263 = vunpack.c.h.b16 %v2196
    %v2264 = vunpack.c.l.b16 %v2197
    %v2265 = vunpack.c.h.b16 %v2197
    %v2266 = vunpack.c.l.b16 %v2198
    %v2267 = vunpack.c.h.b16 %v2198
    %v2268 = vunpack.c.l.b16 %v2199
    %v2269 = vunpack.c.h.b16 %v2199
    %v2270 = vunpack.c.l.b16 %v2200
    %v2271 = vunpack.c.h.b16 %v2200
    %v2272 = vunpack.c.l.b16 %v2201
    %v2273 = vunpack.c.h.b16 %v2201
    %v2274 = vunpack.c.l.b16 %v2202
    %v2275 = vunpack.c.h.b16 %v2202
    %v2276 = vunpack.c.l.b16 %v2203
    %v2277 = vunpack.c.h.b16 %v2203
    %v2278 = vunpack.c.l.b16 %v2204
    %v2279 = vunpack.c.h.b16 %v2204
    %v2280 = vunpack.c.l.b16 %v2205
    %v2281 = vunpack.c.h.b16 %v2205
    %v2282 = vunpack.c.l.b16 %v2206
    %v2283 = vunpack.c.h.b16 %v2206
    %v2284 = vunpack.c.l.b16 %v2207
    %v2285 = vunpack.c.h.b16 %v2207
    %v2286 = vunpack.c.l.b16 %v2208
    %v2287 = vunpack.c.h.b16 %v2208
    %v2288 = vunpack.c.l.b16 %v2209
    %v2289 = vunpack.c.h.b16 %v2209
    %v2290 = vunpack.c.l.b16 %v2210
    %v2291 = vunpack.c.h.b16 %v2210
    %v2292 = vunpack.c.l.b16 %v2211
    %v2293 = vunpack.c.h.b16 %v2211
    %v2294 = vunpack.c.l.b16 %v2212
    %v2295 = vunpack.c.h.b16 %v2212
    %v2296 = vunpack.c.l.b16 %v2213
    %v2297 = vunpack.c.h.b16 %v2213
    %v2298 = vunpack.c.l.b16 %v2214
    %v2299 = vunpack.c.h.b16 %v2214
    %v2300 = vunpack.c.l.b16 %v2215
    %v2301 = vunpack.c.h.b16 %v2215
    %v2302 = vunpack.c.l.b16 %v2216
    %v2303 = vunpack.c.h.b16 %v2216
    %v2304 = vunpack.c.l.b16 %v2217
    %v2305 = vunpack.c.h.b16 %v2217
    %v2306 = vunpack.c.l.b16 %v2218
    %v2307 = vunpack.c.h.b16 %v2218
    %v2308 = vunpack.c.l.b16 %v2219
    %v2309 = vunpack.c.h.b16 %v2219
    %v2310 = vunpack.c.l.b16 %v2220
    %v2311 = vunpack.c.h.b16 %v2220
    %v2312 = vunpack.c.l.b16 %v2221
    %v2313 = vunpack.c.h.b16 %v2221
    %v2314 = vunpack.c.l.b16 %v2222
    %v2315 = vunpack.c.h.b16 %v2222
    %v2316 = vunpack.c.l.b16 %v2223
    %v2317 = vunpack.c.h.b16 %v2223
    %v2318 = vunpack.c.l.b16 %v2224
    %v2319 = vunpack.c.h.b16 %v2224
    %v2320 = vunpack.c.l.b16 %v2225
    %v2321 = vunpack.c.h.b16 %v2225
    %v2322 = vpack.c.b16 %v2262, %v2258
    %v2323 = vpack.c.b16 %v2263, %v2259
    %v2324 = vpack.c.b16 %v2264, %v2260
    %v2325 = vpack.c.b16 %v2265, %v2261
    %v2326 = vpack.c.b16 %v2270, %v2266
    %v2327 = vpack.c.b16 %v2271, %v2267
    %v2328 = vpack.c.b16 %v2272, %v2268
    %v2329 = vpack.c.b16 %v2273, %v2269
    %v2330 = vpack.c.b16 %v2278, %v2274
    %v2331 = vpack.c.b16 %v2279, %v2275
    %v2332 = vpack.c.b16 %v2280, %v2276
    %v2333 = vpack.c.b16 %v2281, %v2277
    %v2334 = vpack.c.b16 %v2286, %v2282
    %v2335 = vpack.c.b16 %v2287, %v2283
    %v2336 = vpack.c.b16 %v2288, %v2284
    %v2337 = vpack.c.b16 %v2289, %v2285
    %v2338 = vpack.c.b16 %v2294, %v2290
    %v2339 = vpack.c.b16 %v2295, %v2291
    %v2340 = vpack.c.b16 %v2296, %v2292
    %v2341 = vpack.c.b16 %v2297, %v2293
    %v2342 = vpack.c.b16 %v2302, %v2298
    %v2343 = vpack.c.b16 %v2303, %v2299
    %v2344 = vpack.c.b16 %v2304, %v2300
    %v2345 = vpack.c.b16 %v2305, %v2301
    %v2346 = vpack.c.b16 %v2310, %v2306
    %v2347 = vpack.c.b16 %v2311, %v2307
    %v2348 = vpack.c.b16 %v2312, %v2308
    %v2349 = vpack.c.b16 %v2313, %v2309
    %v2350 = vpack.c.b16 %v2318, %v2314
    %v2351 = vpack.c.b16 %v2319, %v2315
    %v2352 = vpack.c.b16 %v2320, %v2316
    %v2353 = vpack.c.b16 %v2321, %v2317
    %2386 = vmatprep.subr.bf16.mxu0 0
    %2387 = vmatpush1.bf16.msra.mxu0 %v143
    %2388 = vmatprep.subr.bf16.mxu0 0
    %2389 = vmatpush1.bf16.msra.mxu0 %v144
    %2390 = vmatprep.subr.bf16.mxu0 0
    %2391 = vmatpush1.bf16.msra.mxu0 %v145
    %2392 = vmatprep.subr.bf16.mxu0 0
    %2393 = vmatpush1.bf16.msra.mxu0 %v146
    %2394 = vmatprep.subr.bf16.mxu0 0
    %2395 = vmatpush1.bf16.msra.mxu0 %v147
    %2396 = vmatprep.subr.bf16.mxu0 0
    %2397 = vmatpush1.bf16.msra.mxu0 %v148
    %2398 = vmatprep.subr.bf16.mxu0 0
    %2399 = vmatpush1.bf16.msra.mxu0 %v149
    %2400 = vmatprep.subr.bf16.mxu0 0
    %2401 = vmatpush1.bf16.msra.mxu0 %v150
    %2402 = vmatprep.subr.bf16.mxu0 0
    %2403 = vmatpush1.bf16.msra.mxu0 %v151
    %2404 = vmatprep.subr.bf16.mxu0 0
    %2405 = vmatpush1.bf16.msra.mxu0 %v152
    %2406 = vmatprep.subr.bf16.mxu0 0
    %2407 = vmatpush1.bf16.msra.mxu0 %v153
    %2408 = vmatprep.subr.bf16.mxu0 0
    %2409 = vmatpush1.bf16.msra.mxu0 %v154
    %2410 = vmatprep.subr.bf16.mxu0 0
    %2411 = vmatpush1.bf16.msra.mxu0 %v155
    %2412 = vmatprep.subr.bf16.mxu0 0
    %2413 = vmatpush1.bf16.msra.mxu0 %v156
    %2414 = vmatprep.subr.bf16.mxu0 0
    %2415 = vmatpush1.bf16.msra.mxu0 %v157
    %2416 = vmatprep.subr.bf16.mxu0 0
    %2417 = vmatpush1.bf16.msra.mxu0 %v158
    %2418 = vmatprep.mubr.bf16.mxu0 %v2323
    %2419 = vmatmul.mubr.bf16.gmra.mrb[0].mxu0 %v2322
    %v2420 = vpop.f32.mrb[0].mxu0
    %v2421 = vadd.f32 0.0, %v2420
    %v2422 = vpop.f32.mrb[0].mxu0
    %v2423 = vpop.f32.mrb[0].mxu0
    %v2424 = vadd.f32 0.0, %v2423
    %v2425 = vpop.f32.mrb[0].mxu0
    %2426 = vmatprep.mubr.bf16.mxu0 %v2327
    %2427 = vmatmul.mubr.bf16.gmra.mrb[0].mxu0 %v2326
    %v2428 = vpop.f32.mrb[0].mxu0
    %v2429 = vadd.f32 0.0, %v2428
    %v2430 = vpop.f32.mrb[0].mxu0
    %v2431 = vpop.f32.mrb[0].mxu0
    %v2432 = vadd.f32 0.0, %v2431
    %v2433 = vpop.f32.mrb[0].mxu0
    %2434 = vmatprep.mubr.bf16.mxu0 %v2331
    %2435 = vmatmul.mubr.bf16.gmra.mrb[0].mxu0 %v2330
    %v2436 = vpop.f32.mrb[0].mxu0
    %v2437 = vadd.f32 0.0, %v2436
    %v2438 = vpop.f32.mrb[0].mxu0
    %v2439 = vpop.f32.mrb[0].mxu0
    %v2440 = vadd.f32 0.0, %v2439
    %v2441 = vpop.f32.mrb[0].mxu0
    %2442 = vmatprep.mubr.bf16.mxu0 %v2335
    %2443 = vmatmul.mubr.bf16.gmra.mrb[0].mxu0 %v2334
    %v2444 = vpop.f32.mrb[0].mxu0
    %v2445 = vadd.f32 0.0, %v2444
    %v2446 = vpop.f32.mrb[0].mxu0
    %v2447 = vpop.f32.mrb[0].mxu0
    %v2448 = vadd.f32 0.0, %v2447
    %v2449 = vpop.f32.mrb[0].mxu0
    %2450 = vmatprep.mubr.bf16.mxu0 %v2339
    %2451 = vmatmul.mubr.bf16.gmra.mrb[0].mxu0 %v2338
    %v2452 = vpop.f32.mrb[0].mxu0
    %v2453 = vadd.f32 0.0, %v2452
    %v2454 = vpop.f32.mrb[0].mxu0
    %v2455 = vpop.f32.mrb[0].mxu0
    %v2456 = vadd.f32 0.0, %v2455
    %v2457 = vpop.f32.mrb[0].mxu0
    %2458 = vmatprep.mubr.bf16.mxu0 %v2343
    %2459 = vmatmul.mubr.bf16.gmra.mrb[0].mxu0 %v2342
    %v2460 = vpop.f32.mrb[0].mxu0
    %v2461 = vadd.f32 0.0, %v2460
    %v2462 = vpop.f32.mrb[0].mxu0
    %v2463 = vpop.f32.mrb[0].mxu0
    %v2464 = vadd.f32 0.0, %v2463
    %v2465 = vpop.f32.mrb[0].mxu0
    %2466 = vmatprep.mubr.bf16.mxu0 %v2347
    %2467 = vmatmul.mubr.bf16.gmra.mrb[0].mxu0 %v2346
    %v2468 = vpop.f32.mrb[0].mxu0
    %v2469 = vadd.f32 0.0, %v2468
    %v2470 = vpop.f32.mrb[0].mxu0
    %v2471 = vpop.f32.mrb[0].mxu0
    %v2472 = vadd.f32 0.0, %v2471
    %v2473 = vpop.f32.mrb[0].mxu0
    %2474 = vmatprep.mubr.bf16.mxu0 %v2351
    %2475 = vmatmul.mubr.bf16.gmra.mrb[0].mxu0 %v2350
    %v2476 = vpop.f32.mrb[0].mxu0
    %v2477 = vadd.f32 0.0, %v2476
    %v2478 = vpop.f32.mrb[0].mxu0
    %v2479 = vpop.f32.mrb[0].mxu0
    %v2480 = vadd.f32 0.0, %v2479
    %v2481 = vpop.f32.mrb[0].mxu0
    %2482 = vdwg.mxu0
    %2483 = vmatprep.subr.bf16.mxu0 0
    %2484 = vmatpush1.bf16.msra.mxu0 %v159
    %2485 = vmatprep.subr.bf16.mxu0 0
    %2486 = vmatpush1.bf16.msra.mxu0 %v160
    %2487 = vmatprep.subr.bf16.mxu0 0
    %2488 = vmatpush1.bf16.msra.mxu0 %v161
    %2489 = vmatprep.subr.bf16.mxu0 0
    %2490 = vmatpush1.bf16.msra.mxu0 %v162
    %2491 = vmatprep.subr.bf16.mxu0 0
    %2492 = vmatpush1.bf16.msra.mxu0 %v163
    %2493 = vmatprep.subr.bf16.mxu0 0
    %2494 = vmatpush1.bf16.msra.mxu0 %v164
    %2495 = vmatprep.subr.bf16.mxu0 0
    %2496 = vmatpush1.bf16.msra.mxu0 %v165
    %2497 = vmatprep.subr.bf16.mxu0 0
    %2498 = vmatpush1.bf16.msra.mxu0 %v166
    %2499 = vmatprep.subr.bf16.mxu0 0
    %2500 = vmatpush1.bf16.msra.mxu0 %v167
    %2501 = vmatprep.subr.bf16.mxu0 0
    %2502 = vmatpush1.bf16.msra.mxu0 %v168
    %2503 = vmatprep.subr.bf16.mxu0 0
    %2504 = vmatpush1.bf16.msra.mxu0 %v169
    %2505 = vmatprep.subr.bf16.mxu0 0
    %2506 = vmatpush1.bf16.msra.mxu0 %v170
    %2507 = vmatprep.subr.bf16.mxu0 0
    %2508 = vmatpush1.bf16.msra.mxu0 %v171
    %2509 = vmatprep.subr.bf16.mxu0 0
    %2510 = vmatpush1.bf16.msra.mxu0 %v172
    %2511 = vmatprep.subr.bf16.mxu0 0
    %2512 = vmatpush1.bf16.msra.mxu0 %v173
    %2513 = vmatprep.subr.bf16.mxu0 0
    %2514 = vmatpush1.bf16.msra.mxu0 %v174
    %2515 = vmatprep.mubr.bf16.mxu0 %v2325
    %2516 = vmatmul.mubr.bf16.gmra.mrb[0].mxu0 %v2324
    %v2517 = vpop.f32.mrb[0].mxu0
    %v2518 = vadd.f32 %v2421, %v2517
    %v2519 = vpop.f32.mrb[0].mxu0
    %v2520 = vpop.f32.mrb[0].mxu0
    %v2521 = vadd.f32 %v2424, %v2520
    %v2522 = vpop.f32.mrb[0].mxu0
    %2523 = vmatprep.mubr.bf16.mxu0 %v2329
    %2524 = vmatmul.mubr.bf16.gmra.mrb[0].mxu0 %v2328
    %v2525 = vpop.f32.mrb[0].mxu0
    %v2526 = vadd.f32 %v2429, %v2525
    %v2527 = vpop.f32.mrb[0].mxu0
    %v2528 = vpop.f32.mrb[0].mxu0
    %v2529 = vadd.f32 %v2432, %v2528
    %v2530 = vpop.f32.mrb[0].mxu0
    %2531 = vmatprep.mubr.bf16.mxu0 %v2333
    %2532 = vmatmul.mubr.bf16.gmra.mrb[0].mxu0 %v2332
    %v2533 = vpop.f32.mrb[0].mxu0
    %v2534 = vadd.f32 %v2437, %v2533
    %v2535 = vpop.f32.mrb[0].mxu0
    %v2536 = vpop.f32.mrb[0].mxu0
    %v2537 = vadd.f32 %v2440, %v2536
    %v2538 = vpop.f32.mrb[0].mxu0
    %2539 = vmatprep.mubr.bf16.mxu0 %v2337
    %2540 = vmatmul.mubr.bf16.gmra.mrb[0].mxu0 %v2336
    %v2541 = vpop.f32.mrb[0].mxu0
    %v2542 = vadd.f32 %v2445, %v2541
    %v2543 = vpop.f32.mrb[0].mxu0
    %v2544 = vpop.f32.mrb[0].mxu0
    %v2545 = vadd.f32 %v2448, %v2544
    %v2546 = vpop.f32.mrb[0].mxu0
    %2547 = vmatprep.mubr.bf16.mxu0 %v2341
    %2548 = vmatmul.mubr.bf16.gmra.mrb[0].mxu0 %v2340
    %v2549 = vpop.f32.mrb[0].mxu0
    %v2550 = vadd.f32 %v2453, %v2549
    %v2551 = vpop.f32.mrb[0].mxu0
    %v2552 = vpop.f32.mrb[0].mxu0
    %v2553 = vadd.f32 %v2456, %v2552
    %v2554 = vpop.f32.mrb[0].mxu0
    %2555 = vmatprep.mubr.bf16.mxu0 %v2345
    %2556 = vmatmul.mubr.bf16.gmra.mrb[0].mxu0 %v2344
    %v2557 = vpop.f32.mrb[0].mxu0
    %v2558 = vadd.f32 %v2461, %v2557
    %v2559 = vpop.f32.mrb[0].mxu0
    %v2560 = vpop.f32.mrb[0].mxu0
    %v2561 = vadd.f32 %v2464, %v2560
    %v2562 = vpop.f32.mrb[0].mxu0
    %2563 = vmatprep.mubr.bf16.mxu0 %v2349
    %2564 = vmatmul.mubr.bf16.gmra.mrb[0].mxu0 %v2348
    %v2565 = vpop.f32.mrb[0].mxu0
    %v2566 = vadd.f32 %v2469, %v2565
    %v2567 = vpop.f32.mrb[0].mxu0
    %v2568 = vpop.f32.mrb[0].mxu0
    %v2569 = vadd.f32 %v2472, %v2568
    %v2570 = vpop.f32.mrb[0].mxu0
    %2571 = vmatprep.mubr.bf16.mxu0 %v2353
    %2572 = vmatmul.mubr.bf16.gmra.mrb[0].mxu0 %v2352
    %v2573 = vpop.f32.mrb[0].mxu0
    %v2574 = vadd.f32 %v2477, %v2573
    %v2575 = vpop.f32.mrb[0].mxu0
    %v2576 = vpop.f32.mrb[0].mxu0
    %v2577 = vadd.f32 %v2480, %v2576
    %v2578 = vpop.f32.mrb[0].mxu0
    %2579 = vdwg.mxu0
    %v2580 = vld [vmem:[%s2] sm:$0x4]
    %v2581 = vunpack.c.l.bf16 %v2580
    %2583 = vset.pattern.permute.xlu0 0
    %2584 = vperm.xlu0 %2583, %v2518
    %v2585 = vpop.permute.xlu0 %2584
    %2588 = vset.pattern.permute.xlu0 0
    %2589 = vperm.xlu0 %2588, %v2521
    %v2590 = vpop.permute.xlu0 %2589
    %2593 = vset.pattern.permute.xlu0 0
    %2594 = vperm.xlu0 %2593, %v2526
    %v2595 = vpop.permute.xlu0 %2594
    %2598 = vset.pattern.permute.xlu0 0
    %2599 = vperm.xlu0 %2598, %v2529
    %v2600 = vpop.permute.xlu0 %2599
    %2603 = vset.pattern.permute.xlu0 0
    %2604 = vperm.xlu0 %2603, %v2534
    %v2605 = vpop.permute.xlu0 %2604
    %2608 = vset.pattern.permute.xlu0 0
    %2609 = vperm.xlu0 %2608, %v2537
    %v2610 = vpop.permute.xlu0 %2609
    %2613 = vset.pattern.permute.xlu0 0
    %2614 = vperm.xlu0 %2613, %v2542
    %v2615 = vpop.permute.xlu0 %2614
    %2618 = vset.pattern.permute.xlu0 0
    %2619 = vperm.xlu0 %2618, %v2545
    %v2620 = vpop.permute.xlu0 %2619
    %2623 = vset.pattern.permute.xlu0 0
    %2624 = vperm.xlu0 %2623, %v2550
    %v2625 = vpop.permute.xlu0 %2624
    %2628 = vset.pattern.permute.xlu0 0
    %2629 = vperm.xlu0 %2628, %v2553
    %v2630 = vpop.permute.xlu0 %2629
    %2633 = vset.pattern.permute.xlu0 0
    %2634 = vperm.xlu0 %2633, %v2558
    %v2635 = vpop.permute.xlu0 %2634
    %2638 = vset.pattern.permute.xlu0 0
    %2639 = vperm.xlu0 %2638, %v2561
    %v2640 = vpop.permute.xlu0 %2639
    %2643 = vset.pattern.permute.xlu0 0
    %2644 = vperm.xlu0 %2643, %v2566
    %v2645 = vpop.permute.xlu0 %2644
    %2648 = vset.pattern.permute.xlu0 0
    %2649 = vperm.xlu0 %2648, %v2569
    %v2650 = vpop.permute.xlu0 %2649
    %2653 = vset.pattern.permute.xlu0 0
    %2654 = vperm.xlu0 %2653, %v2574
    %v2655 = vpop.permute.xlu0 %2654
    %2658 = vset.pattern.permute.xlu0 0
    %2659 = vperm.xlu0 %2658, %v2577
    %v2660 = vpop.permute.xlu0 %2659
    %v2662 = vlaneseq
    %v2663 = vshrl.u32 %v2662, 7
    %v2664 = vsub.s32 4, %v2663
    %v2665 = vrot.slane %v2581, %v2664
    %v2666 = vmul.f32 %v2585, %v2665
    %v2667 = vmul.f32 %v2590, %v2665
    %v2668 = vmul.f32 %v2595, %v2665
    %v2669 = vmul.f32 %v2600, %v2665
    %v2670 = vmul.f32 %v2605, %v2665
    %v2671 = vmul.f32 %v2610, %v2665
    %v2672 = vmul.f32 %v2615, %v2665
    %v2673 = vmul.f32 %v2620, %v2665
    %v2674 = vmul.f32 %v2625, %v2665
    %v2675 = vmul.f32 %v2630, %v2665
    %v2676 = vmul.f32 %v2635, %v2665
    %v2677 = vmul.f32 %v2640, %v2665
    %v2678 = vmul.f32 %v2645, %v2665
    %v2679 = vmul.f32 %v2650, %v2665
    %v2680 = vmul.f32 %v2655, %v2665
    %v2681 = vmul.f32 %v2660, %v2665
    %v2682 = vadd.f32 %v2178, %v2666
    %v2683 = vadd.f32 %v2179, %v2667
    %v2684 = vadd.f32 %v2180, %v2668
    %v2685 = vadd.f32 %v2181, %v2669
    %v2686 = vadd.f32 %v2182, %v2670
    %v2687 = vadd.f32 %v2183, %v2671
    %v2688 = vadd.f32 %v2184, %v2672
    %v2689 = vadd.f32 %v2185, %v2673
    %v2690 = vadd.f32 %v2186, %v2674
    %v2691 = vadd.f32 %v2187, %v2675
    %v2692 = vadd.f32 %v2188, %v2676
    %v2693 = vadd.f32 %v2189, %v2677
    %v2694 = vadd.f32 %v2190, %v2678
    %v2695 = vadd.f32 %v2191, %v2679
    %v2696 = vadd.f32 %v2192, %v2680
    %v2697 = vadd.f32 %v2193, %v2681
    %v2698 = vld [vmem:[%s1 + $0x500] sm:$0xff]
    %v2699 = vld [vmem:[%s1 + $0x508] sm:$0xff]
    %v2700 = vld [vmem:[%s1 + $0x510] sm:$0xff]
    %v2701 = vld [vmem:[%s1 + $0x518] sm:$0xff]
    %v2702 = vld [vmem:[%s1 + $0x520] sm:$0xff]
    %v2703 = vld [vmem:[%s1 + $0x528] sm:$0xff]
    %v2704 = vld [vmem:[%s1 + $0x530] sm:$0xff]
    %v2705 = vld [vmem:[%s1 + $0x538] sm:$0xff]
    %v2706 = vld [vmem:[%s1 + $0x540] sm:$0xff]
    %v2707 = vld [vmem:[%s1 + $0x548] sm:$0xff]
    %v2708 = vld [vmem:[%s1 + $0x550] sm:$0xff]
    %v2709 = vld [vmem:[%s1 + $0x558] sm:$0xff]
    %v2710 = vld [vmem:[%s1 + $0x560] sm:$0xff]
    %v2711 = vld [vmem:[%s1 + $0x568] sm:$0xff]
    %v2712 = vld [vmem:[%s1 + $0x570] sm:$0xff]
    %v2713 = vld [vmem:[%s1 + $0x578] sm:$0xff]
    %v2714 = vld [vmem:[%s1 + $0x580] sm:$0xff]
    %v2715 = vld [vmem:[%s1 + $0x588] sm:$0xff]
    %v2716 = vld [vmem:[%s1 + $0x590] sm:$0xff]
    %v2717 = vld [vmem:[%s1 + $0x598] sm:$0xff]
    %v2718 = vld [vmem:[%s1 + $0x5a0] sm:$0xff]
    %v2719 = vld [vmem:[%s1 + $0x5a8] sm:$0xff]
    %v2720 = vld [vmem:[%s1 + $0x5b0] sm:$0xff]
    %v2721 = vld [vmem:[%s1 + $0x5b8] sm:$0xff]
    %v2722 = vld [vmem:[%s1 + $0x5c0] sm:$0xff]
    %v2723 = vld [vmem:[%s1 + $0x5c8] sm:$0xff]
    %v2724 = vld [vmem:[%s1 + $0x5d0] sm:$0xff]
    %v2725 = vld [vmem:[%s1 + $0x5d8] sm:$0xff]
    %v2726 = vld [vmem:[%s1 + $0x5e0] sm:$0xff]
    %v2727 = vld [vmem:[%s1 + $0x5e8] sm:$0xff]
    %v2728 = vld [vmem:[%s1 + $0x5f0] sm:$0xff]
    %v2729 = vld [vmem:[%s1 + $0x5f8] sm:$0xff]
    %v2762 = vunpack.c.l.b16 %v2698
    %v2763 = vunpack.c.h.b16 %v2698
    %v2764 = vunpack.c.l.b16 %v2699
    %v2765 = vunpack.c.h.b16 %v2699
    %v2766 = vunpack.c.l.b16 %v2700
    %v2767 = vunpack.c.h.b16 %v2700
    %v2768 = vunpack.c.l.b16 %v2701
    %v2769 = vunpack.c.h.b16 %v2701
    %v2770 = vunpack.c.l.b16 %v2702
    %v2771 = vunpack.c.h.b16 %v2702
    %v2772 = vunpack.c.l.b16 %v2703
    %v2773 = vunpack.c.h.b16 %v2703
    %v2774 = vunpack.c.l.b16 %v2704
    %v2775 = vunpack.c.h.b16 %v2704
    %v2776 = vunpack.c.l.b16 %v2705
    %v2777 = vunpack.c.h.b16 %v2705
    %v2778 = vunpack.c.l.b16 %v2706
    %v2779 = vunpack.c.h.b16 %v2706
    %v2780 = vunpack.c.l.b16 %v2707
    %v2781 = vunpack.c.h.b16 %v2707
    %v2782 = vunpack.c.l.b16 %v2708
    %v2783 = vunpack.c.h.b16 %v2708
    %v2784 = vunpack.c.l.b16 %v2709
    %v2785 = vunpack.c.h.b16 %v2709
    %v2786 = vunpack.c.l.b16 %v2710
    %v2787 = vunpack.c.h.b16 %v2710
    %v2788 = vunpack.c.l.b16 %v2711
    %v2789 = vunpack.c.h.b16 %v2711
    %v2790 = vunpack.c.l.b16 %v2712
    %v2791 = vunpack.c.h.b16 %v2712
    %v2792 = vunpack.c.l.b16 %v2713
    %v2793 = vunpack.c.h.b16 %v2713
    %v2794 = vunpack.c.l.b16 %v2714
    %v2795 = vunpack.c.h.b16 %v2714
    %v2796 = vunpack.c.l.b16 %v2715
    %v2797 = vunpack.c.h.b16 %v2715
    %v2798 = vunpack.c.l.b16 %v2716
    %v2799 = vunpack.c.h.b16 %v2716
    %v2800 = vunpack.c.l.b16 %v2717
    %v2801 = vunpack.c.h.b16 %v2717
    %v2802 = vunpack.c.l.b16 %v2718
    %v2803 = vunpack.c.h.b16 %v2718
    %v2804 = vunpack.c.l.b16 %v2719
    %v2805 = vunpack.c.h.b16 %v2719
    %v2806 = vunpack.c.l.b16 %v2720
    %v2807 = vunpack.c.h.b16 %v2720
    %v2808 = vunpack.c.l.b16 %v2721
    %v2809 = vunpack.c.h.b16 %v2721
    %v2810 = vunpack.c.l.b16 %v2722
    %v2811 = vunpack.c.h.b16 %v2722
    %v2812 = vunpack.c.l.b16 %v2723
    %v2813 = vunpack.c.h.b16 %v2723
    %v2814 = vunpack.c.l.b16 %v2724
    %v2815 = vunpack.c.h.b16 %v2724
    %v2816 = vunpack.c.l.b16 %v2725
    %v2817 = vunpack.c.h.b16 %v2725
    %v2818 = vunpack.c.l.b16 %v2726
    %v2819 = vunpack.c.h.b16 %v2726
    %v2820 = vunpack.c.l.b16 %v2727
    %v2821 = vunpack.c.h.b16 %v2727
    %v2822 = vunpack.c.l.b16 %v2728
    %v2823 = vunpack.c.h.b16 %v2728
    %v2824 = vunpack.c.l.b16 %v2729
    %v2825 = vunpack.c.h.b16 %v2729
    %v2826 = vpack.c.b16 %v2766, %v2762
    %v2827 = vpack.c.b16 %v2767, %v2763
    %v2828 = vpack.c.b16 %v2768, %v2764
    %v2829 = vpack.c.b16 %v2769, %v2765
    %v2830 = vpack.c.b16 %v2774, %v2770
    %v2831 = vpack.c.b16 %v2775, %v2771
    %v2832 = vpack.c.b16 %v2776, %v2772
    %v2833 = vpack.c.b16 %v2777, %v2773
    %v2834 = vpack.c.b16 %v2782, %v2778
    %v2835 = vpack.c.b16 %v2783, %v2779
    %v2836 = vpack.c.b16 %v2784, %v2780
    %v2837 = vpack.c.b16 %v2785, %v2781
    %v2838 = vpack.c.b16 %v2790, %v2786
    %v2839 = vpack.c.b16 %v2791, %v2787
    %v2840 = vpack.c.b16 %v2792, %v2788
    %v2841 = vpack.c.b16 %v2793, %v2789
    %v2842 = vpack.c.b16 %v2798, %v2794
    %v2843 = vpack.c.b16 %v2799, %v2795
    %v2844 = vpack.c.b16 %v2800, %v2796
    %v2845 = vpack.c.b16 %v2801, %v2797
    %v2846 = vpack.c.b16 %v2806, %v2802
    %v2847 = vpack.c.b16 %v2807, %v2803
    %v2848 = vpack.c.b16 %v2808, %v2804
    %v2849 = vpack.c.b16 %v2809, %v2805
    %v2850 = vpack.c.b16 %v2814, %v2810
    %v2851 = vpack.c.b16 %v2815, %v2811
    %v2852 = vpack.c.b16 %v2816, %v2812
    %v2853 = vpack.c.b16 %v2817, %v2813
    %v2854 = vpack.c.b16 %v2822, %v2818
    %v2855 = vpack.c.b16 %v2823, %v2819
    %v2856 = vpack.c.b16 %v2824, %v2820
    %v2857 = vpack.c.b16 %v2825, %v2821
    %2890 = vmatprep.subr.bf16.mxu0 0
    %2891 = vmatpush1.bf16.msra.mxu0 %v143
    %2892 = vmatprep.subr.bf16.mxu0 0
    %2893 = vmatpush1.bf16.msra.mxu0 %v144
    %2894 = vmatprep.subr.bf16.mxu0 0
    %2895 = vmatpush1.bf16.msra.mxu0 %v145
    %2896 = vmatprep.subr.bf16.mxu0 0
    %2897 = vmatpush1.bf16.msra.mxu0 %v146
    %2898 = vmatprep.subr.bf16.mxu0 0
    %2899 = vmatpush1.bf16.msra.mxu0 %v147
    %2900 = vmatprep.subr.bf16.mxu0 0
    %2901 = vmatpush1.bf16.msra.mxu0 %v148
    %2902 = vmatprep.subr.bf16.mxu0 0
    %2903 = vmatpush1.bf16.msra.mxu0 %v149
    %2904 = vmatprep.subr.bf16.mxu0 0
    %2905 = vmatpush1.bf16.msra.mxu0 %v150
    %2906 = vmatprep.subr.bf16.mxu0 0
    %2907 = vmatpush1.bf16.msra.mxu0 %v151
    %2908 = vmatprep.subr.bf16.mxu0 0
    %2909 = vmatpush1.bf16.msra.mxu0 %v152
    %2910 = vmatprep.subr.bf16.mxu0 0
    %2911 = vmatpush1.bf16.msra.mxu0 %v153
    %2912 = vmatprep.subr.bf16.mxu0 0
    %2913 = vmatpush1.bf16.msra.mxu0 %v154
    %2914 = vmatprep.subr.bf16.mxu0 0
    %2915 = vmatpush1.bf16.msra.mxu0 %v155
    %2916 = vmatprep.subr.bf16.mxu0 0
    %2917 = vmatpush1.bf16.msra.mxu0 %v156
    %2918 = vmatprep.subr.bf16.mxu0 0
    %2919 = vmatpush1.bf16.msra.mxu0 %v157
    %2920 = vmatprep.subr.bf16.mxu0 0
    %2921 = vmatpush1.bf16.msra.mxu0 %v158
    %2922 = vmatprep.mubr.bf16.mxu0 %v2827
    %2923 = vmatmul.mubr.bf16.gmra.mrb[0].mxu0 %v2826
    %v2924 = vpop.f32.mrb[0].mxu0
    %v2925 = vadd.f32 0.0, %v2924
    %v2926 = vpop.f32.mrb[0].mxu0
    %v2927 = vpop.f32.mrb[0].mxu0
    %v2928 = vadd.f32 0.0, %v2927
    %v2929 = vpop.f32.mrb[0].mxu0
    %2930 = vmatprep.mubr.bf16.mxu0 %v2831
    %2931 = vmatmul.mubr.bf16.gmra.mrb[0].mxu0 %v2830
    %v2932 = vpop.f32.mrb[0].mxu0
    %v2933 = vadd.f32 0.0, %v2932
    %v2934 = vpop.f32.mrb[0].mxu0
    %v2935 = vpop.f32.mrb[0].mxu0
    %v2936 = vadd.f32 0.0, %v2935
    %v2937 = vpop.f32.mrb[0].mxu0
    %2938 = vmatprep.mubr.bf16.mxu0 %v2835
    %2939 = vmatmul.mubr.bf16.gmra.mrb[0].mxu0 %v2834
    %v2940 = vpop.f32.mrb[0].mxu0
    %v2941 = vadd.f32 0.0, %v2940
    %v2942 = vpop.f32.mrb[0].mxu0
    %v2943 = vpop.f32.mrb[0].mxu0
    %v2944 = vadd.f32 0.0, %v2943
    %v2945 = vpop.f32.mrb[0].mxu0
    %2946 = vmatprep.mubr.bf16.mxu0 %v2839
    %2947 = vmatmul.mubr.bf16.gmra.mrb[0].mxu0 %v2838
    %v2948 = vpop.f32.mrb[0].mxu0
    %v2949 = vadd.f32 0.0, %v2948
    %v2950 = vpop.f32.mrb[0].mxu0
    %v2951 = vpop.f32.mrb[0].mxu0
    %v2952 = vadd.f32 0.0, %v2951
    %v2953 = vpop.f32.mrb[0].mxu0
    %2954 = vmatprep.mubr.bf16.mxu0 %v2843
    %2955 = vmatmul.mubr.bf16.gmra.mrb[0].mxu0 %v2842
    %v2956 = vpop.f32.mrb[0].mxu0
    %v2957 = vadd.f32 0.0, %v2956
    %v2958 = vpop.f32.mrb[0].mxu0
    %v2959 = vpop.f32.mrb[0].mxu0
    %v2960 = vadd.f32 0.0, %v2959
    %v2961 = vpop.f32.mrb[0].mxu0
    %2962 = vmatprep.mubr.bf16.mxu0 %v2847
    %2963 = vmatmul.mubr.bf16.gmra.mrb[0].mxu0 %v2846
    %v2964 = vpop.f32.mrb[0].mxu0
    %v2965 = vadd.f32 0.0, %v2964
    %v2966 = vpop.f32.mrb[0].mxu0
    %v2967 = vpop.f32.mrb[0].mxu0
    %v2968 = vadd.f32 0.0, %v2967
    %v2969 = vpop.f32.mrb[0].mxu0
    %2970 = vmatprep.mubr.bf16.mxu0 %v2851
    %2971 = vmatmul.mubr.bf16.gmra.mrb[0].mxu0 %v2850
    %v2972 = vpop.f32.mrb[0].mxu0
    %v2973 = vadd.f32 0.0, %v2972
    %v2974 = vpop.f32.mrb[0].mxu0
    %v2975 = vpop.f32.mrb[0].mxu0
    %v2976 = vadd.f32 0.0, %v2975
    %v2977 = vpop.f32.mrb[0].mxu0
    %2978 = vmatprep.mubr.bf16.mxu0 %v2855
    %2979 = vmatmul.mubr.bf16.gmra.mrb[0].mxu0 %v2854
    %v2980 = vpop.f32.mrb[0].mxu0
    %v2981 = vadd.f32 0.0, %v2980
    %v2982 = vpop.f32.mrb[0].mxu0
    %v2983 = vpop.f32.mrb[0].mxu0
    %v2984 = vadd.f32 0.0, %v2983
    %v2985 = vpop.f32.mrb[0].mxu0
    %2986 = vdwg.mxu0
    %2987 = vmatprep.subr.bf16.mxu0 0
    %2988 = vmatpush1.bf16.msra.mxu0 %v159
    %2989 = vmatprep.subr.bf16.mxu0 0
    %2990 = vmatpush1.bf16.msra.mxu0 %v160
    %2991 = vmatprep.subr.bf16.mxu0 0
    %2992 = vmatpush1.bf16.msra.mxu0 %v161
    %2993 = vmatprep.subr.bf16.mxu0 0
    %2994 = vmatpush1.bf16.msra.mxu0 %v162
    %2995 = vmatprep.subr.bf16.mxu0 0
    %2996 = vmatpush1.bf16.msra.mxu0 %v163
    %2997 = vmatprep.subr.bf16.mxu0 0
    %2998 = vmatpush1.bf16.msra.mxu0 %v164
    %2999 = vmatprep.subr.bf16.mxu0 0
    %3000 = vmatpush1.bf16.msra.mxu0 %v165
    %3001 = vmatprep.subr.bf16.mxu0 0
    %3002 = vmatpush1.bf16.msra.mxu0 %v166
    %3003 = vmatprep.subr.bf16.mxu0 0
    %3004 = vmatpush1.bf16.msra.mxu0 %v167
    %3005 = vmatprep.subr.bf16.mxu0 0
    %3006 = vmatpush1.bf16.msra.mxu0 %v168
    %3007 = vmatprep.subr.bf16.mxu0 0
    %3008 = vmatpush1.bf16.msra.mxu0 %v169
    %3009 = vmatprep.subr.bf16.mxu0 0
    %3010 = vmatpush1.bf16.msra.mxu0 %v170
    %3011 = vmatprep.subr.bf16.mxu0 0
    %3012 = vmatpush1.bf16.msra.mxu0 %v171
    %3013 = vmatprep.subr.bf16.mxu0 0
    %3014 = vmatpush1.bf16.msra.mxu0 %v172
    %3015 = vmatprep.subr.bf16.mxu0 0
    %3016 = vmatpush1.bf16.msra.mxu0 %v173
    %3017 = vmatprep.subr.bf16.mxu0 0
    %3018 = vmatpush1.bf16.msra.mxu0 %v174
    %3019 = vmatprep.mubr.bf16.mxu0 %v2829
    %3020 = vmatmul.mubr.bf16.gmra.mrb[0].mxu0 %v2828
    %v3021 = vpop.f32.mrb[0].mxu0
    %v3022 = vadd.f32 %v2925, %v3021
    %v3023 = vpop.f32.mrb[0].mxu0
    %v3024 = vpop.f32.mrb[0].mxu0
    %v3025 = vadd.f32 %v2928, %v3024
    %v3026 = vpop.f32.mrb[0].mxu0
    %3027 = vmatprep.mubr.bf16.mxu0 %v2833
    %3028 = vmatmul.mubr.bf16.gmra.mrb[0].mxu0 %v2832
    %v3029 = vpop.f32.mrb[0].mxu0
    %v3030 = vadd.f32 %v2933, %v3029
    %v3031 = vpop.f32.mrb[0].mxu0
    %v3032 = vpop.f32.mrb[0].mxu0
    %v3033 = vadd.f32 %v2936, %v3032
    %v3034 = vpop.f32.mrb[0].mxu0
    %3035 = vmatprep.mubr.bf16.mxu0 %v2837
    %3036 = vmatmul.mubr.bf16.gmra.mrb[0].mxu0 %v2836
    %v3037 = vpop.f32.mrb[0].mxu0
    %v3038 = vadd.f32 %v2941, %v3037
    %v3039 = vpop.f32.mrb[0].mxu0
    %v3040 = vpop.f32.mrb[0].mxu0
    %v3041 = vadd.f32 %v2944, %v3040
    %v3042 = vpop.f32.mrb[0].mxu0
    %3043 = vmatprep.mubr.bf16.mxu0 %v2841
    %3044 = vmatmul.mubr.bf16.gmra.mrb[0].mxu0 %v2840
    %v3045 = vpop.f32.mrb[0].mxu0
    %v3046 = vadd.f32 %v2949, %v3045
    %v3047 = vpop.f32.mrb[0].mxu0
    %v3048 = vpop.f32.mrb[0].mxu0
    %v3049 = vadd.f32 %v2952, %v3048
    %v3050 = vpop.f32.mrb[0].mxu0
    %3051 = vmatprep.mubr.bf16.mxu0 %v2845
    %3052 = vmatmul.mubr.bf16.gmra.mrb[0].mxu0 %v2844
    %v3053 = vpop.f32.mrb[0].mxu0
    %v3054 = vadd.f32 %v2957, %v3053
    %v3055 = vpop.f32.mrb[0].mxu0
    %v3056 = vpop.f32.mrb[0].mxu0
    %v3057 = vadd.f32 %v2960, %v3056
    %v3058 = vpop.f32.mrb[0].mxu0
    %3059 = vmatprep.mubr.bf16.mxu0 %v2849
    %3060 = vmatmul.mubr.bf16.gmra.mrb[0].mxu0 %v2848
    %v3061 = vpop.f32.mrb[0].mxu0
    %v3062 = vadd.f32 %v2965, %v3061
    %v3063 = vpop.f32.mrb[0].mxu0
    %v3064 = vpop.f32.mrb[0].mxu0
    %v3065 = vadd.f32 %v2968, %v3064
    %v3066 = vpop.f32.mrb[0].mxu0
    %3067 = vmatprep.mubr.bf16.mxu0 %v2853
    %3068 = vmatmul.mubr.bf16.gmra.mrb[0].mxu0 %v2852
    %v3069 = vpop.f32.mrb[0].mxu0
    %v3070 = vadd.f32 %v2973, %v3069
    %v3071 = vpop.f32.mrb[0].mxu0
    %v3072 = vpop.f32.mrb[0].mxu0
    %v3073 = vadd.f32 %v2976, %v3072
    %v3074 = vpop.f32.mrb[0].mxu0
    %3075 = vmatprep.mubr.bf16.mxu0 %v2857
    %3076 = vmatmul.mubr.bf16.gmra.mrb[0].mxu0 %v2856
    %v3077 = vpop.f32.mrb[0].mxu0
    %v3078 = vadd.f32 %v2981, %v3077
    %v3079 = vpop.f32.mrb[0].mxu0
    %v3080 = vpop.f32.mrb[0].mxu0
    %v3081 = vadd.f32 %v2984, %v3080
    %v3082 = vpop.f32.mrb[0].mxu0
    %3083 = vdwg.mxu0
    %3085 = vset.pattern.permute.xlu0 0
    %3086 = vperm.xlu0 %3085, %v3022
    %v3087 = vpop.permute.xlu0 %3086
    %3090 = vset.pattern.permute.xlu0 0
    %3091 = vperm.xlu0 %3090, %v3025
    %v3092 = vpop.permute.xlu0 %3091
    %3095 = vset.pattern.permute.xlu0 0
    %3096 = vperm.xlu0 %3095, %v3030
    %v3097 = vpop.permute.xlu0 %3096
    %3100 = vset.pattern.permute.xlu0 0
    %3101 = vperm.xlu0 %3100, %v3033
    %v3102 = vpop.permute.xlu0 %3101
    %3105 = vset.pattern.permute.xlu0 0
    %3106 = vperm.xlu0 %3105, %v3038
    %v3107 = vpop.permute.xlu0 %3106
    %3110 = vset.pattern.permute.xlu0 0
    %3111 = vperm.xlu0 %3110, %v3041
    %v3112 = vpop.permute.xlu0 %3111
    %3115 = vset.pattern.permute.xlu0 0
    %3116 = vperm.xlu0 %3115, %v3046
    %v3117 = vpop.permute.xlu0 %3116
    %3120 = vset.pattern.permute.xlu0 0
    %3121 = vperm.xlu0 %3120, %v3049
    %v3122 = vpop.permute.xlu0 %3121
    %3125 = vset.pattern.permute.xlu0 0
    %3126 = vperm.xlu0 %3125, %v3054
    %v3127 = vpop.permute.xlu0 %3126
    %3130 = vset.pattern.permute.xlu0 0
    %3131 = vperm.xlu0 %3130, %v3057
    %v3132 = vpop.permute.xlu0 %3131
    %3135 = vset.pattern.permute.xlu0 0
    %3136 = vperm.xlu0 %3135, %v3062
    %v3137 = vpop.permute.xlu0 %3136
    %3140 = vset.pattern.permute.xlu0 0
    %3141 = vperm.xlu0 %3140, %v3065
    %v3142 = vpop.permute.xlu0 %3141
    %3145 = vset.pattern.permute.xlu0 0
    %3146 = vperm.xlu0 %3145, %v3070
    %v3147 = vpop.permute.xlu0 %3146
    %3150 = vset.pattern.permute.xlu0 0
    %3151 = vperm.xlu0 %3150, %v3073
    %v3152 = vpop.permute.xlu0 %3151
    %3155 = vset.pattern.permute.xlu0 0
    %3156 = vperm.xlu0 %3155, %v3078
    %v3157 = vpop.permute.xlu0 %3156
    %3160 = vset.pattern.permute.xlu0 0
    %3161 = vperm.xlu0 %3160, %v3081
    %v3162 = vpop.permute.xlu0 %3161
    %v3164 = vlaneseq
    %v3165 = vshrl.u32 %v3164, 7
    %v3166 = vsub.s32 5, %v3165
    %v3167 = vrot.slane %v2581, %v3166
    %v3168 = vmul.f32 %v3087, %v3167
    %v3169 = vmul.f32 %v3092, %v3167
    %v3170 = vmul.f32 %v3097, %v3167
    %v3171 = vmul.f32 %v3102, %v3167
    %v3172 = vmul.f32 %v3107, %v3167
    %v3173 = vmul.f32 %v3112, %v3167
    %v3174 = vmul.f32 %v3117, %v3167
    %v3175 = vmul.f32 %v3122, %v3167
    %v3176 = vmul.f32 %v3127, %v3167
    %v3177 = vmul.f32 %v3132, %v3167
    %v3178 = vmul.f32 %v3137, %v3167
    %v3179 = vmul.f32 %v3142, %v3167
    %v3180 = vmul.f32 %v3147, %v3167
    %v3181 = vmul.f32 %v3152, %v3167
    %v3182 = vmul.f32 %v3157, %v3167
    %v3183 = vmul.f32 %v3162, %v3167
    %v3184 = vadd.f32 %v2682, %v3168
    %v3185 = vadd.f32 %v2683, %v3169
    %v3186 = vadd.f32 %v2684, %v3170
    %v3187 = vadd.f32 %v2685, %v3171
    %v3188 = vadd.f32 %v2686, %v3172
    %v3189 = vadd.f32 %v2687, %v3173
    %v3190 = vadd.f32 %v2688, %v3174
    %v3191 = vadd.f32 %v2689, %v3175
    %v3192 = vadd.f32 %v2690, %v3176
    %v3193 = vadd.f32 %v2691, %v3177
    %v3194 = vadd.f32 %v2692, %v3178
    %v3195 = vadd.f32 %v2693, %v3179
    %v3196 = vadd.f32 %v2694, %v3180
    %v3197 = vadd.f32 %v2695, %v3181
    %v3198 = vadd.f32 %v2696, %v3182
    %v3199 = vadd.f32 %v2697, %v3183
    %v3200 = vld [vmem:[%s1 + $0x600] sm:$0xff]
    %v3201 = vld [vmem:[%s1 + $0x608] sm:$0xff]
    %v3202 = vld [vmem:[%s1 + $0x610] sm:$0xff]
    %v3203 = vld [vmem:[%s1 + $0x618] sm:$0xff]
    %v3204 = vld [vmem:[%s1 + $0x620] sm:$0xff]
    %v3205 = vld [vmem:[%s1 + $0x628] sm:$0xff]
    %v3206 = vld [vmem:[%s1 + $0x630] sm:$0xff]
    %v3207 = vld [vmem:[%s1 + $0x638] sm:$0xff]
    %v3208 = vld [vmem:[%s1 + $0x640] sm:$0xff]
    %v3209 = vld [vmem:[%s1 + $0x648] sm:$0xff]
    %v3210 = vld [vmem:[%s1 + $0x650] sm:$0xff]
    %v3211 = vld [vmem:[%s1 + $0x658] sm:$0xff]
    %v3212 = vld [vmem:[%s1 + $0x660] sm:$0xff]
    %v3213 = vld [vmem:[%s1 + $0x668] sm:$0xff]
    %v3214 = vld [vmem:[%s1 + $0x670] sm:$0xff]
    %v3215 = vld [vmem:[%s1 + $0x678] sm:$0xff]
    %v3216 = vld [vmem:[%s1 + $0x680] sm:$0xff]
    %v3217 = vld [vmem:[%s1 + $0x688] sm:$0xff]
    %v3218 = vld [vmem:[%s1 + $0x690] sm:$0xff]
    %v3219 = vld [vmem:[%s1 + $0x698] sm:$0xff]
    %v3220 = vld [vmem:[%s1 + $0x6a0] sm:$0xff]
    %v3221 = vld [vmem:[%s1 + $0x6a8] sm:$0xff]
    %v3222 = vld [vmem:[%s1 + $0x6b0] sm:$0xff]
    %v3223 = vld [vmem:[%s1 + $0x6b8] sm:$0xff]
    %v3224 = vld [vmem:[%s1 + $0x6c0] sm:$0xff]
    %v3225 = vld [vmem:[%s1 + $0x6c8] sm:$0xff]
    %v3226 = vld [vmem:[%s1 + $0x6d0] sm:$0xff]
    %v3227 = vld [vmem:[%s1 + $0x6d8] sm:$0xff]
    %v3228 = vld [vmem:[%s1 + $0x6e0] sm:$0xff]
    %v3229 = vld [vmem:[%s1 + $0x6e8] sm:$0xff]
    %v3230 = vld [vmem:[%s1 + $0x6f0] sm:$0xff]
    %v3231 = vld [vmem:[%s1 + $0x6f8] sm:$0xff]
    %v3264 = vunpack.c.l.b16 %v3200
    %v3265 = vunpack.c.h.b16 %v3200
    %v3266 = vunpack.c.l.b16 %v3201
    %v3267 = vunpack.c.h.b16 %v3201
    %v3268 = vunpack.c.l.b16 %v3202
    %v3269 = vunpack.c.h.b16 %v3202
    %v3270 = vunpack.c.l.b16 %v3203
    %v3271 = vunpack.c.h.b16 %v3203
    %v3272 = vunpack.c.l.b16 %v3204
    %v3273 = vunpack.c.h.b16 %v3204
    %v3274 = vunpack.c.l.b16 %v3205
    %v3275 = vunpack.c.h.b16 %v3205
    %v3276 = vunpack.c.l.b16 %v3206
    %v3277 = vunpack.c.h.b16 %v3206
    %v3278 = vunpack.c.l.b16 %v3207
    %v3279 = vunpack.c.h.b16 %v3207
    %v3280 = vunpack.c.l.b16 %v3208
    %v3281 = vunpack.c.h.b16 %v3208
    %v3282 = vunpack.c.l.b16 %v3209
    %v3283 = vunpack.c.h.b16 %v3209
    %v3284 = vunpack.c.l.b16 %v3210
    %v3285 = vunpack.c.h.b16 %v3210
    %v3286 = vunpack.c.l.b16 %v3211
    %v3287 = vunpack.c.h.b16 %v3211
    %v3288 = vunpack.c.l.b16 %v3212
    %v3289 = vunpack.c.h.b16 %v3212
    %v3290 = vunpack.c.l.b16 %v3213
    %v3291 = vunpack.c.h.b16 %v3213
    %v3292 = vunpack.c.l.b16 %v3214
    %v3293 = vunpack.c.h.b16 %v3214
    %v3294 = vunpack.c.l.b16 %v3215
    %v3295 = vunpack.c.h.b16 %v3215
    %v3296 = vunpack.c.l.b16 %v3216
    %v3297 = vunpack.c.h.b16 %v3216
    %v3298 = vunpack.c.l.b16 %v3217
    %v3299 = vunpack.c.h.b16 %v3217
    %v3300 = vunpack.c.l.b16 %v3218
    %v3301 = vunpack.c.h.b16 %v3218
    %v3302 = vunpack.c.l.b16 %v3219
    %v3303 = vunpack.c.h.b16 %v3219
    %v3304 = vunpack.c.l.b16 %v3220
    %v3305 = vunpack.c.h.b16 %v3220
    %v3306 = vunpack.c.l.b16 %v3221
    %v3307 = vunpack.c.h.b16 %v3221
    %v3308 = vunpack.c.l.b16 %v3222
    %v3309 = vunpack.c.h.b16 %v3222
    %v3310 = vunpack.c.l.b16 %v3223
    %v3311 = vunpack.c.h.b16 %v3223
    %v3312 = vunpack.c.l.b16 %v3224
    %v3313 = vunpack.c.h.b16 %v3224
    %v3314 = vunpack.c.l.b16 %v3225
    %v3315 = vunpack.c.h.b16 %v3225
    %v3316 = vunpack.c.l.b16 %v3226
    %v3317 = vunpack.c.h.b16 %v3226
    %v3318 = vunpack.c.l.b16 %v3227
    %v3319 = vunpack.c.h.b16 %v3227
    %v3320 = vunpack.c.l.b16 %v3228
    %v3321 = vunpack.c.h.b16 %v3228
    %v3322 = vunpack.c.l.b16 %v3229
    %v3323 = vunpack.c.h.b16 %v3229
    %v3324 = vunpack.c.l.b16 %v3230
    %v3325 = vunpack.c.h.b16 %v3230
    %v3326 = vunpack.c.l.b16 %v3231
    %v3327 = vunpack.c.h.b16 %v3231
    %v3328 = vpack.c.b16 %v3268, %v3264
    %v3329 = vpack.c.b16 %v3269, %v3265
    %v3330 = vpack.c.b16 %v3270, %v3266
    %v3331 = vpack.c.b16 %v3271, %v3267
    %v3332 = vpack.c.b16 %v3276, %v3272
    %v3333 = vpack.c.b16 %v3277, %v3273
    %v3334 = vpack.c.b16 %v3278, %v3274
    %v3335 = vpack.c.b16 %v3279, %v3275
    %v3336 = vpack.c.b16 %v3284, %v3280
    %v3337 = vpack.c.b16 %v3285, %v3281
    %v3338 = vpack.c.b16 %v3286, %v3282
    %v3339 = vpack.c.b16 %v3287, %v3283
    %v3340 = vpack.c.b16 %v3292, %v3288
    %v3341 = vpack.c.b16 %v3293, %v3289
    %v3342 = vpack.c.b16 %v3294, %v3290
    %v3343 = vpack.c.b16 %v3295, %v3291
    %v3344 = vpack.c.b16 %v3300, %v3296
    %v3345 = vpack.c.b16 %v3301, %v3297
    %v3346 = vpack.c.b16 %v3302, %v3298
    %v3347 = vpack.c.b16 %v3303, %v3299
    %v3348 = vpack.c.b16 %v3308, %v3304
    %v3349 = vpack.c.b16 %v3309, %v3305
    %v3350 = vpack.c.b16 %v3310, %v3306
    %v3351 = vpack.c.b16 %v3311, %v3307
    %v3352 = vpack.c.b16 %v3316, %v3312
    %v3353 = vpack.c.b16 %v3317, %v3313
    %v3354 = vpack.c.b16 %v3318, %v3314
    %v3355 = vpack.c.b16 %v3319, %v3315
    %v3356 = vpack.c.b16 %v3324, %v3320
    %v3357 = vpack.c.b16 %v3325, %v3321
    %v3358 = vpack.c.b16 %v3326, %v3322
    %v3359 = vpack.c.b16 %v3327, %v3323
    %3392 = vmatprep.subr.bf16.mxu0 0
    %3393 = vmatpush1.bf16.msra.mxu0 %v143
    %3394 = vmatprep.subr.bf16.mxu0 0
    %3395 = vmatpush1.bf16.msra.mxu0 %v144
    %3396 = vmatprep.subr.bf16.mxu0 0
    %3397 = vmatpush1.bf16.msra.mxu0 %v145
    %3398 = vmatprep.subr.bf16.mxu0 0
    %3399 = vmatpush1.bf16.msra.mxu0 %v146
    %3400 = vmatprep.subr.bf16.mxu0 0
    %3401 = vmatpush1.bf16.msra.mxu0 %v147
    %3402 = vmatprep.subr.bf16.mxu0 0
    %3403 = vmatpush1.bf16.msra.mxu0 %v148
    %3404 = vmatprep.subr.bf16.mxu0 0
    %3405 = vmatpush1.bf16.msra.mxu0 %v149
    %3406 = vmatprep.subr.bf16.mxu0 0
    %3407 = vmatpush1.bf16.msra.mxu0 %v150
    %3408 = vmatprep.subr.bf16.mxu0 0
    %3409 = vmatpush1.bf16.msra.mxu0 %v151
    %3410 = vmatprep.subr.bf16.mxu0 0
    %3411 = vmatpush1.bf16.msra.mxu0 %v152
    %3412 = vmatprep.subr.bf16.mxu0 0
    %3413 = vmatpush1.bf16.msra.mxu0 %v153
    %3414 = vmatprep.subr.bf16.mxu0 0
    %3415 = vmatpush1.bf16.msra.mxu0 %v154
    %3416 = vmatprep.subr.bf16.mxu0 0
    %3417 = vmatpush1.bf16.msra.mxu0 %v155
    %3418 = vmatprep.subr.bf16.mxu0 0
    %3419 = vmatpush1.bf16.msra.mxu0 %v156
    %3420 = vmatprep.subr.bf16.mxu0 0
    %3421 = vmatpush1.bf16.msra.mxu0 %v157
    %3422 = vmatprep.subr.bf16.mxu0 0
    %3423 = vmatpush1.bf16.msra.mxu0 %v158
    %3424 = vmatprep.mubr.bf16.mxu0 %v3329
    %3425 = vmatmul.mubr.bf16.gmra.mrb[0].mxu0 %v3328
    %v3426 = vpop.f32.mrb[0].mxu0
    %v3427 = vadd.f32 0.0, %v3426
    %v3428 = vpop.f32.mrb[0].mxu0
    %v3429 = vpop.f32.mrb[0].mxu0
    %v3430 = vadd.f32 0.0, %v3429
    %v3431 = vpop.f32.mrb[0].mxu0
    %3432 = vmatprep.mubr.bf16.mxu0 %v3333
    %3433 = vmatmul.mubr.bf16.gmra.mrb[0].mxu0 %v3332
    %v3434 = vpop.f32.mrb[0].mxu0
    %v3435 = vadd.f32 0.0, %v3434
    %v3436 = vpop.f32.mrb[0].mxu0
    %v3437 = vpop.f32.mrb[0].mxu0
    %v3438 = vadd.f32 0.0, %v3437
    %v3439 = vpop.f32.mrb[0].mxu0
    %3440 = vmatprep.mubr.bf16.mxu0 %v3337
    %3441 = vmatmul.mubr.bf16.gmra.mrb[0].mxu0 %v3336
    %v3442 = vpop.f32.mrb[0].mxu0
    %v3443 = vadd.f32 0.0, %v3442
    %v3444 = vpop.f32.mrb[0].mxu0
    %v3445 = vpop.f32.mrb[0].mxu0
    %v3446 = vadd.f32 0.0, %v3445
    %v3447 = vpop.f32.mrb[0].mxu0
    %3448 = vmatprep.mubr.bf16.mxu0 %v3341
    %3449 = vmatmul.mubr.bf16.gmra.mrb[0].mxu0 %v3340
    %v3450 = vpop.f32.mrb[0].mxu0
    %v3451 = vadd.f32 0.0, %v3450
    %v3452 = vpop.f32.mrb[0].mxu0
    %v3453 = vpop.f32.mrb[0].mxu0
    %v3454 = vadd.f32 0.0, %v3453
    %v3455 = vpop.f32.mrb[0].mxu0
    %3456 = vmatprep.mubr.bf16.mxu0 %v3345
    %3457 = vmatmul.mubr.bf16.gmra.mrb[0].mxu0 %v3344
    %v3458 = vpop.f32.mrb[0].mxu0
    %v3459 = vadd.f32 0.0, %v3458
    %v3460 = vpop.f32.mrb[0].mxu0
    %v3461 = vpop.f32.mrb[0].mxu0
    %v3462 = vadd.f32 0.0, %v3461
    %v3463 = vpop.f32.mrb[0].mxu0
    %3464 = vmatprep.mubr.bf16.mxu0 %v3349
    %3465 = vmatmul.mubr.bf16.gmra.mrb[0].mxu0 %v3348
    %v3466 = vpop.f32.mrb[0].mxu0
    %v3467 = vadd.f32 0.0, %v3466
    %v3468 = vpop.f32.mrb[0].mxu0
    %v3469 = vpop.f32.mrb[0].mxu0
    %v3470 = vadd.f32 0.0, %v3469
    %v3471 = vpop.f32.mrb[0].mxu0
    %3472 = vmatprep.mubr.bf16.mxu0 %v3353
    %3473 = vmatmul.mubr.bf16.gmra.mrb[0].mxu0 %v3352
    %v3474 = vpop.f32.mrb[0].mxu0
    %v3475 = vadd.f32 0.0, %v3474
    %v3476 = vpop.f32.mrb[0].mxu0
    %v3477 = vpop.f32.mrb[0].mxu0
    %v3478 = vadd.f32 0.0, %v3477
    %v3479 = vpop.f32.mrb[0].mxu0
    %3480 = vmatprep.mubr.bf16.mxu0 %v3357
    %3481 = vmatmul.mubr.bf16.gmra.mrb[0].mxu0 %v3356
    %v3482 = vpop.f32.mrb[0].mxu0
    %v3483 = vadd.f32 0.0, %v3482
    %v3484 = vpop.f32.mrb[0].mxu0
    %v3485 = vpop.f32.mrb[0].mxu0
    %v3486 = vadd.f32 0.0, %v3485
    %v3487 = vpop.f32.mrb[0].mxu0
    %3488 = vdwg.mxu0
    %3489 = vmatprep.subr.bf16.mxu0 0
    %3490 = vmatpush1.bf16.msra.mxu0 %v159
    %3491 = vmatprep.subr.bf16.mxu0 0
    %3492 = vmatpush1.bf16.msra.mxu0 %v160
    %3493 = vmatprep.subr.bf16.mxu0 0
    %3494 = vmatpush1.bf16.msra.mxu0 %v161
    %3495 = vmatprep.subr.bf16.mxu0 0
    %3496 = vmatpush1.bf16.msra.mxu0 %v162
    %3497 = vmatprep.subr.bf16.mxu0 0
    %3498 = vmatpush1.bf16.msra.mxu0 %v163
    %3499 = vmatprep.subr.bf16.mxu0 0
    %3500 = vmatpush1.bf16.msra.mxu0 %v164
    %3501 = vmatprep.subr.bf16.mxu0 0
    %3502 = vmatpush1.bf16.msra.mxu0 %v165
    %3503 = vmatprep.subr.bf16.mxu0 0
    %3504 = vmatpush1.bf16.msra.mxu0 %v166
    %3505 = vmatprep.subr.bf16.mxu0 0
    %3506 = vmatpush1.bf16.msra.mxu0 %v167
    %3507 = vmatprep.subr.bf16.mxu0 0
    %3508 = vmatpush1.bf16.msra.mxu0 %v168
    %3509 = vmatprep.subr.bf16.mxu0 0
    %3510 = vmatpush1.bf16.msra.mxu0 %v169
    %3511 = vmatprep.subr.bf16.mxu0 0
    %3512 = vmatpush1.bf16.msra.mxu0 %v170
    %3513 = vmatprep.subr.bf16.mxu0 0
    %3514 = vmatpush1.bf16.msra.mxu0 %v171
    %3515 = vmatprep.subr.bf16.mxu0 0
    %3516 = vmatpush1.bf16.msra.mxu0 %v172
    %3517 = vmatprep.subr.bf16.mxu0 0
    %3518 = vmatpush1.bf16.msra.mxu0 %v173
    %3519 = vmatprep.subr.bf16.mxu0 0
    %3520 = vmatpush1.bf16.msra.mxu0 %v174
    %3521 = vmatprep.mubr.bf16.mxu0 %v3331
    %3522 = vmatmul.mubr.bf16.gmra.mrb[0].mxu0 %v3330
    %v3523 = vpop.f32.mrb[0].mxu0
    %v3524 = vadd.f32 %v3427, %v3523
    %v3525 = vpop.f32.mrb[0].mxu0
    %v3526 = vpop.f32.mrb[0].mxu0
    %v3527 = vadd.f32 %v3430, %v3526
    %v3528 = vpop.f32.mrb[0].mxu0
    %3529 = vmatprep.mubr.bf16.mxu0 %v3335
    %3530 = vmatmul.mubr.bf16.gmra.mrb[0].mxu0 %v3334
    %v3531 = vpop.f32.mrb[0].mxu0
    %v3532 = vadd.f32 %v3435, %v3531
    %v3533 = vpop.f32.mrb[0].mxu0
    %v3534 = vpop.f32.mrb[0].mxu0
    %v3535 = vadd.f32 %v3438, %v3534
    %v3536 = vpop.f32.mrb[0].mxu0
    %3537 = vmatprep.mubr.bf16.mxu0 %v3339
    %3538 = vmatmul.mubr.bf16.gmra.mrb[0].mxu0 %v3338
    %v3539 = vpop.f32.mrb[0].mxu0
    %v3540 = vadd.f32 %v3443, %v3539
    %v3541 = vpop.f32.mrb[0].mxu0
    %v3542 = vpop.f32.mrb[0].mxu0
    %v3543 = vadd.f32 %v3446, %v3542
    %v3544 = vpop.f32.mrb[0].mxu0
    %3545 = vmatprep.mubr.bf16.mxu0 %v3343
    %3546 = vmatmul.mubr.bf16.gmra.mrb[0].mxu0 %v3342
    %v3547 = vpop.f32.mrb[0].mxu0
    %v3548 = vadd.f32 %v3451, %v3547
    %v3549 = vpop.f32.mrb[0].mxu0
    %v3550 = vpop.f32.mrb[0].mxu0
    %v3551 = vadd.f32 %v3454, %v3550
    %v3552 = vpop.f32.mrb[0].mxu0
    %3553 = vmatprep.mubr.bf16.mxu0 %v3347
    %3554 = vmatmul.mubr.bf16.gmra.mrb[0].mxu0 %v3346
    %v3555 = vpop.f32.mrb[0].mxu0
    %v3556 = vadd.f32 %v3459, %v3555
    %v3557 = vpop.f32.mrb[0].mxu0
    %v3558 = vpop.f32.mrb[0].mxu0
    %v3559 = vadd.f32 %v3462, %v3558
    %v3560 = vpop.f32.mrb[0].mxu0
    %3561 = vmatprep.mubr.bf16.mxu0 %v3351
    %3562 = vmatmul.mubr.bf16.gmra.mrb[0].mxu0 %v3350
    %v3563 = vpop.f32.mrb[0].mxu0
    %v3564 = vadd.f32 %v3467, %v3563
    %v3565 = vpop.f32.mrb[0].mxu0
    %v3566 = vpop.f32.mrb[0].mxu0
    %v3567 = vadd.f32 %v3470, %v3566
    %v3568 = vpop.f32.mrb[0].mxu0
    %3569 = vmatprep.mubr.bf16.mxu0 %v3355
    %3570 = vmatmul.mubr.bf16.gmra.mrb[0].mxu0 %v3354
    %v3571 = vpop.f32.mrb[0].mxu0
    %v3572 = vadd.f32 %v3475, %v3571
    %v3573 = vpop.f32.mrb[0].mxu0
    %v3574 = vpop.f32.mrb[0].mxu0
    %v3575 = vadd.f32 %v3478, %v3574
    %v3576 = vpop.f32.mrb[0].mxu0
    %3577 = vmatprep.mubr.bf16.mxu0 %v3359
    %3578 = vmatmul.mubr.bf16.gmra.mrb[0].mxu0 %v3358
    %v3579 = vpop.f32.mrb[0].mxu0
    %v3580 = vadd.f32 %v3483, %v3579
    %v3581 = vpop.f32.mrb[0].mxu0
    %v3582 = vpop.f32.mrb[0].mxu0
    %v3583 = vadd.f32 %v3486, %v3582
    %v3584 = vpop.f32.mrb[0].mxu0
    %3585 = vdwg.mxu0
    %v3586 = vld [vmem:[%s2] sm:$0x8]
    %v3587 = vunpack.c.l.bf16 %v3586
    %3589 = vset.pattern.permute.xlu0 0
    %3590 = vperm.xlu0 %3589, %v3524
    %v3591 = vpop.permute.xlu0 %3590
    %3594 = vset.pattern.permute.xlu0 0
    %3595 = vperm.xlu0 %3594, %v3527
    %v3596 = vpop.permute.xlu0 %3595
    %3599 = vset.pattern.permute.xlu0 0
    %3600 = vperm.xlu0 %3599, %v3532
    %v3601 = vpop.permute.xlu0 %3600
    %3604 = vset.pattern.permute.xlu0 0
    %3605 = vperm.xlu0 %3604, %v3535
    %v3606 = vpop.permute.xlu0 %3605
    %3609 = vset.pattern.permute.xlu0 0
    %3610 = vperm.xlu0 %3609, %v3540
    %v3611 = vpop.permute.xlu0 %3610
    %3614 = vset.pattern.permute.xlu0 0
    %3615 = vperm.xlu0 %3614, %v3543
    %v3616 = vpop.permute.xlu0 %3615
    %3619 = vset.pattern.permute.xlu0 0
    %3620 = vperm.xlu0 %3619, %v3548
    %v3621 = vpop.permute.xlu0 %3620
    %3624 = vset.pattern.permute.xlu0 0
    %3625 = vperm.xlu0 %3624, %v3551
    %v3626 = vpop.permute.xlu0 %3625
    %3629 = vset.pattern.permute.xlu0 0
    %3630 = vperm.xlu0 %3629, %v3556
    %v3631 = vpop.permute.xlu0 %3630
    %3634 = vset.pattern.permute.xlu0 0
    %3635 = vperm.xlu0 %3634, %v3559
    %v3636 = vpop.permute.xlu0 %3635
    %3639 = vset.pattern.permute.xlu0 0
    %3640 = vperm.xlu0 %3639, %v3564
    %v3641 = vpop.permute.xlu0 %3640
    %3644 = vset.pattern.permute.xlu0 0
    %3645 = vperm.xlu0 %3644, %v3567
    %v3646 = vpop.permute.xlu0 %3645
    %3649 = vset.pattern.permute.xlu0 0
    %3650 = vperm.xlu0 %3649, %v3572
    %v3651 = vpop.permute.xlu0 %3650
    %3654 = vset.pattern.permute.xlu0 0
    %3655 = vperm.xlu0 %3654, %v3575
    %v3656 = vpop.permute.xlu0 %3655
    %3659 = vset.pattern.permute.xlu0 0
    %3660 = vperm.xlu0 %3659, %v3580
    %v3661 = vpop.permute.xlu0 %3660
    %3664 = vset.pattern.permute.xlu0 0
    %3665 = vperm.xlu0 %3664, %v3583
    %v3666 = vpop.permute.xlu0 %3665
    %v3668 = vlaneseq
    %v3669 = vshrl.u32 %v3668, 7
    %v3670 = vsub.s32 6, %v3669
    %v3671 = vrot.slane %v3587, %v3670
    %v3672 = vmul.f32 %v3591, %v3671
    %v3673 = vmul.f32 %v3596, %v3671
    %v3674 = vmul.f32 %v3601, %v3671
    %v3675 = vmul.f32 %v3606, %v3671
    %v3676 = vmul.f32 %v3611, %v3671
    %v3677 = vmul.f32 %v3616, %v3671
    %v3678 = vmul.f32 %v3621, %v3671
    %v3679 = vmul.f32 %v3626, %v3671
    %v3680 = vmul.f32 %v3631, %v3671
    %v3681 = vmul.f32 %v3636, %v3671
    %v3682 = vmul.f32 %v3641, %v3671
    %v3683 = vmul.f32 %v3646, %v3671
    %v3684 = vmul.f32 %v3651, %v3671
    %v3685 = vmul.f32 %v3656, %v3671
    %v3686 = vmul.f32 %v3661, %v3671
    %v3687 = vmul.f32 %v3666, %v3671
    %v3688 = vadd.f32 %v3184, %v3672
    %v3689 = vadd.f32 %v3185, %v3673
    %v3690 = vadd.f32 %v3186, %v3674
    %v3691 = vadd.f32 %v3187, %v3675
    %v3692 = vadd.f32 %v3188, %v3676
    %v3693 = vadd.f32 %v3189, %v3677
    %v3694 = vadd.f32 %v3190, %v3678
    %v3695 = vadd.f32 %v3191, %v3679
    %v3696 = vadd.f32 %v3192, %v3680
    %v3697 = vadd.f32 %v3193, %v3681
    %v3698 = vadd.f32 %v3194, %v3682
    %v3699 = vadd.f32 %v3195, %v3683
    %v3700 = vadd.f32 %v3196, %v3684
    %v3701 = vadd.f32 %v3197, %v3685
    %v3702 = vadd.f32 %v3198, %v3686
    %v3703 = vadd.f32 %v3199, %v3687
    %v3704 = vld [vmem:[%s1 + $0x700] sm:$0xff]
    %v3705 = vld [vmem:[%s1 + $0x708] sm:$0xff]
    %v3706 = vld [vmem:[%s1 + $0x710] sm:$0xff]
    %v3707 = vld [vmem:[%s1 + $0x718] sm:$0xff]
    %v3708 = vld [vmem:[%s1 + $0x720] sm:$0xff]
    %v3709 = vld [vmem:[%s1 + $0x728] sm:$0xff]
    %v3710 = vld [vmem:[%s1 + $0x730] sm:$0xff]
    %v3711 = vld [vmem:[%s1 + $0x738] sm:$0xff]
    %v3712 = vld [vmem:[%s1 + $0x740] sm:$0xff]
    %v3713 = vld [vmem:[%s1 + $0x748] sm:$0xff]
    %v3714 = vld [vmem:[%s1 + $0x750] sm:$0xff]
    %v3715 = vld [vmem:[%s1 + $0x758] sm:$0xff]
    %v3716 = vld [vmem:[%s1 + $0x760] sm:$0xff]
    %v3717 = vld [vmem:[%s1 + $0x768] sm:$0xff]
    %v3718 = vld [vmem:[%s1 + $0x770] sm:$0xff]
    %v3719 = vld [vmem:[%s1 + $0x778] sm:$0xff]
    %v3720 = vld [vmem:[%s1 + $0x780] sm:$0xff]
    %v3721 = vld [vmem:[%s1 + $0x788] sm:$0xff]
    %v3722 = vld [vmem:[%s1 + $0x790] sm:$0xff]
    %v3723 = vld [vmem:[%s1 + $0x798] sm:$0xff]
    %v3724 = vld [vmem:[%s1 + $0x7a0] sm:$0xff]
    %v3725 = vld [vmem:[%s1 + $0x7a8] sm:$0xff]
    %v3726 = vld [vmem:[%s1 + $0x7b0] sm:$0xff]
    %v3727 = vld [vmem:[%s1 + $0x7b8] sm:$0xff]
    %v3728 = vld [vmem:[%s1 + $0x7c0] sm:$0xff]
    %v3729 = vld [vmem:[%s1 + $0x7c8] sm:$0xff]
    %v3730 = vld [vmem:[%s1 + $0x7d0] sm:$0xff]
    %v3731 = vld [vmem:[%s1 + $0x7d8] sm:$0xff]
    %v3732 = vld [vmem:[%s1 + $0x7e0] sm:$0xff]
    %v3733 = vld [vmem:[%s1 + $0x7e8] sm:$0xff]
    %v3734 = vld [vmem:[%s1 + $0x7f0] sm:$0xff]
    %v3735 = vld [vmem:[%s1 + $0x7f8] sm:$0xff]
    %v3768 = vunpack.c.l.b16 %v3704
    %v3769 = vunpack.c.h.b16 %v3704
    %v3770 = vunpack.c.l.b16 %v3705
    %v3771 = vunpack.c.h.b16 %v3705
    %v3772 = vunpack.c.l.b16 %v3706
    %v3773 = vunpack.c.h.b16 %v3706
    %v3774 = vunpack.c.l.b16 %v3707
    %v3775 = vunpack.c.h.b16 %v3707
    %v3776 = vunpack.c.l.b16 %v3708
    %v3777 = vunpack.c.h.b16 %v3708
    %v3778 = vunpack.c.l.b16 %v3709
    %v3779 = vunpack.c.h.b16 %v3709
    %v3780 = vunpack.c.l.b16 %v3710
    %v3781 = vunpack.c.h.b16 %v3710
    %v3782 = vunpack.c.l.b16 %v3711
    %v3783 = vunpack.c.h.b16 %v3711
    %v3784 = vunpack.c.l.b16 %v3712
    %v3785 = vunpack.c.h.b16 %v3712
    %v3786 = vunpack.c.l.b16 %v3713
    %v3787 = vunpack.c.h.b16 %v3713
    %v3788 = vunpack.c.l.b16 %v3714
    %v3789 = vunpack.c.h.b16 %v3714
    %v3790 = vunpack.c.l.b16 %v3715
    %v3791 = vunpack.c.h.b16 %v3715
    %v3792 = vunpack.c.l.b16 %v3716
    %v3793 = vunpack.c.h.b16 %v3716
    %v3794 = vunpack.c.l.b16 %v3717
    %v3795 = vunpack.c.h.b16 %v3717
    %v3796 = vunpack.c.l.b16 %v3718
    %v3797 = vunpack.c.h.b16 %v3718
    %v3798 = vunpack.c.l.b16 %v3719
    %v3799 = vunpack.c.h.b16 %v3719
    %v3800 = vunpack.c.l.b16 %v3720
    %v3801 = vunpack.c.h.b16 %v3720
    %v3802 = vunpack.c.l.b16 %v3721
    %v3803 = vunpack.c.h.b16 %v3721
    %v3804 = vunpack.c.l.b16 %v3722
    %v3805 = vunpack.c.h.b16 %v3722
    %v3806 = vunpack.c.l.b16 %v3723
    %v3807 = vunpack.c.h.b16 %v3723
    %v3808 = vunpack.c.l.b16 %v3724
    %v3809 = vunpack.c.h.b16 %v3724
    %v3810 = vunpack.c.l.b16 %v3725
    %v3811 = vunpack.c.h.b16 %v3725
    %v3812 = vunpack.c.l.b16 %v3726
    %v3813 = vunpack.c.h.b16 %v3726
    %v3814 = vunpack.c.l.b16 %v3727
    %v3815 = vunpack.c.h.b16 %v3727
    %v3816 = vunpack.c.l.b16 %v3728
    %v3817 = vunpack.c.h.b16 %v3728
    %v3818 = vunpack.c.l.b16 %v3729
    %v3819 = vunpack.c.h.b16 %v3729
    %v3820 = vunpack.c.l.b16 %v3730
    %v3821 = vunpack.c.h.b16 %v3730
    %v3822 = vunpack.c.l.b16 %v3731
    %v3823 = vunpack.c.h.b16 %v3731
    %v3824 = vunpack.c.l.b16 %v3732
    %v3825 = vunpack.c.h.b16 %v3732
    %v3826 = vunpack.c.l.b16 %v3733
    %v3827 = vunpack.c.h.b16 %v3733
    %v3828 = vunpack.c.l.b16 %v3734
    %v3829 = vunpack.c.h.b16 %v3734
    %v3830 = vunpack.c.l.b16 %v3735
    %v3831 = vunpack.c.h.b16 %v3735
    %v3832 = vpack.c.b16 %v3772, %v3768
    %v3833 = vpack.c.b16 %v3773, %v3769
    %v3834 = vpack.c.b16 %v3774, %v3770
    %v3835 = vpack.c.b16 %v3775, %v3771
    %v3836 = vpack.c.b16 %v3780, %v3776
    %v3837 = vpack.c.b16 %v3781, %v3777
    %v3838 = vpack.c.b16 %v3782, %v3778
    %v3839 = vpack.c.b16 %v3783, %v3779
    %v3840 = vpack.c.b16 %v3788, %v3784
    %v3841 = vpack.c.b16 %v3789, %v3785
    %v3842 = vpack.c.b16 %v3790, %v3786
    %v3843 = vpack.c.b16 %v3791, %v3787
    %v3844 = vpack.c.b16 %v3796, %v3792
    %v3845 = vpack.c.b16 %v3797, %v3793
    %v3846 = vpack.c.b16 %v3798, %v3794
    %v3847 = vpack.c.b16 %v3799, %v3795
    %v3848 = vpack.c.b16 %v3804, %v3800
    %v3849 = vpack.c.b16 %v3805, %v3801
    %v3850 = vpack.c.b16 %v3806, %v3802
    %v3851 = vpack.c.b16 %v3807, %v3803
    %v3852 = vpack.c.b16 %v3812, %v3808
    %v3853 = vpack.c.b16 %v3813, %v3809
    %v3854 = vpack.c.b16 %v3814, %v3810
    %v3855 = vpack.c.b16 %v3815, %v3811
    %v3856 = vpack.c.b16 %v3820, %v3816
    %v3857 = vpack.c.b16 %v3821, %v3817
    %v3858 = vpack.c.b16 %v3822, %v3818
    %v3859 = vpack.c.b16 %v3823, %v3819
    %v3860 = vpack.c.b16 %v3828, %v3824
    %v3861 = vpack.c.b16 %v3829, %v3825
    %v3862 = vpack.c.b16 %v3830, %v3826
    %v3863 = vpack.c.b16 %v3831, %v3827
    %3896 = vmatprep.subr.bf16.mxu0 0
    %3897 = vmatpush1.bf16.msra.mxu0 %v143
    %3898 = vmatprep.subr.bf16.mxu0 0
    %3899 = vmatpush1.bf16.msra.mxu0 %v144
    %3900 = vmatprep.subr.bf16.mxu0 0
    %3901 = vmatpush1.bf16.msra.mxu0 %v145
    %3902 = vmatprep.subr.bf16.mxu0 0
    %3903 = vmatpush1.bf16.msra.mxu0 %v146
    %3904 = vmatprep.subr.bf16.mxu0 0
    %3905 = vmatpush1.bf16.msra.mxu0 %v147
    %3906 = vmatprep.subr.bf16.mxu0 0
    %3907 = vmatpush1.bf16.msra.mxu0 %v148
    %3908 = vmatprep.subr.bf16.mxu0 0
    %3909 = vmatpush1.bf16.msra.mxu0 %v149
    %3910 = vmatprep.subr.bf16.mxu0 0
    %3911 = vmatpush1.bf16.msra.mxu0 %v150
    %3912 = vmatprep.subr.bf16.mxu0 0
    %3913 = vmatpush1.bf16.msra.mxu0 %v151
    %3914 = vmatprep.subr.bf16.mxu0 0
    %3915 = vmatpush1.bf16.msra.mxu0 %v152
    %3916 = vmatprep.subr.bf16.mxu0 0
    %3917 = vmatpush1.bf16.msra.mxu0 %v153
    %3918 = vmatprep.subr.bf16.mxu0 0
    %3919 = vmatpush1.bf16.msra.mxu0 %v154
    %3920 = vmatprep.subr.bf16.mxu0 0
    %3921 = vmatpush1.bf16.msra.mxu0 %v155
    %3922 = vmatprep.subr.bf16.mxu0 0
    %3923 = vmatpush1.bf16.msra.mxu0 %v156
    %3924 = vmatprep.subr.bf16.mxu0 0
    %3925 = vmatpush1.bf16.msra.mxu0 %v157
    %3926 = vmatprep.subr.bf16.mxu0 0
    %3927 = vmatpush1.bf16.msra.mxu0 %v158
    %3928 = vmatprep.mubr.bf16.mxu0 %v3833
    %3929 = vmatmul.mubr.bf16.gmra.mrb[0].mxu0 %v3832
    %v3930 = vpop.f32.mrb[0].mxu0
    %v3931 = vadd.f32 0.0, %v3930
    %v3932 = vpop.f32.mrb[0].mxu0
    %v3933 = vpop.f32.mrb[0].mxu0
    %v3934 = vadd.f32 0.0, %v3933
    %v3935 = vpop.f32.mrb[0].mxu0
    %3936 = vmatprep.mubr.bf16.mxu0 %v3837
    %3937 = vmatmul.mubr.bf16.gmra.mrb[0].mxu0 %v3836
    %v3938 = vpop.f32.mrb[0].mxu0
    %v3939 = vadd.f32 0.0, %v3938
    %v3940 = vpop.f32.mrb[0].mxu0
    %v3941 = vpop.f32.mrb[0].mxu0
    %v3942 = vadd.f32 0.0, %v3941
    %v3943 = vpop.f32.mrb[0].mxu0
    %3944 = vmatprep.mubr.bf16.mxu0 %v3841
    %3945 = vmatmul.mubr.bf16.gmra.mrb[0].mxu0 %v3840
    %v3946 = vpop.f32.mrb[0].mxu0
    %v3947 = vadd.f32 0.0, %v3946
    %v3948 = vpop.f32.mrb[0].mxu0
    %v3949 = vpop.f32.mrb[0].mxu0
    %v3950 = vadd.f32 0.0, %v3949
    %v3951 = vpop.f32.mrb[0].mxu0
    %3952 = vmatprep.mubr.bf16.mxu0 %v3845
    %3953 = vmatmul.mubr.bf16.gmra.mrb[0].mxu0 %v3844
    %v3954 = vpop.f32.mrb[0].mxu0
    %v3955 = vadd.f32 0.0, %v3954
    %v3956 = vpop.f32.mrb[0].mxu0
    %v3957 = vpop.f32.mrb[0].mxu0
    %v3958 = vadd.f32 0.0, %v3957
    %v3959 = vpop.f32.mrb[0].mxu0
    %3960 = vmatprep.mubr.bf16.mxu0 %v3849
    %3961 = vmatmul.mubr.bf16.gmra.mrb[0].mxu0 %v3848
    %v3962 = vpop.f32.mrb[0].mxu0
    %v3963 = vadd.f32 0.0, %v3962
    %v3964 = vpop.f32.mrb[0].mxu0
    %v3965 = vpop.f32.mrb[0].mxu0
    %v3966 = vadd.f32 0.0, %v3965
    %v3967 = vpop.f32.mrb[0].mxu0
    %3968 = vmatprep.mubr.bf16.mxu0 %v3853
    %3969 = vmatmul.mubr.bf16.gmra.mrb[0].mxu0 %v3852
    %v3970 = vpop.f32.mrb[0].mxu0
    %v3971 = vadd.f32 0.0, %v3970
    %v3972 = vpop.f32.mrb[0].mxu0
    %v3973 = vpop.f32.mrb[0].mxu0
    %v3974 = vadd.f32 0.0, %v3973
    %v3975 = vpop.f32.mrb[0].mxu0
    %3976 = vmatprep.mubr.bf16.mxu0 %v3857
    %3977 = vmatmul.mubr.bf16.gmra.mrb[0].mxu0 %v3856
    %v3978 = vpop.f32.mrb[0].mxu0
    %v3979 = vadd.f32 0.0, %v3978
    %v3980 = vpop.f32.mrb[0].mxu0
    %v3981 = vpop.f32.mrb[0].mxu0
    %v3982 = vadd.f32 0.0, %v3981
    %v3983 = vpop.f32.mrb[0].mxu0
    %3984 = vmatprep.mubr.bf16.mxu0 %v3861
    %3985 = vmatmul.mubr.bf16.gmra.mrb[0].mxu0 %v3860
    %v3986 = vpop.f32.mrb[0].mxu0
    %v3987 = vadd.f32 0.0, %v3986
    %v3988 = vpop.f32.mrb[0].mxu0
    %v3989 = vpop.f32.mrb[0].mxu0
    %v3990 = vadd.f32 0.0, %v3989
    %v3991 = vpop.f32.mrb[0].mxu0
    %3992 = vdwg.mxu0
    %3993 = vmatprep.subr.bf16.mxu0 0
    %3994 = vmatpush1.bf16.msra.mxu0 %v159
    %3995 = vmatprep.subr.bf16.mxu0 0
    %3996 = vmatpush1.bf16.msra.mxu0 %v160
    %3997 = vmatprep.subr.bf16.mxu0 0
    %3998 = vmatpush1.bf16.msra.mxu0 %v161
    %3999 = vmatprep.subr.bf16.mxu0 0
    %4000 = vmatpush1.bf16.msra.mxu0 %v162
    %4001 = vmatprep.subr.bf16.mxu0 0
    %4002 = vmatpush1.bf16.msra.mxu0 %v163
    %4003 = vmatprep.subr.bf16.mxu0 0
    %4004 = vmatpush1.bf16.msra.mxu0 %v164
    %4005 = vmatprep.subr.bf16.mxu0 0
    %4006 = vmatpush1.bf16.msra.mxu0 %v165
    %4007 = vmatprep.subr.bf16.mxu0 0
    %4008 = vmatpush1.bf16.msra.mxu0 %v166
    %4009 = vmatprep.subr.bf16.mxu0 0
    %4010 = vmatpush1.bf16.msra.mxu0 %v167
    %4011 = vmatprep.subr.bf16.mxu0 0
    %4012 = vmatpush1.bf16.msra.mxu0 %v168
    %4013 = vmatprep.subr.bf16.mxu0 0
    %4014 = vmatpush1.bf16.msra.mxu0 %v169
    %4015 = vmatprep.subr.bf16.mxu0 0
    %4016 = vmatpush1.bf16.msra.mxu0 %v170
    %4017 = vmatprep.subr.bf16.mxu0 0
    %4018 = vmatpush1.bf16.msra.mxu0 %v171
    %4019 = vmatprep.subr.bf16.mxu0 0
    %4020 = vmatpush1.bf16.msra.mxu0 %v172
    %4021 = vmatprep.subr.bf16.mxu0 0
    %4022 = vmatpush1.bf16.msra.mxu0 %v173
    %4023 = vmatprep.subr.bf16.mxu0 0
    %4024 = vmatpush1.bf16.msra.mxu0 %v174
    %4025 = vmatprep.mubr.bf16.mxu0 %v3835
    %4026 = vmatmul.mubr.bf16.gmra.mrb[0].mxu0 %v3834
    %v4027 = vpop.f32.mrb[0].mxu0
    %v4028 = vadd.f32 %v3931, %v4027
    %v4029 = vpop.f32.mrb[0].mxu0
    %v4030 = vpop.f32.mrb[0].mxu0
    %v4031 = vadd.f32 %v3934, %v4030
    %v4032 = vpop.f32.mrb[0].mxu0
    %4033 = vmatprep.mubr.bf16.mxu0 %v3839
    %4034 = vmatmul.mubr.bf16.gmra.mrb[0].mxu0 %v3838
    %v4035 = vpop.f32.mrb[0].mxu0
    %v4036 = vadd.f32 %v3939, %v4035
    %v4037 = vpop.f32.mrb[0].mxu0
    %v4038 = vpop.f32.mrb[0].mxu0
    %v4039 = vadd.f32 %v3942, %v4038
    %v4040 = vpop.f32.mrb[0].mxu0
    %4041 = vmatprep.mubr.bf16.mxu0 %v3843
    %4042 = vmatmul.mubr.bf16.gmra.mrb[0].mxu0 %v3842
    %v4043 = vpop.f32.mrb[0].mxu0
    %v4044 = vadd.f32 %v3947, %v4043
    %v4045 = vpop.f32.mrb[0].mxu0
    %v4046 = vpop.f32.mrb[0].mxu0
    %v4047 = vadd.f32 %v3950, %v4046
    %v4048 = vpop.f32.mrb[0].mxu0
    %4049 = vmatprep.mubr.bf16.mxu0 %v3847
    %4050 = vmatmul.mubr.bf16.gmra.mrb[0].mxu0 %v3846
    %v4051 = vpop.f32.mrb[0].mxu0
    %v4052 = vadd.f32 %v3955, %v4051
    %v4053 = vpop.f32.mrb[0].mxu0
    %v4054 = vpop.f32.mrb[0].mxu0
    %v4055 = vadd.f32 %v3958, %v4054
    %v4056 = vpop.f32.mrb[0].mxu0
    %4057 = vmatprep.mubr.bf16.mxu0 %v3851
    %4058 = vmatmul.mubr.bf16.gmra.mrb[0].mxu0 %v3850
    %v4059 = vpop.f32.mrb[0].mxu0
    %v4060 = vadd.f32 %v3963, %v4059
    %v4061 = vpop.f32.mrb[0].mxu0
    %v4062 = vpop.f32.mrb[0].mxu0
    %v4063 = vadd.f32 %v3966, %v4062
    %v4064 = vpop.f32.mrb[0].mxu0
    %4065 = vmatprep.mubr.bf16.mxu0 %v3855
    %4066 = vmatmul.mubr.bf16.gmra.mrb[0].mxu0 %v3854
    %v4067 = vpop.f32.mrb[0].mxu0
    %v4068 = vadd.f32 %v3971, %v4067
    %v4069 = vpop.f32.mrb[0].mxu0
    %v4070 = vpop.f32.mrb[0].mxu0
    %v4071 = vadd.f32 %v3974, %v4070
    %v4072 = vpop.f32.mrb[0].mxu0
    %4073 = vmatprep.mubr.bf16.mxu0 %v3859
    %4074 = vmatmul.mubr.bf16.gmra.mrb[0].mxu0 %v3858
    %v4075 = vpop.f32.mrb[0].mxu0
    %v4076 = vadd.f32 %v3979, %v4075
    %v4077 = vpop.f32.mrb[0].mxu0
    %v4078 = vpop.f32.mrb[0].mxu0
    %v4079 = vadd.f32 %v3982, %v4078
    %v4080 = vpop.f32.mrb[0].mxu0
    %4081 = vmatprep.mubr.bf16.mxu0 %v3863
    %4082 = vmatmul.mubr.bf16.gmra.mrb[0].mxu0 %v3862
    %v4083 = vpop.f32.mrb[0].mxu0
    %v4084 = vadd.f32 %v3987, %v4083
    %v4085 = vpop.f32.mrb[0].mxu0
    %v4086 = vpop.f32.mrb[0].mxu0
    %v4087 = vadd.f32 %v3990, %v4086
    %v4088 = vpop.f32.mrb[0].mxu0
    %4089 = vdwg.mxu0
    %4091 = vset.pattern.permute.xlu0 0
    %4092 = vperm.xlu0 %4091, %v4028
    %v4093 = vpop.permute.xlu0 %4092
    %4096 = vset.pattern.permute.xlu0 0
    %4097 = vperm.xlu0 %4096, %v4031
    %v4098 = vpop.permute.xlu0 %4097
    %4101 = vset.pattern.permute.xlu0 0
    %4102 = vperm.xlu0 %4101, %v4036
    %v4103 = vpop.permute.xlu0 %4102
    %4106 = vset.pattern.permute.xlu0 0
    %4107 = vperm.xlu0 %4106, %v4039
    %v4108 = vpop.permute.xlu0 %4107
    %4111 = vset.pattern.permute.xlu0 0
    %4112 = vperm.xlu0 %4111, %v4044
    %v4113 = vpop.permute.xlu0 %4112
    %4116 = vset.pattern.permute.xlu0 0
    %4117 = vperm.xlu0 %4116, %v4047
    %v4118 = vpop.permute.xlu0 %4117
    %4121 = vset.pattern.permute.xlu0 0
    %4122 = vperm.xlu0 %4121, %v4052
    %v4123 = vpop.permute.xlu0 %4122
    %4126 = vset.pattern.permute.xlu0 0
    %4127 = vperm.xlu0 %4126, %v4055
    %v4128 = vpop.permute.xlu0 %4127
    %4131 = vset.pattern.permute.xlu0 0
    %4132 = vperm.xlu0 %4131, %v4060
    %v4133 = vpop.permute.xlu0 %4132
    %4136 = vset.pattern.permute.xlu0 0
    %4137 = vperm.xlu0 %4136, %v4063
    %v4138 = vpop.permute.xlu0 %4137
    %4141 = vset.pattern.permute.xlu0 0
    %4142 = vperm.xlu0 %4141, %v4068
    %v4143 = vpop.permute.xlu0 %4142
    %4146 = vset.pattern.permute.xlu0 0
    %4147 = vperm.xlu0 %4146, %v4071
    %v4148 = vpop.permute.xlu0 %4147
    %4151 = vset.pattern.permute.xlu0 0
    %4152 = vperm.xlu0 %4151, %v4076
    %v4153 = vpop.permute.xlu0 %4152
    %4156 = vset.pattern.permute.xlu0 0
    %4157 = vperm.xlu0 %4156, %v4079
    %v4158 = vpop.permute.xlu0 %4157
    %4161 = vset.pattern.permute.xlu0 0
    %4162 = vperm.xlu0 %4161, %v4084
    %v4163 = vpop.permute.xlu0 %4162
    %4166 = vset.pattern.permute.xlu0 0
    %4167 = vperm.xlu0 %4166, %v4087
    %v4168 = vpop.permute.xlu0 %4167
    %v4170 = vlaneseq
    %v4171 = vshrl.u32 %v4170, 7
    %v4172 = vsub.s32 7, %v4171
    %v4173 = vrot.slane %v3587, %v4172
    %v4174 = vmul.f32 %v4093, %v4173
    %v4175 = vmul.f32 %v4098, %v4173
    %v4176 = vmul.f32 %v4103, %v4173
    %v4177 = vmul.f32 %v4108, %v4173
    %v4178 = vmul.f32 %v4113, %v4173
    %v4179 = vmul.f32 %v4118, %v4173
    %v4180 = vmul.f32 %v4123, %v4173
    %v4181 = vmul.f32 %v4128, %v4173
    %v4182 = vmul.f32 %v4133, %v4173
    %v4183 = vmul.f32 %v4138, %v4173
    %v4184 = vmul.f32 %v4143, %v4173
    %v4185 = vmul.f32 %v4148, %v4173
    %v4186 = vmul.f32 %v4153, %v4173
    %v4187 = vmul.f32 %v4158, %v4173
    %v4188 = vmul.f32 %v4163, %v4173
    %v4189 = vmul.f32 %v4168, %v4173
    %v4190 = vadd.f32 %v3688, %v4174
    %v4191 = vadd.f32 %v3689, %v4175
    %v4192 = vadd.f32 %v3690, %v4176
    %v4193 = vadd.f32 %v3691, %v4177
    %v4194 = vadd.f32 %v3692, %v4178
    %v4195 = vadd.f32 %v3693, %v4179
    %v4196 = vadd.f32 %v3694, %v4180
    %v4197 = vadd.f32 %v3695, %v4181
    %v4198 = vadd.f32 %v3696, %v4182
    %v4199 = vadd.f32 %v3697, %v4183
    %v4200 = vadd.f32 %v3698, %v4184
    %v4201 = vadd.f32 %v3699, %v4185
    %v4202 = vadd.f32 %v3700, %v4186
    %v4203 = vadd.f32 %v3701, %v4187
    %v4204 = vadd.f32 %v3702, %v4188
    %v4205 = vadd.f32 %v3703, %v4189
    %v4206 = vld [vmem:[%s1 + $0x800] sm:$0xff]
    %v4207 = vld [vmem:[%s1 + $0x808] sm:$0xff]
    %v4208 = vld [vmem:[%s1 + $0x810] sm:$0xff]
    %v4209 = vld [vmem:[%s1 + $0x818] sm:$0xff]
    %v4210 = vld [vmem:[%s1 + $0x820] sm:$0xff]
    %v4211 = vld [vmem:[%s1 + $0x828] sm:$0xff]
    %v4212 = vld [vmem:[%s1 + $0x830] sm:$0xff]
    %v4213 = vld [vmem:[%s1 + $0x838] sm:$0xff]
    %v4214 = vld [vmem:[%s1 + $0x840] sm:$0xff]
    %v4215 = vld [vmem:[%s1 + $0x848] sm:$0xff]
    %v4216 = vld [vmem:[%s1 + $0x850] sm:$0xff]
    %v4217 = vld [vmem:[%s1 + $0x858] sm:$0xff]
    %v4218 = vld [vmem:[%s1 + $0x860] sm:$0xff]
    %v4219 = vld [vmem:[%s1 + $0x868] sm:$0xff]
    %v4220 = vld [vmem:[%s1 + $0x870] sm:$0xff]
    %v4221 = vld [vmem:[%s1 + $0x878] sm:$0xff]
    %v4222 = vld [vmem:[%s1 + $0x880] sm:$0xff]
    %v4223 = vld [vmem:[%s1 + $0x888] sm:$0xff]
    %v4224 = vld [vmem:[%s1 + $0x890] sm:$0xff]
    %v4225 = vld [vmem:[%s1 + $0x898] sm:$0xff]
    %v4226 = vld [vmem:[%s1 + $0x8a0] sm:$0xff]
    %v4227 = vld [vmem:[%s1 + $0x8a8] sm:$0xff]
    %v4228 = vld [vmem:[%s1 + $0x8b0] sm:$0xff]
    %v4229 = vld [vmem:[%s1 + $0x8b8] sm:$0xff]
    %v4230 = vld [vmem:[%s1 + $0x8c0] sm:$0xff]
    %v4231 = vld [vmem:[%s1 + $0x8c8] sm:$0xff]
    %v4232 = vld [vmem:[%s1 + $0x8d0] sm:$0xff]
    %v4233 = vld [vmem:[%s1 + $0x8d8] sm:$0xff]
    %v4234 = vld [vmem:[%s1 + $0x8e0] sm:$0xff]
    %v4235 = vld [vmem:[%s1 + $0x8e8] sm:$0xff]
    %v4236 = vld [vmem:[%s1 + $0x8f0] sm:$0xff]
    %v4237 = vld [vmem:[%s1 + $0x8f8] sm:$0xff]
    %v4270 = vunpack.c.l.b16 %v4206
    %v4271 = vunpack.c.h.b16 %v4206
    %v4272 = vunpack.c.l.b16 %v4207
    %v4273 = vunpack.c.h.b16 %v4207
    %v4274 = vunpack.c.l.b16 %v4208
    %v4275 = vunpack.c.h.b16 %v4208
    %v4276 = vunpack.c.l.b16 %v4209
    %v4277 = vunpack.c.h.b16 %v4209
    %v4278 = vunpack.c.l.b16 %v4210
    %v4279 = vunpack.c.h.b16 %v4210
    %v4280 = vunpack.c.l.b16 %v4211
    %v4281 = vunpack.c.h.b16 %v4211
    %v4282 = vunpack.c.l.b16 %v4212
    %v4283 = vunpack.c.h.b16 %v4212
    %v4284 = vunpack.c.l.b16 %v4213
    %v4285 = vunpack.c.h.b16 %v4213
    %v4286 = vunpack.c.l.b16 %v4214
    %v4287 = vunpack.c.h.b16 %v4214
    %v4288 = vunpack.c.l.b16 %v4215
    %v4289 = vunpack.c.h.b16 %v4215
    %v4290 = vunpack.c.l.b16 %v4216
    %v4291 = vunpack.c.h.b16 %v4216
    %v4292 = vunpack.c.l.b16 %v4217
    %v4293 = vunpack.c.h.b16 %v4217
    %v4294 = vunpack.c.l.b16 %v4218
    %v4295 = vunpack.c.h.b16 %v4218
    %v4296 = vunpack.c.l.b16 %v4219
    %v4297 = vunpack.c.h.b16 %v4219
    %v4298 = vunpack.c.l.b16 %v4220
    %v4299 = vunpack.c.h.b16 %v4220
    %v4300 = vunpack.c.l.b16 %v4221
    %v4301 = vunpack.c.h.b16 %v4221
    %v4302 = vunpack.c.l.b16 %v4222
    %v4303 = vunpack.c.h.b16 %v4222
    %v4304 = vunpack.c.l.b16 %v4223
    %v4305 = vunpack.c.h.b16 %v4223
    %v4306 = vunpack.c.l.b16 %v4224
    %v4307 = vunpack.c.h.b16 %v4224
    %v4308 = vunpack.c.l.b16 %v4225
    %v4309 = vunpack.c.h.b16 %v4225
    %v4310 = vunpack.c.l.b16 %v4226
    %v4311 = vunpack.c.h.b16 %v4226
    %v4312 = vunpack.c.l.b16 %v4227
    %v4313 = vunpack.c.h.b16 %v4227
    %v4314 = vunpack.c.l.b16 %v4228
    %v4315 = vunpack.c.h.b16 %v4228
    %v4316 = vunpack.c.l.b16 %v4229
    %v4317 = vunpack.c.h.b16 %v4229
    %v4318 = vunpack.c.l.b16 %v4230
    %v4319 = vunpack.c.h.b16 %v4230
    %v4320 = vunpack.c.l.b16 %v4231
    %v4321 = vunpack.c.h.b16 %v4231
    %v4322 = vunpack.c.l.b16 %v4232
    %v4323 = vunpack.c.h.b16 %v4232
    %v4324 = vunpack.c.l.b16 %v4233
    %v4325 = vunpack.c.h.b16 %v4233
    %v4326 = vunpack.c.l.b16 %v4234
    %v4327 = vunpack.c.h.b16 %v4234
    %v4328 = vunpack.c.l.b16 %v4235
    %v4329 = vunpack.c.h.b16 %v4235
    %v4330 = vunpack.c.l.b16 %v4236
    %v4331 = vunpack.c.h.b16 %v4236
    %v4332 = vunpack.c.l.b16 %v4237
    %v4333 = vunpack.c.h.b16 %v4237
    %v4334 = vpack.c.b16 %v4274, %v4270
    %v4335 = vpack.c.b16 %v4275, %v4271
    %v4336 = vpack.c.b16 %v4276, %v4272
    %v4337 = vpack.c.b16 %v4277, %v4273
    %v4338 = vpack.c.b16 %v4282, %v4278
    %v4339 = vpack.c.b16 %v4283, %v4279
    %v4340 = vpack.c.b16 %v4284, %v4280
    %v4341 = vpack.c.b16 %v4285, %v4281
    %v4342 = vpack.c.b16 %v4290, %v4286
    %v4343 = vpack.c.b16 %v4291, %v4287
    %v4344 = vpack.c.b16 %v4292, %v4288
    %v4345 = vpack.c.b16 %v4293, %v4289
    %v4346 = vpack.c.b16 %v4298, %v4294
    %v4347 = vpack.c.b16 %v4299, %v4295
    %v4348 = vpack.c.b16 %v4300, %v4296
    %v4349 = vpack.c.b16 %v4301, %v4297
    %v4350 = vpack.c.b16 %v4306, %v4302
    %v4351 = vpack.c.b16 %v4307, %v4303
    %v4352 = vpack.c.b16 %v4308, %v4304
    %v4353 = vpack.c.b16 %v4309, %v4305
    %v4354 = vpack.c.b16 %v4314, %v4310
    %v4355 = vpack.c.b16 %v4315, %v4311
    %v4356 = vpack.c.b16 %v4316, %v4312
    %v4357 = vpack.c.b16 %v4317, %v4313
    %v4358 = vpack.c.b16 %v4322, %v4318
    %v4359 = vpack.c.b16 %v4323, %v4319
    %v4360 = vpack.c.b16 %v4324, %v4320
    %v4361 = vpack.c.b16 %v4325, %v4321
    %v4362 = vpack.c.b16 %v4330, %v4326
    %v4363 = vpack.c.b16 %v4331, %v4327
    %v4364 = vpack.c.b16 %v4332, %v4328
    %v4365 = vpack.c.b16 %v4333, %v4329
    %4398 = vmatprep.subr.bf16.mxu0 0
    %4399 = vmatpush1.bf16.msra.mxu0 %v143
    %4400 = vmatprep.subr.bf16.mxu0 0
    %4401 = vmatpush1.bf16.msra.mxu0 %v144
    %4402 = vmatprep.subr.bf16.mxu0 0
    %4403 = vmatpush1.bf16.msra.mxu0 %v145
    %4404 = vmatprep.subr.bf16.mxu0 0
    %4405 = vmatpush1.bf16.msra.mxu0 %v146
    %4406 = vmatprep.subr.bf16.mxu0 0
    %4407 = vmatpush1.bf16.msra.mxu0 %v147
    %4408 = vmatprep.subr.bf16.mxu0 0
    %4409 = vmatpush1.bf16.msra.mxu0 %v148
    %4410 = vmatprep.subr.bf16.mxu0 0
    %4411 = vmatpush1.bf16.msra.mxu0 %v149
    %4412 = vmatprep.subr.bf16.mxu0 0
    %4413 = vmatpush1.bf16.msra.mxu0 %v150
    %4414 = vmatprep.subr.bf16.mxu0 0
    %4415 = vmatpush1.bf16.msra.mxu0 %v151
    %4416 = vmatprep.subr.bf16.mxu0 0
    %4417 = vmatpush1.bf16.msra.mxu0 %v152
    %4418 = vmatprep.subr.bf16.mxu0 0
    %4419 = vmatpush1.bf16.msra.mxu0 %v153
    %4420 = vmatprep.subr.bf16.mxu0 0
    %4421 = vmatpush1.bf16.msra.mxu0 %v154
    %4422 = vmatprep.subr.bf16.mxu0 0
    %4423 = vmatpush1.bf16.msra.mxu0 %v155
    %4424 = vmatprep.subr.bf16.mxu0 0
    %4425 = vmatpush1.bf16.msra.mxu0 %v156
    %4426 = vmatprep.subr.bf16.mxu0 0
    %4427 = vmatpush1.bf16.msra.mxu0 %v157
    %4428 = vmatprep.subr.bf16.mxu0 0
    %4429 = vmatpush1.bf16.msra.mxu0 %v158
    %4430 = vmatprep.mubr.bf16.mxu0 %v4335
    %4431 = vmatmul.mubr.bf16.gmra.mrb[0].mxu0 %v4334
    %v4432 = vpop.f32.mrb[0].mxu0
    %v4433 = vadd.f32 0.0, %v4432
    %v4434 = vpop.f32.mrb[0].mxu0
    %v4435 = vpop.f32.mrb[0].mxu0
    %v4436 = vadd.f32 0.0, %v4435
    %v4437 = vpop.f32.mrb[0].mxu0
    %4438 = vmatprep.mubr.bf16.mxu0 %v4339
    %4439 = vmatmul.mubr.bf16.gmra.mrb[0].mxu0 %v4338
    %v4440 = vpop.f32.mrb[0].mxu0
    %v4441 = vadd.f32 0.0, %v4440
    %v4442 = vpop.f32.mrb[0].mxu0
    %v4443 = vpop.f32.mrb[0].mxu0
    %v4444 = vadd.f32 0.0, %v4443
    %v4445 = vpop.f32.mrb[0].mxu0
    %4446 = vmatprep.mubr.bf16.mxu0 %v4343
    %4447 = vmatmul.mubr.bf16.gmra.mrb[0].mxu0 %v4342
    %v4448 = vpop.f32.mrb[0].mxu0
    %v4449 = vadd.f32 0.0, %v4448
    %v4450 = vpop.f32.mrb[0].mxu0
    %v4451 = vpop.f32.mrb[0].mxu0
    %v4452 = vadd.f32 0.0, %v4451
    %v4453 = vpop.f32.mrb[0].mxu0
    %4454 = vmatprep.mubr.bf16.mxu0 %v4347
    %4455 = vmatmul.mubr.bf16.gmra.mrb[0].mxu0 %v4346
    %v4456 = vpop.f32.mrb[0].mxu0
    %v4457 = vadd.f32 0.0, %v4456
    %v4458 = vpop.f32.mrb[0].mxu0
    %v4459 = vpop.f32.mrb[0].mxu0
    %v4460 = vadd.f32 0.0, %v4459
    %v4461 = vpop.f32.mrb[0].mxu0
    %4462 = vmatprep.mubr.bf16.mxu0 %v4351
    %4463 = vmatmul.mubr.bf16.gmra.mrb[0].mxu0 %v4350
    %v4464 = vpop.f32.mrb[0].mxu0
    %v4465 = vadd.f32 0.0, %v4464
    %v4466 = vpop.f32.mrb[0].mxu0
    %v4467 = vpop.f32.mrb[0].mxu0
    %v4468 = vadd.f32 0.0, %v4467
    %v4469 = vpop.f32.mrb[0].mxu0
    %4470 = vmatprep.mubr.bf16.mxu0 %v4355
    %4471 = vmatmul.mubr.bf16.gmra.mrb[0].mxu0 %v4354
    %v4472 = vpop.f32.mrb[0].mxu0
    %v4473 = vadd.f32 0.0, %v4472
    %v4474 = vpop.f32.mrb[0].mxu0
    %v4475 = vpop.f32.mrb[0].mxu0
    %v4476 = vadd.f32 0.0, %v4475
    %v4477 = vpop.f32.mrb[0].mxu0
    %4478 = vmatprep.mubr.bf16.mxu0 %v4359
    %4479 = vmatmul.mubr.bf16.gmra.mrb[0].mxu0 %v4358
    %v4480 = vpop.f32.mrb[0].mxu0
    %v4481 = vadd.f32 0.0, %v4480
    %v4482 = vpop.f32.mrb[0].mxu0
    %v4483 = vpop.f32.mrb[0].mxu0
    %v4484 = vadd.f32 0.0, %v4483
    %v4485 = vpop.f32.mrb[0].mxu0
    %4486 = vmatprep.mubr.bf16.mxu0 %v4363
    %4487 = vmatmul.mubr.bf16.gmra.mrb[0].mxu0 %v4362
    %v4488 = vpop.f32.mrb[0].mxu0
    %v4489 = vadd.f32 0.0, %v4488
    %v4490 = vpop.f32.mrb[0].mxu0
    %v4491 = vpop.f32.mrb[0].mxu0
    %v4492 = vadd.f32 0.0, %v4491
    %v4493 = vpop.f32.mrb[0].mxu0
    %4494 = vdwg.mxu0
    %4495 = vmatprep.subr.bf16.mxu0 0
    %4496 = vmatpush1.bf16.msra.mxu0 %v159
    %4497 = vmatprep.subr.bf16.mxu0 0
    %4498 = vmatpush1.bf16.msra.mxu0 %v160
    %4499 = vmatprep.subr.bf16.mxu0 0
    %4500 = vmatpush1.bf16.msra.mxu0 %v161
    %4501 = vmatprep.subr.bf16.mxu0 0
    %4502 = vmatpush1.bf16.msra.mxu0 %v162
    %4503 = vmatprep.subr.bf16.mxu0 0
    %4504 = vmatpush1.bf16.msra.mxu0 %v163
    %4505 = vmatprep.subr.bf16.mxu0 0
    %4506 = vmatpush1.bf16.msra.mxu0 %v164
    %4507 = vmatprep.subr.bf16.mxu0 0
    %4508 = vmatpush1.bf16.msra.mxu0 %v165
    %4509 = vmatprep.subr.bf16.mxu0 0
    %4510 = vmatpush1.bf16.msra.mxu0 %v166
    %4511 = vmatprep.subr.bf16.mxu0 0
    %4512 = vmatpush1.bf16.msra.mxu0 %v167
    %4513 = vmatprep.subr.bf16.mxu0 0
    %4514 = vmatpush1.bf16.msra.mxu0 %v168
    %4515 = vmatprep.subr.bf16.mxu0 0
    %4516 = vmatpush1.bf16.msra.mxu0 %v169
    %4517 = vmatprep.subr.bf16.mxu0 0
    %4518 = vmatpush1.bf16.msra.mxu0 %v170
    %4519 = vmatprep.subr.bf16.mxu0 0
    %4520 = vmatpush1.bf16.msra.mxu0 %v171
    %4521 = vmatprep.subr.bf16.mxu0 0
    %4522 = vmatpush1.bf16.msra.mxu0 %v172
    %4523 = vmatprep.subr.bf16.mxu0 0
    %4524 = vmatpush1.bf16.msra.mxu0 %v173
    %4525 = vmatprep.subr.bf16.mxu0 0
    %4526 = vmatpush1.bf16.msra.mxu0 %v174
    %4527 = vmatprep.mubr.bf16.mxu0 %v4337
    %4528 = vmatmul.mubr.bf16.gmra.mrb[0].mxu0 %v4336
    %v4529 = vpop.f32.mrb[0].mxu0
    %v4530 = vadd.f32 %v4433, %v4529
    %v4531 = vpop.f32.mrb[0].mxu0
    %v4532 = vpop.f32.mrb[0].mxu0
    %v4533 = vadd.f32 %v4436, %v4532
    %v4534 = vpop.f32.mrb[0].mxu0
    %4535 = vmatprep.mubr.bf16.mxu0 %v4341
    %4536 = vmatmul.mubr.bf16.gmra.mrb[0].mxu0 %v4340
    %v4537 = vpop.f32.mrb[0].mxu0
    %v4538 = vadd.f32 %v4441, %v4537
    %v4539 = vpop.f32.mrb[0].mxu0
    %v4540 = vpop.f32.mrb[0].mxu0
    %v4541 = vadd.f32 %v4444, %v4540
    %v4542 = vpop.f32.mrb[0].mxu0
    %4543 = vmatprep.mubr.bf16.mxu0 %v4345
    %4544 = vmatmul.mubr.bf16.gmra.mrb[0].mxu0 %v4344
    %v4545 = vpop.f32.mrb[0].mxu0
    %v4546 = vadd.f32 %v4449, %v4545
    %v4547 = vpop.f32.mrb[0].mxu0
    %v4548 = vpop.f32.mrb[0].mxu0
    %v4549 = vadd.f32 %v4452, %v4548
    %v4550 = vpop.f32.mrb[0].mxu0
    %4551 = vmatprep.mubr.bf16.mxu0 %v4349
    %4552 = vmatmul.mubr.bf16.gmra.mrb[0].mxu0 %v4348
    %v4553 = vpop.f32.mrb[0].mxu0
    %v4554 = vadd.f32 %v4457, %v4553
    %v4555 = vpop.f32.mrb[0].mxu0
    %v4556 = vpop.f32.mrb[0].mxu0
    %v4557 = vadd.f32 %v4460, %v4556
    %v4558 = vpop.f32.mrb[0].mxu0
    %4559 = vmatprep.mubr.bf16.mxu0 %v4353
    %4560 = vmatmul.mubr.bf16.gmra.mrb[0].mxu0 %v4352
    %v4561 = vpop.f32.mrb[0].mxu0
    %v4562 = vadd.f32 %v4465, %v4561
    %v4563 = vpop.f32.mrb[0].mxu0
    %v4564 = vpop.f32.mrb[0].mxu0
    %v4565 = vadd.f32 %v4468, %v4564
    %v4566 = vpop.f32.mrb[0].mxu0
    %4567 = vmatprep.mubr.bf16.mxu0 %v4357
    %4568 = vmatmul.mubr.bf16.gmra.mrb[0].mxu0 %v4356
    %v4569 = vpop.f32.mrb[0].mxu0
    %v4570 = vadd.f32 %v4473, %v4569
    %v4571 = vpop.f32.mrb[0].mxu0
    %v4572 = vpop.f32.mrb[0].mxu0
    %v4573 = vadd.f32 %v4476, %v4572
    %v4574 = vpop.f32.mrb[0].mxu0
    %4575 = vmatprep.mubr.bf16.mxu0 %v4361
    %4576 = vmatmul.mubr.bf16.gmra.mrb[0].mxu0 %v4360
    %v4577 = vpop.f32.mrb[0].mxu0
    %v4578 = vadd.f32 %v4481, %v4577
    %v4579 = vpop.f32.mrb[0].mxu0
    %v4580 = vpop.f32.mrb[0].mxu0
    %v4581 = vadd.f32 %v4484, %v4580
    %v4582 = vpop.f32.mrb[0].mxu0
    %4583 = vmatprep.mubr.bf16.mxu0 %v4365
    %4584 = vmatmul.mubr.bf16.gmra.mrb[0].mxu0 %v4364
    %v4585 = vpop.f32.mrb[0].mxu0
    %v4586 = vadd.f32 %v4489, %v4585
    %v4587 = vpop.f32.mrb[0].mxu0
    %v4588 = vpop.f32.mrb[0].mxu0
    %v4589 = vadd.f32 %v4492, %v4588
    %v4590 = vpop.f32.mrb[0].mxu0
    %4591 = vdwg.mxu0
    %v4592 = vld [vmem:[%s2 + $0x4] sm:$0x1]
    %v4593 = vunpack.c.l.bf16 %v4592
    %4595 = vset.pattern.permute.xlu0 0
    %4596 = vperm.xlu0 %4595, %v4530
    %v4597 = vpop.permute.xlu0 %4596
    %4600 = vset.pattern.permute.xlu0 0
    %4601 = vperm.xlu0 %4600, %v4533
    %v4602 = vpop.permute.xlu0 %4601
    %4605 = vset.pattern.permute.xlu0 0
    %4606 = vperm.xlu0 %4605, %v4538
    %v4607 = vpop.permute.xlu0 %4606
    %4610 = vset.pattern.permute.xlu0 0
    %4611 = vperm.xlu0 %4610, %v4541
    %v4612 = vpop.permute.xlu0 %4611
    %4615 = vset.pattern.permute.xlu0 0
    %4616 = vperm.xlu0 %4615, %v4546
    %v4617 = vpop.permute.xlu0 %4616
    %4620 = vset.pattern.permute.xlu0 0
    %4621 = vperm.xlu0 %4620, %v4549
    %v4622 = vpop.permute.xlu0 %4621
    %4625 = vset.pattern.permute.xlu0 0
    %4626 = vperm.xlu0 %4625, %v4554
    %v4627 = vpop.permute.xlu0 %4626
    %4630 = vset.pattern.permute.xlu0 0
    %4631 = vperm.xlu0 %4630, %v4557
    %v4632 = vpop.permute.xlu0 %4631
    %4635 = vset.pattern.permute.xlu0 0
    %4636 = vperm.xlu0 %4635, %v4562
    %v4637 = vpop.permute.xlu0 %4636
    %4640 = vset.pattern.permute.xlu0 0
    %4641 = vperm.xlu0 %4640, %v4565
    %v4642 = vpop.permute.xlu0 %4641
    %4645 = vset.pattern.permute.xlu0 0
    %4646 = vperm.xlu0 %4645, %v4570
    %v4647 = vpop.permute.xlu0 %4646
    %4650 = vset.pattern.permute.xlu0 0
    %4651 = vperm.xlu0 %4650, %v4573
    %v4652 = vpop.permute.xlu0 %4651
    %4655 = vset.pattern.permute.xlu0 0
    %4656 = vperm.xlu0 %4655, %v4578
    %v4657 = vpop.permute.xlu0 %4656
    %4660 = vset.pattern.permute.xlu0 0
    %4661 = vperm.xlu0 %4660, %v4581
    %v4662 = vpop.permute.xlu0 %4661
    %4665 = vset.pattern.permute.xlu0 0
    %4666 = vperm.xlu0 %4665, %v4586
    %v4667 = vpop.permute.xlu0 %4666
    %4670 = vset.pattern.permute.xlu0 0
    %4671 = vperm.xlu0 %4670, %v4589
    %v4672 = vpop.permute.xlu0 %4671
    %v4674 = vlaneseq
    %v4675 = vshrl.u32 %v4674, 7
    %v4676 = vsub.s32 0, %v4675
    %v4677 = vrot.slane %v4593, %v4676
    %v4678 = vmul.f32 %v4597, %v4677
    %v4679 = vmul.f32 %v4602, %v4677
    %v4680 = vmul.f32 %v4607, %v4677
    %v4681 = vmul.f32 %v4612, %v4677
    %v4682 = vmul.f32 %v4617, %v4677
    %v4683 = vmul.f32 %v4622, %v4677
    %v4684 = vmul.f32 %v4627, %v4677
    %v4685 = vmul.f32 %v4632, %v4677
    %v4686 = vmul.f32 %v4637, %v4677
    %v4687 = vmul.f32 %v4642, %v4677
    %v4688 = vmul.f32 %v4647, %v4677
    %v4689 = vmul.f32 %v4652, %v4677
    %v4690 = vmul.f32 %v4657, %v4677
    %v4691 = vmul.f32 %v4662, %v4677
    %v4692 = vmul.f32 %v4667, %v4677
    %v4693 = vmul.f32 %v4672, %v4677
    %v4694 = vadd.f32 %v4190, %v4678
    %v4695 = vadd.f32 %v4191, %v4679
    %v4696 = vadd.f32 %v4192, %v4680
    %v4697 = vadd.f32 %v4193, %v4681
    %v4698 = vadd.f32 %v4194, %v4682
    %v4699 = vadd.f32 %v4195, %v4683
    %v4700 = vadd.f32 %v4196, %v4684
    %v4701 = vadd.f32 %v4197, %v4685
    %v4702 = vadd.f32 %v4198, %v4686
    %v4703 = vadd.f32 %v4199, %v4687
    %v4704 = vadd.f32 %v4200, %v4688
    %v4705 = vadd.f32 %v4201, %v4689
    %v4706 = vadd.f32 %v4202, %v4690
    %v4707 = vadd.f32 %v4203, %v4691
    %v4708 = vadd.f32 %v4204, %v4692
    %v4709 = vadd.f32 %v4205, %v4693
    %v4710 = vmax.f32 %v4694, 0.0
    %v4711 = vmax.f32 %v4695, 0.0
    %v4712 = vmax.f32 %v4696, 0.0
    %v4713 = vmax.f32 %v4697, 0.0
    %v4714 = vmax.f32 %v4698, 0.0
    %v4715 = vmax.f32 %v4699, 0.0
    %v4716 = vmax.f32 %v4700, 0.0
    %v4717 = vmax.f32 %v4701, 0.0
    %v4718 = vmax.f32 %v4702, 0.0
    %v4719 = vmax.f32 %v4703, 0.0
    %v4720 = vmax.f32 %v4704, 0.0
    %v4721 = vmax.f32 %v4705, 0.0
    %v4722 = vmax.f32 %v4706, 0.0
    %v4723 = vmax.f32 %v4707, 0.0
    %v4724 = vmax.f32 %v4708, 0.0
    %v4725 = vmax.f32 %v4709, 0.0
    %v4726 = vpack.c.bf16 %v4711, %v4710
    %v4727 = vpack.c.bf16 %v4713, %v4712
    %v4728 = vpack.c.bf16 %v4715, %v4714
    %v4729 = vpack.c.bf16 %v4717, %v4716
    %v4730 = vpack.c.bf16 %v4719, %v4718
    %v4731 = vpack.c.bf16 %v4721, %v4720
    %v4732 = vpack.c.bf16 %v4723, %v4722
    %v4733 = vpack.c.bf16 %v4725, %v4724
    %v4734 = vld [vmem:[%s6] sm:$0x1]
    %v4735 = vld [vmem:[%s4] sm:$0xf]
    %v4736 = vld [vmem:[%s4 + $0x4] sm:$0xf]
    %v4737 = vld [vmem:[%s4 + $0x8] sm:$0xf]
    %v4738 = vld [vmem:[%s4 + $0xc] sm:$0xf]
    %v4739 = vld [vmem:[%s4 + $0x10] sm:$0xf]
    %v4740 = vld [vmem:[%s4 + $0x14] sm:$0xf]
    %v4741 = vld [vmem:[%s4 + $0x18] sm:$0xf]
    %v4742 = vld [vmem:[%s4 + $0x1c] sm:$0xf]
    %v4743 = vld [vmem:[%s4 + $0x20] sm:$0xf]
    %v4744 = vld [vmem:[%s4 + $0x24] sm:$0xf]
    %v4745 = vld [vmem:[%s4 + $0x28] sm:$0xf]
    %v4746 = vld [vmem:[%s4 + $0x2c] sm:$0xf]
    %v4747 = vld [vmem:[%s4 + $0x30] sm:$0xf]
    %v4748 = vld [vmem:[%s4 + $0x34] sm:$0xf]
    %v4749 = vld [vmem:[%s4 + $0x38] sm:$0xf]
    %v4750 = vld [vmem:[%s4 + $0x3c] sm:$0xf]
    %v4751 = vld [vmem:[%s4 + $0x40] sm:$0xf]
    %v4752 = vld [vmem:[%s4 + $0x44] sm:$0xf]
    %v4753 = vld [vmem:[%s4 + $0x48] sm:$0xf]
    %v4754 = vld [vmem:[%s4 + $0x4c] sm:$0xf]
    %v4755 = vld [vmem:[%s4 + $0x50] sm:$0xf]
    %v4756 = vld [vmem:[%s4 + $0x54] sm:$0xf]
    %v4757 = vld [vmem:[%s4 + $0x58] sm:$0xf]
    %v4758 = vld [vmem:[%s4 + $0x5c] sm:$0xf]
    %v4759 = vld [vmem:[%s4 + $0x60] sm:$0xf]
    %v4760 = vld [vmem:[%s4 + $0x64] sm:$0xf]
    %v4761 = vld [vmem:[%s4 + $0x68] sm:$0xf]
    %v4762 = vld [vmem:[%s4 + $0x6c] sm:$0xf]
    %v4763 = vld [vmem:[%s4 + $0x70] sm:$0xf]
    %v4764 = vld [vmem:[%s4 + $0x74] sm:$0xf]
    %v4765 = vld [vmem:[%s4 + $0x78] sm:$0xf]
    %v4766 = vld [vmem:[%s4 + $0x7c] sm:$0xf]
    %v4767 = vld [vmem:[%s4 + $0x80] sm:$0xf]
    %v4768 = vld [vmem:[%s4 + $0x84] sm:$0xf]
    %v4769 = vld [vmem:[%s4 + $0x88] sm:$0xf]
    %v4770 = vld [vmem:[%s4 + $0x8c] sm:$0xf]
    %v4807 = vunpack.c.l.b16 %v4735
    %v4808 = vunpack.c.l.b16 %v4736
    %v4809 = vunpack.c.l.b16 %v4737
    %v4810 = vunpack.c.l.b16 %v4738
    %v4811 = vunpack.c.l.b16 %v4739
    %v4812 = vunpack.c.l.b16 %v4740
    %v4813 = vunpack.c.l.b16 %v4741
    %v4814 = vunpack.c.l.b16 %v4742
    %v4815 = vunpack.c.l.b16 %v4743
    %v4816 = vunpack.c.l.b16 %v4744
    %v4817 = vunpack.c.l.b16 %v4745
    %v4818 = vunpack.c.l.b16 %v4746
    %v4819 = vunpack.c.l.b16 %v4747
    %v4820 = vunpack.c.l.b16 %v4748
    %v4821 = vunpack.c.l.b16 %v4749
    %v4822 = vunpack.c.l.b16 %v4750
    %v4823 = vunpack.c.l.b16 %v4751
    %v4824 = vunpack.c.l.b16 %v4752
    %v4825 = vunpack.c.l.b16 %v4753
    %v4826 = vunpack.c.l.b16 %v4754
    %v4827 = vunpack.c.l.b16 %v4755
    %v4828 = vunpack.c.l.b16 %v4756
    %v4829 = vunpack.c.l.b16 %v4757
    %v4830 = vunpack.c.l.b16 %v4758
    %v4831 = vunpack.c.l.b16 %v4759
    %v4832 = vunpack.c.l.b16 %v4760
    %v4833 = vunpack.c.l.b16 %v4761
    %v4834 = vunpack.c.l.b16 %v4762
    %v4835 = vunpack.c.l.b16 %v4763
    %v4836 = vunpack.c.l.b16 %v4764
    %v4837 = vunpack.c.l.b16 %v4765
    %v4838 = vunpack.c.l.b16 %v4766
    %v4839 = vunpack.c.l.b16 %v4767
    %v4840 = vunpack.c.l.b16 %v4768
    %v4841 = vunpack.c.l.b16 %v4769
    %v4842 = vunpack.c.l.b16 %v4770
    %v4843 = vpack.c.b16 %v4808, %v4807
    %v4844 = vpack.c.b16 %v4810, %v4809
    %v4845 = vpack.c.b16 %v4812, %v4811
    %v4846 = vpack.c.b16 %v4814, %v4813
    %v4847 = vpack.c.b16 %v4816, %v4815
    %v4848 = vpack.c.b16 %v4818, %v4817
    %v4849 = vpack.c.b16 %v4820, %v4819
    %v4850 = vpack.c.b16 %v4822, %v4821
    %v4851 = vpack.c.b16 %v4824, %v4823
    %v4852 = vpack.c.b16 %v4826, %v4825
    %v4853 = vpack.c.b16 %v4828, %v4827
    %v4854 = vpack.c.b16 %v4830, %v4829
    %v4855 = vpack.c.b16 %v4832, %v4831
    %v4856 = vpack.c.b16 %v4834, %v4833
    %v4857 = vpack.c.b16 %v4836, %v4835
    %v4858 = vpack.c.b16 %v4838, %v4837
    %v4859 = vpack.c.b16 %v4840, %v4839
    %v4860 = vpack.c.b16 %v4842, %v4841
    %4879 = vmatprep.subr.bf16.mxu0 0
    %4880 = vmatpush1.bf16.msra.mxu0 %v4726
    %4881 = vmatprep.subr.bf16.mxu0 0
    %4882 = vmatpush1.bf16.msra.mxu0 %v4727
    %4883 = vmatprep.subr.bf16.mxu0 0
    %4884 = vmatpush1.bf16.msra.mxu0 %v4728
    %4885 = vmatprep.subr.bf16.mxu0 0
    %4886 = vmatpush1.bf16.msra.mxu0 %v4729
    %4887 = vmatprep.subr.bf16.mxu0 0
    %4888 = vmatpush1.bf16.msra.mxu0 %v4730
    %4889 = vmatprep.subr.bf16.mxu0 0
    %4890 = vmatpush1.bf16.msra.mxu0 %v4731
    %4891 = vmatprep.subr.bf16.mxu0 0
    %4892 = vmatpush1.bf16.msra.mxu0 %v4732
    %4893 = vmatprep.subr.bf16.mxu0 0
    %4894 = vmatpush1.bf16.msra.mxu0 %v4733
    %4895 = vmatprep.subr.bf16.mxu0 0
    %4896 = vmatpush1.bf16.msra.mxu0 0
    %4897 = vmatprep.subr.bf16.mxu0 0
    %4898 = vmatpush1.bf16.msra.mxu0 0
    %4899 = vmatprep.subr.bf16.mxu0 0
    %4900 = vmatpush1.bf16.msra.mxu0 0
    %4901 = vmatprep.subr.bf16.mxu0 0
    %4902 = vmatpush1.bf16.msra.mxu0 0
    %4903 = vmatprep.subr.bf16.mxu0 0
    %4904 = vmatpush1.bf16.msra.mxu0 0
    %4905 = vmatprep.subr.bf16.mxu0 0
    %4906 = vmatpush1.bf16.msra.mxu0 0
    %4907 = vmatprep.subr.bf16.mxu0 0
    %4908 = vmatpush1.bf16.msra.mxu0 0
    %4909 = vmatprep.subr.bf16.mxu0 0
    %4910 = vmatpush1.bf16.msra.mxu0 0
    %4911 = vmatprep.mubr.bf16.mxu0 0
    %4912 = vmatmul.mubr.bf16.gmra.mrb[0].mxu0 %v4843
    %v4913 = vpop.f32.mrb[0].mxu0
    %v4914 = vadd.f32 0.0, %v4913
    %v4915 = vpop.f32.mrb[0].mxu0
    %v4916 = vpop.f32.mrb[0].mxu0
    %v4917 = vadd.f32 0.0, %v4916
    %v4918 = vpop.f32.mrb[0].mxu0
    %4919 = vmatprep.mubr.bf16.mxu0 0
    %4920 = vmatmul.mubr.bf16.gmra.mrb[0].mxu0 %v4844
    %v4921 = vpop.f32.mrb[0].mxu0
    %v4922 = vadd.f32 0.0, %v4921
    %v4923 = vpop.f32.mrb[0].mxu0
    %v4924 = vpop.f32.mrb[0].mxu0
    %v4925 = vadd.f32 0.0, %v4924
    %v4926 = vpop.f32.mrb[0].mxu0
    %4927 = vmatprep.mubr.bf16.mxu0 0
    %4928 = vmatmul.mubr.bf16.gmra.mrb[0].mxu0 %v4845
    %v4929 = vpop.f32.mrb[0].mxu0
    %v4930 = vadd.f32 0.0, %v4929
    %v4931 = vpop.f32.mrb[0].mxu0
    %v4932 = vpop.f32.mrb[0].mxu0
    %v4933 = vadd.f32 0.0, %v4932
    %v4934 = vpop.f32.mrb[0].mxu0
    %4935 = vmatprep.mubr.bf16.mxu0 0
    %4936 = vmatmul.mubr.bf16.gmra.mrb[0].mxu0 %v4846
    %v4937 = vpop.f32.mrb[0].mxu0
    %v4938 = vadd.f32 0.0, %v4937
    %v4939 = vpop.f32.mrb[0].mxu0
    %v4940 = vpop.f32.mrb[0].mxu0
    %v4941 = vadd.f32 0.0, %v4940
    %v4942 = vpop.f32.mrb[0].mxu0
    %4943 = vmatprep.mubr.bf16.mxu0 0
    %4944 = vmatmul.mubr.bf16.gmra.mrb[0].mxu0 %v4847
    %v4945 = vpop.f32.mrb[0].mxu0
    %v4946 = vadd.f32 0.0, %v4945
    %v4947 = vpop.f32.mrb[0].mxu0
    %v4948 = vpop.f32.mrb[0].mxu0
    %v4949 = vadd.f32 0.0, %v4948
    %v4950 = vpop.f32.mrb[0].mxu0
    %4951 = vmatprep.mubr.bf16.mxu0 0
    %4952 = vmatmul.mubr.bf16.gmra.mrb[0].mxu0 %v4848
    %v4953 = vpop.f32.mrb[0].mxu0
    %v4954 = vadd.f32 0.0, %v4953
    %v4955 = vpop.f32.mrb[0].mxu0
    %v4956 = vpop.f32.mrb[0].mxu0
    %v4957 = vadd.f32 0.0, %v4956
    %v4958 = vpop.f32.mrb[0].mxu0
    %4959 = vmatprep.mubr.bf16.mxu0 0
    %4960 = vmatmul.mubr.bf16.gmra.mrb[0].mxu0 %v4849
    %v4961 = vpop.f32.mrb[0].mxu0
    %v4962 = vadd.f32 0.0, %v4961
    %v4963 = vpop.f32.mrb[0].mxu0
    %v4964 = vpop.f32.mrb[0].mxu0
    %v4965 = vadd.f32 0.0, %v4964
    %v4966 = vpop.f32.mrb[0].mxu0
    %4967 = vmatprep.mubr.bf16.mxu0 0
    %4968 = vmatmul.mubr.bf16.gmra.mrb[0].mxu0 %v4850
    %v4969 = vpop.f32.mrb[0].mxu0
    %v4970 = vadd.f32 0.0, %v4969
    %v4971 = vpop.f32.mrb[0].mxu0
    %v4972 = vpop.f32.mrb[0].mxu0
    %v4973 = vadd.f32 0.0, %v4972
    %v4974 = vpop.f32.mrb[0].mxu0
    %4975 = vmatprep.mubr.bf16.mxu0 0
    %4976 = vmatmul.mubr.bf16.gmra.mrb[0].mxu0 %v4851
    %v4977 = vpop.f32.mrb[0].mxu0
    %v4978 = vadd.f32 0.0, %v4977
    %v4979 = vpop.f32.mrb[0].mxu0
    %v4980 = vpop.f32.mrb[0].mxu0
    %v4981 = vadd.f32 0.0, %v4980
    %v4982 = vpop.f32.mrb[0].mxu0
    %4983 = vmatprep.mubr.bf16.mxu0 0
    %4984 = vmatmul.mubr.bf16.gmra.mrb[0].mxu0 %v4852
    %v4985 = vpop.f32.mrb[0].mxu0
    %v4986 = vadd.f32 0.0, %v4985
    %v4987 = vpop.f32.mrb[0].mxu0
    %v4988 = vpop.f32.mrb[0].mxu0
    %v4989 = vadd.f32 0.0, %v4988
    %v4990 = vpop.f32.mrb[0].mxu0
    %4991 = vmatprep.mubr.bf16.mxu0 0
    %4992 = vmatmul.mubr.bf16.gmra.mrb[0].mxu0 %v4853
    %v4993 = vpop.f32.mrb[0].mxu0
    %v4994 = vadd.f32 0.0, %v4993
    %v4995 = vpop.f32.mrb[0].mxu0
    %v4996 = vpop.f32.mrb[0].mxu0
    %v4997 = vadd.f32 0.0, %v4996
    %v4998 = vpop.f32.mrb[0].mxu0
    %4999 = vmatprep.mubr.bf16.mxu0 0
    %5000 = vmatmul.mubr.bf16.gmra.mrb[0].mxu0 %v4854
    %v5001 = vpop.f32.mrb[0].mxu0
    %v5002 = vadd.f32 0.0, %v5001
    %v5003 = vpop.f32.mrb[0].mxu0
    %v5004 = vpop.f32.mrb[0].mxu0
    %v5005 = vadd.f32 0.0, %v5004
    %v5006 = vpop.f32.mrb[0].mxu0
    %5007 = vmatprep.mubr.bf16.mxu0 0
    %5008 = vmatmul.mubr.bf16.gmra.mrb[0].mxu0 %v4855
    %v5009 = vpop.f32.mrb[0].mxu0
    %v5010 = vadd.f32 0.0, %v5009
    %v5011 = vpop.f32.mrb[0].mxu0
    %v5012 = vpop.f32.mrb[0].mxu0
    %v5013 = vadd.f32 0.0, %v5012
    %v5014 = vpop.f32.mrb[0].mxu0
    %5015 = vmatprep.mubr.bf16.mxu0 0
    %5016 = vmatmul.mubr.bf16.gmra.mrb[0].mxu0 %v4856
    %v5017 = vpop.f32.mrb[0].mxu0
    %v5018 = vadd.f32 0.0, %v5017
    %v5019 = vpop.f32.mrb[0].mxu0
    %v5020 = vpop.f32.mrb[0].mxu0
    %v5021 = vadd.f32 0.0, %v5020
    %v5022 = vpop.f32.mrb[0].mxu0
    %5023 = vmatprep.mubr.bf16.mxu0 0
    %5024 = vmatmul.mubr.bf16.gmra.mrb[0].mxu0 %v4857
    %v5025 = vpop.f32.mrb[0].mxu0
    %v5026 = vadd.f32 0.0, %v5025
    %v5027 = vpop.f32.mrb[0].mxu0
    %v5028 = vpop.f32.mrb[0].mxu0
    %v5029 = vadd.f32 0.0, %v5028
    %v5030 = vpop.f32.mrb[0].mxu0
    %5031 = vmatprep.mubr.bf16.mxu0 0
    %5032 = vmatmul.mubr.bf16.gmra.mrb[0].mxu0 %v4858
    %v5033 = vpop.f32.mrb[0].mxu0
    %v5034 = vadd.f32 0.0, %v5033
    %v5035 = vpop.f32.mrb[0].mxu0
    %v5036 = vpop.f32.mrb[0].mxu0
    %v5037 = vadd.f32 0.0, %v5036
    %v5038 = vpop.f32.mrb[0].mxu0
    %5039 = vmatprep.mubr.bf16.mxu0 0
    %5040 = vmatmul.mubr.bf16.gmra.mrb[0].mxu0 %v4859
    %v5041 = vpop.f32.mrb[0].mxu0
    %v5042 = vadd.f32 0.0, %v5041
    %v5043 = vpop.f32.mrb[0].mxu0
    %v5044 = vpop.f32.mrb[0].mxu0
    %v5045 = vadd.f32 0.0, %v5044
    %v5046 = vpop.f32.mrb[0].mxu0
    %5047 = vmatprep.mubr.bf16.mxu0 0
    %5048 = vmatmul.mubr.bf16.gmra.mrb[0].mxu0 %v4860
    %v5049 = vpop.f32.mrb[0].mxu0
    %v5050 = vadd.f32 0.0, %v5049
    %v5051 = vpop.f32.mrb[0].mxu0
    %v5052 = vpop.f32.mrb[0].mxu0
    %v5053 = vadd.f32 0.0, %v5052
    %v5054 = vpop.f32.mrb[0].mxu0
    %5055 = vdwg.mxu0
    %v5056 = vpack.c.bf16 %v4917, %v4914
    %v5057 = vpack.c.bf16 %v4925, %v4922
    %v5058 = vld [vmem:[%s5] sm:$0xf]
    %v5059 = vld [vmem:[%s5 + $0x4] sm:$0xf]
    %v5060 = vld [vmem:[%s5 + $0x8] sm:$0xf]
    %v5061 = vld [vmem:[%s5 + $0xc] sm:$0xf]
    %v5066 = vunpack.c.l.b16 %v5058
    %v5067 = vunpack.c.l.b16 %v5059
    %v5068 = vunpack.c.l.b16 %v5060
    %v5069 = vunpack.c.l.b16 %v5061
    %v5070 = vpack.c.b16 %v5067, %v5066
    %v5071 = vpack.c.b16 %v5069, %v5068
    %vm5074 = vcmask 261120
    %v5076 = vsel %vm5074, %v5056, 0
    %v5079 = vsel %vm5074, %v5057, 0
    %5081 = vmatprep.subr.bf16.mxu0 0
    %5082 = vmatpush1.bf16.msra.mxu0 %v5070
    %5083 = vmatprep.subr.bf16.mxu0 0
    %5084 = vmatpush1.bf16.msra.mxu0 %v5071
    %5085 = vmatprep.subr.bf16.mxu0 0
    %5086 = vmatpush1.bf16.msra.mxu0 0
    %5087 = vmatprep.subr.bf16.mxu0 0
    %5088 = vmatpush1.bf16.msra.mxu0 0
    %5089 = vmatprep.subr.bf16.mxu0 0
    %5090 = vmatpush1.bf16.msra.mxu0 0
    %5091 = vmatprep.subr.bf16.mxu0 0
    %5092 = vmatpush1.bf16.msra.mxu0 0
    %5093 = vmatprep.subr.bf16.mxu0 0
    %5094 = vmatpush1.bf16.msra.mxu0 0
    %5095 = vmatprep.subr.bf16.mxu0 0
    %5096 = vmatpush1.bf16.msra.mxu0 0
    %5097 = vmatprep.subr.bf16.mxu0 0
    %5098 = vmatpush1.bf16.msra.mxu0 0
    %5099 = vmatprep.subr.bf16.mxu0 0
    %5100 = vmatpush1.bf16.msra.mxu0 0
    %5101 = vmatprep.subr.bf16.mxu0 0
    %5102 = vmatpush1.bf16.msra.mxu0 0
    %5103 = vmatprep.subr.bf16.mxu0 0
    %5104 = vmatpush1.bf16.msra.mxu0 0
    %5105 = vmatprep.subr.bf16.mxu0 0
    %5106 = vmatpush1.bf16.msra.mxu0 0
    %5107 = vmatprep.subr.bf16.mxu0 0
    %5108 = vmatpush1.bf16.msra.mxu0 0
    %5109 = vmatprep.subr.bf16.mxu0 0
    %5110 = vmatpush1.bf16.msra.mxu0 0
    %5111 = vmatprep.subr.bf16.mxu0 0
    %5112 = vmatpush1.bf16.msra.mxu0 0
    %5113 = vmatprep.mubr.bf16.mxu0 0
    %5114 = vmatmul.mubr.bf16.gmra.mrb[0].mxu0 %v5076
    %v5115 = vpop.f32.mrb[0].mxu0
    %v5116 = vadd.f32 0.0, %v5115
    %v5117 = vpop.f32.mrb[0].mxu0
    %v5118 = vpop.f32.mrb[0].mxu0
    %v5119 = vadd.f32 0.0, %v5118
    %v5120 = vpop.f32.mrb[0].mxu0
    %5121 = vmatprep.mubr.bf16.mxu0 0
    %5122 = vmatmul.mubr.bf16.gmra.mrb[0].mxu0 %v5079
    %v5123 = vpop.f32.mrb[0].mxu0
    %v5124 = vadd.f32 0.0, %v5123
    %v5125 = vpop.f32.mrb[0].mxu0
    %v5126 = vpop.f32.mrb[0].mxu0
    %v5127 = vadd.f32 0.0, %v5126
    %v5128 = vpop.f32.mrb[0].mxu0
    %5129 = vdwg.mxu0
    %v5131 = vlaneseq
    %v5132 = vshrl.u32 %v5131, 7
    %v5133 = vsub.s32 0, %v5132
    %v5134 = vrot.slane %v4734, %v5133
    %v5136 = vadd.f32 %v5134, %v5116
    %v5137 = vadd.f32 %v5134, %v5119
    %v5138 = vadd.f32 %v5134, %v5124
    %v5139 = vadd.f32 %v5134, %v5127
    %v5140 = vpack.c.bf16 %v4933, %v4930
    %v5141 = vpack.c.bf16 %v4941, %v4938
    %v5142 = vld [vmem:[%s5 + $0x10] sm:$0xf]
    %v5143 = vld [vmem:[%s5 + $0x14] sm:$0xf]
    %v5144 = vld [vmem:[%s5 + $0x18] sm:$0xf]
    %v5145 = vld [vmem:[%s5 + $0x1c] sm:$0xf]
    %v5150 = vunpack.c.l.b16 %v5142
    %v5151 = vunpack.c.l.b16 %v5143
    %v5152 = vunpack.c.l.b16 %v5144
    %v5153 = vunpack.c.l.b16 %v5145
    %v5154 = vpack.c.b16 %v5151, %v5150
    %v5155 = vpack.c.b16 %v5153, %v5152
    %v5159 = vsel %vm5074, %v5140, 0
    %v5162 = vsel %vm5074, %v5141, 0
    %5164 = vmatprep.subr.bf16.mxu0 0
    %5165 = vmatpush1.bf16.msra.mxu0 %v5154
    %5166 = vmatprep.subr.bf16.mxu0 0
    %5167 = vmatpush1.bf16.msra.mxu0 %v5155
    %5168 = vmatprep.subr.bf16.mxu0 0
    %5169 = vmatpush1.bf16.msra.mxu0 0
    %5170 = vmatprep.subr.bf16.mxu0 0
    %5171 = vmatpush1.bf16.msra.mxu0 0
    %5172 = vmatprep.subr.bf16.mxu0 0
    %5173 = vmatpush1.bf16.msra.mxu0 0
    %5174 = vmatprep.subr.bf16.mxu0 0
    %5175 = vmatpush1.bf16.msra.mxu0 0
    %5176 = vmatprep.subr.bf16.mxu0 0
    %5177 = vmatpush1.bf16.msra.mxu0 0
    %5178 = vmatprep.subr.bf16.mxu0 0
    %5179 = vmatpush1.bf16.msra.mxu0 0
    %5180 = vmatprep.subr.bf16.mxu0 0
    %5181 = vmatpush1.bf16.msra.mxu0 0
    %5182 = vmatprep.subr.bf16.mxu0 0
    %5183 = vmatpush1.bf16.msra.mxu0 0
    %5184 = vmatprep.subr.bf16.mxu0 0
    %5185 = vmatpush1.bf16.msra.mxu0 0
    %5186 = vmatprep.subr.bf16.mxu0 0
    %5187 = vmatpush1.bf16.msra.mxu0 0
    %5188 = vmatprep.subr.bf16.mxu0 0
    %5189 = vmatpush1.bf16.msra.mxu0 0
    %5190 = vmatprep.subr.bf16.mxu0 0
    %5191 = vmatpush1.bf16.msra.mxu0 0
    %5192 = vmatprep.subr.bf16.mxu0 0
    %5193 = vmatpush1.bf16.msra.mxu0 0
    %5194 = vmatprep.subr.bf16.mxu0 0
    %5195 = vmatpush1.bf16.msra.mxu0 0
    %5196 = vmatprep.mubr.bf16.mxu0 0
    %5197 = vmatmul.mubr.bf16.gmra.mrb[0].mxu0 %v5159
    %v5198 = vpop.f32.mrb[0].mxu0
    %v5199 = vadd.f32 0.0, %v5198
    %v5200 = vpop.f32.mrb[0].mxu0
    %v5201 = vpop.f32.mrb[0].mxu0
    %v5202 = vadd.f32 0.0, %v5201
    %v5203 = vpop.f32.mrb[0].mxu0
    %5204 = vmatprep.mubr.bf16.mxu0 0
    %5205 = vmatmul.mubr.bf16.gmra.mrb[0].mxu0 %v5162
    %v5206 = vpop.f32.mrb[0].mxu0
    %v5207 = vadd.f32 0.0, %v5206
    %v5208 = vpop.f32.mrb[0].mxu0
    %v5209 = vpop.f32.mrb[0].mxu0
    %v5210 = vadd.f32 0.0, %v5209
    %v5211 = vpop.f32.mrb[0].mxu0
    %5212 = vdwg.mxu0
    %v5213 = vadd.f32 %v5136, %v5199
    %v5214 = vadd.f32 %v5137, %v5202
    %v5215 = vadd.f32 %v5138, %v5207
    %v5216 = vadd.f32 %v5139, %v5210
    %v5217 = vpack.c.bf16 %v4949, %v4946
    %v5218 = vpack.c.bf16 %v4957, %v4954
    %v5219 = vld [vmem:[%s5 + $0x20] sm:$0xf]
    %v5220 = vld [vmem:[%s5 + $0x24] sm:$0xf]
    %v5221 = vld [vmem:[%s5 + $0x28] sm:$0xf]
    %v5222 = vld [vmem:[%s5 + $0x2c] sm:$0xf]
    %v5227 = vunpack.c.l.b16 %v5219
    %v5228 = vunpack.c.l.b16 %v5220
    %v5229 = vunpack.c.l.b16 %v5221
    %v5230 = vunpack.c.l.b16 %v5222
    %v5231 = vpack.c.b16 %v5228, %v5227
    %v5232 = vpack.c.b16 %v5230, %v5229
    %v5236 = vsel %vm5074, %v5217, 0
    %v5239 = vsel %vm5074, %v5218, 0
    %5241 = vmatprep.subr.bf16.mxu0 0
    %5242 = vmatpush1.bf16.msra.mxu0 %v5231
    %5243 = vmatprep.subr.bf16.mxu0 0
    %5244 = vmatpush1.bf16.msra.mxu0 %v5232
    %5245 = vmatprep.subr.bf16.mxu0 0
    %5246 = vmatpush1.bf16.msra.mxu0 0
    %5247 = vmatprep.subr.bf16.mxu0 0
    %5248 = vmatpush1.bf16.msra.mxu0 0
    %5249 = vmatprep.subr.bf16.mxu0 0
    %5250 = vmatpush1.bf16.msra.mxu0 0
    %5251 = vmatprep.subr.bf16.mxu0 0
    %5252 = vmatpush1.bf16.msra.mxu0 0
    %5253 = vmatprep.subr.bf16.mxu0 0
    %5254 = vmatpush1.bf16.msra.mxu0 0
    %5255 = vmatprep.subr.bf16.mxu0 0
    %5256 = vmatpush1.bf16.msra.mxu0 0
    %5257 = vmatprep.subr.bf16.mxu0 0
    %5258 = vmatpush1.bf16.msra.mxu0 0
    %5259 = vmatprep.subr.bf16.mxu0 0
    %5260 = vmatpush1.bf16.msra.mxu0 0
    %5261 = vmatprep.subr.bf16.mxu0 0
    %5262 = vmatpush1.bf16.msra.mxu0 0
    %5263 = vmatprep.subr.bf16.mxu0 0
    %5264 = vmatpush1.bf16.msra.mxu0 0
    %5265 = vmatprep.subr.bf16.mxu0 0
    %5266 = vmatpush1.bf16.msra.mxu0 0
    %5267 = vmatprep.subr.bf16.mxu0 0
    %5268 = vmatpush1.bf16.msra.mxu0 0
    %5269 = vmatprep.subr.bf16.mxu0 0
    %5270 = vmatpush1.bf16.msra.mxu0 0
    %5271 = vmatprep.subr.bf16.mxu0 0
    %5272 = vmatpush1.bf16.msra.mxu0 0
    %5273 = vmatprep.mubr.bf16.mxu0 0
    %5274 = vmatmul.mubr.bf16.gmra.mrb[0].mxu0 %v5236
    %v5275 = vpop.f32.mrb[0].mxu0
    %v5276 = vadd.f32 0.0, %v5275
    %v5277 = vpop.f32.mrb[0].mxu0
    %v5278 = vpop.f32.mrb[0].mxu0
    %v5279 = vadd.f32 0.0, %v5278
    %v5280 = vpop.f32.mrb[0].mxu0
    %5281 = vmatprep.mubr.bf16.mxu0 0
    %5282 = vmatmul.mubr.bf16.gmra.mrb[0].mxu0 %v5239
    %v5283 = vpop.f32.mrb[0].mxu0
    %v5284 = vadd.f32 0.0, %v5283
    %v5285 = vpop.f32.mrb[0].mxu0
    %v5286 = vpop.f32.mrb[0].mxu0
    %v5287 = vadd.f32 0.0, %v5286
    %v5288 = vpop.f32.mrb[0].mxu0
    %5289 = vdwg.mxu0
    %v5290 = vadd.f32 %v5213, %v5276
    %v5291 = vadd.f32 %v5214, %v5279
    %v5292 = vadd.f32 %v5215, %v5284
    %v5293 = vadd.f32 %v5216, %v5287
    %v5294 = vpack.c.bf16 %v4965, %v4962
    %v5295 = vpack.c.bf16 %v4973, %v4970
    %v5296 = vld [vmem:[%s5 + $0x30] sm:$0xf]
    %v5297 = vld [vmem:[%s5 + $0x34] sm:$0xf]
    %v5298 = vld [vmem:[%s5 + $0x38] sm:$0xf]
    %v5299 = vld [vmem:[%s5 + $0x3c] sm:$0xf]
    %v5304 = vunpack.c.l.b16 %v5296
    %v5305 = vunpack.c.l.b16 %v5297
    %v5306 = vunpack.c.l.b16 %v5298
    %v5307 = vunpack.c.l.b16 %v5299
    %v5308 = vpack.c.b16 %v5305, %v5304
    %v5309 = vpack.c.b16 %v5307, %v5306
    %v5313 = vsel %vm5074, %v5294, 0
    %v5316 = vsel %vm5074, %v5295, 0
    %5318 = vmatprep.subr.bf16.mxu0 0
    %5319 = vmatpush1.bf16.msra.mxu0 %v5308
    %5320 = vmatprep.subr.bf16.mxu0 0
    %5321 = vmatpush1.bf16.msra.mxu0 %v5309
    %5322 = vmatprep.subr.bf16.mxu0 0
    %5323 = vmatpush1.bf16.msra.mxu0 0
    %5324 = vmatprep.subr.bf16.mxu0 0
    %5325 = vmatpush1.bf16.msra.mxu0 0
    %5326 = vmatprep.subr.bf16.mxu0 0
    %5327 = vmatpush1.bf16.msra.mxu0 0
    %5328 = vmatprep.subr.bf16.mxu0 0
    %5329 = vmatpush1.bf16.msra.mxu0 0
    %5330 = vmatprep.subr.bf16.mxu0 0
    %5331 = vmatpush1.bf16.msra.mxu0 0
    %5332 = vmatprep.subr.bf16.mxu0 0
    %5333 = vmatpush1.bf16.msra.mxu0 0
    %5334 = vmatprep.subr.bf16.mxu0 0
    %5335 = vmatpush1.bf16.msra.mxu0 0
    %5336 = vmatprep.subr.bf16.mxu0 0
    %5337 = vmatpush1.bf16.msra.mxu0 0
    %5338 = vmatprep.subr.bf16.mxu0 0
    %5339 = vmatpush1.bf16.msra.mxu0 0
    %5340 = vmatprep.subr.bf16.mxu0 0
    %5341 = vmatpush1.bf16.msra.mxu0 0
    %5342 = vmatprep.subr.bf16.mxu0 0
    %5343 = vmatpush1.bf16.msra.mxu0 0
    %5344 = vmatprep.subr.bf16.mxu0 0
    %5345 = vmatpush1.bf16.msra.mxu0 0
    %5346 = vmatprep.subr.bf16.mxu0 0
    %5347 = vmatpush1.bf16.msra.mxu0 0
    %5348 = vmatprep.subr.bf16.mxu0 0
    %5349 = vmatpush1.bf16.msra.mxu0 0
    %5350 = vmatprep.mubr.bf16.mxu0 0
    %5351 = vmatmul.mubr.bf16.gmra.mrb[0].mxu0 %v5313
    %v5352 = vpop.f32.mrb[0].mxu0
    %v5353 = vadd.f32 0.0, %v5352
    %v5354 = vpop.f32.mrb[0].mxu0
    %v5355 = vpop.f32.mrb[0].mxu0
    %v5356 = vadd.f32 0.0, %v5355
    %v5357 = vpop.f32.mrb[0].mxu0
    %5358 = vmatprep.mubr.bf16.mxu0 0
    %5359 = vmatmul.mubr.bf16.gmra.mrb[0].mxu0 %v5316
    %v5360 = vpop.f32.mrb[0].mxu0
    %v5361 = vadd.f32 0.0, %v5360
    %v5362 = vpop.f32.mrb[0].mxu0
    %v5363 = vpop.f32.mrb[0].mxu0
    %v5364 = vadd.f32 0.0, %v5363
    %v5365 = vpop.f32.mrb[0].mxu0
    %5366 = vdwg.mxu0
    %v5367 = vadd.f32 %v5290, %v5353
    %v5368 = vadd.f32 %v5291, %v5356
    %v5369 = vadd.f32 %v5292, %v5361
    %v5370 = vadd.f32 %v5293, %v5364
    %v5371 = vpack.c.bf16 %v4981, %v4978
    %v5372 = vpack.c.bf16 %v4989, %v4986
    %v5373 = vld [vmem:[%s5 + $0x40] sm:$0xf]
    %v5374 = vld [vmem:[%s5 + $0x44] sm:$0xf]
    %v5375 = vld [vmem:[%s5 + $0x48] sm:$0xf]
    %v5376 = vld [vmem:[%s5 + $0x4c] sm:$0xf]
    %v5381 = vunpack.c.l.b16 %v5373
    %v5382 = vunpack.c.l.b16 %v5374
    %v5383 = vunpack.c.l.b16 %v5375
    %v5384 = vunpack.c.l.b16 %v5376
    %v5385 = vpack.c.b16 %v5382, %v5381
    %v5386 = vpack.c.b16 %v5384, %v5383
    %v5390 = vsel %vm5074, %v5371, 0
    %v5393 = vsel %vm5074, %v5372, 0
    %5395 = vmatprep.subr.bf16.mxu0 0
    %5396 = vmatpush1.bf16.msra.mxu0 %v5385
    %5397 = vmatprep.subr.bf16.mxu0 0
    %5398 = vmatpush1.bf16.msra.mxu0 %v5386
    %5399 = vmatprep.subr.bf16.mxu0 0
    %5400 = vmatpush1.bf16.msra.mxu0 0
    %5401 = vmatprep.subr.bf16.mxu0 0
    %5402 = vmatpush1.bf16.msra.mxu0 0
    %5403 = vmatprep.subr.bf16.mxu0 0
    %5404 = vmatpush1.bf16.msra.mxu0 0
    %5405 = vmatprep.subr.bf16.mxu0 0
    %5406 = vmatpush1.bf16.msra.mxu0 0
    %5407 = vmatprep.subr.bf16.mxu0 0
    %5408 = vmatpush1.bf16.msra.mxu0 0
    %5409 = vmatprep.subr.bf16.mxu0 0
    %5410 = vmatpush1.bf16.msra.mxu0 0
    %5411 = vmatprep.subr.bf16.mxu0 0
    %5412 = vmatpush1.bf16.msra.mxu0 0
    %5413 = vmatprep.subr.bf16.mxu0 0
    %5414 = vmatpush1.bf16.msra.mxu0 0
    %5415 = vmatprep.subr.bf16.mxu0 0
    %5416 = vmatpush1.bf16.msra.mxu0 0
    %5417 = vmatprep.subr.bf16.mxu0 0
    %5418 = vmatpush1.bf16.msra.mxu0 0
    %5419 = vmatprep.subr.bf16.mxu0 0
    %5420 = vmatpush1.bf16.msra.mxu0 0
    %5421 = vmatprep.subr.bf16.mxu0 0
    %5422 = vmatpush1.bf16.msra.mxu0 0
    %5423 = vmatprep.subr.bf16.mxu0 0
    %5424 = vmatpush1.bf16.msra.mxu0 0
    %5425 = vmatprep.subr.bf16.mxu0 0
    %5426 = vmatpush1.bf16.msra.mxu0 0
    %5427 = vmatprep.mubr.bf16.mxu0 0
    %5428 = vmatmul.mubr.bf16.gmra.mrb[0].mxu0 %v5390
    %v5429 = vpop.f32.mrb[0].mxu0
    %v5430 = vadd.f32 0.0, %v5429
    %v5431 = vpop.f32.mrb[0].mxu0
    %v5432 = vpop.f32.mrb[0].mxu0
    %v5433 = vadd.f32 0.0, %v5432
    %v5434 = vpop.f32.mrb[0].mxu0
    %5435 = vmatprep.mubr.bf16.mxu0 0
    %5436 = vmatmul.mubr.bf16.gmra.mrb[0].mxu0 %v5393
    %v5437 = vpop.f32.mrb[0].mxu0
    %v5438 = vadd.f32 0.0, %v5437
    %v5439 = vpop.f32.mrb[0].mxu0
    %v5440 = vpop.f32.mrb[0].mxu0
    %v5441 = vadd.f32 0.0, %v5440
    %v5442 = vpop.f32.mrb[0].mxu0
    %5443 = vdwg.mxu0
    %v5444 = vadd.f32 %v5367, %v5430
    %v5445 = vadd.f32 %v5368, %v5433
    %v5446 = vadd.f32 %v5369, %v5438
    %v5447 = vadd.f32 %v5370, %v5441
    %v5448 = vpack.c.bf16 %v4997, %v4994
    %v5449 = vpack.c.bf16 %v5005, %v5002
    %v5450 = vld [vmem:[%s5 + $0x50] sm:$0xf]
    %v5451 = vld [vmem:[%s5 + $0x54] sm:$0xf]
    %v5452 = vld [vmem:[%s5 + $0x58] sm:$0xf]
    %v5453 = vld [vmem:[%s5 + $0x5c] sm:$0xf]
    %v5458 = vunpack.c.l.b16 %v5450
    %v5459 = vunpack.c.l.b16 %v5451
    %v5460 = vunpack.c.l.b16 %v5452
    %v5461 = vunpack.c.l.b16 %v5453
    %v5462 = vpack.c.b16 %v5459, %v5458
    %v5463 = vpack.c.b16 %v5461, %v5460
    %v5467 = vsel %vm5074, %v5448, 0
    %v5470 = vsel %vm5074, %v5449, 0
    %5472 = vmatprep.subr.bf16.mxu0 0
    %5473 = vmatpush1.bf16.msra.mxu0 %v5462
    %5474 = vmatprep.subr.bf16.mxu0 0
    %5475 = vmatpush1.bf16.msra.mxu0 %v5463
    %5476 = vmatprep.subr.bf16.mxu0 0
    %5477 = vmatpush1.bf16.msra.mxu0 0
    %5478 = vmatprep.subr.bf16.mxu0 0
    %5479 = vmatpush1.bf16.msra.mxu0 0
    %5480 = vmatprep.subr.bf16.mxu0 0
    %5481 = vmatpush1.bf16.msra.mxu0 0
    %5482 = vmatprep.subr.bf16.mxu0 0
    %5483 = vmatpush1.bf16.msra.mxu0 0
    %5484 = vmatprep.subr.bf16.mxu0 0
    %5485 = vmatpush1.bf16.msra.mxu0 0
    %5486 = vmatprep.subr.bf16.mxu0 0
    %5487 = vmatpush1.bf16.msra.mxu0 0
    %5488 = vmatprep.subr.bf16.mxu0 0
    %5489 = vmatpush1.bf16.msra.mxu0 0
    %5490 = vmatprep.subr.bf16.mxu0 0
    %5491 = vmatpush1.bf16.msra.mxu0 0
    %5492 = vmatprep.subr.bf16.mxu0 0
    %5493 = vmatpush1.bf16.msra.mxu0 0
    %5494 = vmatprep.subr.bf16.mxu0 0
    %5495 = vmatpush1.bf16.msra.mxu0 0
    %5496 = vmatprep.subr.bf16.mxu0 0
    %5497 = vmatpush1.bf16.msra.mxu0 0
    %5498 = vmatprep.subr.bf16.mxu0 0
    %5499 = vmatpush1.bf16.msra.mxu0 0
    %5500 = vmatprep.subr.bf16.mxu0 0
    %5501 = vmatpush1.bf16.msra.mxu0 0
    %5502 = vmatprep.subr.bf16.mxu0 0
    %5503 = vmatpush1.bf16.msra.mxu0 0
    %5504 = vmatprep.mubr.bf16.mxu0 0
    %5505 = vmatmul.mubr.bf16.gmra.mrb[0].mxu0 %v5467
    %v5506 = vpop.f32.mrb[0].mxu0
    %v5507 = vadd.f32 0.0, %v5506
    %v5508 = vpop.f32.mrb[0].mxu0
    %v5509 = vpop.f32.mrb[0].mxu0
    %v5510 = vadd.f32 0.0, %v5509
    %v5511 = vpop.f32.mrb[0].mxu0
    %5512 = vmatprep.mubr.bf16.mxu0 0
    %5513 = vmatmul.mubr.bf16.gmra.mrb[0].mxu0 %v5470
    %v5514 = vpop.f32.mrb[0].mxu0
    %v5515 = vadd.f32 0.0, %v5514
    %v5516 = vpop.f32.mrb[0].mxu0
    %v5517 = vpop.f32.mrb[0].mxu0
    %v5518 = vadd.f32 0.0, %v5517
    %v5519 = vpop.f32.mrb[0].mxu0
    %5520 = vdwg.mxu0
    %v5521 = vadd.f32 %v5444, %v5507
    %v5522 = vadd.f32 %v5445, %v5510
    %v5523 = vadd.f32 %v5446, %v5515
    %v5524 = vadd.f32 %v5447, %v5518
    %v5525 = vpack.c.bf16 %v5013, %v5010
    %v5526 = vpack.c.bf16 %v5021, %v5018
    %v5527 = vld [vmem:[%s5 + $0x60] sm:$0xf]
    %v5528 = vld [vmem:[%s5 + $0x64] sm:$0xf]
    %v5529 = vld [vmem:[%s5 + $0x68] sm:$0xf]
    %v5530 = vld [vmem:[%s5 + $0x6c] sm:$0xf]
    %v5535 = vunpack.c.l.b16 %v5527
    %v5536 = vunpack.c.l.b16 %v5528
    %v5537 = vunpack.c.l.b16 %v5529
    %v5538 = vunpack.c.l.b16 %v5530
    %v5539 = vpack.c.b16 %v5536, %v5535
    %v5540 = vpack.c.b16 %v5538, %v5537
    %v5544 = vsel %vm5074, %v5525, 0
    %v5547 = vsel %vm5074, %v5526, 0
    %5549 = vmatprep.subr.bf16.mxu0 0
    %5550 = vmatpush1.bf16.msra.mxu0 %v5539
    %5551 = vmatprep.subr.bf16.mxu0 0
    %5552 = vmatpush1.bf16.msra.mxu0 %v5540
    %5553 = vmatprep.subr.bf16.mxu0 0
    %5554 = vmatpush1.bf16.msra.mxu0 0
    %5555 = vmatprep.subr.bf16.mxu0 0
    %5556 = vmatpush1.bf16.msra.mxu0 0
    %5557 = vmatprep.subr.bf16.mxu0 0
    %5558 = vmatpush1.bf16.msra.mxu0 0
    %5559 = vmatprep.subr.bf16.mxu0 0
    %5560 = vmatpush1.bf16.msra.mxu0 0
    %5561 = vmatprep.subr.bf16.mxu0 0
    %5562 = vmatpush1.bf16.msra.mxu0 0
    %5563 = vmatprep.subr.bf16.mxu0 0
    %5564 = vmatpush1.bf16.msra.mxu0 0
    %5565 = vmatprep.subr.bf16.mxu0 0
    %5566 = vmatpush1.bf16.msra.mxu0 0
    %5567 = vmatprep.subr.bf16.mxu0 0
    %5568 = vmatpush1.bf16.msra.mxu0 0
    %5569 = vmatprep.subr.bf16.mxu0 0
    %5570 = vmatpush1.bf16.msra.mxu0 0
    %5571 = vmatprep.subr.bf16.mxu0 0
    %5572 = vmatpush1.bf16.msra.mxu0 0
    %5573 = vmatprep.subr.bf16.mxu0 0
    %5574 = vmatpush1.bf16.msra.mxu0 0
    %5575 = vmatprep.subr.bf16.mxu0 0
    %5576 = vmatpush1.bf16.msra.mxu0 0
    %5577 = vmatprep.subr.bf16.mxu0 0
    %5578 = vmatpush1.bf16.msra.mxu0 0
    %5579 = vmatprep.subr.bf16.mxu0 0
    %5580 = vmatpush1.bf16.msra.mxu0 0
    %5581 = vmatprep.mubr.bf16.mxu0 0
    %5582 = vmatmul.mubr.bf16.gmra.mrb[0].mxu0 %v5544
    %v5583 = vpop.f32.mrb[0].mxu0
    %v5584 = vadd.f32 0.0, %v5583
    %v5585 = vpop.f32.mrb[0].mxu0
    %v5586 = vpop.f32.mrb[0].mxu0
    %v5587 = vadd.f32 0.0, %v5586
    %v5588 = vpop.f32.mrb[0].mxu0
    %5589 = vmatprep.mubr.bf16.mxu0 0
    %5590 = vmatmul.mubr.bf16.gmra.mrb[0].mxu0 %v5547
    %v5591 = vpop.f32.mrb[0].mxu0
    %v5592 = vadd.f32 0.0, %v5591
    %v5593 = vpop.f32.mrb[0].mxu0
    %v5594 = vpop.f32.mrb[0].mxu0
    %v5595 = vadd.f32 0.0, %v5594
    %v5596 = vpop.f32.mrb[0].mxu0
    %5597 = vdwg.mxu0
    %v5598 = vadd.f32 %v5521, %v5584
    %v5599 = vadd.f32 %v5522, %v5587
    %v5600 = vadd.f32 %v5523, %v5592
    %v5601 = vadd.f32 %v5524, %v5595
    %v5602 = vpack.c.bf16 %v5029, %v5026
    %v5603 = vpack.c.bf16 %v5037, %v5034
    %v5604 = vld [vmem:[%s5 + $0x70] sm:$0xf]
    %v5605 = vld [vmem:[%s5 + $0x74] sm:$0xf]
    %v5606 = vld [vmem:[%s5 + $0x78] sm:$0xf]
    %v5607 = vld [vmem:[%s5 + $0x7c] sm:$0xf]
    %v5612 = vunpack.c.l.b16 %v5604
    %v5613 = vunpack.c.l.b16 %v5605
    %v5614 = vunpack.c.l.b16 %v5606
    %v5615 = vunpack.c.l.b16 %v5607
    %v5616 = vpack.c.b16 %v5613, %v5612
    %v5617 = vpack.c.b16 %v5615, %v5614
    %v5621 = vsel %vm5074, %v5602, 0
    %v5624 = vsel %vm5074, %v5603, 0
    %5626 = vmatprep.subr.bf16.mxu0 0
    %5627 = vmatpush1.bf16.msra.mxu0 %v5616
    %5628 = vmatprep.subr.bf16.mxu0 0
    %5629 = vmatpush1.bf16.msra.mxu0 %v5617
    %5630 = vmatprep.subr.bf16.mxu0 0
    %5631 = vmatpush1.bf16.msra.mxu0 0
    %5632 = vmatprep.subr.bf16.mxu0 0
    %5633 = vmatpush1.bf16.msra.mxu0 0
    %5634 = vmatprep.subr.bf16.mxu0 0
    %5635 = vmatpush1.bf16.msra.mxu0 0
    %5636 = vmatprep.subr.bf16.mxu0 0
    %5637 = vmatpush1.bf16.msra.mxu0 0
    %5638 = vmatprep.subr.bf16.mxu0 0
    %5639 = vmatpush1.bf16.msra.mxu0 0
    %5640 = vmatprep.subr.bf16.mxu0 0
    %5641 = vmatpush1.bf16.msra.mxu0 0
    %5642 = vmatprep.subr.bf16.mxu0 0
    %5643 = vmatpush1.bf16.msra.mxu0 0
    %5644 = vmatprep.subr.bf16.mxu0 0
    %5645 = vmatpush1.bf16.msra.mxu0 0
    %5646 = vmatprep.subr.bf16.mxu0 0
    %5647 = vmatpush1.bf16.msra.mxu0 0
    %5648 = vmatprep.subr.bf16.mxu0 0
    %5649 = vmatpush1.bf16.msra.mxu0 0
    %5650 = vmatprep.subr.bf16.mxu0 0
    %5651 = vmatpush1.bf16.msra.mxu0 0
    %5652 = vmatprep.subr.bf16.mxu0 0
    %5653 = vmatpush1.bf16.msra.mxu0 0
    %5654 = vmatprep.subr.bf16.mxu0 0
    %5655 = vmatpush1.bf16.msra.mxu0 0
    %5656 = vmatprep.subr.bf16.mxu0 0
    %5657 = vmatpush1.bf16.msra.mxu0 0
    %5658 = vmatprep.mubr.bf16.mxu0 0
    %5659 = vmatmul.mubr.bf16.gmra.mrb[0].mxu0 %v5621
    %v5660 = vpop.f32.mrb[0].mxu0
    %v5661 = vadd.f32 0.0, %v5660
    %v5662 = vpop.f32.mrb[0].mxu0
    %v5663 = vpop.f32.mrb[0].mxu0
    %v5664 = vadd.f32 0.0, %v5663
    %v5665 = vpop.f32.mrb[0].mxu0
    %5666 = vmatprep.mubr.bf16.mxu0 0
    %5667 = vmatmul.mubr.bf16.gmra.mrb[0].mxu0 %v5624
    %v5668 = vpop.f32.mrb[0].mxu0
    %v5669 = vadd.f32 0.0, %v5668
    %v5670 = vpop.f32.mrb[0].mxu0
    %v5671 = vpop.f32.mrb[0].mxu0
    %v5672 = vadd.f32 0.0, %v5671
    %v5673 = vpop.f32.mrb[0].mxu0
    %5674 = vdwg.mxu0
    %v5675 = vadd.f32 %v5598, %v5661
    %v5676 = vadd.f32 %v5599, %v5664
    %v5677 = vadd.f32 %v5600, %v5669
    %v5678 = vadd.f32 %v5601, %v5672
    %v5679 = vpack.c.bf16 %v5045, %v5042
    %v5680 = vpack.c.bf16 %v5053, %v5050
    %v5681 = vld [vmem:[%s5 + $0x80] sm:$0xf]
    %v5682 = vld [vmem:[%s5 + $0x84] sm:$0xf]
    %v5683 = vld [vmem:[%s5 + $0x88] sm:$0xf]
    %v5684 = vld [vmem:[%s5 + $0x8c] sm:$0xf]
    %v5689 = vunpack.c.l.b16 %v5681
    %v5690 = vunpack.c.l.b16 %v5682
    %v5691 = vunpack.c.l.b16 %v5683
    %v5692 = vunpack.c.l.b16 %v5684
    %v5693 = vpack.c.b16 %v5690, %v5689
    %v5694 = vpack.c.b16 %v5692, %v5691
    %v5698 = vsel %vm5074, %v5679, 0
    %v5701 = vsel %vm5074, %v5680, 0
    %5703 = vmatprep.subr.bf16.mxu0 0
    %5704 = vmatpush1.bf16.msra.mxu0 %v5693
    %5705 = vmatprep.subr.bf16.mxu0 0
    %5706 = vmatpush1.bf16.msra.mxu0 %v5694
    %5707 = vmatprep.subr.bf16.mxu0 0
    %5708 = vmatpush1.bf16.msra.mxu0 0
    %5709 = vmatprep.subr.bf16.mxu0 0
    %5710 = vmatpush1.bf16.msra.mxu0 0
    %5711 = vmatprep.subr.bf16.mxu0 0
    %5712 = vmatpush1.bf16.msra.mxu0 0
    %5713 = vmatprep.subr.bf16.mxu0 0
    %5714 = vmatpush1.bf16.msra.mxu0 0
    %5715 = vmatprep.subr.bf16.mxu0 0
    %5716 = vmatpush1.bf16.msra.mxu0 0
    %5717 = vmatprep.subr.bf16.mxu0 0
    %5718 = vmatpush1.bf16.msra.mxu0 0
    %5719 = vmatprep.subr.bf16.mxu0 0
    %5720 = vmatpush1.bf16.msra.mxu0 0
    %5721 = vmatprep.subr.bf16.mxu0 0
    %5722 = vmatpush1.bf16.msra.mxu0 0
    %5723 = vmatprep.subr.bf16.mxu0 0
    %5724 = vmatpush1.bf16.msra.mxu0 0
    %5725 = vmatprep.subr.bf16.mxu0 0
    %5726 = vmatpush1.bf16.msra.mxu0 0
    %5727 = vmatprep.subr.bf16.mxu0 0
    %5728 = vmatpush1.bf16.msra.mxu0 0
    %5729 = vmatprep.subr.bf16.mxu0 0
    %5730 = vmatpush1.bf16.msra.mxu0 0
    %5731 = vmatprep.subr.bf16.mxu0 0
    %5732 = vmatpush1.bf16.msra.mxu0 0
    %5733 = vmatprep.subr.bf16.mxu0 0
    %5734 = vmatpush1.bf16.msra.mxu0 0
    %5735 = vmatprep.mubr.bf16.mxu0 0
    %5736 = vmatmul.mubr.bf16.gmra.mrb[0].mxu0 %v5698
    %v5737 = vpop.f32.mrb[0].mxu0
    %v5738 = vadd.f32 0.0, %v5737
    %v5739 = vpop.f32.mrb[0].mxu0
    %v5740 = vpop.f32.mrb[0].mxu0
    %v5741 = vadd.f32 0.0, %v5740
    %v5742 = vpop.f32.mrb[0].mxu0
    %5743 = vmatprep.mubr.bf16.mxu0 0
    %5744 = vmatmul.mubr.bf16.gmra.mrb[0].mxu0 %v5701
    %v5745 = vpop.f32.mrb[0].mxu0
    %v5746 = vadd.f32 0.0, %v5745
    %v5747 = vpop.f32.mrb[0].mxu0
    %v5748 = vpop.f32.mrb[0].mxu0
    %v5749 = vadd.f32 0.0, %v5748
    %v5750 = vpop.f32.mrb[0].mxu0
    %5751 = vdwg.mxu0
    %v5752 = vadd.f32 %v5675, %v5738
    %v5753 = vadd.f32 %v5676, %v5741
    %v5754 = vadd.f32 %v5677, %v5746
    %v5755 = vadd.f32 %v5678, %v5749
    %v5756 = vmax.f32 %v5752, 0.0
    %v5757 = vmax.f32 %v5753, 0.0
    %v5758 = vmax.f32 %v5754, 0.0
    %v5759 = vmax.f32 %v5755, 0.0
    %v5760 = vpack.c.bf16 %v5757, %v5756
    %v5761 = vpack.c.bf16 %v5759, %v5758
    %v5762 = vld [vmem:[%s9] sm:$0x1]
    %v5763 = vld [vmem:[%s7] sm:$0xf]
    %v5764 = vld [vmem:[%s7 + $0x4] sm:$0xf]
    %v5765 = vld [vmem:[%s7 + $0x8] sm:$0xf]
    %v5766 = vld [vmem:[%s7 + $0xc] sm:$0xf]
    %v5767 = vld [vmem:[%s7 + $0x10] sm:$0xf]
    %v5768 = vld [vmem:[%s7 + $0x14] sm:$0xf]
    %v5769 = vld [vmem:[%s7 + $0x18] sm:$0xf]
    %v5770 = vld [vmem:[%s7 + $0x1c] sm:$0xf]
    %v5771 = vld [vmem:[%s7 + $0x20] sm:$0xf]
    %v5781 = vunpack.c.l.b16 %v5763
    %v5782 = vunpack.c.l.b16 %v5764
    %v5783 = vunpack.c.l.b16 %v5765
    %v5784 = vunpack.c.l.b16 %v5766
    %v5785 = vunpack.c.l.b16 %v5767
    %v5786 = vunpack.c.l.b16 %v5768
    %v5787 = vunpack.c.l.b16 %v5769
    %v5788 = vunpack.c.l.b16 %v5770
    %v5789 = vunpack.c.l.b16 %v5771
    %v5790 = vpack.c.b16 %v5782, %v5781
    %v5791 = vpack.c.b16 %v5784, %v5783
    %v5792 = vpack.c.b16 %v5786, %v5785
    %v5793 = vpack.c.b16 %v5788, %v5787
    %v5794 = vpack.c.b16 %v5789, %v5789
    %v5796 = vsel %vm5074, %v5790, 0
    %v5799 = vsel %vm5074, %v5791, 0
    %v5802 = vsel %vm5074, %v5792, 0
    %v5805 = vsel %vm5074, %v5793, 0
    %v5808 = vsel %vm5074, %v5794, 0
    %5810 = vmatprep.subr.bf16.mxu0 0
    %5811 = vmatpush1.bf16.msra.mxu0 %v5760
    %5812 = vmatprep.subr.bf16.mxu0 0
    %5813 = vmatpush1.bf16.msra.mxu0 %v5761
    %5814 = vmatprep.subr.bf16.mxu0 0
    %5815 = vmatpush1.bf16.msra.mxu0 0
    %5816 = vmatprep.subr.bf16.mxu0 0
    %5817 = vmatpush1.bf16.msra.mxu0 0
    %5818 = vmatprep.subr.bf16.mxu0 0
    %5819 = vmatpush1.bf16.msra.mxu0 0
    %5820 = vmatprep.subr.bf16.mxu0 0
    %5821 = vmatpush1.bf16.msra.mxu0 0
    %5822 = vmatprep.subr.bf16.mxu0 0
    %5823 = vmatpush1.bf16.msra.mxu0 0
    %5824 = vmatprep.subr.bf16.mxu0 0
    %5825 = vmatpush1.bf16.msra.mxu0 0
    %5826 = vmatprep.subr.bf16.mxu0 0
    %5827 = vmatpush1.bf16.msra.mxu0 0
    %5828 = vmatprep.subr.bf16.mxu0 0
    %5829 = vmatpush1.bf16.msra.mxu0 0
    %5830 = vmatprep.subr.bf16.mxu0 0
    %5831 = vmatpush1.bf16.msra.mxu0 0
    %5832 = vmatprep.subr.bf16.mxu0 0
    %5833 = vmatpush1.bf16.msra.mxu0 0
    %5834 = vmatprep.subr.bf16.mxu0 0
    %5835 = vmatpush1.bf16.msra.mxu0 0
    %5836 = vmatprep.subr.bf16.mxu0 0
    %5837 = vmatpush1.bf16.msra.mxu0 0
    %5838 = vmatprep.subr.bf16.mxu0 0
    %5839 = vmatpush1.bf16.msra.mxu0 0
    %5840 = vmatprep.subr.bf16.mxu0 0
    %5841 = vmatpush1.bf16.msra.mxu0 0
    %5842 = vmatprep.mubr.bf16.mxu0 0
    %5843 = vmatmul.mubr.bf16.gmra.mrb[0].mxu0 %v5796
    %v5844 = vpop.f32.mrb[0].mxu0
    %v5845 = vadd.f32 0.0, %v5844
    %v5846 = vpop.f32.mrb[0].mxu0
    %v5847 = vpop.f32.mrb[0].mxu0
    %v5848 = vadd.f32 0.0, %v5847
    %v5849 = vpop.f32.mrb[0].mxu0
    %5850 = vmatprep.mubr.bf16.mxu0 0
    %5851 = vmatmul.mubr.bf16.gmra.mrb[0].mxu0 %v5799
    %v5852 = vpop.f32.mrb[0].mxu0
    %v5853 = vadd.f32 0.0, %v5852
    %v5854 = vpop.f32.mrb[0].mxu0
    %v5855 = vpop.f32.mrb[0].mxu0
    %v5856 = vadd.f32 0.0, %v5855
    %v5857 = vpop.f32.mrb[0].mxu0
    %5858 = vmatprep.mubr.bf16.mxu0 0
    %5859 = vmatmul.mubr.bf16.gmra.mrb[0].mxu0 %v5802
    %v5860 = vpop.f32.mrb[0].mxu0
    %v5861 = vadd.f32 0.0, %v5860
    %v5862 = vpop.f32.mrb[0].mxu0
    %v5863 = vpop.f32.mrb[0].mxu0
    %v5864 = vadd.f32 0.0, %v5863
    %v5865 = vpop.f32.mrb[0].mxu0
    %5866 = vmatprep.mubr.bf16.mxu0 0
    %5867 = vmatmul.mubr.bf16.gmra.mrb[0].mxu0 %v5805
    %v5868 = vpop.f32.mrb[0].mxu0
    %v5869 = vadd.f32 0.0, %v5868
    %v5870 = vpop.f32.mrb[0].mxu0
    %v5871 = vpop.f32.mrb[0].mxu0
    %v5872 = vadd.f32 0.0, %v5871
    %v5873 = vpop.f32.mrb[0].mxu0
    %5874 = vmatprep.mubr.bf16.mxu0 0
    %5875 = vmatmul.mubr.bf16.gmra.mrb[0].mxu0 %v5808
    %v5876 = vpop.f32.mrb[0].mxu0
    %v5877 = vadd.f32 0.0, %v5876
    %v5878 = vpop.f32.mrb[0].mxu0
    %v5879 = vpop.f32.mrb[0].mxu0
    %v5880 = vpop.f32.mrb[0].mxu0
    %5881 = vdwg.mxu0
    %v5882 = vpack.c.bf16 %v5845, %v5845
    %v5883 = vld [vmem:[%s8] sm:$0xf]
    %v5884 = vld [vmem:[%s8 + $0x4] sm:$0xf]
    %v5885 = vld [vmem:[%s8 + $0x8] sm:$0xf]
    %v5886 = vld [vmem:[%s8 + $0xc] sm:$0xf]
    %v5887 = vld [vmem:[%s8 + $0x10] sm:$0xf]
    %v5888 = vld [vmem:[%s8 + $0x14] sm:$0xf]
    %v5889 = vld [vmem:[%s8 + $0x18] sm:$0xf]
    %v5890 = vld [vmem:[%s8 + $0x1c] sm:$0xf]
    %v5899 = vunpack.c.l.b16 %v5883
    %v5900 = vunpack.c.l.b16 %v5884
    %v5901 = vunpack.c.l.b16 %v5885
    %v5902 = vunpack.c.l.b16 %v5886
    %v5903 = vunpack.c.l.b16 %v5887
    %v5904 = vunpack.c.l.b16 %v5888
    %v5905 = vunpack.c.l.b16 %v5889
    %v5906 = vunpack.c.l.b16 %v5890
    %v5907 = vpack.c.b16 %v5900, %v5899
    %v5908 = vpack.c.b16 %v5902, %v5901
    %v5909 = vpack.c.b16 %v5904, %v5903
    %v5910 = vpack.c.b16 %v5906, %v5905
    %vm5915 = vcmask 523264
    %v5917 = vsel %vm5915, %v5882, 0
    %5919 = vmatprep.subr.bf16.mxu0 0
    %5920 = vmatpush1.bf16.msra.mxu0 %v5907
    %5921 = vmatprep.subr.bf16.mxu0 0
    %5922 = vmatpush1.bf16.msra.mxu0 %v5908
    %5923 = vmatprep.subr.bf16.mxu0 0
    %5924 = vmatpush1.bf16.msra.mxu0 %v5909
    %5925 = vmatprep.subr.bf16.mxu0 0
    %5926 = vmatpush1.bf16.msra.mxu0 %v5910
    %5927 = vmatprep.subr.bf16.mxu0 0
    %5928 = vmatpush1.bf16.msra.mxu0 0
    %5929 = vmatprep.subr.bf16.mxu0 0
    %5930 = vmatpush1.bf16.msra.mxu0 0
    %5931 = vmatprep.subr.bf16.mxu0 0
    %5932 = vmatpush1.bf16.msra.mxu0 0
    %5933 = vmatprep.subr.bf16.mxu0 0
    %5934 = vmatpush1.bf16.msra.mxu0 0
    %5935 = vmatprep.subr.bf16.mxu0 0
    %5936 = vmatpush1.bf16.msra.mxu0 0
    %5937 = vmatprep.subr.bf16.mxu0 0
    %5938 = vmatpush1.bf16.msra.mxu0 0
    %5939 = vmatprep.subr.bf16.mxu0 0
    %5940 = vmatpush1.bf16.msra.mxu0 0
    %5941 = vmatprep.subr.bf16.mxu0 0
    %5942 = vmatpush1.bf16.msra.mxu0 0
    %5943 = vmatprep.subr.bf16.mxu0 0
    %5944 = vmatpush1.bf16.msra.mxu0 0
    %5945 = vmatprep.subr.bf16.mxu0 0
    %5946 = vmatpush1.bf16.msra.mxu0 0
    %5947 = vmatprep.subr.bf16.mxu0 0
    %5948 = vmatpush1.bf16.msra.mxu0 0
    %5949 = vmatprep.subr.bf16.mxu0 0
    %5950 = vmatpush1.bf16.msra.mxu0 0
    %5951 = vmatprep.mubr.bf16.mxu0 0
    %5952 = vmatmul.mubr.bf16.gmra.mrb[0].mxu0 %v5917
    %v5953 = vpop.f32.mrb[0].mxu0
    %v5954 = vadd.f32 0.0, %v5953
    %v5955 = vpop.f32.mrb[0].mxu0
    %v5956 = vpop.f32.mrb[0].mxu0
    %v5957 = vpop.f32.mrb[0].mxu0
    %5958 = vdwg.mxu0
    %v5960 = vlaneseq
    %v5961 = vshrl.u32 %v5960, 7
    %v5962 = vsub.s32 0, %v5961
    %v5963 = vrot.slane %v5762, %v5962
    %v5965 = vadd.f32 %v5963, %v5954
    %v5966 = vpack.c.bf16 %v5848, %v5848
    %v5967 = vld [vmem:[%s8 + $0x20] sm:$0xf]
    %v5968 = vld [vmem:[%s8 + $0x24] sm:$0xf]
    %v5969 = vld [vmem:[%s8 + $0x28] sm:$0xf]
    %v5970 = vld [vmem:[%s8 + $0x2c] sm:$0xf]
    %v5971 = vld [vmem:[%s8 + $0x30] sm:$0xf]
    %v5972 = vld [vmem:[%s8 + $0x34] sm:$0xf]
    %v5973 = vld [vmem:[%s8 + $0x38] sm:$0xf]
    %v5974 = vld [vmem:[%s8 + $0x3c] sm:$0xf]
    %v5983 = vunpack.c.l.b16 %v5967
    %v5984 = vunpack.c.l.b16 %v5968
    %v5985 = vunpack.c.l.b16 %v5969
    %v5986 = vunpack.c.l.b16 %v5970
    %v5987 = vunpack.c.l.b16 %v5971
    %v5988 = vunpack.c.l.b16 %v5972
    %v5989 = vunpack.c.l.b16 %v5973
    %v5990 = vunpack.c.l.b16 %v5974
    %v5991 = vpack.c.b16 %v5984, %v5983
    %v5992 = vpack.c.b16 %v5986, %v5985
    %v5993 = vpack.c.b16 %v5988, %v5987
    %v5994 = vpack.c.b16 %v5990, %v5989
    %v6000 = vsel %vm5915, %v5966, 0
    %6002 = vmatprep.subr.bf16.mxu0 0
    %6003 = vmatpush1.bf16.msra.mxu0 %v5991
    %6004 = vmatprep.subr.bf16.mxu0 0
    %6005 = vmatpush1.bf16.msra.mxu0 %v5992
    %6006 = vmatprep.subr.bf16.mxu0 0
    %6007 = vmatpush1.bf16.msra.mxu0 %v5993
    %6008 = vmatprep.subr.bf16.mxu0 0
    %6009 = vmatpush1.bf16.msra.mxu0 %v5994
    %6010 = vmatprep.subr.bf16.mxu0 0
    %6011 = vmatpush1.bf16.msra.mxu0 0
    %6012 = vmatprep.subr.bf16.mxu0 0
    %6013 = vmatpush1.bf16.msra.mxu0 0
    %6014 = vmatprep.subr.bf16.mxu0 0
    %6015 = vmatpush1.bf16.msra.mxu0 0
    %6016 = vmatprep.subr.bf16.mxu0 0
    %6017 = vmatpush1.bf16.msra.mxu0 0
    %6018 = vmatprep.subr.bf16.mxu0 0
    %6019 = vmatpush1.bf16.msra.mxu0 0
    %6020 = vmatprep.subr.bf16.mxu0 0
    %6021 = vmatpush1.bf16.msra.mxu0 0
    %6022 = vmatprep.subr.bf16.mxu0 0
    %6023 = vmatpush1.bf16.msra.mxu0 0
    %6024 = vmatprep.subr.bf16.mxu0 0
    %6025 = vmatpush1.bf16.msra.mxu0 0
    %6026 = vmatprep.subr.bf16.mxu0 0
    %6027 = vmatpush1.bf16.msra.mxu0 0
    %6028 = vmatprep.subr.bf16.mxu0 0
    %6029 = vmatpush1.bf16.msra.mxu0 0
    %6030 = vmatprep.subr.bf16.mxu0 0
    %6031 = vmatpush1.bf16.msra.mxu0 0
    %6032 = vmatprep.subr.bf16.mxu0 0
    %6033 = vmatpush1.bf16.msra.mxu0 0
    %6034 = vmatprep.mubr.bf16.mxu0 0
    %6035 = vmatmul.mubr.bf16.gmra.mrb[0].mxu0 %v6000
    %v6036 = vpop.f32.mrb[0].mxu0
    %v6037 = vadd.f32 0.0, %v6036
    %v6038 = vpop.f32.mrb[0].mxu0
    %v6039 = vpop.f32.mrb[0].mxu0
    %v6040 = vpop.f32.mrb[0].mxu0
    %6041 = vdwg.mxu0
    %v6042 = vadd.f32 %v5965, %v6037
    %v6043 = vpack.c.bf16 %v5853, %v5853
    %v6044 = vld [vmem:[%s8 + $0x40] sm:$0xf]
    %v6045 = vld [vmem:[%s8 + $0x44] sm:$0xf]
    %v6046 = vld [vmem:[%s8 + $0x48] sm:$0xf]
    %v6047 = vld [vmem:[%s8 + $0x4c] sm:$0xf]
    %v6048 = vld [vmem:[%s8 + $0x50] sm:$0xf]
    %v6049 = vld [vmem:[%s8 + $0x54] sm:$0xf]
    %v6050 = vld [vmem:[%s8 + $0x58] sm:$0xf]
    %v6051 = vld [vmem:[%s8 + $0x5c] sm:$0xf]
    %v6060 = vunpack.c.l.b16 %v6044
    %v6061 = vunpack.c.l.b16 %v6045
    %v6062 = vunpack.c.l.b16 %v6046
    %v6063 = vunpack.c.l.b16 %v6047
    %v6064 = vunpack.c.l.b16 %v6048
    %v6065 = vunpack.c.l.b16 %v6049
    %v6066 = vunpack.c.l.b16 %v6050
    %v6067 = vunpack.c.l.b16 %v6051
    %v6068 = vpack.c.b16 %v6061, %v6060
    %v6069 = vpack.c.b16 %v6063, %v6062
    %v6070 = vpack.c.b16 %v6065, %v6064
    %v6071 = vpack.c.b16 %v6067, %v6066
    %v6077 = vsel %vm5915, %v6043, 0
    %6079 = vmatprep.subr.bf16.mxu0 0
    %6080 = vmatpush1.bf16.msra.mxu0 %v6068
    %6081 = vmatprep.subr.bf16.mxu0 0
    %6082 = vmatpush1.bf16.msra.mxu0 %v6069
    %6083 = vmatprep.subr.bf16.mxu0 0
    %6084 = vmatpush1.bf16.msra.mxu0 %v6070
    %6085 = vmatprep.subr.bf16.mxu0 0
    %6086 = vmatpush1.bf16.msra.mxu0 %v6071
    %6087 = vmatprep.subr.bf16.mxu0 0
    %6088 = vmatpush1.bf16.msra.mxu0 0
    %6089 = vmatprep.subr.bf16.mxu0 0
    %6090 = vmatpush1.bf16.msra.mxu0 0
    %6091 = vmatprep.subr.bf16.mxu0 0
    %6092 = vmatpush1.bf16.msra.mxu0 0
    %6093 = vmatprep.subr.bf16.mxu0 0
    %6094 = vmatpush1.bf16.msra.mxu0 0
    %6095 = vmatprep.subr.bf16.mxu0 0
    %6096 = vmatpush1.bf16.msra.mxu0 0
    %6097 = vmatprep.subr.bf16.mxu0 0
    %6098 = vmatpush1.bf16.msra.mxu0 0
    %6099 = vmatprep.subr.bf16.mxu0 0
    %6100 = vmatpush1.bf16.msra.mxu0 0
    %6101 = vmatprep.subr.bf16.mxu0 0
    %6102 = vmatpush1.bf16.msra.mxu0 0
    %6103 = vmatprep.subr.bf16.mxu0 0
    %6104 = vmatpush1.bf16.msra.mxu0 0
    %6105 = vmatprep.subr.bf16.mxu0 0
    %6106 = vmatpush1.bf16.msra.mxu0 0
    %6107 = vmatprep.subr.bf16.mxu0 0
    %6108 = vmatpush1.bf16.msra.mxu0 0
    %6109 = vmatprep.subr.bf16.mxu0 0
    %6110 = vmatpush1.bf16.msra.mxu0 0
    %6111 = vmatprep.mubr.bf16.mxu0 0
    %6112 = vmatmul.mubr.bf16.gmra.mrb[0].mxu0 %v6077
    %v6113 = vpop.f32.mrb[0].mxu0
    %v6114 = vadd.f32 0.0, %v6113
    %v6115 = vpop.f32.mrb[0].mxu0
    %v6116 = vpop.f32.mrb[0].mxu0
    %v6117 = vpop.f32.mrb[0].mxu0
    %6118 = vdwg.mxu0
    %v6119 = vadd.f32 %v6042, %v6114
    %v6120 = vpack.c.bf16 %v5856, %v5856
    %v6121 = vld [vmem:[%s8 + $0x60] sm:$0xf]
    %v6122 = vld [vmem:[%s8 + $0x64] sm:$0xf]
    %v6123 = vld [vmem:[%s8 + $0x68] sm:$0xf]
    %v6124 = vld [vmem:[%s8 + $0x6c] sm:$0xf]
    %v6125 = vld [vmem:[%s8 + $0x70] sm:$0xf]
    %v6126 = vld [vmem:[%s8 + $0x74] sm:$0xf]
    %v6127 = vld [vmem:[%s8 + $0x78] sm:$0xf]
    %v6128 = vld [vmem:[%s8 + $0x7c] sm:$0xf]
    %v6137 = vunpack.c.l.b16 %v6121
    %v6138 = vunpack.c.l.b16 %v6122
    %v6139 = vunpack.c.l.b16 %v6123
    %v6140 = vunpack.c.l.b16 %v6124
    %v6141 = vunpack.c.l.b16 %v6125
    %v6142 = vunpack.c.l.b16 %v6126
    %v6143 = vunpack.c.l.b16 %v6127
    %v6144 = vunpack.c.l.b16 %v6128
    %v6145 = vpack.c.b16 %v6138, %v6137
    %v6146 = vpack.c.b16 %v6140, %v6139
    %v6147 = vpack.c.b16 %v6142, %v6141
    %v6148 = vpack.c.b16 %v6144, %v6143
    %v6154 = vsel %vm5915, %v6120, 0
    %6156 = vmatprep.subr.bf16.mxu0 0
    %6157 = vmatpush1.bf16.msra.mxu0 %v6145
    %6158 = vmatprep.subr.bf16.mxu0 0
    %6159 = vmatpush1.bf16.msra.mxu0 %v6146
    %6160 = vmatprep.subr.bf16.mxu0 0
    %6161 = vmatpush1.bf16.msra.mxu0 %v6147
    %6162 = vmatprep.subr.bf16.mxu0 0
    %6163 = vmatpush1.bf16.msra.mxu0 %v6148
    %6164 = vmatprep.subr.bf16.mxu0 0
    %6165 = vmatpush1.bf16.msra.mxu0 0
    %6166 = vmatprep.subr.bf16.mxu0 0
    %6167 = vmatpush1.bf16.msra.mxu0 0
    %6168 = vmatprep.subr.bf16.mxu0 0
    %6169 = vmatpush1.bf16.msra.mxu0 0
    %6170 = vmatprep.subr.bf16.mxu0 0
    %6171 = vmatpush1.bf16.msra.mxu0 0
    %6172 = vmatprep.subr.bf16.mxu0 0
    %6173 = vmatpush1.bf16.msra.mxu0 0
    %6174 = vmatprep.subr.bf16.mxu0 0
    %6175 = vmatpush1.bf16.msra.mxu0 0
    %6176 = vmatprep.subr.bf16.mxu0 0
    %6177 = vmatpush1.bf16.msra.mxu0 0
    %6178 = vmatprep.subr.bf16.mxu0 0
    %6179 = vmatpush1.bf16.msra.mxu0 0
    %6180 = vmatprep.subr.bf16.mxu0 0
    %6181 = vmatpush1.bf16.msra.mxu0 0
    %6182 = vmatprep.subr.bf16.mxu0 0
    %6183 = vmatpush1.bf16.msra.mxu0 0
    %6184 = vmatprep.subr.bf16.mxu0 0
    %6185 = vmatpush1.bf16.msra.mxu0 0
    %6186 = vmatprep.subr.bf16.mxu0 0
    %6187 = vmatpush1.bf16.msra.mxu0 0
    %6188 = vmatprep.mubr.bf16.mxu0 0
    %6189 = vmatmul.mubr.bf16.gmra.mrb[0].mxu0 %v6154
    %v6190 = vpop.f32.mrb[0].mxu0
    %v6191 = vadd.f32 0.0, %v6190
    %v6192 = vpop.f32.mrb[0].mxu0
    %v6193 = vpop.f32.mrb[0].mxu0
    %v6194 = vpop.f32.mrb[0].mxu0
    %6195 = vdwg.mxu0
    %v6196 = vadd.f32 %v6119, %v6191
    %v6197 = vpack.c.bf16 %v5861, %v5861
    %v6198 = vld [vmem:[%s8 + $0x80] sm:$0xf]
    %v6199 = vld [vmem:[%s8 + $0x84] sm:$0xf]
    %v6200 = vld [vmem:[%s8 + $0x88] sm:$0xf]
    %v6201 = vld [vmem:[%s8 + $0x8c] sm:$0xf]
    %v6202 = vld [vmem:[%s8 + $0x90] sm:$0xf]
    %v6203 = vld [vmem:[%s8 + $0x94] sm:$0xf]
    %v6204 = vld [vmem:[%s8 + $0x98] sm:$0xf]
    %v6205 = vld [vmem:[%s8 + $0x9c] sm:$0xf]
    %v6214 = vunpack.c.l.b16 %v6198
    %v6215 = vunpack.c.l.b16 %v6199
    %v6216 = vunpack.c.l.b16 %v6200
    %v6217 = vunpack.c.l.b16 %v6201
    %v6218 = vunpack.c.l.b16 %v6202
    %v6219 = vunpack.c.l.b16 %v6203
    %v6220 = vunpack.c.l.b16 %v6204
    %v6221 = vunpack.c.l.b16 %v6205
    %v6222 = vpack.c.b16 %v6215, %v6214
    %v6223 = vpack.c.b16 %v6217, %v6216
    %v6224 = vpack.c.b16 %v6219, %v6218
    %v6225 = vpack.c.b16 %v6221, %v6220
    %v6231 = vsel %vm5915, %v6197, 0
    %6233 = vmatprep.subr.bf16.mxu0 0
    %6234 = vmatpush1.bf16.msra.mxu0 %v6222
    %6235 = vmatprep.subr.bf16.mxu0 0
    %6236 = vmatpush1.bf16.msra.mxu0 %v6223
    %6237 = vmatprep.subr.bf16.mxu0 0
    %6238 = vmatpush1.bf16.msra.mxu0 %v6224
    %6239 = vmatprep.subr.bf16.mxu0 0
    %6240 = vmatpush1.bf16.msra.mxu0 %v6225
    %6241 = vmatprep.subr.bf16.mxu0 0
    %6242 = vmatpush1.bf16.msra.mxu0 0
    %6243 = vmatprep.subr.bf16.mxu0 0
    %6244 = vmatpush1.bf16.msra.mxu0 0
    %6245 = vmatprep.subr.bf16.mxu0 0
    %6246 = vmatpush1.bf16.msra.mxu0 0
    %6247 = vmatprep.subr.bf16.mxu0 0
    %6248 = vmatpush1.bf16.msra.mxu0 0
    %6249 = vmatprep.subr.bf16.mxu0 0
    %6250 = vmatpush1.bf16.msra.mxu0 0
    %6251 = vmatprep.subr.bf16.mxu0 0
    %6252 = vmatpush1.bf16.msra.mxu0 0
    %6253 = vmatprep.subr.bf16.mxu0 0
    %6254 = vmatpush1.bf16.msra.mxu0 0
    %6255 = vmatprep.subr.bf16.mxu0 0
    %6256 = vmatpush1.bf16.msra.mxu0 0
    %6257 = vmatprep.subr.bf16.mxu0 0
    %6258 = vmatpush1.bf16.msra.mxu0 0
    %6259 = vmatprep.subr.bf16.mxu0 0
    %6260 = vmatpush1.bf16.msra.mxu0 0
    %6261 = vmatprep.subr.bf16.mxu0 0
    %6262 = vmatpush1.bf16.msra.mxu0 0
    %6263 = vmatprep.subr.bf16.mxu0 0
    %6264 = vmatpush1.bf16.msra.mxu0 0
    %6265 = vmatprep.mubr.bf16.mxu0 0
    %6266 = vmatmul.mubr.bf16.gmra.mrb[0].mxu0 %v6231
    %v6267 = vpop.f32.mrb[0].mxu0
    %v6268 = vadd.f32 0.0, %v6267
    %v6269 = vpop.f32.mrb[0].mxu0
    %v6270 = vpop.f32.mrb[0].mxu0
    %v6271 = vpop.f32.mrb[0].mxu0
    %6272 = vdwg.mxu0
    %v6273 = vadd.f32 %v6196, %v6268
    %v6274 = vpack.c.bf16 %v5864, %v5864
    %v6275 = vld [vmem:[%s8 + $0xa0] sm:$0xf]
    %v6276 = vld [vmem:[%s8 + $0xa4] sm:$0xf]
    %v6277 = vld [vmem:[%s8 + $0xa8] sm:$0xf]
    %v6278 = vld [vmem:[%s8 + $0xac] sm:$0xf]
    %v6279 = vld [vmem:[%s8 + $0xb0] sm:$0xf]
    %v6280 = vld [vmem:[%s8 + $0xb4] sm:$0xf]
    %v6281 = vld [vmem:[%s8 + $0xb8] sm:$0xf]
    %v6282 = vld [vmem:[%s8 + $0xbc] sm:$0xf]
    %v6291 = vunpack.c.l.b16 %v6275
    %v6292 = vunpack.c.l.b16 %v6276
    %v6293 = vunpack.c.l.b16 %v6277
    %v6294 = vunpack.c.l.b16 %v6278
    %v6295 = vunpack.c.l.b16 %v6279
    %v6296 = vunpack.c.l.b16 %v6280
    %v6297 = vunpack.c.l.b16 %v6281
    %v6298 = vunpack.c.l.b16 %v6282
    %v6299 = vpack.c.b16 %v6292, %v6291
    %v6300 = vpack.c.b16 %v6294, %v6293
    %v6301 = vpack.c.b16 %v6296, %v6295
    %v6302 = vpack.c.b16 %v6298, %v6297
    %v6308 = vsel %vm5915, %v6274, 0
    %6310 = vmatprep.subr.bf16.mxu0 0
    %6311 = vmatpush1.bf16.msra.mxu0 %v6299
    %6312 = vmatprep.subr.bf16.mxu0 0
    %6313 = vmatpush1.bf16.msra.mxu0 %v6300
    %6314 = vmatprep.subr.bf16.mxu0 0
    %6315 = vmatpush1.bf16.msra.mxu0 %v6301
    %6316 = vmatprep.subr.bf16.mxu0 0
    %6317 = vmatpush1.bf16.msra.mxu0 %v6302
    %6318 = vmatprep.subr.bf16.mxu0 0
    %6319 = vmatpush1.bf16.msra.mxu0 0
    %6320 = vmatprep.subr.bf16.mxu0 0
    %6321 = vmatpush1.bf16.msra.mxu0 0
    %6322 = vmatprep.subr.bf16.mxu0 0
    %6323 = vmatpush1.bf16.msra.mxu0 0
    %6324 = vmatprep.subr.bf16.mxu0 0
    %6325 = vmatpush1.bf16.msra.mxu0 0
    %6326 = vmatprep.subr.bf16.mxu0 0
    %6327 = vmatpush1.bf16.msra.mxu0 0
    %6328 = vmatprep.subr.bf16.mxu0 0
    %6329 = vmatpush1.bf16.msra.mxu0 0
    %6330 = vmatprep.subr.bf16.mxu0 0
    %6331 = vmatpush1.bf16.msra.mxu0 0
    %6332 = vmatprep.subr.bf16.mxu0 0
    %6333 = vmatpush1.bf16.msra.mxu0 0
    %6334 = vmatprep.subr.bf16.mxu0 0
    %6335 = vmatpush1.bf16.msra.mxu0 0
    %6336 = vmatprep.subr.bf16.mxu0 0
    %6337 = vmatpush1.bf16.msra.mxu0 0
    %6338 = vmatprep.subr.bf16.mxu0 0
    %6339 = vmatpush1.bf16.msra.mxu0 0
    %6340 = vmatprep.subr.bf16.mxu0 0
    %6341 = vmatpush1.bf16.msra.mxu0 0
    %6342 = vmatprep.mubr.bf16.mxu0 0
    %6343 = vmatmul.mubr.bf16.gmra.mrb[0].mxu0 %v6308
    %v6344 = vpop.f32.mrb[0].mxu0
    %v6345 = vadd.f32 0.0, %v6344
    %v6346 = vpop.f32.mrb[0].mxu0
    %v6347 = vpop.f32.mrb[0].mxu0
    %v6348 = vpop.f32.mrb[0].mxu0
    %6349 = vdwg.mxu0
    %v6350 = vadd.f32 %v6273, %v6345
    %v6351 = vpack.c.bf16 %v5869, %v5869
    %v6352 = vld [vmem:[%s8 + $0xc0] sm:$0xf]
    %v6353 = vld [vmem:[%s8 + $0xc4] sm:$0xf]
    %v6354 = vld [vmem:[%s8 + $0xc8] sm:$0xf]
    %v6355 = vld [vmem:[%s8 + $0xcc] sm:$0xf]
    %v6356 = vld [vmem:[%s8 + $0xd0] sm:$0xf]
    %v6357 = vld [vmem:[%s8 + $0xd4] sm:$0xf]
    %v6358 = vld [vmem:[%s8 + $0xd8] sm:$0xf]
    %v6359 = vld [vmem:[%s8 + $0xdc] sm:$0xf]
    %v6368 = vunpack.c.l.b16 %v6352
    %v6369 = vunpack.c.l.b16 %v6353
    %v6370 = vunpack.c.l.b16 %v6354
    %v6371 = vunpack.c.l.b16 %v6355
    %v6372 = vunpack.c.l.b16 %v6356
    %v6373 = vunpack.c.l.b16 %v6357
    %v6374 = vunpack.c.l.b16 %v6358
    %v6375 = vunpack.c.l.b16 %v6359
    %v6376 = vpack.c.b16 %v6369, %v6368
    %v6377 = vpack.c.b16 %v6371, %v6370
    %v6378 = vpack.c.b16 %v6373, %v6372
    %v6379 = vpack.c.b16 %v6375, %v6374
    %v6385 = vsel %vm5915, %v6351, 0
    %6387 = vmatprep.subr.bf16.mxu0 0
    %6388 = vmatpush1.bf16.msra.mxu0 %v6376
    %6389 = vmatprep.subr.bf16.mxu0 0
    %6390 = vmatpush1.bf16.msra.mxu0 %v6377
    %6391 = vmatprep.subr.bf16.mxu0 0
    %6392 = vmatpush1.bf16.msra.mxu0 %v6378
    %6393 = vmatprep.subr.bf16.mxu0 0
    %6394 = vmatpush1.bf16.msra.mxu0 %v6379
    %6395 = vmatprep.subr.bf16.mxu0 0
    %6396 = vmatpush1.bf16.msra.mxu0 0
    %6397 = vmatprep.subr.bf16.mxu0 0
    %6398 = vmatpush1.bf16.msra.mxu0 0
    %6399 = vmatprep.subr.bf16.mxu0 0
    %6400 = vmatpush1.bf16.msra.mxu0 0
    %6401 = vmatprep.subr.bf16.mxu0 0
    %6402 = vmatpush1.bf16.msra.mxu0 0
    %6403 = vmatprep.subr.bf16.mxu0 0
    %6404 = vmatpush1.bf16.msra.mxu0 0
    %6405 = vmatprep.subr.bf16.mxu0 0
    %6406 = vmatpush1.bf16.msra.mxu0 0
    %6407 = vmatprep.subr.bf16.mxu0 0
    %6408 = vmatpush1.bf16.msra.mxu0 0
    %6409 = vmatprep.subr.bf16.mxu0 0
    %6410 = vmatpush1.bf16.msra.mxu0 0
    %6411 = vmatprep.subr.bf16.mxu0 0
    %6412 = vmatpush1.bf16.msra.mxu0 0
    %6413 = vmatprep.subr.bf16.mxu0 0
    %6414 = vmatpush1.bf16.msra.mxu0 0
    %6415 = vmatprep.subr.bf16.mxu0 0
    %6416 = vmatpush1.bf16.msra.mxu0 0
    %6417 = vmatprep.subr.bf16.mxu0 0
    %6418 = vmatpush1.bf16.msra.mxu0 0
    %6419 = vmatprep.mubr.bf16.mxu0 0
    %6420 = vmatmul.mubr.bf16.gmra.mrb[0].mxu0 %v6385
    %v6421 = vpop.f32.mrb[0].mxu0
    %v6422 = vadd.f32 0.0, %v6421
    %v6423 = vpop.f32.mrb[0].mxu0
    %v6424 = vpop.f32.mrb[0].mxu0
    %v6425 = vpop.f32.mrb[0].mxu0
    %6426 = vdwg.mxu0
    %v6427 = vadd.f32 %v6350, %v6422
    %v6428 = vpack.c.bf16 %v5872, %v5872
    %v6429 = vld [vmem:[%s8 + $0xe0] sm:$0xf]
    %v6430 = vld [vmem:[%s8 + $0xe4] sm:$0xf]
    %v6431 = vld [vmem:[%s8 + $0xe8] sm:$0xf]
    %v6432 = vld [vmem:[%s8 + $0xec] sm:$0xf]
    %v6433 = vld [vmem:[%s8 + $0xf0] sm:$0xf]
    %v6434 = vld [vmem:[%s8 + $0xf4] sm:$0xf]
    %v6435 = vld [vmem:[%s8 + $0xf8] sm:$0xf]
    %v6436 = vld [vmem:[%s8 + $0xfc] sm:$0xf]
    %v6445 = vunpack.c.l.b16 %v6429
    %v6446 = vunpack.c.l.b16 %v6430
    %v6447 = vunpack.c.l.b16 %v6431
    %v6448 = vunpack.c.l.b16 %v6432
    %v6449 = vunpack.c.l.b16 %v6433
    %v6450 = vunpack.c.l.b16 %v6434
    %v6451 = vunpack.c.l.b16 %v6435
    %v6452 = vunpack.c.l.b16 %v6436
    %v6453 = vpack.c.b16 %v6446, %v6445
    %v6454 = vpack.c.b16 %v6448, %v6447
    %v6455 = vpack.c.b16 %v6450, %v6449
    %v6456 = vpack.c.b16 %v6452, %v6451
    %v6462 = vsel %vm5915, %v6428, 0
    %6464 = vmatprep.subr.bf16.mxu0 0
    %6465 = vmatpush1.bf16.msra.mxu0 %v6453
    %6466 = vmatprep.subr.bf16.mxu0 0
    %6467 = vmatpush1.bf16.msra.mxu0 %v6454
    %6468 = vmatprep.subr.bf16.mxu0 0
    %6469 = vmatpush1.bf16.msra.mxu0 %v6455
    %6470 = vmatprep.subr.bf16.mxu0 0
    %6471 = vmatpush1.bf16.msra.mxu0 %v6456
    %6472 = vmatprep.subr.bf16.mxu0 0
    %6473 = vmatpush1.bf16.msra.mxu0 0
    %6474 = vmatprep.subr.bf16.mxu0 0
    %6475 = vmatpush1.bf16.msra.mxu0 0
    %6476 = vmatprep.subr.bf16.mxu0 0
    %6477 = vmatpush1.bf16.msra.mxu0 0
    %6478 = vmatprep.subr.bf16.mxu0 0
    %6479 = vmatpush1.bf16.msra.mxu0 0
    %6480 = vmatprep.subr.bf16.mxu0 0
    %6481 = vmatpush1.bf16.msra.mxu0 0
    %6482 = vmatprep.subr.bf16.mxu0 0
    %6483 = vmatpush1.bf16.msra.mxu0 0
    %6484 = vmatprep.subr.bf16.mxu0 0
    %6485 = vmatpush1.bf16.msra.mxu0 0
    %6486 = vmatprep.subr.bf16.mxu0 0
    %6487 = vmatpush1.bf16.msra.mxu0 0
    %6488 = vmatprep.subr.bf16.mxu0 0
    %6489 = vmatpush1.bf16.msra.mxu0 0
    %6490 = vmatprep.subr.bf16.mxu0 0
    %6491 = vmatpush1.bf16.msra.mxu0 0
    %6492 = vmatprep.subr.bf16.mxu0 0
    %6493 = vmatpush1.bf16.msra.mxu0 0
    %6494 = vmatprep.subr.bf16.mxu0 0
    %6495 = vmatpush1.bf16.msra.mxu0 0
    %6496 = vmatprep.mubr.bf16.mxu0 0
    %6497 = vmatmul.mubr.bf16.gmra.mrb[0].mxu0 %v6462
    %v6498 = vpop.f32.mrb[0].mxu0
    %v6499 = vadd.f32 0.0, %v6498
    %v6500 = vpop.f32.mrb[0].mxu0
    %v6501 = vpop.f32.mrb[0].mxu0
    %v6502 = vpop.f32.mrb[0].mxu0
    %6503 = vdwg.mxu0
    %v6504 = vadd.f32 %v6427, %v6499
    %v6505 = vpack.c.bf16 %v5877, %v5877
    %v6506 = vld [vmem:[%s8 + $0x100] sm:$0xf]
    %v6507 = vld [vmem:[%s8 + $0x104] sm:$0xf]
    %v6508 = vld [vmem:[%s8 + $0x108] sm:$0xf]
    %v6509 = vld [vmem:[%s8 + $0x10c] sm:$0xf]
    %v6510 = vld [vmem:[%s8 + $0x110] sm:$0xf]
    %v6511 = vld [vmem:[%s8 + $0x114] sm:$0xf]
    %v6512 = vld [vmem:[%s8 + $0x118] sm:$0xf]
    %v6513 = vld [vmem:[%s8 + $0x11c] sm:$0xf]
    %v6522 = vunpack.c.l.b16 %v6506
    %v6523 = vunpack.c.l.b16 %v6507
    %v6524 = vunpack.c.l.b16 %v6508
    %v6525 = vunpack.c.l.b16 %v6509
    %v6526 = vunpack.c.l.b16 %v6510
    %v6527 = vunpack.c.l.b16 %v6511
    %v6528 = vunpack.c.l.b16 %v6512
    %v6529 = vunpack.c.l.b16 %v6513
    %v6530 = vpack.c.b16 %v6523, %v6522
    %v6531 = vpack.c.b16 %v6525, %v6524
    %v6532 = vpack.c.b16 %v6527, %v6526
    %v6533 = vpack.c.b16 %v6529, %v6528
    %v6539 = vsel %vm5915, %v6505, 0
    %6541 = vmatprep.subr.bf16.mxu0 0
    %6542 = vmatpush1.bf16.msra.mxu0 %v6530
    %6543 = vmatprep.subr.bf16.mxu0 0
    %6544 = vmatpush1.bf16.msra.mxu0 %v6531
    %6545 = vmatprep.subr.bf16.mxu0 0
    %6546 = vmatpush1.bf16.msra.mxu0 %v6532
    %6547 = vmatprep.subr.bf16.mxu0 0
    %6548 = vmatpush1.bf16.msra.mxu0 %v6533
    %6549 = vmatprep.subr.bf16.mxu0 0
    %6550 = vmatpush1.bf16.msra.mxu0 0
    %6551 = vmatprep.subr.bf16.mxu0 0
    %6552 = vmatpush1.bf16.msra.mxu0 0
    %6553 = vmatprep.subr.bf16.mxu0 0
    %6554 = vmatpush1.bf16.msra.mxu0 0
    %6555 = vmatprep.subr.bf16.mxu0 0
    %6556 = vmatpush1.bf16.msra.mxu0 0
    %6557 = vmatprep.subr.bf16.mxu0 0
    %6558 = vmatpush1.bf16.msra.mxu0 0
    %6559 = vmatprep.subr.bf16.mxu0 0
    %6560 = vmatpush1.bf16.msra.mxu0 0
    %6561 = vmatprep.subr.bf16.mxu0 0
    %6562 = vmatpush1.bf16.msra.mxu0 0
    %6563 = vmatprep.subr.bf16.mxu0 0
    %6564 = vmatpush1.bf16.msra.mxu0 0
    %6565 = vmatprep.subr.bf16.mxu0 0
    %6566 = vmatpush1.bf16.msra.mxu0 0
    %6567 = vmatprep.subr.bf16.mxu0 0
    %6568 = vmatpush1.bf16.msra.mxu0 0
    %6569 = vmatprep.subr.bf16.mxu0 0
    %6570 = vmatpush1.bf16.msra.mxu0 0
    %6571 = vmatprep.subr.bf16.mxu0 0
    %6572 = vmatpush1.bf16.msra.mxu0 0
    %6573 = vmatprep.mubr.bf16.mxu0 0
    %6574 = vmatmul.mubr.bf16.gmra.mrb[0].mxu0 %v6539
    %v6575 = vpop.f32.mrb[0].mxu0
    %v6576 = vadd.f32 0.0, %v6575
    %v6577 = vpop.f32.mrb[0].mxu0
    %v6578 = vpop.f32.mrb[0].mxu0
    %v6579 = vpop.f32.mrb[0].mxu0
    %6580 = vdwg.mxu0
    %v6581 = vadd.f32 %v6504, %v6576
    %v6582 = vmax.f32 %v6581, 0.0
    %v6583 = vld [vmem:[%s10] sm:$0xff]
    %v6584 = vadd.f32 %v6582, %v6583
    %v6585 = vld [vmem:[%s11] sm:$0xff]
    %v6586 = vlaneseq
    %v6587 = vand.u32 %v6586, 127
    %vm6588 = vcmp.ge.s32.totalorder %v6587, 0
    %vm6589 = vcmp.lt.s32.totalorder %v6587, 8
    %vm6590 = vmand %vm6588, %vm6589
    %v6591 = vsel %vm6590, 1, 0
    %v6592 = vcvt.s32.f32 %v6591
    %vm6593 = vcmp.ge.s32.totalorder %v6587, 8
    %vm6594 = vcmp.lt.s32.totalorder %v6587, 16
    %vm6595 = vmand %vm6593, %vm6594
    %v6596 = vsel %vm6595, 1, 0
    %v6597 = vcvt.s32.f32 %v6596
    %vm6598 = vcmp.ge.s32.totalorder %v6587, 16
    %vm6599 = vcmp.lt.s32.totalorder %v6587, 24
    %vm6600 = vmand %vm6598, %vm6599
    %v6601 = vsel %vm6600, 1, 0
    %v6602 = vcvt.s32.f32 %v6601
    %vm6603 = vcmp.ge.s32.totalorder %v6587, 24
    %vm6604 = vcmp.lt.s32.totalorder %v6587, 32
    %vm6605 = vmand %vm6603, %vm6604
    %v6606 = vsel %vm6605, 1, 0
    %v6607 = vcvt.s32.f32 %v6606
    %v6608 = vpack.c.bf16 %v6584, %v6584
    %v6609 = vld [vmem:[%s12] sm:$0xf]
    %v6610 = vld [vmem:[%s12 + $0x4] sm:$0xf]
    %v6611 = vld [vmem:[%s12 + $0x8] sm:$0xf]
    %v6612 = vld [vmem:[%s12 + $0xc] sm:$0xf]
    %v6613 = vld [vmem:[%s13] sm:$0x1]
    %v6615 = vlaneseq
    %v6616 = vshrl.u32 %v6615, 7
    %v6617 = vsub.s32 0, %v6616
    %v6618 = vrot.slane %v6613, %v6617
    %v6624 = vunpack.c.l.b16 %v6609
    %v6625 = vunpack.c.l.b16 %v6610
    %v6626 = vunpack.c.l.b16 %v6611
    %v6627 = vunpack.c.l.b16 %v6612
    %v6628 = vpack.c.b16 %v6625, %v6624
    %v6629 = vpack.c.b16 %v6627, %v6626
    %v6633 = vsel %vm5074, %v6608, 0
    %6635 = vmatprep.subr.bf16.mxu0 0
    %6636 = vmatpush1.bf16.msra.mxu0 %v6628
    %6637 = vmatprep.subr.bf16.mxu0 0
    %6638 = vmatpush1.bf16.msra.mxu0 %v6629
    %6639 = vmatprep.subr.bf16.mxu0 0
    %6640 = vmatpush1.bf16.msra.mxu0 0
    %6641 = vmatprep.subr.bf16.mxu0 0
    %6642 = vmatpush1.bf16.msra.mxu0 0
    %6643 = vmatprep.subr.bf16.mxu0 0
    %6644 = vmatpush1.bf16.msra.mxu0 0
    %6645 = vmatprep.subr.bf16.mxu0 0
    %6646 = vmatpush1.bf16.msra.mxu0 0
    %6647 = vmatprep.subr.bf16.mxu0 0
    %6648 = vmatpush1.bf16.msra.mxu0 0
    %6649 = vmatprep.subr.bf16.mxu0 0
    %6650 = vmatpush1.bf16.msra.mxu0 0
    %6651 = vmatprep.subr.bf16.mxu0 0
    %6652 = vmatpush1.bf16.msra.mxu0 0
    %6653 = vmatprep.subr.bf16.mxu0 0
    %6654 = vmatpush1.bf16.msra.mxu0 0
    %6655 = vmatprep.subr.bf16.mxu0 0
    %6656 = vmatpush1.bf16.msra.mxu0 0
    %6657 = vmatprep.subr.bf16.mxu0 0
    %6658 = vmatpush1.bf16.msra.mxu0 0
    %6659 = vmatprep.subr.bf16.mxu0 0
    %6660 = vmatpush1.bf16.msra.mxu0 0
    %6661 = vmatprep.subr.bf16.mxu0 0
    %6662 = vmatpush1.bf16.msra.mxu0 0
    %6663 = vmatprep.subr.bf16.mxu0 0
    %6664 = vmatpush1.bf16.msra.mxu0 0
    %6665 = vmatprep.subr.bf16.mxu0 0
    %6666 = vmatpush1.bf16.msra.mxu0 0
    %6667 = vmatprep.mubr.bf16.mxu0 0
    %6668 = vmatmul.mubr.bf16.gmra.mrb[0].mxu0 %v6633
    %v6669 = vpop.f32.mrb[0].mxu0
    %v6670 = vadd.f32 %v6618, %v6669
    %v6671 = vpop.f32.mrb[0].mxu0
    %v6672 = vpop.f32.mrb[0].mxu0
    %v6673 = vpop.f32.mrb[0].mxu0
    %6674 = vdwg.mxu0
    %v6675 = vpack.c.bf16 %v6670, %v6670
    %v6676 = vmul.f32 %v6670, %v6592
    %v6677 = vpack.c.bf16 %v6676, %v6676
    %6679 = vrot.lane.b32.xlu0 %v6675, 96
    %v6680 = vpop.permute.xlu0 %6679
    %v6682 = vsel %vm5074, %v6677, 0
    %v6685 = vsel %vm5074, %v6680, 0
    %6687 = vmatprep.subr.bf16.mxu0 0
    %6688 = vmatpush1.bf16.xpose.msra.mxu0 %v6685
    %6689 = vmatprep.subr.bf16.mxu0 0
    %6690 = vmatpush1.bf16.xpose.msra.mxu0 0
    %6691 = vmatprep.subr.bf16.mxu0 0
    %6692 = vmatpush1.bf16.xpose.msra.mxu0 0
    %6693 = vmatprep.subr.bf16.mxu0 0
    %6694 = vmatpush1.bf16.xpose.msra.mxu0 0
    %6695 = vmatprep.subr.bf16.mxu0 0
    %6696 = vmatpush1.bf16.xpose.msra.mxu0 0
    %6697 = vmatprep.subr.bf16.mxu0 0
    %6698 = vmatpush1.bf16.xpose.msra.mxu0 0
    %6699 = vmatprep.subr.bf16.mxu0 0
    %6700 = vmatpush1.bf16.xpose.msra.mxu0 0
    %6701 = vmatprep.subr.bf16.mxu0 0
    %6702 = vmatpush1.bf16.xpose.msra.mxu0 0
    %6703 = vmatprep.subr.bf16.mxu0 0
    %6704 = vmatpush1.bf16.xpose.msra.mxu0 0
    %6705 = vmatprep.subr.bf16.mxu0 0
    %6706 = vmatpush1.bf16.xpose.msra.mxu0 0
    %6707 = vmatprep.subr.bf16.mxu0 0
    %6708 = vmatpush1.bf16.xpose.msra.mxu0 0
    %6709 = vmatprep.subr.bf16.mxu0 0
    %6710 = vmatpush1.bf16.xpose.msra.mxu0 0
    %6711 = vmatprep.subr.bf16.mxu0 0
    %6712 = vmatpush1.bf16.xpose.msra.mxu0 0
    %6713 = vmatprep.subr.bf16.mxu0 0
    %6714 = vmatpush1.bf16.xpose.msra.mxu0 0
    %6715 = vmatprep.subr.bf16.mxu0 0
    %6716 = vmatpush1.bf16.xpose.msra.mxu0 0
    %6717 = vmatprep.subr.bf16.mxu0 0
    %6718 = vmatpush1.bf16.xpose.msra.mxu0 0
    %6719 = vmatprep.mubr.bf16.mxu0 0
    %6720 = vmatmul.mubr.bf16.gmra.mrb[0].mxu0 %v6682
    %v6721 = vpop.f32.mrb[0].mxu0
    %v6722 = vadd.f32 %v6585, %v6721
    %v6723 = vpop.f32.mrb[0].mxu0
    %v6724 = vpop.f32.mrb[0].mxu0
    %v6725 = vpop.f32.mrb[0].mxu0
    %6726 = vdwg.mxu0
    %vm6727 = vcmask 64512
    %v6728 = vsel %vm6727, %v6722, -inf
    %6729 = vmax.xlane.f32.xlu0 %v6728
    %v6730 = vpop.xlane.xlu0 %6729
    %v6731 = vsub.f32 %v6722, %v6730
    %v6732 = vmul.f32 %v6731, 1.442695
    %v6733 = vpow.pop %v6732
    %v6734 = vsel %vm6727, %v6733, 0.0
    %6735 = vadd.xlane.f32.xlu0 %v6734
    %v6736 = vpop.xlane.xlu0 %6735
    %v6737 = vrcp.pop %v6736
    %v6738 = vmul.f32 %v6733, %v6737
    %v6739 = vpack.c.bf16 %v6738, %v6738
    %6740 = vrot.lane.b32.xlu0 %v6675, 64
    %v6741 = vpop.permute.xlu0 %6740
    %v6743 = vsel %vm6727, %v6739, 0
    %vm6745 = vcmask 1043456
    %v6747 = vsel %vm6745, %v6741, 0
    %6749 = vmatprep.subr.bf16.mxu0 0
    %6750 = vmatpush1.bf16.msra.mxu0 %v6747
    %6751 = vmatprep.subr.bf16.mxu0 0
    %6752 = vmatpush1.bf16.msra.mxu0 0
    %6753 = vmatprep.subr.bf16.mxu0 0
    %6754 = vmatpush1.bf16.msra.mxu0 0
    %6755 = vmatprep.subr.bf16.mxu0 0
    %6756 = vmatpush1.bf16.msra.mxu0 0
    %6757 = vmatprep.subr.bf16.mxu0 0
    %6758 = vmatpush1.bf16.msra.mxu0 0
    %6759 = vmatprep.subr.bf16.mxu0 0
    %6760 = vmatpush1.bf16.msra.mxu0 0
    %6761 = vmatprep.subr.bf16.mxu0 0
    %6762 = vmatpush1.bf16.msra.mxu0 0
    %6763 = vmatprep.subr.bf16.mxu0 0
    %6764 = vmatpush1.bf16.msra.mxu0 0
    %6765 = vmatprep.subr.bf16.mxu0 0
    %6766 = vmatpush1.bf16.msra.mxu0 0
    %6767 = vmatprep.subr.bf16.mxu0 0
    %6768 = vmatpush1.bf16.msra.mxu0 0
    %6769 = vmatprep.subr.bf16.mxu0 0
    %6770 = vmatpush1.bf16.msra.mxu0 0
    %6771 = vmatprep.subr.bf16.mxu0 0
    %6772 = vmatpush1.bf16.msra.mxu0 0
    %6773 = vmatprep.subr.bf16.mxu0 0
    %6774 = vmatpush1.bf16.msra.mxu0 0
    %6775 = vmatprep.subr.bf16.mxu0 0
    %6776 = vmatpush1.bf16.msra.mxu0 0
    %6777 = vmatprep.subr.bf16.mxu0 0
    %6778 = vmatpush1.bf16.msra.mxu0 0
    %6779 = vmatprep.subr.bf16.mxu0 0
    %6780 = vmatpush1.bf16.msra.mxu0 0
    %6781 = vmatprep.mubr.bf16.mxu0 0
    %6782 = vmatmul.mubr.bf16.gmra.mrb[0].mxu0 %v6743
    %v6783 = vpop.f32.mrb[0].mxu0
    %v6784 = vadd.f32 0.0, %v6783
    %v6785 = vpop.f32.mrb[0].mxu0
    %v6786 = vpop.f32.mrb[0].mxu0
    %v6787 = vpop.f32.mrb[0].mxu0
    %6788 = vdwg.mxu0
    %v6789 = vmul.f32 %v6784, %v6592
    %v6790 = vadd.f32 %v6789, 0.0
    %v6791 = vmul.f32 %v6670, %v6597
    %v6792 = vpack.c.bf16 %v6791, %v6791
    %v6794 = vsel %vm5074, %v6792, 0
    %6796 = vmatprep.subr.bf16.mxu0 0
    %6797 = vmatpush1.bf16.xpose.msra.mxu0 %v6685
    %6798 = vmatprep.subr.bf16.mxu0 0
    %6799 = vmatpush1.bf16.xpose.msra.mxu0 0
    %6800 = vmatprep.subr.bf16.mxu0 0
    %6801 = vmatpush1.bf16.xpose.msra.mxu0 0
    %6802 = vmatprep.subr.bf16.mxu0 0
    %6803 = vmatpush1.bf16.xpose.msra.mxu0 0
    %6804 = vmatprep.subr.bf16.mxu0 0
    %6805 = vmatpush1.bf16.xpose.msra.mxu0 0
    %6806 = vmatprep.subr.bf16.mxu0 0
    %6807 = vmatpush1.bf16.xpose.msra.mxu0 0
    %6808 = vmatprep.subr.bf16.mxu0 0
    %6809 = vmatpush1.bf16.xpose.msra.mxu0 0
    %6810 = vmatprep.subr.bf16.mxu0 0
    %6811 = vmatpush1.bf16.xpose.msra.mxu0 0
    %6812 = vmatprep.subr.bf16.mxu0 0
    %6813 = vmatpush1.bf16.xpose.msra.mxu0 0
    %6814 = vmatprep.subr.bf16.mxu0 0
    %6815 = vmatpush1.bf16.xpose.msra.mxu0 0
    %6816 = vmatprep.subr.bf16.mxu0 0
    %6817 = vmatpush1.bf16.xpose.msra.mxu0 0
    %6818 = vmatprep.subr.bf16.mxu0 0
    %6819 = vmatpush1.bf16.xpose.msra.mxu0 0
    %6820 = vmatprep.subr.bf16.mxu0 0
    %6821 = vmatpush1.bf16.xpose.msra.mxu0 0
    %6822 = vmatprep.subr.bf16.mxu0 0
    %6823 = vmatpush1.bf16.xpose.msra.mxu0 0
    %6824 = vmatprep.subr.bf16.mxu0 0
    %6825 = vmatpush1.bf16.xpose.msra.mxu0 0
    %6826 = vmatprep.subr.bf16.mxu0 0
    %6827 = vmatpush1.bf16.xpose.msra.mxu0 0
    %6828 = vmatprep.mubr.bf16.mxu0 0
    %6829 = vmatmul.mubr.bf16.gmra.mrb[0].mxu0 %v6794
    %v6830 = vpop.f32.mrb[0].mxu0
    %v6831 = vadd.f32 %v6585, %v6830
    %v6832 = vpop.f32.mrb[0].mxu0
    %v6833 = vpop.f32.mrb[0].mxu0
    %v6834 = vpop.f32.mrb[0].mxu0
    %6835 = vdwg.mxu0
    %v6836 = vsel %vm6727, %v6831, -inf
    %6837 = vmax.xlane.f32.xlu0 %v6836
    %v6838 = vpop.xlane.xlu0 %6837
    %v6839 = vsub.f32 %v6831, %v6838
    %v6840 = vmul.f32 %v6839, 1.442695
    %v6841 = vpow.pop %v6840
    %v6842 = vsel %vm6727, %v6841, 0.0
    %6843 = vadd.xlane.f32.xlu0 %v6842
    %v6844 = vpop.xlane.xlu0 %6843
    %v6845 = vrcp.pop %v6844
    %v6846 = vmul.f32 %v6841, %v6845
    %v6847 = vpack.c.bf16 %v6846, %v6846
    %v6849 = vsel %vm6727, %v6847, 0
    %6851 = vmatprep.subr.bf16.mxu0 0
    %6852 = vmatpush1.bf16.msra.mxu0 %v6747
    %6853 = vmatprep.subr.bf16.mxu0 0
    %6854 = vmatpush1.bf16.msra.mxu0 0
    %6855 = vmatprep.subr.bf16.mxu0 0
    %6856 = vmatpush1.bf16.msra.mxu0 0
    %6857 = vmatprep.subr.bf16.mxu0 0
    %6858 = vmatpush1.bf16.msra.mxu0 0
    %6859 = vmatprep.subr.bf16.mxu0 0
    %6860 = vmatpush1.bf16.msra.mxu0 0
    %6861 = vmatprep.subr.bf16.mxu0 0
    %6862 = vmatpush1.bf16.msra.mxu0 0
    %6863 = vmatprep.subr.bf16.mxu0 0
    %6864 = vmatpush1.bf16.msra.mxu0 0
    %6865 = vmatprep.subr.bf16.mxu0 0
    %6866 = vmatpush1.bf16.msra.mxu0 0
    %6867 = vmatprep.subr.bf16.mxu0 0
    %6868 = vmatpush1.bf16.msra.mxu0 0
    %6869 = vmatprep.subr.bf16.mxu0 0
    %6870 = vmatpush1.bf16.msra.mxu0 0
    %6871 = vmatprep.subr.bf16.mxu0 0
    %6872 = vmatpush1.bf16.msra.mxu0 0
    %6873 = vmatprep.subr.bf16.mxu0 0
    %6874 = vmatpush1.bf16.msra.mxu0 0
    %6875 = vmatprep.subr.bf16.mxu0 0
    %6876 = vmatpush1.bf16.msra.mxu0 0
    %6877 = vmatprep.subr.bf16.mxu0 0
    %6878 = vmatpush1.bf16.msra.mxu0 0
    %6879 = vmatprep.subr.bf16.mxu0 0
    %6880 = vmatpush1.bf16.msra.mxu0 0
    %6881 = vmatprep.subr.bf16.mxu0 0
    %6882 = vmatpush1.bf16.msra.mxu0 0
    %6883 = vmatprep.mubr.bf16.mxu0 0
    %6884 = vmatmul.mubr.bf16.gmra.mrb[0].mxu0 %v6849
    %v6885 = vpop.f32.mrb[0].mxu0
    %v6886 = vadd.f32 0.0, %v6885
    %v6887 = vpop.f32.mrb[0].mxu0
    %v6888 = vpop.f32.mrb[0].mxu0
    %v6889 = vpop.f32.mrb[0].mxu0
    %6890 = vdwg.mxu0
    %v6891 = vmul.f32 %v6886, %v6597
    %v6892 = vadd.f32 %v6790, %v6891
    %v6893 = vmul.f32 %v6670, %v6602
    %v6894 = vpack.c.bf16 %v6893, %v6893
    %v6896 = vsel %vm5074, %v6894, 0
    %6898 = vmatprep.subr.bf16.mxu0 0
    %6899 = vmatpush1.bf16.xpose.msra.mxu0 %v6685
    %6900 = vmatprep.subr.bf16.mxu0 0
    %6901 = vmatpush1.bf16.xpose.msra.mxu0 0
    %6902 = vmatprep.subr.bf16.mxu0 0
    %6903 = vmatpush1.bf16.xpose.msra.mxu0 0
    %6904 = vmatprep.subr.bf16.mxu0 0
    %6905 = vmatpush1.bf16.xpose.msra.mxu0 0
    %6906 = vmatprep.subr.bf16.mxu0 0
    %6907 = vmatpush1.bf16.xpose.msra.mxu0 0
    %6908 = vmatprep.subr.bf16.mxu0 0
    %6909 = vmatpush1.bf16.xpose.msra.mxu0 0
    %6910 = vmatprep.subr.bf16.mxu0 0
    %6911 = vmatpush1.bf16.xpose.msra.mxu0 0
    %6912 = vmatprep.subr.bf16.mxu0 0
    %6913 = vmatpush1.bf16.xpose.msra.mxu0 0
    %6914 = vmatprep.subr.bf16.mxu0 0
    %6915 = vmatpush1.bf16.xpose.msra.mxu0 0
    %6916 = vmatprep.subr.bf16.mxu0 0
    %6917 = vmatpush1.bf16.xpose.msra.mxu0 0
    %6918 = vmatprep.subr.bf16.mxu0 0
    %6919 = vmatpush1.bf16.xpose.msra.mxu0 0
    %6920 = vmatprep.subr.bf16.mxu0 0
    %6921 = vmatpush1.bf16.xpose.msra.mxu0 0
    %6922 = vmatprep.subr.bf16.mxu0 0
    %6923 = vmatpush1.bf16.xpose.msra.mxu0 0
    %6924 = vmatprep.subr.bf16.mxu0 0
    %6925 = vmatpush1.bf16.xpose.msra.mxu0 0
    %6926 = vmatprep.subr.bf16.mxu0 0
    %6927 = vmatpush1.bf16.xpose.msra.mxu0 0
    %6928 = vmatprep.subr.bf16.mxu0 0
    %6929 = vmatpush1.bf16.xpose.msra.mxu0 0
    %6930 = vmatprep.mubr.bf16.mxu0 0
    %6931 = vmatmul.mubr.bf16.gmra.mrb[0].mxu0 %v6896
    %v6932 = vpop.f32.mrb[0].mxu0
    %v6933 = vadd.f32 %v6585, %v6932
    %v6934 = vpop.f32.mrb[0].mxu0
    %v6935 = vpop.f32.mrb[0].mxu0
    %v6936 = vpop.f32.mrb[0].mxu0
    %6937 = vdwg.mxu0
    %v6938 = vsel %vm6727, %v6933, -inf
    %6939 = vmax.xlane.f32.xlu0 %v6938
    %v6940 = vpop.xlane.xlu0 %6939
    %v6941 = vsub.f32 %v6933, %v6940
    %v6942 = vmul.f32 %v6941, 1.442695
    %v6943 = vpow.pop %v6942
    %v6944 = vsel %vm6727, %v6943, 0.0
    %6945 = vadd.xlane.f32.xlu0 %v6944
    %v6946 = vpop.xlane.xlu0 %6945
    %v6947 = vrcp.pop %v6946
    %v6948 = vmul.f32 %v6943, %v6947
    %v6949 = vpack.c.bf16 %v6948, %v6948
    %v6951 = vsel %vm6727, %v6949, 0
    %6953 = vmatprep.subr.bf16.mxu0 0
    %6954 = vmatpush1.bf16.msra.mxu0 %v6747
    %6955 = vmatprep.subr.bf16.mxu0 0
    %6956 = vmatpush1.bf16.msra.mxu0 0
    %6957 = vmatprep.subr.bf16.mxu0 0
    %6958 = vmatpush1.bf16.msra.mxu0 0
    %6959 = vmatprep.subr.bf16.mxu0 0
    %6960 = vmatpush1.bf16.msra.mxu0 0
    %6961 = vmatprep.subr.bf16.mxu0 0
    %6962 = vmatpush1.bf16.msra.mxu0 0
    %6963 = vmatprep.subr.bf16.mxu0 0
    %6964 = vmatpush1.bf16.msra.mxu0 0
    %6965 = vmatprep.subr.bf16.mxu0 0
    %6966 = vmatpush1.bf16.msra.mxu0 0
    %6967 = vmatprep.subr.bf16.mxu0 0
    %6968 = vmatpush1.bf16.msra.mxu0 0
    %6969 = vmatprep.subr.bf16.mxu0 0
    %6970 = vmatpush1.bf16.msra.mxu0 0
    %6971 = vmatprep.subr.bf16.mxu0 0
    %6972 = vmatpush1.bf16.msra.mxu0 0
    %6973 = vmatprep.subr.bf16.mxu0 0
    %6974 = vmatpush1.bf16.msra.mxu0 0
    %6975 = vmatprep.subr.bf16.mxu0 0
    %6976 = vmatpush1.bf16.msra.mxu0 0
    %6977 = vmatprep.subr.bf16.mxu0 0
    %6978 = vmatpush1.bf16.msra.mxu0 0
    %6979 = vmatprep.subr.bf16.mxu0 0
    %6980 = vmatpush1.bf16.msra.mxu0 0
    %6981 = vmatprep.subr.bf16.mxu0 0
    %6982 = vmatpush1.bf16.msra.mxu0 0
    %6983 = vmatprep.subr.bf16.mxu0 0
    %6984 = vmatpush1.bf16.msra.mxu0 0
    %6985 = vmatprep.mubr.bf16.mxu0 0
    %6986 = vmatmul.mubr.bf16.gmra.mrb[0].mxu0 %v6951
    %v6987 = vpop.f32.mrb[0].mxu0
    %v6988 = vadd.f32 0.0, %v6987
    %v6989 = vpop.f32.mrb[0].mxu0
    %v6990 = vpop.f32.mrb[0].mxu0
    %v6991 = vpop.f32.mrb[0].mxu0
    %6992 = vdwg.mxu0
    %v6993 = vmul.f32 %v6988, %v6602
    %v6994 = vadd.f32 %v6892, %v6993
    %v6995 = vmul.f32 %v6670, %v6607
    %v6996 = vpack.c.bf16 %v6995, %v6995
    %v6998 = vsel %vm5074, %v6996, 0
    %7000 = vmatprep.subr.bf16.mxu0 0
    %7001 = vmatpush1.bf16.xpose.msra.mxu0 %v6685
    %7002 = vmatprep.subr.bf16.mxu0 0
    %7003 = vmatpush1.bf16.xpose.msra.mxu0 0
    %7004 = vmatprep.subr.bf16.mxu0 0
    %7005 = vmatpush1.bf16.xpose.msra.mxu0 0
    %7006 = vmatprep.subr.bf16.mxu0 0
    %7007 = vmatpush1.bf16.xpose.msra.mxu0 0
    %7008 = vmatprep.subr.bf16.mxu0 0
    %7009 = vmatpush1.bf16.xpose.msra.mxu0 0
    %7010 = vmatprep.subr.bf16.mxu0 0
    %7011 = vmatpush1.bf16.xpose.msra.mxu0 0
    %7012 = vmatprep.subr.bf16.mxu0 0
    %7013 = vmatpush1.bf16.xpose.msra.mxu0 0
    %7014 = vmatprep.subr.bf16.mxu0 0
    %7015 = vmatpush1.bf16.xpose.msra.mxu0 0
    %7016 = vmatprep.subr.bf16.mxu0 0
    %7017 = vmatpush1.bf16.xpose.msra.mxu0 0
    %7018 = vmatprep.subr.bf16.mxu0 0
    %7019 = vmatpush1.bf16.xpose.msra.mxu0 0
    %7020 = vmatprep.subr.bf16.mxu0 0
    %7021 = vmatpush1.bf16.xpose.msra.mxu0 0
    %7022 = vmatprep.subr.bf16.mxu0 0
    %7023 = vmatpush1.bf16.xpose.msra.mxu0 0
    %7024 = vmatprep.subr.bf16.mxu0 0
    %7025 = vmatpush1.bf16.xpose.msra.mxu0 0
    %7026 = vmatprep.subr.bf16.mxu0 0
    %7027 = vmatpush1.bf16.xpose.msra.mxu0 0
    %7028 = vmatprep.subr.bf16.mxu0 0
    %7029 = vmatpush1.bf16.xpose.msra.mxu0 0
    %7030 = vmatprep.subr.bf16.mxu0 0
    %7031 = vmatpush1.bf16.xpose.msra.mxu0 0
    %7032 = vmatprep.mubr.bf16.mxu0 0
    %7033 = vmatmul.mubr.bf16.gmra.mrb[0].mxu0 %v6998
    %v7034 = vpop.f32.mrb[0].mxu0
    %v7035 = vadd.f32 %v6585, %v7034
    %v7036 = vpop.f32.mrb[0].mxu0
    %v7037 = vpop.f32.mrb[0].mxu0
    %v7038 = vpop.f32.mrb[0].mxu0
    %7039 = vdwg.mxu0
    %v7040 = vsel %vm6727, %v7035, -inf
    %7041 = vmax.xlane.f32.xlu0 %v7040
    %v7042 = vpop.xlane.xlu0 %7041
    %v7043 = vsub.f32 %v7035, %v7042
    %v7044 = vmul.f32 %v7043, 1.442695
    %v7045 = vpow.pop %v7044
    %v7046 = vsel %vm6727, %v7045, 0.0
    %7047 = vadd.xlane.f32.xlu0 %v7046
    %v7048 = vpop.xlane.xlu0 %7047
    %v7049 = vrcp.pop %v7048
    %v7050 = vmul.f32 %v7045, %v7049
    %v7051 = vpack.c.bf16 %v7050, %v7050
    %v7053 = vsel %vm6727, %v7051, 0
    %7055 = vmatprep.subr.bf16.mxu0 0
    %7056 = vmatpush1.bf16.msra.mxu0 %v6747
    %7057 = vmatprep.subr.bf16.mxu0 0
    %7058 = vmatpush1.bf16.msra.mxu0 0
    %7059 = vmatprep.subr.bf16.mxu0 0
    %7060 = vmatpush1.bf16.msra.mxu0 0
    %7061 = vmatprep.subr.bf16.mxu0 0
    %7062 = vmatpush1.bf16.msra.mxu0 0
    %7063 = vmatprep.subr.bf16.mxu0 0
    %7064 = vmatpush1.bf16.msra.mxu0 0
    %7065 = vmatprep.subr.bf16.mxu0 0
    %7066 = vmatpush1.bf16.msra.mxu0 0
    %7067 = vmatprep.subr.bf16.mxu0 0
    %7068 = vmatpush1.bf16.msra.mxu0 0
    %7069 = vmatprep.subr.bf16.mxu0 0
    %7070 = vmatpush1.bf16.msra.mxu0 0
    %7071 = vmatprep.subr.bf16.mxu0 0
    %7072 = vmatpush1.bf16.msra.mxu0 0
    %7073 = vmatprep.subr.bf16.mxu0 0
    %7074 = vmatpush1.bf16.msra.mxu0 0
    %7075 = vmatprep.subr.bf16.mxu0 0
    %7076 = vmatpush1.bf16.msra.mxu0 0
    %7077 = vmatprep.subr.bf16.mxu0 0
    %7078 = vmatpush1.bf16.msra.mxu0 0
    %7079 = vmatprep.subr.bf16.mxu0 0
    %7080 = vmatpush1.bf16.msra.mxu0 0
    %7081 = vmatprep.subr.bf16.mxu0 0
    %7082 = vmatpush1.bf16.msra.mxu0 0
    %7083 = vmatprep.subr.bf16.mxu0 0
    %7084 = vmatpush1.bf16.msra.mxu0 0
    %7085 = vmatprep.subr.bf16.mxu0 0
    %7086 = vmatpush1.bf16.msra.mxu0 0
    %7087 = vmatprep.mubr.bf16.mxu0 0
    %7088 = vmatmul.mubr.bf16.gmra.mrb[0].mxu0 %v7053
    %v7089 = vpop.f32.mrb[0].mxu0
    %v7090 = vadd.f32 0.0, %v7089
    %v7091 = vpop.f32.mrb[0].mxu0
    %v7092 = vpop.f32.mrb[0].mxu0
    %v7093 = vpop.f32.mrb[0].mxu0
    %7094 = vdwg.mxu0
    %v7095 = vmul.f32 %v7090, %v6607
    %v7096 = vadd.f32 %v6994, %v7095
    %v7097 = vpack.c.bf16 %v7096, %v7096
    %v7098 = vld [vmem:[%s14] sm:$0xf]
    %v7099 = vld [vmem:[%s14 + $0x4] sm:$0xf]
    %v7100 = vld [vmem:[%s14 + $0x8] sm:$0xf]
    %v7101 = vld [vmem:[%s14 + $0xc] sm:$0xf]
    %v7102 = vld [vmem:[%s15] sm:$0x1]
    %v7104 = vlaneseq
    %v7105 = vshrl.u32 %v7104, 7
    %v7106 = vsub.s32 0, %v7105
    %v7107 = vrot.slane %v7102, %v7106
    %v7113 = vunpack.c.l.b16 %v7098
    %v7114 = vunpack.c.l.b16 %v7099
    %v7115 = vunpack.c.l.b16 %v7100
    %v7116 = vunpack.c.l.b16 %v7101
    %v7117 = vpack.c.b16 %v7114, %v7113
    %v7118 = vpack.c.b16 %v7116, %v7115
    %v7122 = vsel %vm5074, %v7097, 0
    %7124 = vmatprep.subr.bf16.mxu0 0
    %7125 = vmatpush1.bf16.msra.mxu0 %v7117
    %7126 = vmatprep.subr.bf16.mxu0 0
    %7127 = vmatpush1.bf16.msra.mxu0 %v7118
    %7128 = vmatprep.subr.bf16.mxu0 0
    %7129 = vmatpush1.bf16.msra.mxu0 0
    %7130 = vmatprep.subr.bf16.mxu0 0
    %7131 = vmatpush1.bf16.msra.mxu0 0
    %7132 = vmatprep.subr.bf16.mxu0 0
    %7133 = vmatpush1.bf16.msra.mxu0 0
    %7134 = vmatprep.subr.bf16.mxu0 0
    %7135 = vmatpush1.bf16.msra.mxu0 0
    %7136 = vmatprep.subr.bf16.mxu0 0
    %7137 = vmatpush1.bf16.msra.mxu0 0
    %7138 = vmatprep.subr.bf16.mxu0 0
    %7139 = vmatpush1.bf16.msra.mxu0 0
    %7140 = vmatprep.subr.bf16.mxu0 0
    %7141 = vmatpush1.bf16.msra.mxu0 0
    %7142 = vmatprep.subr.bf16.mxu0 0
    %7143 = vmatpush1.bf16.msra.mxu0 0
    %7144 = vmatprep.subr.bf16.mxu0 0
    %7145 = vmatpush1.bf16.msra.mxu0 0
    %7146 = vmatprep.subr.bf16.mxu0 0
    %7147 = vmatpush1.bf16.msra.mxu0 0
    %7148 = vmatprep.subr.bf16.mxu0 0
    %7149 = vmatpush1.bf16.msra.mxu0 0
    %7150 = vmatprep.subr.bf16.mxu0 0
    %7151 = vmatpush1.bf16.msra.mxu0 0
    %7152 = vmatprep.subr.bf16.mxu0 0
    %7153 = vmatpush1.bf16.msra.mxu0 0
    %7154 = vmatprep.subr.bf16.mxu0 0
    %7155 = vmatpush1.bf16.msra.mxu0 0
    %7156 = vmatprep.mubr.bf16.mxu0 0
    %7157 = vmatmul.mubr.bf16.gmra.mrb[0].mxu0 %v7122
    %v7158 = vpop.f32.mrb[0].mxu0
    %v7159 = vadd.f32 %v7107, %v7158
    %v7160 = vpop.f32.mrb[0].mxu0
    %v7161 = vpop.f32.mrb[0].mxu0
    %v7162 = vpop.f32.mrb[0].mxu0
    %7163 = vdwg.mxu0
    %v7164 = vadd.f32 %v6584, %v7159
    %v7165 = vld [vmem:[%s20] sm:$0x1]
    %v7166 = vld [vmem:[%s21] sm:$0x1]
    %v7167 = vsel %vm5074, %v7164, 0.0
    %7168 = vadd.xlane.f32.xlu0 %v7167
    %v7169 = vpop.xlane.xlu0 %7168
    %v7170 = vrcp.pop 32.0
    %v7171 = vmul.f32 %v7169, %v7170
    %v7172 = vsub.f32 %v7164, %v7171
    %v7173 = vmul.f32 %v7172, %v7172
    %v7174 = vsel %vm5074, %v7173, 0.0
    %7175 = vadd.xlane.f32.xlu0 %v7174
    %v7176 = vpop.xlane.xlu0 %7175
    %v7177 = vmul.f32 %v7176, %v7170
    %v7178 = vadd.f32 %v7177, 1e-05
    %v7179 = vrsqrt.pop %v7178
    %v7180 = vmul.f32 %v7172, %v7179
    %v7182 = vlaneseq
    %v7183 = vshrl.u32 %v7182, 7
    %v7184 = vsub.s32 0, %v7183
    %v7185 = vrot.slane %v7165, %v7184
    %v7187 = vmul.f32 %v7180, %v7185
    %v7189 = vlaneseq
    %v7190 = vshrl.u32 %v7189, 7
    %v7191 = vsub.s32 0, %v7190
    %v7192 = vrot.slane %v7166, %v7191
    %v7194 = vadd.f32 %v7187, %v7192
    %v7195 = vpack.c.bf16 %v7194, %v7194
    %v7196 = vld [vmem:[%s16] sm:$0xf]
    %v7197 = vld [vmem:[%s16 + $0x4] sm:$0xf]
    %v7198 = vld [vmem:[%s16 + $0x8] sm:$0xf]
    %v7199 = vld [vmem:[%s16 + $0xc] sm:$0xf]
    %v7200 = vld [vmem:[%s17] sm:$0x1]
    %v7202 = vlaneseq
    %v7203 = vshrl.u32 %v7202, 7
    %v7204 = vsub.s32 0, %v7203
    %v7205 = vrot.slane %v7200, %v7204
    %v7211 = vunpack.c.l.b16 %v7196
    %v7212 = vunpack.c.l.b16 %v7197
    %v7213 = vunpack.c.l.b16 %v7198
    %v7214 = vunpack.c.l.b16 %v7199
    %v7215 = vpack.c.b16 %v7212, %v7211
    %v7216 = vpack.c.b16 %v7214, %v7213
    %v7220 = vsel %vm5074, %v7195, 0
    %7222 = vmatprep.subr.bf16.mxu0 0
    %7223 = vmatpush1.bf16.msra.mxu0 %v7215
    %7224 = vmatprep.subr.bf16.mxu0 0
    %7225 = vmatpush1.bf16.msra.mxu0 %v7216
    %7226 = vmatprep.subr.bf16.mxu0 0
    %7227 = vmatpush1.bf16.msra.mxu0 0
    %7228 = vmatprep.subr.bf16.mxu0 0
    %7229 = vmatpush1.bf16.msra.mxu0 0
    %7230 = vmatprep.subr.bf16.mxu0 0
    %7231 = vmatpush1.bf16.msra.mxu0 0
    %7232 = vmatprep.subr.bf16.mxu0 0
    %7233 = vmatpush1.bf16.msra.mxu0 0
    %7234 = vmatprep.subr.bf16.mxu0 0
    %7235 = vmatpush1.bf16.msra.mxu0 0
    %7236 = vmatprep.subr.bf16.mxu0 0
    %7237 = vmatpush1.bf16.msra.mxu0 0
    %7238 = vmatprep.subr.bf16.mxu0 0
    %7239 = vmatpush1.bf16.msra.mxu0 0
    %7240 = vmatprep.subr.bf16.mxu0 0
    %7241 = vmatpush1.bf16.msra.mxu0 0
    %7242 = vmatprep.subr.bf16.mxu0 0
    %7243 = vmatpush1.bf16.msra.mxu0 0
    %7244 = vmatprep.subr.bf16.mxu0 0
    %7245 = vmatpush1.bf16.msra.mxu0 0
    %7246 = vmatprep.subr.bf16.mxu0 0
    %7247 = vmatpush1.bf16.msra.mxu0 0
    %7248 = vmatprep.subr.bf16.mxu0 0
    %7249 = vmatpush1.bf16.msra.mxu0 0
    %7250 = vmatprep.subr.bf16.mxu0 0
    %7251 = vmatpush1.bf16.msra.mxu0 0
    %7252 = vmatprep.subr.bf16.mxu0 0
    %7253 = vmatpush1.bf16.msra.mxu0 0
    %7254 = vmatprep.mubr.bf16.mxu0 0
    %7255 = vmatmul.mubr.bf16.gmra.mrb[0].mxu0 %v7220
    %v7256 = vpop.f32.mrb[0].mxu0
    %v7257 = vadd.f32 %v7205, %v7256
    %v7258 = vpop.f32.mrb[0].mxu0
    %v7259 = vpop.f32.mrb[0].mxu0
    %v7260 = vpop.f32.mrb[0].mxu0
    %7261 = vdwg.mxu0
    %v7262 = vmax.f32 %v7257, 0.0
    %v7263 = vpack.c.bf16 %v7262, %v7262
    %v7264 = vld [vmem:[%s18] sm:$0xf]
    %v7265 = vld [vmem:[%s18 + $0x4] sm:$0xf]
    %v7266 = vld [vmem:[%s18 + $0x8] sm:$0xf]
    %v7267 = vld [vmem:[%s18 + $0xc] sm:$0xf]
    %v7268 = vld [vmem:[%s18 + $0x10] sm:$0xf]
    %v7269 = vld [vmem:[%s18 + $0x14] sm:$0xf]
    %v7270 = vld [vmem:[%s18 + $0x18] sm:$0xf]
    %v7271 = vld [vmem:[%s18 + $0x1c] sm:$0xf]
    %v7272 = vld [vmem:[%s18 + $0x20] sm:$0xf]
    %v7273 = vld [vmem:[%s18 + $0x24] sm:$0xf]
    %v7274 = vld [vmem:[%s18 + $0x28] sm:$0xf]
    %v7275 = vld [vmem:[%s18 + $0x2c] sm:$0xf]
    %v7276 = vld [vmem:[%s18 + $0x30] sm:$0xf]
    %v7277 = vld [vmem:[%s18 + $0x34] sm:$0xf]
    %v7278 = vld [vmem:[%s18 + $0x38] sm:$0xf]
    %v7279 = vld [vmem:[%s18 + $0x3c] sm:$0xf]
    %v7280 = vld [vmem:[%s19] sm:$0x1]
    %v7282 = vlaneseq
    %v7283 = vshrl.u32 %v7282, 7
    %v7284 = vsub.s32 0, %v7283
    %v7285 = vrot.slane %v7280, %v7284
    %v7303 = vunpack.c.l.b16 %v7264
    %v7304 = vunpack.c.l.b16 %v7265
    %v7305 = vunpack.c.l.b16 %v7266
    %v7306 = vunpack.c.l.b16 %v7267
    %v7307 = vunpack.c.l.b16 %v7268
    %v7308 = vunpack.c.l.b16 %v7269
    %v7309 = vunpack.c.l.b16 %v7270
    %v7310 = vunpack.c.l.b16 %v7271
    %v7311 = vunpack.c.l.b16 %v7272
    %v7312 = vunpack.c.l.b16 %v7273
    %v7313 = vunpack.c.l.b16 %v7274
    %v7314 = vunpack.c.l.b16 %v7275
    %v7315 = vunpack.c.l.b16 %v7276
    %v7316 = vunpack.c.l.b16 %v7277
    %v7317 = vunpack.c.l.b16 %v7278
    %v7318 = vunpack.c.l.b16 %v7279
    %v7319 = vpack.c.b16 %v7304, %v7303
    %v7320 = vpack.c.b16 %v7306, %v7305
    %v7321 = vpack.c.b16 %v7308, %v7307
    %v7322 = vpack.c.b16 %v7310, %v7309
    %v7323 = vpack.c.b16 %v7312, %v7311
    %v7324 = vpack.c.b16 %v7314, %v7313
    %v7325 = vpack.c.b16 %v7316, %v7315
    %v7326 = vpack.c.b16 %v7318, %v7317
    %7335 = vmatprep.subr.bf16.mxu0 0
    %7336 = vmatpush1.bf16.msra.mxu0 %v7319
    %7337 = vmatprep.subr.bf16.mxu0 0
    %7338 = vmatpush1.bf16.msra.mxu0 %v7320
    %7339 = vmatprep.subr.bf16.mxu0 0
    %7340 = vmatpush1.bf16.msra.mxu0 %v7321
    %7341 = vmatprep.subr.bf16.mxu0 0
    %7342 = vmatpush1.bf16.msra.mxu0 %v7322
    %7343 = vmatprep.subr.bf16.mxu0 0
    %7344 = vmatpush1.bf16.msra.mxu0 %v7323
    %7345 = vmatprep.subr.bf16.mxu0 0
    %7346 = vmatpush1.bf16.msra.mxu0 %v7324
    %7347 = vmatprep.subr.bf16.mxu0 0
    %7348 = vmatpush1.bf16.msra.mxu0 %v7325
    %7349 = vmatprep.subr.bf16.mxu0 0
    %7350 = vmatpush1.bf16.msra.mxu0 %v7326
    %7351 = vmatprep.subr.bf16.mxu0 0
    %7352 = vmatpush1.bf16.msra.mxu0 0
    %7353 = vmatprep.subr.bf16.mxu0 0
    %7354 = vmatpush1.bf16.msra.mxu0 0
    %7355 = vmatprep.subr.bf16.mxu0 0
    %7356 = vmatpush1.bf16.msra.mxu0 0
    %7357 = vmatprep.subr.bf16.mxu0 0
    %7358 = vmatpush1.bf16.msra.mxu0 0
    %7359 = vmatprep.subr.bf16.mxu0 0
    %7360 = vmatpush1.bf16.msra.mxu0 0
    %7361 = vmatprep.subr.bf16.mxu0 0
    %7362 = vmatpush1.bf16.msra.mxu0 0
    %7363 = vmatprep.subr.bf16.mxu0 0
    %7364 = vmatpush1.bf16.msra.mxu0 0
    %7365 = vmatprep.subr.bf16.mxu0 0
    %7366 = vmatpush1.bf16.msra.mxu0 0
    %7367 = vmatprep.mubr.bf16.mxu0 0
    %7368 = vmatmul.mubr.bf16.gmra.mrb[0].mxu0 %v7263
    %v7369 = vpop.f32.mrb[0].mxu0
    %v7370 = vadd.f32 %v7285, %v7369
    %v7371 = vpop.f32.mrb[0].mxu0
    %v7372 = vpop.f32.mrb[0].mxu0
    %v7373 = vpop.f32.mrb[0].mxu0
    %7374 = vdwg.mxu0
    %v7375 = vadd.f32 %v7194, %v7370
    %v7376 = vld [vmem:[%s22] sm:$0x1]
    %v7377 = vld [vmem:[%s23] sm:$0x1]
    %v7378 = vsel %vm5074, %v7375, 0.0
    %7379 = vadd.xlane.f32.xlu0 %v7378
    %v7380 = vpop.xlane.xlu0 %7379
    %v7381 = vmul.f32 %v7380, %v7170
    %v7382 = vsub.f32 %v7375, %v7381
    %v7383 = vmul.f32 %v7382, %v7382
    %v7384 = vsel %vm5074, %v7383, 0.0
    %7385 = vadd.xlane.f32.xlu0 %v7384
    %v7386 = vpop.xlane.xlu0 %7385
    %v7387 = vmul.f32 %v7386, %v7170
    %v7388 = vadd.f32 %v7387, 1e-05
    %v7389 = vrsqrt.pop %v7388
    %v7390 = vmul.f32 %v7382, %v7389
    %v7392 = vlaneseq
    %v7393 = vshrl.u32 %v7392, 7
    %v7394 = vsub.s32 0, %v7393
    %v7395 = vrot.slane %v7376, %v7394
    %v7397 = vmul.f32 %v7390, %v7395
    %v7399 = vlaneseq
    %v7400 = vshrl.u32 %v7399, 7
    %v7401 = vsub.s32 0, %v7400
    %v7402 = vrot.slane %v7377, %v7401
    %v7404 = vadd.f32 %v7397, %v7402
    %v7405 = vpack.c.bf16 %v7404, %v7404
    %s7406 = scalar_lea.vmem %s12, 16
    %v7407 = vld [vmem:[%s7406] sm:$0xf]
    %v7408 = vld [vmem:[%s7406 + $0x4] sm:$0xf]
    %v7409 = vld [vmem:[%s7406 + $0x8] sm:$0xf]
    %v7410 = vld [vmem:[%s7406 + $0xc] sm:$0xf]
    %s7411 = scalar_lea.vmem %s13, 1
    %v7412 = vld [vmem:[%s7411] sm:$0x1]
    %v7414 = vlaneseq
    %v7415 = vshrl.u32 %v7414, 7
    %v7416 = vsub.s32 0, %v7415
    %v7417 = vrot.slane %v7412, %v7416
    %v7423 = vunpack.c.l.b16 %v7407
    %v7424 = vunpack.c.l.b16 %v7408
    %v7425 = vunpack.c.l.b16 %v7409
    %v7426 = vunpack.c.l.b16 %v7410
    %v7427 = vpack.c.b16 %v7424, %v7423
    %v7428 = vpack.c.b16 %v7426, %v7425
    %v7432 = vsel %vm5074, %v7405, 0
    %7434 = vmatprep.subr.bf16.mxu0 0
    %7435 = vmatpush1.bf16.msra.mxu0 %v7427
    %7436 = vmatprep.subr.bf16.mxu0 0
    %7437 = vmatpush1.bf16.msra.mxu0 %v7428
    %7438 = vmatprep.subr.bf16.mxu0 0
    %7439 = vmatpush1.bf16.msra.mxu0 0
    %7440 = vmatprep.subr.bf16.mxu0 0
    %7441 = vmatpush1.bf16.msra.mxu0 0
    %7442 = vmatprep.subr.bf16.mxu0 0
    %7443 = vmatpush1.bf16.msra.mxu0 0
    %7444 = vmatprep.subr.bf16.mxu0 0
    %7445 = vmatpush1.bf16.msra.mxu0 0
    %7446 = vmatprep.subr.bf16.mxu0 0
    %7447 = vmatpush1.bf16.msra.mxu0 0
    %7448 = vmatprep.subr.bf16.mxu0 0
    %7449 = vmatpush1.bf16.msra.mxu0 0
    %7450 = vmatprep.subr.bf16.mxu0 0
    %7451 = vmatpush1.bf16.msra.mxu0 0
    %7452 = vmatprep.subr.bf16.mxu0 0
    %7453 = vmatpush1.bf16.msra.mxu0 0
    %7454 = vmatprep.subr.bf16.mxu0 0
    %7455 = vmatpush1.bf16.msra.mxu0 0
    %7456 = vmatprep.subr.bf16.mxu0 0
    %7457 = vmatpush1.bf16.msra.mxu0 0
    %7458 = vmatprep.subr.bf16.mxu0 0
    %7459 = vmatpush1.bf16.msra.mxu0 0
    %7460 = vmatprep.subr.bf16.mxu0 0
    %7461 = vmatpush1.bf16.msra.mxu0 0
    %7462 = vmatprep.subr.bf16.mxu0 0
    %7463 = vmatpush1.bf16.msra.mxu0 0
    %7464 = vmatprep.subr.bf16.mxu0 0
    %7465 = vmatpush1.bf16.msra.mxu0 0
    %7466 = vmatprep.mubr.bf16.mxu0 0
    %7467 = vmatmul.mubr.bf16.gmra.mrb[0].mxu0 %v7432
    %v7468 = vpop.f32.mrb[0].mxu0
    %v7469 = vadd.f32 %v7417, %v7468
    %v7470 = vpop.f32.mrb[0].mxu0
    %v7471 = vpop.f32.mrb[0].mxu0
    %v7472 = vpop.f32.mrb[0].mxu0
    %7473 = vdwg.mxu0
    %v7474 = vpack.c.bf16 %v7469, %v7469
    %v7475 = vmul.f32 %v7469, %v6592
    %v7476 = vpack.c.bf16 %v7475, %v7475
    %7478 = vrot.lane.b32.xlu0 %v7474, 96
    %v7479 = vpop.permute.xlu0 %7478
    %v7481 = vsel %vm5074, %v7476, 0
    %v7484 = vsel %vm5074, %v7479, 0
    %7486 = vmatprep.subr.bf16.mxu0 0
    %7487 = vmatpush1.bf16.xpose.msra.mxu0 %v7484
    %7488 = vmatprep.subr.bf16.mxu0 0
    %7489 = vmatpush1.bf16.xpose.msra.mxu0 0
    %7490 = vmatprep.subr.bf16.mxu0 0
    %7491 = vmatpush1.bf16.xpose.msra.mxu0 0
    %7492 = vmatprep.subr.bf16.mxu0 0
    %7493 = vmatpush1.bf16.xpose.msra.mxu0 0
    %7494 = vmatprep.subr.bf16.mxu0 0
    %7495 = vmatpush1.bf16.xpose.msra.mxu0 0
    %7496 = vmatprep.subr.bf16.mxu0 0
    %7497 = vmatpush1.bf16.xpose.msra.mxu0 0
    %7498 = vmatprep.subr.bf16.mxu0 0
    %7499 = vmatpush1.bf16.xpose.msra.mxu0 0
    %7500 = vmatprep.subr.bf16.mxu0 0
    %7501 = vmatpush1.bf16.xpose.msra.mxu0 0
    %7502 = vmatprep.subr.bf16.mxu0 0
    %7503 = vmatpush1.bf16.xpose.msra.mxu0 0
    %7504 = vmatprep.subr.bf16.mxu0 0
    %7505 = vmatpush1.bf16.xpose.msra.mxu0 0
    %7506 = vmatprep.subr.bf16.mxu0 0
    %7507 = vmatpush1.bf16.xpose.msra.mxu0 0
    %7508 = vmatprep.subr.bf16.mxu0 0
    %7509 = vmatpush1.bf16.xpose.msra.mxu0 0
    %7510 = vmatprep.subr.bf16.mxu0 0
    %7511 = vmatpush1.bf16.xpose.msra.mxu0 0
    %7512 = vmatprep.subr.bf16.mxu0 0
    %7513 = vmatpush1.bf16.xpose.msra.mxu0 0
    %7514 = vmatprep.subr.bf16.mxu0 0
    %7515 = vmatpush1.bf16.xpose.msra.mxu0 0
    %7516 = vmatprep.subr.bf16.mxu0 0
    %7517 = vmatpush1.bf16.xpose.msra.mxu0 0
    %7518 = vmatprep.mubr.bf16.mxu0 0
    %7519 = vmatmul.mubr.bf16.gmra.mrb[0].mxu0 %v7481
    %v7520 = vpop.f32.mrb[0].mxu0
    %v7521 = vadd.f32 %v6585, %v7520
    %v7522 = vpop.f32.mrb[0].mxu0
    %v7523 = vpop.f32.mrb[0].mxu0
    %v7524 = vpop.f32.mrb[0].mxu0
    %7525 = vdwg.mxu0
    %v7526 = vsel %vm6727, %v7521, -inf
    %7527 = vmax.xlane.f32.xlu0 %v7526
    %v7528 = vpop.xlane.xlu0 %7527
    %v7529 = vsub.f32 %v7521, %v7528
    %v7530 = vmul.f32 %v7529, 1.442695
    %v7531 = vpow.pop %v7530
    %v7532 = vsel %vm6727, %v7531, 0.0
    %7533 = vadd.xlane.f32.xlu0 %v7532
    %v7534 = vpop.xlane.xlu0 %7533
    %v7535 = vrcp.pop %v7534
    %v7536 = vmul.f32 %v7531, %v7535
    %v7537 = vpack.c.bf16 %v7536, %v7536
    %7538 = vrot.lane.b32.xlu0 %v7474, 64
    %v7539 = vpop.permute.xlu0 %7538
    %v7541 = vsel %vm6727, %v7537, 0
    %v7544 = vsel %vm6745, %v7539, 0
    %7546 = vmatprep.subr.bf16.mxu0 0
    %7547 = vmatpush1.bf16.msra.mxu0 %v7544
    %7548 = vmatprep.subr.bf16.mxu0 0
    %7549 = vmatpush1.bf16.msra.mxu0 0
    %7550 = vmatprep.subr.bf16.mxu0 0
    %7551 = vmatpush1.bf16.msra.mxu0 0
    %7552 = vmatprep.subr.bf16.mxu0 0
    %7553 = vmatpush1.bf16.msra.mxu0 0
    %7554 = vmatprep.subr.bf16.mxu0 0
    %7555 = vmatpush1.bf16.msra.mxu0 0
    %7556 = vmatprep.subr.bf16.mxu0 0
    %7557 = vmatpush1.bf16.msra.mxu0 0
    %7558 = vmatprep.subr.bf16.mxu0 0
    %7559 = vmatpush1.bf16.msra.mxu0 0
    %7560 = vmatprep.subr.bf16.mxu0 0
    %7561 = vmatpush1.bf16.msra.mxu0 0
    %7562 = vmatprep.subr.bf16.mxu0 0
    %7563 = vmatpush1.bf16.msra.mxu0 0
    %7564 = vmatprep.subr.bf16.mxu0 0
    %7565 = vmatpush1.bf16.msra.mxu0 0
    %7566 = vmatprep.subr.bf16.mxu0 0
    %7567 = vmatpush1.bf16.msra.mxu0 0
    %7568 = vmatprep.subr.bf16.mxu0 0
    %7569 = vmatpush1.bf16.msra.mxu0 0
    %7570 = vmatprep.subr.bf16.mxu0 0
    %7571 = vmatpush1.bf16.msra.mxu0 0
    %7572 = vmatprep.subr.bf16.mxu0 0
    %7573 = vmatpush1.bf16.msra.mxu0 0
    %7574 = vmatprep.subr.bf16.mxu0 0
    %7575 = vmatpush1.bf16.msra.mxu0 0
    %7576 = vmatprep.subr.bf16.mxu0 0
    %7577 = vmatpush1.bf16.msra.mxu0 0
    %7578 = vmatprep.mubr.bf16.mxu0 0
    %7579 = vmatmul.mubr.bf16.gmra.mrb[0].mxu0 %v7541
    %v7580 = vpop.f32.mrb[0].mxu0
    %v7581 = vadd.f32 0.0, %v7580
    %v7582 = vpop.f32.mrb[0].mxu0
    %v7583 = vpop.f32.mrb[0].mxu0
    %v7584 = vpop.f32.mrb[0].mxu0
    %7585 = vdwg.mxu0
    %v7586 = vmul.f32 %v7581, %v6592
    %v7587 = vadd.f32 %v7586, 0.0
    %v7588 = vmul.f32 %v7469, %v6597
    %v7589 = vpack.c.bf16 %v7588, %v7588
    %v7591 = vsel %vm5074, %v7589, 0
    %7593 = vmatprep.subr.bf16.mxu0 0
    %7594 = vmatpush1.bf16.xpose.msra.mxu0 %v7484
    %7595 = vmatprep.subr.bf16.mxu0 0
    %7596 = vmatpush1.bf16.xpose.msra.mxu0 0
    %7597 = vmatprep.subr.bf16.mxu0 0
    %7598 = vmatpush1.bf16.xpose.msra.mxu0 0
    %7599 = vmatprep.subr.bf16.mxu0 0
    %7600 = vmatpush1.bf16.xpose.msra.mxu0 0
    %7601 = vmatprep.subr.bf16.mxu0 0
    %7602 = vmatpush1.bf16.xpose.msra.mxu0 0
    %7603 = vmatprep.subr.bf16.mxu0 0
    %7604 = vmatpush1.bf16.xpose.msra.mxu0 0
    %7605 = vmatprep.subr.bf16.mxu0 0
    %7606 = vmatpush1.bf16.xpose.msra.mxu0 0
    %7607 = vmatprep.subr.bf16.mxu0 0
    %7608 = vmatpush1.bf16.xpose.msra.mxu0 0
    %7609 = vmatprep.subr.bf16.mxu0 0
    %7610 = vmatpush1.bf16.xpose.msra.mxu0 0
    %7611 = vmatprep.subr.bf16.mxu0 0
    %7612 = vmatpush1.bf16.xpose.msra.mxu0 0
    %7613 = vmatprep.subr.bf16.mxu0 0
    %7614 = vmatpush1.bf16.xpose.msra.mxu0 0
    %7615 = vmatprep.subr.bf16.mxu0 0
    %7616 = vmatpush1.bf16.xpose.msra.mxu0 0
    %7617 = vmatprep.subr.bf16.mxu0 0
    %7618 = vmatpush1.bf16.xpose.msra.mxu0 0
    %7619 = vmatprep.subr.bf16.mxu0 0
    %7620 = vmatpush1.bf16.xpose.msra.mxu0 0
    %7621 = vmatprep.subr.bf16.mxu0 0
    %7622 = vmatpush1.bf16.xpose.msra.mxu0 0
    %7623 = vmatprep.subr.bf16.mxu0 0
    %7624 = vmatpush1.bf16.xpose.msra.mxu0 0
    %7625 = vmatprep.mubr.bf16.mxu0 0
    %7626 = vmatmul.mubr.bf16.gmra.mrb[0].mxu0 %v7591
    %v7627 = vpop.f32.mrb[0].mxu0
    %v7628 = vadd.f32 %v6585, %v7627
    %v7629 = vpop.f32.mrb[0].mxu0
    %v7630 = vpop.f32.mrb[0].mxu0
    %v7631 = vpop.f32.mrb[0].mxu0
    %7632 = vdwg.mxu0
    %v7633 = vsel %vm6727, %v7628, -inf
    %7634 = vmax.xlane.f32.xlu0 %v7633
    %v7635 = vpop.xlane.xlu0 %7634
    %v7636 = vsub.f32 %v7628, %v7635
    %v7637 = vmul.f32 %v7636, 1.442695
    %v7638 = vpow.pop %v7637
    %v7639 = vsel %vm6727, %v7638, 0.0
    %7640 = vadd.xlane.f32.xlu0 %v7639
    %v7641 = vpop.xlane.xlu0 %7640
    %v7642 = vrcp.pop %v7641
    %v7643 = vmul.f32 %v7638, %v7642
    %v7644 = vpack.c.bf16 %v7643, %v7643
    %v7646 = vsel %vm6727, %v7644, 0
    %7648 = vmatprep.subr.bf16.mxu0 0
    %7649 = vmatpush1.bf16.msra.mxu0 %v7544
    %7650 = vmatprep.subr.bf16.mxu0 0
    %7651 = vmatpush1.bf16.msra.mxu0 0
    %7652 = vmatprep.subr.bf16.mxu0 0
    %7653 = vmatpush1.bf16.msra.mxu0 0
    %7654 = vmatprep.subr.bf16.mxu0 0
    %7655 = vmatpush1.bf16.msra.mxu0 0
    %7656 = vmatprep.subr.bf16.mxu0 0
    %7657 = vmatpush1.bf16.msra.mxu0 0
    %7658 = vmatprep.subr.bf16.mxu0 0
    %7659 = vmatpush1.bf16.msra.mxu0 0
    %7660 = vmatprep.subr.bf16.mxu0 0
    %7661 = vmatpush1.bf16.msra.mxu0 0
    %7662 = vmatprep.subr.bf16.mxu0 0
    %7663 = vmatpush1.bf16.msra.mxu0 0
    %7664 = vmatprep.subr.bf16.mxu0 0
    %7665 = vmatpush1.bf16.msra.mxu0 0
    %7666 = vmatprep.subr.bf16.mxu0 0
    %7667 = vmatpush1.bf16.msra.mxu0 0
    %7668 = vmatprep.subr.bf16.mxu0 0
    %7669 = vmatpush1.bf16.msra.mxu0 0
    %7670 = vmatprep.subr.bf16.mxu0 0
    %7671 = vmatpush1.bf16.msra.mxu0 0
    %7672 = vmatprep.subr.bf16.mxu0 0
    %7673 = vmatpush1.bf16.msra.mxu0 0
    %7674 = vmatprep.subr.bf16.mxu0 0
    %7675 = vmatpush1.bf16.msra.mxu0 0
    %7676 = vmatprep.subr.bf16.mxu0 0
    %7677 = vmatpush1.bf16.msra.mxu0 0
    %7678 = vmatprep.subr.bf16.mxu0 0
    %7679 = vmatpush1.bf16.msra.mxu0 0
    %7680 = vmatprep.mubr.bf16.mxu0 0
    %7681 = vmatmul.mubr.bf16.gmra.mrb[0].mxu0 %v7646
    %v7682 = vpop.f32.mrb[0].mxu0
    %v7683 = vadd.f32 0.0, %v7682
    %v7684 = vpop.f32.mrb[0].mxu0
    %v7685 = vpop.f32.mrb[0].mxu0
    %v7686 = vpop.f32.mrb[0].mxu0
    %7687 = vdwg.mxu0
    %v7688 = vmul.f32 %v7683, %v6597
    %v7689 = vadd.f32 %v7587, %v7688
    %v7690 = vmul.f32 %v7469, %v6602
    %v7691 = vpack.c.bf16 %v7690, %v7690
    %v7693 = vsel %vm5074, %v7691, 0
    %7695 = vmatprep.subr.bf16.mxu0 0
    %7696 = vmatpush1.bf16.xpose.msra.mxu0 %v7484
    %7697 = vmatprep.subr.bf16.mxu0 0
    %7698 = vmatpush1.bf16.xpose.msra.mxu0 0
    %7699 = vmatprep.subr.bf16.mxu0 0
    %7700 = vmatpush1.bf16.xpose.msra.mxu0 0
    %7701 = vmatprep.subr.bf16.mxu0 0
    %7702 = vmatpush1.bf16.xpose.msra.mxu0 0
    %7703 = vmatprep.subr.bf16.mxu0 0
    %7704 = vmatpush1.bf16.xpose.msra.mxu0 0
    %7705 = vmatprep.subr.bf16.mxu0 0
    %7706 = vmatpush1.bf16.xpose.msra.mxu0 0
    %7707 = vmatprep.subr.bf16.mxu0 0
    %7708 = vmatpush1.bf16.xpose.msra.mxu0 0
    %7709 = vmatprep.subr.bf16.mxu0 0
    %7710 = vmatpush1.bf16.xpose.msra.mxu0 0
    %7711 = vmatprep.subr.bf16.mxu0 0
    %7712 = vmatpush1.bf16.xpose.msra.mxu0 0
    %7713 = vmatprep.subr.bf16.mxu0 0
    %7714 = vmatpush1.bf16.xpose.msra.mxu0 0
    %7715 = vmatprep.subr.bf16.mxu0 0
    %7716 = vmatpush1.bf16.xpose.msra.mxu0 0
    %7717 = vmatprep.subr.bf16.mxu0 0
    %7718 = vmatpush1.bf16.xpose.msra.mxu0 0
    %7719 = vmatprep.subr.bf16.mxu0 0
    %7720 = vmatpush1.bf16.xpose.msra.mxu0 0
    %7721 = vmatprep.subr.bf16.mxu0 0
    %7722 = vmatpush1.bf16.xpose.msra.mxu0 0
    %7723 = vmatprep.subr.bf16.mxu0 0
    %7724 = vmatpush1.bf16.xpose.msra.mxu0 0
    %7725 = vmatprep.subr.bf16.mxu0 0
    %7726 = vmatpush1.bf16.xpose.msra.mxu0 0
    %7727 = vmatprep.mubr.bf16.mxu0 0
    %7728 = vmatmul.mubr.bf16.gmra.mrb[0].mxu0 %v7693
    %v7729 = vpop.f32.mrb[0].mxu0
    %v7730 = vadd.f32 %v6585, %v7729
    %v7731 = vpop.f32.mrb[0].mxu0
    %v7732 = vpop.f32.mrb[0].mxu0
    %v7733 = vpop.f32.mrb[0].mxu0
    %7734 = vdwg.mxu0
    %v7735 = vsel %vm6727, %v7730, -inf
    %7736 = vmax.xlane.f32.xlu0 %v7735
    %v7737 = vpop.xlane.xlu0 %7736
    %v7738 = vsub.f32 %v7730, %v7737
    %v7739 = vmul.f32 %v7738, 1.442695
    %v7740 = vpow.pop %v7739
    %v7741 = vsel %vm6727, %v7740, 0.0
    %7742 = vadd.xlane.f32.xlu0 %v7741
    %v7743 = vpop.xlane.xlu0 %7742
    %v7744 = vrcp.pop %v7743
    %v7745 = vmul.f32 %v7740, %v7744
    %v7746 = vpack.c.bf16 %v7745, %v7745
    %v7748 = vsel %vm6727, %v7746, 0
    %7750 = vmatprep.subr.bf16.mxu0 0
    %7751 = vmatpush1.bf16.msra.mxu0 %v7544
    %7752 = vmatprep.subr.bf16.mxu0 0
    %7753 = vmatpush1.bf16.msra.mxu0 0
    %7754 = vmatprep.subr.bf16.mxu0 0
    %7755 = vmatpush1.bf16.msra.mxu0 0
    %7756 = vmatprep.subr.bf16.mxu0 0
    %7757 = vmatpush1.bf16.msra.mxu0 0
    %7758 = vmatprep.subr.bf16.mxu0 0
    %7759 = vmatpush1.bf16.msra.mxu0 0
    %7760 = vmatprep.subr.bf16.mxu0 0
    %7761 = vmatpush1.bf16.msra.mxu0 0
    %7762 = vmatprep.subr.bf16.mxu0 0
    %7763 = vmatpush1.bf16.msra.mxu0 0
    %7764 = vmatprep.subr.bf16.mxu0 0
    %7765 = vmatpush1.bf16.msra.mxu0 0
    %7766 = vmatprep.subr.bf16.mxu0 0
    %7767 = vmatpush1.bf16.msra.mxu0 0
    %7768 = vmatprep.subr.bf16.mxu0 0
    %7769 = vmatpush1.bf16.msra.mxu0 0
    %7770 = vmatprep.subr.bf16.mxu0 0
    %7771 = vmatpush1.bf16.msra.mxu0 0
    %7772 = vmatprep.subr.bf16.mxu0 0
    %7773 = vmatpush1.bf16.msra.mxu0 0
    %7774 = vmatprep.subr.bf16.mxu0 0
    %7775 = vmatpush1.bf16.msra.mxu0 0
    %7776 = vmatprep.subr.bf16.mxu0 0
    %7777 = vmatpush1.bf16.msra.mxu0 0
    %7778 = vmatprep.subr.bf16.mxu0 0
    %7779 = vmatpush1.bf16.msra.mxu0 0
    %7780 = vmatprep.subr.bf16.mxu0 0
    %7781 = vmatpush1.bf16.msra.mxu0 0
    %7782 = vmatprep.mubr.bf16.mxu0 0
    %7783 = vmatmul.mubr.bf16.gmra.mrb[0].mxu0 %v7748
    %v7784 = vpop.f32.mrb[0].mxu0
    %v7785 = vadd.f32 0.0, %v7784
    %v7786 = vpop.f32.mrb[0].mxu0
    %v7787 = vpop.f32.mrb[0].mxu0
    %v7788 = vpop.f32.mrb[0].mxu0
    %7789 = vdwg.mxu0
    %v7790 = vmul.f32 %v7785, %v6602
    %v7791 = vadd.f32 %v7689, %v7790
    %v7792 = vmul.f32 %v7469, %v6607
    %v7793 = vpack.c.bf16 %v7792, %v7792
    %v7795 = vsel %vm5074, %v7793, 0
    %7797 = vmatprep.subr.bf16.mxu0 0
    %7798 = vmatpush1.bf16.xpose.msra.mxu0 %v7484
    %7799 = vmatprep.subr.bf16.mxu0 0
    %7800 = vmatpush1.bf16.xpose.msra.mxu0 0
    %7801 = vmatprep.subr.bf16.mxu0 0
    %7802 = vmatpush1.bf16.xpose.msra.mxu0 0
    %7803 = vmatprep.subr.bf16.mxu0 0
    %7804 = vmatpush1.bf16.xpose.msra.mxu0 0
    %7805 = vmatprep.subr.bf16.mxu0 0
    %7806 = vmatpush1.bf16.xpose.msra.mxu0 0
    %7807 = vmatprep.subr.bf16.mxu0 0
    %7808 = vmatpush1.bf16.xpose.msra.mxu0 0
    %7809 = vmatprep.subr.bf16.mxu0 0
    %7810 = vmatpush1.bf16.xpose.msra.mxu0 0
    %7811 = vmatprep.subr.bf16.mxu0 0
    %7812 = vmatpush1.bf16.xpose.msra.mxu0 0
    %7813 = vmatprep.subr.bf16.mxu0 0
    %7814 = vmatpush1.bf16.xpose.msra.mxu0 0
    %7815 = vmatprep.subr.bf16.mxu0 0
    %7816 = vmatpush1.bf16.xpose.msra.mxu0 0
    %7817 = vmatprep.subr.bf16.mxu0 0
    %7818 = vmatpush1.bf16.xpose.msra.mxu0 0
    %7819 = vmatprep.subr.bf16.mxu0 0
    %7820 = vmatpush1.bf16.xpose.msra.mxu0 0
    %7821 = vmatprep.subr.bf16.mxu0 0
    %7822 = vmatpush1.bf16.xpose.msra.mxu0 0
    %7823 = vmatprep.subr.bf16.mxu0 0
    %7824 = vmatpush1.bf16.xpose.msra.mxu0 0
    %7825 = vmatprep.subr.bf16.mxu0 0
    %7826 = vmatpush1.bf16.xpose.msra.mxu0 0
    %7827 = vmatprep.subr.bf16.mxu0 0
    %7828 = vmatpush1.bf16.xpose.msra.mxu0 0
    %7829 = vmatprep.mubr.bf16.mxu0 0
    %7830 = vmatmul.mubr.bf16.gmra.mrb[0].mxu0 %v7795
    %v7831 = vpop.f32.mrb[0].mxu0
    %v7832 = vadd.f32 %v6585, %v7831
    %v7833 = vpop.f32.mrb[0].mxu0
    %v7834 = vpop.f32.mrb[0].mxu0
    %v7835 = vpop.f32.mrb[0].mxu0
    %7836 = vdwg.mxu0
    %v7837 = vsel %vm6727, %v7832, -inf
    %7838 = vmax.xlane.f32.xlu0 %v7837
    %v7839 = vpop.xlane.xlu0 %7838
    %v7840 = vsub.f32 %v7832, %v7839
    %v7841 = vmul.f32 %v7840, 1.442695
    %v7842 = vpow.pop %v7841
    %v7843 = vsel %vm6727, %v7842, 0.0
    %7844 = vadd.xlane.f32.xlu0 %v7843
    %v7845 = vpop.xlane.xlu0 %7844
    %v7846 = vrcp.pop %v7845
    %v7847 = vmul.f32 %v7842, %v7846
    %v7848 = vpack.c.bf16 %v7847, %v7847
    %v7850 = vsel %vm6727, %v7848, 0
    %7852 = vmatprep.subr.bf16.mxu0 0
    %7853 = vmatpush1.bf16.msra.mxu0 %v7544
    %7854 = vmatprep.subr.bf16.mxu0 0
    %7855 = vmatpush1.bf16.msra.mxu0 0
    %7856 = vmatprep.subr.bf16.mxu0 0
    %7857 = vmatpush1.bf16.msra.mxu0 0
    %7858 = vmatprep.subr.bf16.mxu0 0
    %7859 = vmatpush1.bf16.msra.mxu0 0
    %7860 = vmatprep.subr.bf16.mxu0 0
    %7861 = vmatpush1.bf16.msra.mxu0 0
    %7862 = vmatprep.subr.bf16.mxu0 0
    %7863 = vmatpush1.bf16.msra.mxu0 0
    %7864 = vmatprep.subr.bf16.mxu0 0
    %7865 = vmatpush1.bf16.msra.mxu0 0
    %7866 = vmatprep.subr.bf16.mxu0 0
    %7867 = vmatpush1.bf16.msra.mxu0 0
    %7868 = vmatprep.subr.bf16.mxu0 0
    %7869 = vmatpush1.bf16.msra.mxu0 0
    %7870 = vmatprep.subr.bf16.mxu0 0
    %7871 = vmatpush1.bf16.msra.mxu0 0
    %7872 = vmatprep.subr.bf16.mxu0 0
    %7873 = vmatpush1.bf16.msra.mxu0 0
    %7874 = vmatprep.subr.bf16.mxu0 0
    %7875 = vmatpush1.bf16.msra.mxu0 0
    %7876 = vmatprep.subr.bf16.mxu0 0
    %7877 = vmatpush1.bf16.msra.mxu0 0
    %7878 = vmatprep.subr.bf16.mxu0 0
    %7879 = vmatpush1.bf16.msra.mxu0 0
    %7880 = vmatprep.subr.bf16.mxu0 0
    %7881 = vmatpush1.bf16.msra.mxu0 0
    %7882 = vmatprep.subr.bf16.mxu0 0
    %7883 = vmatpush1.bf16.msra.mxu0 0
    %7884 = vmatprep.mubr.bf16.mxu0 0
    %7885 = vmatmul.mubr.bf16.gmra.mrb[0].mxu0 %v7850
    %v7886 = vpop.f32.mrb[0].mxu0
    %v7887 = vadd.f32 0.0, %v7886
    %v7888 = vpop.f32.mrb[0].mxu0
    %v7889 = vpop.f32.mrb[0].mxu0
    %v7890 = vpop.f32.mrb[0].mxu0
    %7891 = vdwg.mxu0
    %v7892 = vmul.f32 %v7887, %v6607
    %v7893 = vadd.f32 %v7791, %v7892
    %v7894 = vpack.c.bf16 %v7893, %v7893
    %s7895 = scalar_lea.vmem %s14, 16
    %v7896 = vld [vmem:[%s7895] sm:$0xf]
    %v7897 = vld [vmem:[%s7895 + $0x4] sm:$0xf]
    %v7898 = vld [vmem:[%s7895 + $0x8] sm:$0xf]
    %v7899 = vld [vmem:[%s7895 + $0xc] sm:$0xf]
    %s7900 = scalar_lea.vmem %s15, 1
    %v7901 = vld [vmem:[%s7900] sm:$0x1]
    %v7903 = vlaneseq
    %v7904 = vshrl.u32 %v7903, 7
    %v7905 = vsub.s32 0, %v7904
    %v7906 = vrot.slane %v7901, %v7905
    %v7912 = vunpack.c.l.b16 %v7896
    %v7913 = vunpack.c.l.b16 %v7897
    %v7914 = vunpack.c.l.b16 %v7898
    %v7915 = vunpack.c.l.b16 %v7899
    %v7916 = vpack.c.b16 %v7913, %v7912
    %v7917 = vpack.c.b16 %v7915, %v7914
    %v7921 = vsel %vm5074, %v7894, 0
    %7923 = vmatprep.subr.bf16.mxu0 0
    %7924 = vmatpush1.bf16.msra.mxu0 %v7916
    %7925 = vmatprep.subr.bf16.mxu0 0
    %7926 = vmatpush1.bf16.msra.mxu0 %v7917
    %7927 = vmatprep.subr.bf16.mxu0 0
    %7928 = vmatpush1.bf16.msra.mxu0 0
    %7929 = vmatprep.subr.bf16.mxu0 0
    %7930 = vmatpush1.bf16.msra.mxu0 0
    %7931 = vmatprep.subr.bf16.mxu0 0
    %7932 = vmatpush1.bf16.msra.mxu0 0
    %7933 = vmatprep.subr.bf16.mxu0 0
    %7934 = vmatpush1.bf16.msra.mxu0 0
    %7935 = vmatprep.subr.bf16.mxu0 0
    %7936 = vmatpush1.bf16.msra.mxu0 0
    %7937 = vmatprep.subr.bf16.mxu0 0
    %7938 = vmatpush1.bf16.msra.mxu0 0
    %7939 = vmatprep.subr.bf16.mxu0 0
    %7940 = vmatpush1.bf16.msra.mxu0 0
    %7941 = vmatprep.subr.bf16.mxu0 0
    %7942 = vmatpush1.bf16.msra.mxu0 0
    %7943 = vmatprep.subr.bf16.mxu0 0
    %7944 = vmatpush1.bf16.msra.mxu0 0
    %7945 = vmatprep.subr.bf16.mxu0 0
    %7946 = vmatpush1.bf16.msra.mxu0 0
    %7947 = vmatprep.subr.bf16.mxu0 0
    %7948 = vmatpush1.bf16.msra.mxu0 0
    %7949 = vmatprep.subr.bf16.mxu0 0
    %7950 = vmatpush1.bf16.msra.mxu0 0
    %7951 = vmatprep.subr.bf16.mxu0 0
    %7952 = vmatpush1.bf16.msra.mxu0 0
    %7953 = vmatprep.subr.bf16.mxu0 0
    %7954 = vmatpush1.bf16.msra.mxu0 0
    %7955 = vmatprep.mubr.bf16.mxu0 0
    %7956 = vmatmul.mubr.bf16.gmra.mrb[0].mxu0 %v7921
    %v7957 = vpop.f32.mrb[0].mxu0
    %v7958 = vadd.f32 %v7906, %v7957
    %v7959 = vpop.f32.mrb[0].mxu0
    %v7960 = vpop.f32.mrb[0].mxu0
    %v7961 = vpop.f32.mrb[0].mxu0
    %7962 = vdwg.mxu0
    %v7963 = vadd.f32 %v7404, %v7958
    %s7964 = scalar_lea.vmem %s20, 1
    %v7965 = vld [vmem:[%s7964] sm:$0x1]
    %s7966 = scalar_lea.vmem %s21, 1
    %v7967 = vld [vmem:[%s7966] sm:$0x1]
    %v7968 = vsel %vm5074, %v7963, 0.0
    %7969 = vadd.xlane.f32.xlu0 %v7968
    %v7970 = vpop.xlane.xlu0 %7969
    %v7971 = vmul.f32 %v7970, %v7170
    %v7972 = vsub.f32 %v7963, %v7971
    %v7973 = vmul.f32 %v7972, %v7972
    %v7974 = vsel %vm5074, %v7973, 0.0
    %7975 = vadd.xlane.f32.xlu0 %v7974
    %v7976 = vpop.xlane.xlu0 %7975
    %v7977 = vmul.f32 %v7976, %v7170
    %v7978 = vadd.f32 %v7977, 1e-05
    %v7979 = vrsqrt.pop %v7978
    %v7980 = vmul.f32 %v7972, %v7979
    %v7982 = vlaneseq
    %v7983 = vshrl.u32 %v7982, 7
    %v7984 = vsub.s32 0, %v7983
    %v7985 = vrot.slane %v7965, %v7984
    %v7987 = vmul.f32 %v7980, %v7985
    %v7989 = vlaneseq
    %v7990 = vshrl.u32 %v7989, 7
    %v7991 = vsub.s32 0, %v7990
    %v7992 = vrot.slane %v7967, %v7991
    %v7994 = vadd.f32 %v7987, %v7992
    %v7995 = vpack.c.bf16 %v7994, %v7994
    %s7996 = scalar_lea.vmem %s16, 16
    %v7997 = vld [vmem:[%s7996] sm:$0xf]
    %v7998 = vld [vmem:[%s7996 + $0x4] sm:$0xf]
    %v7999 = vld [vmem:[%s7996 + $0x8] sm:$0xf]
    %v8000 = vld [vmem:[%s7996 + $0xc] sm:$0xf]
    %s8001 = scalar_lea.vmem %s17, 1
    %v8002 = vld [vmem:[%s8001] sm:$0x1]
    %v8004 = vlaneseq
    %v8005 = vshrl.u32 %v8004, 7
    %v8006 = vsub.s32 0, %v8005
    %v8007 = vrot.slane %v8002, %v8006
    %v8013 = vunpack.c.l.b16 %v7997
    %v8014 = vunpack.c.l.b16 %v7998
    %v8015 = vunpack.c.l.b16 %v7999
    %v8016 = vunpack.c.l.b16 %v8000
    %v8017 = vpack.c.b16 %v8014, %v8013
    %v8018 = vpack.c.b16 %v8016, %v8015
    %v8022 = vsel %vm5074, %v7995, 0
    %8024 = vmatprep.subr.bf16.mxu0 0
    %8025 = vmatpush1.bf16.msra.mxu0 %v8017
    %8026 = vmatprep.subr.bf16.mxu0 0
    %8027 = vmatpush1.bf16.msra.mxu0 %v8018
    %8028 = vmatprep.subr.bf16.mxu0 0
    %8029 = vmatpush1.bf16.msra.mxu0 0
    %8030 = vmatprep.subr.bf16.mxu0 0
    %8031 = vmatpush1.bf16.msra.mxu0 0
    %8032 = vmatprep.subr.bf16.mxu0 0
    %8033 = vmatpush1.bf16.msra.mxu0 0
    %8034 = vmatprep.subr.bf16.mxu0 0
    %8035 = vmatpush1.bf16.msra.mxu0 0
    %8036 = vmatprep.subr.bf16.mxu0 0
    %8037 = vmatpush1.bf16.msra.mxu0 0
    %8038 = vmatprep.subr.bf16.mxu0 0
    %8039 = vmatpush1.bf16.msra.mxu0 0
    %8040 = vmatprep.subr.bf16.mxu0 0
    %8041 = vmatpush1.bf16.msra.mxu0 0
    %8042 = vmatprep.subr.bf16.mxu0 0
    %8043 = vmatpush1.bf16.msra.mxu0 0
    %8044 = vmatprep.subr.bf16.mxu0 0
    %8045 = vmatpush1.bf16.msra.mxu0 0
    %8046 = vmatprep.subr.bf16.mxu0 0
    %8047 = vmatpush1.bf16.msra.mxu0 0
    %8048 = vmatprep.subr.bf16.mxu0 0
    %8049 = vmatpush1.bf16.msra.mxu0 0
    %8050 = vmatprep.subr.bf16.mxu0 0
    %8051 = vmatpush1.bf16.msra.mxu0 0
    %8052 = vmatprep.subr.bf16.mxu0 0
    %8053 = vmatpush1.bf16.msra.mxu0 0
    %8054 = vmatprep.subr.bf16.mxu0 0
    %8055 = vmatpush1.bf16.msra.mxu0 0
    %8056 = vmatprep.mubr.bf16.mxu0 0
    %8057 = vmatmul.mubr.bf16.gmra.mrb[0].mxu0 %v8022
    %v8058 = vpop.f32.mrb[0].mxu0
    %v8059 = vadd.f32 %v8007, %v8058
    %v8060 = vpop.f32.mrb[0].mxu0
    %v8061 = vpop.f32.mrb[0].mxu0
    %v8062 = vpop.f32.mrb[0].mxu0
    %8063 = vdwg.mxu0
    %v8064 = vmax.f32 %v8059, 0.0
    %v8065 = vpack.c.bf16 %v8064, %v8064
    %s8066 = scalar_lea.vmem %s18, 64
    %v8067 = vld [vmem:[%s8066] sm:$0xf]
    %v8068 = vld [vmem:[%s8066 + $0x4] sm:$0xf]
    %v8069 = vld [vmem:[%s8066 + $0x8] sm:$0xf]
    %v8070 = vld [vmem:[%s8066 + $0xc] sm:$0xf]
    %v8071 = vld [vmem:[%s8066 + $0x10] sm:$0xf]
    %v8072 = vld [vmem:[%s8066 + $0x14] sm:$0xf]
    %v8073 = vld [vmem:[%s8066 + $0x18] sm:$0xf]
    %v8074 = vld [vmem:[%s8066 + $0x1c] sm:$0xf]
    %v8075 = vld [vmem:[%s8066 + $0x20] sm:$0xf]
    %v8076 = vld [vmem:[%s8066 + $0x24] sm:$0xf]
    %v8077 = vld [vmem:[%s8066 + $0x28] sm:$0xf]
    %v8078 = vld [vmem:[%s8066 + $0x2c] sm:$0xf]
    %v8079 = vld [vmem:[%s8066 + $0x30] sm:$0xf]
    %v8080 = vld [vmem:[%s8066 + $0x34] sm:$0xf]
    %v8081 = vld [vmem:[%s8066 + $0x38] sm:$0xf]
    %v8082 = vld [vmem:[%s8066 + $0x3c] sm:$0xf]
    %s8083 = scalar_lea.vmem %s19, 1
    %v8084 = vld [vmem:[%s8083] sm:$0x1]
    %v8086 = vlaneseq
    %v8087 = vshrl.u32 %v8086, 7
    %v8088 = vsub.s32 0, %v8087
    %v8089 = vrot.slane %v8084, %v8088
    %v8107 = vunpack.c.l.b16 %v8067
    %v8108 = vunpack.c.l.b16 %v8068
    %v8109 = vunpack.c.l.b16 %v8069
    %v8110 = vunpack.c.l.b16 %v8070
    %v8111 = vunpack.c.l.b16 %v8071
    %v8112 = vunpack.c.l.b16 %v8072
    %v8113 = vunpack.c.l.b16 %v8073
    %v8114 = vunpack.c.l.b16 %v8074
    %v8115 = vunpack.c.l.b16 %v8075
    %v8116 = vunpack.c.l.b16 %v8076
    %v8117 = vunpack.c.l.b16 %v8077
    %v8118 = vunpack.c.l.b16 %v8078
    %v8119 = vunpack.c.l.b16 %v8079
    %v8120 = vunpack.c.l.b16 %v8080
    %v8121 = vunpack.c.l.b16 %v8081
    %v8122 = vunpack.c.l.b16 %v8082
    %v8123 = vpack.c.b16 %v8108, %v8107
    %v8124 = vpack.c.b16 %v8110, %v8109
    %v8125 = vpack.c.b16 %v8112, %v8111
    %v8126 = vpack.c.b16 %v8114, %v8113
    %v8127 = vpack.c.b16 %v8116, %v8115
    %v8128 = vpack.c.b16 %v8118, %v8117
    %v8129 = vpack.c.b16 %v8120, %v8119
    %v8130 = vpack.c.b16 %v8122, %v8121
    %8139 = vmatprep.subr.bf16.mxu0 0
    %8140 = vmatpush1.bf16.msra.mxu0 %v8123
    %8141 = vmatprep.subr.bf16.mxu0 0
    %8142 = vmatpush1.bf16.msra.mxu0 %v8124
    %8143 = vmatprep.subr.bf16.mxu0 0
    %8144 = vmatpush1.bf16.msra.mxu0 %v8125
    %8145 = vmatprep.subr.bf16.mxu0 0
    %8146 = vmatpush1.bf16.msra.mxu0 %v8126
    %8147 = vmatprep.subr.bf16.mxu0 0
    %8148 = vmatpush1.bf16.msra.mxu0 %v8127
    %8149 = vmatprep.subr.bf16.mxu0 0
    %8150 = vmatpush1.bf16.msra.mxu0 %v8128
    %8151 = vmatprep.subr.bf16.mxu0 0
    %8152 = vmatpush1.bf16.msra.mxu0 %v8129
    %8153 = vmatprep.subr.bf16.mxu0 0
    %8154 = vmatpush1.bf16.msra.mxu0 %v8130
    %8155 = vmatprep.subr.bf16.mxu0 0
    %8156 = vmatpush1.bf16.msra.mxu0 0
    %8157 = vmatprep.subr.bf16.mxu0 0
    %8158 = vmatpush1.bf16.msra.mxu0 0
    %8159 = vmatprep.subr.bf16.mxu0 0
    %8160 = vmatpush1.bf16.msra.mxu0 0
    %8161 = vmatprep.subr.bf16.mxu0 0
    %8162 = vmatpush1.bf16.msra.mxu0 0
    %8163 = vmatprep.subr.bf16.mxu0 0
    %8164 = vmatpush1.bf16.msra.mxu0 0
    %8165 = vmatprep.subr.bf16.mxu0 0
    %8166 = vmatpush1.bf16.msra.mxu0 0
    %8167 = vmatprep.subr.bf16.mxu0 0
    %8168 = vmatpush1.bf16.msra.mxu0 0
    %8169 = vmatprep.subr.bf16.mxu0 0
    %8170 = vmatpush1.bf16.msra.mxu0 0
    %8171 = vmatprep.mubr.bf16.mxu0 0
    %8172 = vmatmul.mubr.bf16.gmra.mrb[0].mxu0 %v8065
    %v8173 = vpop.f32.mrb[0].mxu0
    %v8174 = vadd.f32 %v8089, %v8173
    %v8175 = vpop.f32.mrb[0].mxu0
    %v8176 = vpop.f32.mrb[0].mxu0
    %v8177 = vpop.f32.mrb[0].mxu0
    %8178 = vdwg.mxu0
    %v8179 = vadd.f32 %v7994, %v8174
    %s8180 = scalar_lea.vmem %s22, 1
    %v8181 = vld [vmem:[%s8180] sm:$0x1]
    %s8182 = scalar_lea.vmem %s23, 1
    %v8183 = vld [vmem:[%s8182] sm:$0x1]
    %v8184 = vsel %vm5074, %v8179, 0.0
    %8185 = vadd.xlane.f32.xlu0 %v8184
    %v8186 = vpop.xlane.xlu0 %8185
    %v8187 = vmul.f32 %v8186, %v7170
    %v8188 = vsub.f32 %v8179, %v8187
    %v8189 = vmul.f32 %v8188, %v8188
    %v8190 = vsel %vm5074, %v8189, 0.0
    %8191 = vadd.xlane.f32.xlu0 %v8190
    %v8192 = vpop.xlane.xlu0 %8191
    %v8193 = vmul.f32 %v8192, %v7170
    %v8194 = vadd.f32 %v8193, 1e-05
    %v8195 = vrsqrt.pop %v8194
    %v8196 = vmul.f32 %v8188, %v8195
    %v8198 = vlaneseq
    %v8199 = vshrl.u32 %v8198, 7
    %v8200 = vsub.s32 0, %v8199
    %v8201 = vrot.slane %v8181, %v8200
    %v8203 = vmul.f32 %v8196, %v8201
    %v8205 = vlaneseq
    %v8206 = vshrl.u32 %v8205, 7
    %v8207 = vsub.s32 0, %v8206
    %v8208 = vrot.slane %v8183, %v8207
    %v8210 = vadd.f32 %v8203, %v8208
    %v8211 = vpack.c.bf16 %v8210, %v8210
    %s8212 = scalar_lea.vmem %s12, 32
    %v8213 = vld [vmem:[%s8212] sm:$0xf]
    %v8214 = vld [vmem:[%s8212 + $0x4] sm:$0xf]
    %v8215 = vld [vmem:[%s8212 + $0x8] sm:$0xf]
    %v8216 = vld [vmem:[%s8212 + $0xc] sm:$0xf]
    %s8217 = scalar_lea.vmem %s13, 2
    %v8218 = vld [vmem:[%s8217] sm:$0x1]
    %v8220 = vlaneseq
    %v8221 = vshrl.u32 %v8220, 7
    %v8222 = vsub.s32 0, %v8221
    %v8223 = vrot.slane %v8218, %v8222
    %v8229 = vunpack.c.l.b16 %v8213
    %v8230 = vunpack.c.l.b16 %v8214
    %v8231 = vunpack.c.l.b16 %v8215
    %v8232 = vunpack.c.l.b16 %v8216
    %v8233 = vpack.c.b16 %v8230, %v8229
    %v8234 = vpack.c.b16 %v8232, %v8231
    %v8238 = vsel %vm5074, %v8211, 0
    %8240 = vmatprep.subr.bf16.mxu0 0
    %8241 = vmatpush1.bf16.msra.mxu0 %v8233
    %8242 = vmatprep.subr.bf16.mxu0 0
    %8243 = vmatpush1.bf16.msra.mxu0 %v8234
    %8244 = vmatprep.subr.bf16.mxu0 0
    %8245 = vmatpush1.bf16.msra.mxu0 0
    %8246 = vmatprep.subr.bf16.mxu0 0
    %8247 = vmatpush1.bf16.msra.mxu0 0
    %8248 = vmatprep.subr.bf16.mxu0 0
    %8249 = vmatpush1.bf16.msra.mxu0 0
    %8250 = vmatprep.subr.bf16.mxu0 0
    %8251 = vmatpush1.bf16.msra.mxu0 0
    %8252 = vmatprep.subr.bf16.mxu0 0
    %8253 = vmatpush1.bf16.msra.mxu0 0
    %8254 = vmatprep.subr.bf16.mxu0 0
    %8255 = vmatpush1.bf16.msra.mxu0 0
    %8256 = vmatprep.subr.bf16.mxu0 0
    %8257 = vmatpush1.bf16.msra.mxu0 0
    %8258 = vmatprep.subr.bf16.mxu0 0
    %8259 = vmatpush1.bf16.msra.mxu0 0
    %8260 = vmatprep.subr.bf16.mxu0 0
    %8261 = vmatpush1.bf16.msra.mxu0 0
    %8262 = vmatprep.subr.bf16.mxu0 0
    %8263 = vmatpush1.bf16.msra.mxu0 0
    %8264 = vmatprep.subr.bf16.mxu0 0
    %8265 = vmatpush1.bf16.msra.mxu0 0
    %8266 = vmatprep.subr.bf16.mxu0 0
    %8267 = vmatpush1.bf16.msra.mxu0 0
    %8268 = vmatprep.subr.bf16.mxu0 0
    %8269 = vmatpush1.bf16.msra.mxu0 0
    %8270 = vmatprep.subr.bf16.mxu0 0
    %8271 = vmatpush1.bf16.msra.mxu0 0
    %8272 = vmatprep.mubr.bf16.mxu0 0
    %8273 = vmatmul.mubr.bf16.gmra.mrb[0].mxu0 %v8238
    %v8274 = vpop.f32.mrb[0].mxu0
    %v8275 = vadd.f32 %v8223, %v8274
    %v8276 = vpop.f32.mrb[0].mxu0
    %v8277 = vpop.f32.mrb[0].mxu0
    %v8278 = vpop.f32.mrb[0].mxu0
    %8279 = vdwg.mxu0
    %v8280 = vpack.c.bf16 %v8275, %v8275
    %v8281 = vmul.f32 %v8275, %v6592
    %v8282 = vpack.c.bf16 %v8281, %v8281
    %8284 = vrot.lane.b32.xlu0 %v8280, 96
    %v8285 = vpop.permute.xlu0 %8284
    %v8287 = vsel %vm5074, %v8282, 0
    %v8290 = vsel %vm5074, %v8285, 0
    %8292 = vmatprep.subr.bf16.mxu0 0
    %8293 = vmatpush1.bf16.xpose.msra.mxu0 %v8290
    %8294 = vmatprep.subr.bf16.mxu0 0
    %8295 = vmatpush1.bf16.xpose.msra.mxu0 0
    %8296 = vmatprep.subr.bf16.mxu0 0
    %8297 = vmatpush1.bf16.xpose.msra.mxu0 0
    %8298 = vmatprep.subr.bf16.mxu0 0
    %8299 = vmatpush1.bf16.xpose.msra.mxu0 0
    %8300 = vmatprep.subr.bf16.mxu0 0
    %8301 = vmatpush1.bf16.xpose.msra.mxu0 0
    %8302 = vmatprep.subr.bf16.mxu0 0
    %8303 = vmatpush1.bf16.xpose.msra.mxu0 0
    %8304 = vmatprep.subr.bf16.mxu0 0
    %8305 = vmatpush1.bf16.xpose.msra.mxu0 0
    %8306 = vmatprep.subr.bf16.mxu0 0
    %8307 = vmatpush1.bf16.xpose.msra.mxu0 0
    %8308 = vmatprep.subr.bf16.mxu0 0
    %8309 = vmatpush1.bf16.xpose.msra.mxu0 0
    %8310 = vmatprep.subr.bf16.mxu0 0
    %8311 = vmatpush1.bf16.xpose.msra.mxu0 0
    %8312 = vmatprep.subr.bf16.mxu0 0
    %8313 = vmatpush1.bf16.xpose.msra.mxu0 0
    %8314 = vmatprep.subr.bf16.mxu0 0
    %8315 = vmatpush1.bf16.xpose.msra.mxu0 0
    %8316 = vmatprep.subr.bf16.mxu0 0
    %8317 = vmatpush1.bf16.xpose.msra.mxu0 0
    %8318 = vmatprep.subr.bf16.mxu0 0
    %8319 = vmatpush1.bf16.xpose.msra.mxu0 0
    %8320 = vmatprep.subr.bf16.mxu0 0
    %8321 = vmatpush1.bf16.xpose.msra.mxu0 0
    %8322 = vmatprep.subr.bf16.mxu0 0
    %8323 = vmatpush1.bf16.xpose.msra.mxu0 0
    %8324 = vmatprep.mubr.bf16.mxu0 0
    %8325 = vmatmul.mubr.bf16.gmra.mrb[0].mxu0 %v8287
    %v8326 = vpop.f32.mrb[0].mxu0
    %v8327 = vadd.f32 %v6585, %v8326
    %v8328 = vpop.f32.mrb[0].mxu0
    %v8329 = vpop.f32.mrb[0].mxu0
    %v8330 = vpop.f32.mrb[0].mxu0
    %8331 = vdwg.mxu0
    %v8332 = vsel %vm6727, %v8327, -inf
    %8333 = vmax.xlane.f32.xlu0 %v8332
    %v8334 = vpop.xlane.xlu0 %8333
    %v8335 = vsub.f32 %v8327, %v8334
    %v8336 = vmul.f32 %v8335, 1.442695
    %v8337 = vpow.pop %v8336
    %v8338 = vsel %vm6727, %v8337, 0.0
    %8339 = vadd.xlane.f32.xlu0 %v8338
    %v8340 = vpop.xlane.xlu0 %8339
    %v8341 = vrcp.pop %v8340
    %v8342 = vmul.f32 %v8337, %v8341
    %v8343 = vpack.c.bf16 %v8342, %v8342
    %8344 = vrot.lane.b32.xlu0 %v8280, 64
    %v8345 = vpop.permute.xlu0 %8344
    %v8347 = vsel %vm6727, %v8343, 0
    %v8350 = vsel %vm6745, %v8345, 0
    %8352 = vmatprep.subr.bf16.mxu0 0
    %8353 = vmatpush1.bf16.msra.mxu0 %v8350
    %8354 = vmatprep.subr.bf16.mxu0 0
    %8355 = vmatpush1.bf16.msra.mxu0 0
    %8356 = vmatprep.subr.bf16.mxu0 0
    %8357 = vmatpush1.bf16.msra.mxu0 0
    %8358 = vmatprep.subr.bf16.mxu0 0
    %8359 = vmatpush1.bf16.msra.mxu0 0
    %8360 = vmatprep.subr.bf16.mxu0 0
    %8361 = vmatpush1.bf16.msra.mxu0 0
    %8362 = vmatprep.subr.bf16.mxu0 0
    %8363 = vmatpush1.bf16.msra.mxu0 0
    %8364 = vmatprep.subr.bf16.mxu0 0
    %8365 = vmatpush1.bf16.msra.mxu0 0
    %8366 = vmatprep.subr.bf16.mxu0 0
    %8367 = vmatpush1.bf16.msra.mxu0 0
    %8368 = vmatprep.subr.bf16.mxu0 0
    %8369 = vmatpush1.bf16.msra.mxu0 0
    %8370 = vmatprep.subr.bf16.mxu0 0
    %8371 = vmatpush1.bf16.msra.mxu0 0
    %8372 = vmatprep.subr.bf16.mxu0 0
    %8373 = vmatpush1.bf16.msra.mxu0 0
    %8374 = vmatprep.subr.bf16.mxu0 0
    %8375 = vmatpush1.bf16.msra.mxu0 0
    %8376 = vmatprep.subr.bf16.mxu0 0
    %8377 = vmatpush1.bf16.msra.mxu0 0
    %8378 = vmatprep.subr.bf16.mxu0 0
    %8379 = vmatpush1.bf16.msra.mxu0 0
    %8380 = vmatprep.subr.bf16.mxu0 0
    %8381 = vmatpush1.bf16.msra.mxu0 0
    %8382 = vmatprep.subr.bf16.mxu0 0
    %8383 = vmatpush1.bf16.msra.mxu0 0
    %8384 = vmatprep.mubr.bf16.mxu0 0
    %8385 = vmatmul.mubr.bf16.gmra.mrb[0].mxu0 %v8347
    %v8386 = vpop.f32.mrb[0].mxu0
    %v8387 = vadd.f32 0.0, %v8386
    %v8388 = vpop.f32.mrb[0].mxu0
    %v8389 = vpop.f32.mrb[0].mxu0
    %v8390 = vpop.f32.mrb[0].mxu0
    %8391 = vdwg.mxu0
    %v8392 = vmul.f32 %v8387, %v6592
    %v8393 = vadd.f32 %v8392, 0.0
    %v8394 = vmul.f32 %v8275, %v6597
    %v8395 = vpack.c.bf16 %v8394, %v8394
    %v8397 = vsel %vm5074, %v8395, 0
    %8399 = vmatprep.subr.bf16.mxu0 0
    %8400 = vmatpush1.bf16.xpose.msra.mxu0 %v8290
    %8401 = vmatprep.subr.bf16.mxu0 0
    %8402 = vmatpush1.bf16.xpose.msra.mxu0 0
    %8403 = vmatprep.subr.bf16.mxu0 0
    %8404 = vmatpush1.bf16.xpose.msra.mxu0 0
    %8405 = vmatprep.subr.bf16.mxu0 0
    %8406 = vmatpush1.bf16.xpose.msra.mxu0 0
    %8407 = vmatprep.subr.bf16.mxu0 0
    %8408 = vmatpush1.bf16.xpose.msra.mxu0 0
    %8409 = vmatprep.subr.bf16.mxu0 0
    %8410 = vmatpush1.bf16.xpose.msra.mxu0 0
    %8411 = vmatprep.subr.bf16.mxu0 0
    %8412 = vmatpush1.bf16.xpose.msra.mxu0 0
    %8413 = vmatprep.subr.bf16.mxu0 0
    %8414 = vmatpush1.bf16.xpose.msra.mxu0 0
    %8415 = vmatprep.subr.bf16.mxu0 0
    %8416 = vmatpush1.bf16.xpose.msra.mxu0 0
    %8417 = vmatprep.subr.bf16.mxu0 0
    %8418 = vmatpush1.bf16.xpose.msra.mxu0 0
    %8419 = vmatprep.subr.bf16.mxu0 0
    %8420 = vmatpush1.bf16.xpose.msra.mxu0 0
    %8421 = vmatprep.subr.bf16.mxu0 0
    %8422 = vmatpush1.bf16.xpose.msra.mxu0 0
    %8423 = vmatprep.subr.bf16.mxu0 0
    %8424 = vmatpush1.bf16.xpose.msra.mxu0 0
    %8425 = vmatprep.subr.bf16.mxu0 0
    %8426 = vmatpush1.bf16.xpose.msra.mxu0 0
    %8427 = vmatprep.subr.bf16.mxu0 0
    %8428 = vmatpush1.bf16.xpose.msra.mxu0 0
    %8429 = vmatprep.subr.bf16.mxu0 0
    %8430 = vmatpush1.bf16.xpose.msra.mxu0 0
    %8431 = vmatprep.mubr.bf16.mxu0 0
    %8432 = vmatmul.mubr.bf16.gmra.mrb[0].mxu0 %v8397
    %v8433 = vpop.f32.mrb[0].mxu0
    %v8434 = vadd.f32 %v6585, %v8433
    %v8435 = vpop.f32.mrb[0].mxu0
    %v8436 = vpop.f32.mrb[0].mxu0
    %v8437 = vpop.f32.mrb[0].mxu0
    %8438 = vdwg.mxu0
    %v8439 = vsel %vm6727, %v8434, -inf
    %8440 = vmax.xlane.f32.xlu0 %v8439
    %v8441 = vpop.xlane.xlu0 %8440
    %v8442 = vsub.f32 %v8434, %v8441
    %v8443 = vmul.f32 %v8442, 1.442695
    %v8444 = vpow.pop %v8443
    %v8445 = vsel %vm6727, %v8444, 0.0
    %8446 = vadd.xlane.f32.xlu0 %v8445
    %v8447 = vpop.xlane.xlu0 %8446
    %v8448 = vrcp.pop %v8447
    %v8449 = vmul.f32 %v8444, %v8448
    %v8450 = vpack.c.bf16 %v8449, %v8449
    %v8452 = vsel %vm6727, %v8450, 0
    %8454 = vmatprep.subr.bf16.mxu0 0
    %8455 = vmatpush1.bf16.msra.mxu0 %v8350
    %8456 = vmatprep.subr.bf16.mxu0 0
    %8457 = vmatpush1.bf16.msra.mxu0 0
    %8458 = vmatprep.subr.bf16.mxu0 0
    %8459 = vmatpush1.bf16.msra.mxu0 0
    %8460 = vmatprep.subr.bf16.mxu0 0
    %8461 = vmatpush1.bf16.msra.mxu0 0
    %8462 = vmatprep.subr.bf16.mxu0 0
    %8463 = vmatpush1.bf16.msra.mxu0 0
    %8464 = vmatprep.subr.bf16.mxu0 0
    %8465 = vmatpush1.bf16.msra.mxu0 0
    %8466 = vmatprep.subr.bf16.mxu0 0
    %8467 = vmatpush1.bf16.msra.mxu0 0
    %8468 = vmatprep.subr.bf16.mxu0 0
    %8469 = vmatpush1.bf16.msra.mxu0 0
    %8470 = vmatprep.subr.bf16.mxu0 0
    %8471 = vmatpush1.bf16.msra.mxu0 0
    %8472 = vmatprep.subr.bf16.mxu0 0
    %8473 = vmatpush1.bf16.msra.mxu0 0
    %8474 = vmatprep.subr.bf16.mxu0 0
    %8475 = vmatpush1.bf16.msra.mxu0 0
    %8476 = vmatprep.subr.bf16.mxu0 0
    %8477 = vmatpush1.bf16.msra.mxu0 0
    %8478 = vmatprep.subr.bf16.mxu0 0
    %8479 = vmatpush1.bf16.msra.mxu0 0
    %8480 = vmatprep.subr.bf16.mxu0 0
    %8481 = vmatpush1.bf16.msra.mxu0 0
    %8482 = vmatprep.subr.bf16.mxu0 0
    %8483 = vmatpush1.bf16.msra.mxu0 0
    %8484 = vmatprep.subr.bf16.mxu0 0
    %8485 = vmatpush1.bf16.msra.mxu0 0
    %8486 = vmatprep.mubr.bf16.mxu0 0
    %8487 = vmatmul.mubr.bf16.gmra.mrb[0].mxu0 %v8452
    %v8488 = vpop.f32.mrb[0].mxu0
    %v8489 = vadd.f32 0.0, %v8488
    %v8490 = vpop.f32.mrb[0].mxu0
    %v8491 = vpop.f32.mrb[0].mxu0
    %v8492 = vpop.f32.mrb[0].mxu0
    %8493 = vdwg.mxu0
    %v8494 = vmul.f32 %v8489, %v6597
    %v8495 = vadd.f32 %v8393, %v8494
    %v8496 = vmul.f32 %v8275, %v6602
    %v8497 = vpack.c.bf16 %v8496, %v8496
    %v8499 = vsel %vm5074, %v8497, 0
    %8501 = vmatprep.subr.bf16.mxu0 0
    %8502 = vmatpush1.bf16.xpose.msra.mxu0 %v8290
    %8503 = vmatprep.subr.bf16.mxu0 0
    %8504 = vmatpush1.bf16.xpose.msra.mxu0 0
    %8505 = vmatprep.subr.bf16.mxu0 0
    %8506 = vmatpush1.bf16.xpose.msra.mxu0 0
    %8507 = vmatprep.subr.bf16.mxu0 0
    %8508 = vmatpush1.bf16.xpose.msra.mxu0 0
    %8509 = vmatprep.subr.bf16.mxu0 0
    %8510 = vmatpush1.bf16.xpose.msra.mxu0 0
    %8511 = vmatprep.subr.bf16.mxu0 0
    %8512 = vmatpush1.bf16.xpose.msra.mxu0 0
    %8513 = vmatprep.subr.bf16.mxu0 0
    %8514 = vmatpush1.bf16.xpose.msra.mxu0 0
    %8515 = vmatprep.subr.bf16.mxu0 0
    %8516 = vmatpush1.bf16.xpose.msra.mxu0 0
    %8517 = vmatprep.subr.bf16.mxu0 0
    %8518 = vmatpush1.bf16.xpose.msra.mxu0 0
    %8519 = vmatprep.subr.bf16.mxu0 0
    %8520 = vmatpush1.bf16.xpose.msra.mxu0 0
    %8521 = vmatprep.subr.bf16.mxu0 0
    %8522 = vmatpush1.bf16.xpose.msra.mxu0 0
    %8523 = vmatprep.subr.bf16.mxu0 0
    %8524 = vmatpush1.bf16.xpose.msra.mxu0 0
    %8525 = vmatprep.subr.bf16.mxu0 0
    %8526 = vmatpush1.bf16.xpose.msra.mxu0 0
    %8527 = vmatprep.subr.bf16.mxu0 0
    %8528 = vmatpush1.bf16.xpose.msra.mxu0 0
    %8529 = vmatprep.subr.bf16.mxu0 0
    %8530 = vmatpush1.bf16.xpose.msra.mxu0 0
    %8531 = vmatprep.subr.bf16.mxu0 0
    %8532 = vmatpush1.bf16.xpose.msra.mxu0 0
    %8533 = vmatprep.mubr.bf16.mxu0 0
    %8534 = vmatmul.mubr.bf16.gmra.mrb[0].mxu0 %v8499
    %v8535 = vpop.f32.mrb[0].mxu0
    %v8536 = vadd.f32 %v6585, %v8535
    %v8537 = vpop.f32.mrb[0].mxu0
    %v8538 = vpop.f32.mrb[0].mxu0
    %v8539 = vpop.f32.mrb[0].mxu0
    %8540 = vdwg.mxu0
    %v8541 = vsel %vm6727, %v8536, -inf
    %8542 = vmax.xlane.f32.xlu0 %v8541
    %v8543 = vpop.xlane.xlu0 %8542
    %v8544 = vsub.f32 %v8536, %v8543
    %v8545 = vmul.f32 %v8544, 1.442695
    %v8546 = vpow.pop %v8545
    %v8547 = vsel %vm6727, %v8546, 0.0
    %8548 = vadd.xlane.f32.xlu0 %v8547
    %v8549 = vpop.xlane.xlu0 %8548
    %v8550 = vrcp.pop %v8549
    %v8551 = vmul.f32 %v8546, %v8550
    %v8552 = vpack.c.bf16 %v8551, %v8551
    %v8554 = vsel %vm6727, %v8552, 0
    %8556 = vmatprep.subr.bf16.mxu0 0
    %8557 = vmatpush1.bf16.msra.mxu0 %v8350
    %8558 = vmatprep.subr.bf16.mxu0 0
    %8559 = vmatpush1.bf16.msra.mxu0 0
    %8560 = vmatprep.subr.bf16.mxu0 0
    %8561 = vmatpush1.bf16.msra.mxu0 0
    %8562 = vmatprep.subr.bf16.mxu0 0
    %8563 = vmatpush1.bf16.msra.mxu0 0
    %8564 = vmatprep.subr.bf16.mxu0 0
    %8565 = vmatpush1.bf16.msra.mxu0 0
    %8566 = vmatprep.subr.bf16.mxu0 0
    %8567 = vmatpush1.bf16.msra.mxu0 0
    %8568 = vmatprep.subr.bf16.mxu0 0
    %8569 = vmatpush1.bf16.msra.mxu0 0
    %8570 = vmatprep.subr.bf16.mxu0 0
    %8571 = vmatpush1.bf16.msra.mxu0 0
    %8572 = vmatprep.subr.bf16.mxu0 0
    %8573 = vmatpush1.bf16.msra.mxu0 0
    %8574 = vmatprep.subr.bf16.mxu0 0
    %8575 = vmatpush1.bf16.msra.mxu0 0
    %8576 = vmatprep.subr.bf16.mxu0 0
    %8577 = vmatpush1.bf16.msra.mxu0 0
    %8578 = vmatprep.subr.bf16.mxu0 0
    %8579 = vmatpush1.bf16.msra.mxu0 0
    %8580 = vmatprep.subr.bf16.mxu0 0
    %8581 = vmatpush1.bf16.msra.mxu0 0
    %8582 = vmatprep.subr.bf16.mxu0 0
    %8583 = vmatpush1.bf16.msra.mxu0 0
    %8584 = vmatprep.subr.bf16.mxu0 0
    %8585 = vmatpush1.bf16.msra.mxu0 0
    %8586 = vmatprep.subr.bf16.mxu0 0
    %8587 = vmatpush1.bf16.msra.mxu0 0
    %8588 = vmatprep.mubr.bf16.mxu0 0
    %8589 = vmatmul.mubr.bf16.gmra.mrb[0].mxu0 %v8554
    %v8590 = vpop.f32.mrb[0].mxu0
    %v8591 = vadd.f32 0.0, %v8590
    %v8592 = vpop.f32.mrb[0].mxu0
    %v8593 = vpop.f32.mrb[0].mxu0
    %v8594 = vpop.f32.mrb[0].mxu0
    %8595 = vdwg.mxu0
    %v8596 = vmul.f32 %v8591, %v6602
    %v8597 = vadd.f32 %v8495, %v8596
    %v8598 = vmul.f32 %v8275, %v6607
    %v8599 = vpack.c.bf16 %v8598, %v8598
    %v8601 = vsel %vm5074, %v8599, 0
    %8603 = vmatprep.subr.bf16.mxu0 0
    %8604 = vmatpush1.bf16.xpose.msra.mxu0 %v8290
    %8605 = vmatprep.subr.bf16.mxu0 0
    %8606 = vmatpush1.bf16.xpose.msra.mxu0 0
    %8607 = vmatprep.subr.bf16.mxu0 0
    %8608 = vmatpush1.bf16.xpose.msra.mxu0 0
    %8609 = vmatprep.subr.bf16.mxu0 0
    %8610 = vmatpush1.bf16.xpose.msra.mxu0 0
    %8611 = vmatprep.subr.bf16.mxu0 0
    %8612 = vmatpush1.bf16.xpose.msra.mxu0 0
    %8613 = vmatprep.subr.bf16.mxu0 0
    %8614 = vmatpush1.bf16.xpose.msra.mxu0 0
    %8615 = vmatprep.subr.bf16.mxu0 0
    %8616 = vmatpush1.bf16.xpose.msra.mxu0 0
    %8617 = vmatprep.subr.bf16.mxu0 0
    %8618 = vmatpush1.bf16.xpose.msra.mxu0 0
    %8619 = vmatprep.subr.bf16.mxu0 0
    %8620 = vmatpush1.bf16.xpose.msra.mxu0 0
    %8621 = vmatprep.subr.bf16.mxu0 0
    %8622 = vmatpush1.bf16.xpose.msra.mxu0 0
    %8623 = vmatprep.subr.bf16.mxu0 0
    %8624 = vmatpush1.bf16.xpose.msra.mxu0 0
    %8625 = vmatprep.subr.bf16.mxu0 0
    %8626 = vmatpush1.bf16.xpose.msra.mxu0 0
    %8627 = vmatprep.subr.bf16.mxu0 0
    %8628 = vmatpush1.bf16.xpose.msra.mxu0 0
    %8629 = vmatprep.subr.bf16.mxu0 0
    %8630 = vmatpush1.bf16.xpose.msra.mxu0 0
    %8631 = vmatprep.subr.bf16.mxu0 0
    %8632 = vmatpush1.bf16.xpose.msra.mxu0 0
    %8633 = vmatprep.subr.bf16.mxu0 0
    %8634 = vmatpush1.bf16.xpose.msra.mxu0 0
    %8635 = vmatprep.mubr.bf16.mxu0 0
    %8636 = vmatmul.mubr.bf16.gmra.mrb[0].mxu0 %v8601
    %v8637 = vpop.f32.mrb[0].mxu0
    %v8638 = vadd.f32 %v6585, %v8637
    %v8639 = vpop.f32.mrb[0].mxu0
    %v8640 = vpop.f32.mrb[0].mxu0
    %v8641 = vpop.f32.mrb[0].mxu0
    %8642 = vdwg.mxu0
    %v8643 = vsel %vm6727, %v8638, -inf
    %8644 = vmax.xlane.f32.xlu0 %v8643
    %v8645 = vpop.xlane.xlu0 %8644
    %v8646 = vsub.f32 %v8638, %v8645
    %v8647 = vmul.f32 %v8646, 1.442695
    %v8648 = vpow.pop %v8647
    %v8649 = vsel %vm6727, %v8648, 0.0
    %8650 = vadd.xlane.f32.xlu0 %v8649
    %v8651 = vpop.xlane.xlu0 %8650
    %v8652 = vrcp.pop %v8651
    %v8653 = vmul.f32 %v8648, %v8652
    %v8654 = vpack.c.bf16 %v8653, %v8653
    %v8656 = vsel %vm6727, %v8654, 0
    %8658 = vmatprep.subr.bf16.mxu0 0
    %8659 = vmatpush1.bf16.msra.mxu0 %v8350
    %8660 = vmatprep.subr.bf16.mxu0 0
    %8661 = vmatpush1.bf16.msra.mxu0 0
    %8662 = vmatprep.subr.bf16.mxu0 0
    %8663 = vmatpush1.bf16.msra.mxu0 0
    %8664 = vmatprep.subr.bf16.mxu0 0
    %8665 = vmatpush1.bf16.msra.mxu0 0
    %8666 = vmatprep.subr.bf16.mxu0 0
    %8667 = vmatpush1.bf16.msra.mxu0 0
    %8668 = vmatprep.subr.bf16.mxu0 0
    %8669 = vmatpush1.bf16.msra.mxu0 0
    %8670 = vmatprep.subr.bf16.mxu0 0
    %8671 = vmatpush1.bf16.msra.mxu0 0
    %8672 = vmatprep.subr.bf16.mxu0 0
    %8673 = vmatpush1.bf16.msra.mxu0 0
    %8674 = vmatprep.subr.bf16.mxu0 0
    %8675 = vmatpush1.bf16.msra.mxu0 0
    %8676 = vmatprep.subr.bf16.mxu0 0
    %8677 = vmatpush1.bf16.msra.mxu0 0
    %8678 = vmatprep.subr.bf16.mxu0 0
    %8679 = vmatpush1.bf16.msra.mxu0 0
    %8680 = vmatprep.subr.bf16.mxu0 0
    %8681 = vmatpush1.bf16.msra.mxu0 0
    %8682 = vmatprep.subr.bf16.mxu0 0
    %8683 = vmatpush1.bf16.msra.mxu0 0
    %8684 = vmatprep.subr.bf16.mxu0 0
    %8685 = vmatpush1.bf16.msra.mxu0 0
    %8686 = vmatprep.subr.bf16.mxu0 0
    %8687 = vmatpush1.bf16.msra.mxu0 0
    %8688 = vmatprep.subr.bf16.mxu0 0
    %8689 = vmatpush1.bf16.msra.mxu0 0
    %8690 = vmatprep.mubr.bf16.mxu0 0
    %8691 = vmatmul.mubr.bf16.gmra.mrb[0].mxu0 %v8656
    %v8692 = vpop.f32.mrb[0].mxu0
    %v8693 = vadd.f32 0.0, %v8692
    %v8694 = vpop.f32.mrb[0].mxu0
    %v8695 = vpop.f32.mrb[0].mxu0
    %v8696 = vpop.f32.mrb[0].mxu0
    %8697 = vdwg.mxu0
    %v8698 = vmul.f32 %v8693, %v6607
    %v8699 = vadd.f32 %v8597, %v8698
    %v8700 = vpack.c.bf16 %v8699, %v8699
    %s8701 = scalar_lea.vmem %s14, 32
    %v8702 = vld [vmem:[%s8701] sm:$0xf]
    %v8703 = vld [vmem:[%s8701 + $0x4] sm:$0xf]
    %v8704 = vld [vmem:[%s8701 + $0x8] sm:$0xf]
    %v8705 = vld [vmem:[%s8701 + $0xc] sm:$0xf]
    %s8706 = scalar_lea.vmem %s15, 2
    %v8707 = vld [vmem:[%s8706] sm:$0x1]
    %v8709 = vlaneseq
    %v8710 = vshrl.u32 %v8709, 7
    %v8711 = vsub.s32 0, %v8710
    %v8712 = vrot.slane %v8707, %v8711
    %v8718 = vunpack.c.l.b16 %v8702
    %v8719 = vunpack.c.l.b16 %v8703
    %v8720 = vunpack.c.l.b16 %v8704
    %v8721 = vunpack.c.l.b16 %v8705
    %v8722 = vpack.c.b16 %v8719, %v8718
    %v8723 = vpack.c.b16 %v8721, %v8720
    %v8727 = vsel %vm5074, %v8700, 0
    %8729 = vmatprep.subr.bf16.mxu0 0
    %8730 = vmatpush1.bf16.msra.mxu0 %v8722
    %8731 = vmatprep.subr.bf16.mxu0 0
    %8732 = vmatpush1.bf16.msra.mxu0 %v8723
    %8733 = vmatprep.subr.bf16.mxu0 0
    %8734 = vmatpush1.bf16.msra.mxu0 0
    %8735 = vmatprep.subr.bf16.mxu0 0
    %8736 = vmatpush1.bf16.msra.mxu0 0
    %8737 = vmatprep.subr.bf16.mxu0 0
    %8738 = vmatpush1.bf16.msra.mxu0 0
    %8739 = vmatprep.subr.bf16.mxu0 0
    %8740 = vmatpush1.bf16.msra.mxu0 0
    %8741 = vmatprep.subr.bf16.mxu0 0
    %8742 = vmatpush1.bf16.msra.mxu0 0
    %8743 = vmatprep.subr.bf16.mxu0 0
    %8744 = vmatpush1.bf16.msra.mxu0 0
    %8745 = vmatprep.subr.bf16.mxu0 0
    %8746 = vmatpush1.bf16.msra.mxu0 0
    %8747 = vmatprep.subr.bf16.mxu0 0
    %8748 = vmatpush1.bf16.msra.mxu0 0
    %8749 = vmatprep.subr.bf16.mxu0 0
    %8750 = vmatpush1.bf16.msra.mxu0 0
    %8751 = vmatprep.subr.bf16.mxu0 0
    %8752 = vmatpush1.bf16.msra.mxu0 0
    %8753 = vmatprep.subr.bf16.mxu0 0
    %8754 = vmatpush1.bf16.msra.mxu0 0
    %8755 = vmatprep.subr.bf16.mxu0 0
    %8756 = vmatpush1.bf16.msra.mxu0 0
    %8757 = vmatprep.subr.bf16.mxu0 0
    %8758 = vmatpush1.bf16.msra.mxu0 0
    %8759 = vmatprep.subr.bf16.mxu0 0
    %8760 = vmatpush1.bf16.msra.mxu0 0
    %8761 = vmatprep.mubr.bf16.mxu0 0
    %8762 = vmatmul.mubr.bf16.gmra.mrb[0].mxu0 %v8727
    %v8763 = vpop.f32.mrb[0].mxu0
    %v8764 = vadd.f32 %v8712, %v8763
    %v8765 = vpop.f32.mrb[0].mxu0
    %v8766 = vpop.f32.mrb[0].mxu0
    %v8767 = vpop.f32.mrb[0].mxu0
    %8768 = vdwg.mxu0
    %v8769 = vadd.f32 %v8210, %v8764
    %s8770 = scalar_lea.vmem %s20, 2
    %v8771 = vld [vmem:[%s8770] sm:$0x1]
    %s8772 = scalar_lea.vmem %s21, 2
    %v8773 = vld [vmem:[%s8772] sm:$0x1]
    %v8774 = vsel %vm5074, %v8769, 0.0
    %8775 = vadd.xlane.f32.xlu0 %v8774
    %v8776 = vpop.xlane.xlu0 %8775
    %v8777 = vmul.f32 %v8776, %v7170
    %v8778 = vsub.f32 %v8769, %v8777
    %v8779 = vmul.f32 %v8778, %v8778
    %v8780 = vsel %vm5074, %v8779, 0.0
    %8781 = vadd.xlane.f32.xlu0 %v8780
    %v8782 = vpop.xlane.xlu0 %8781
    %v8783 = vmul.f32 %v8782, %v7170
    %v8784 = vadd.f32 %v8783, 1e-05
    %v8785 = vrsqrt.pop %v8784
    %v8786 = vmul.f32 %v8778, %v8785
    %v8788 = vlaneseq
    %v8789 = vshrl.u32 %v8788, 7
    %v8790 = vsub.s32 0, %v8789
    %v8791 = vrot.slane %v8771, %v8790
    %v8793 = vmul.f32 %v8786, %v8791
    %v8795 = vlaneseq
    %v8796 = vshrl.u32 %v8795, 7
    %v8797 = vsub.s32 0, %v8796
    %v8798 = vrot.slane %v8773, %v8797
    %v8800 = vadd.f32 %v8793, %v8798
    %v8801 = vpack.c.bf16 %v8800, %v8800
    %s8802 = scalar_lea.vmem %s16, 32
    %v8803 = vld [vmem:[%s8802] sm:$0xf]
    %v8804 = vld [vmem:[%s8802 + $0x4] sm:$0xf]
    %v8805 = vld [vmem:[%s8802 + $0x8] sm:$0xf]
    %v8806 = vld [vmem:[%s8802 + $0xc] sm:$0xf]
    %s8807 = scalar_lea.vmem %s17, 2
    %v8808 = vld [vmem:[%s8807] sm:$0x1]
    %v8810 = vlaneseq
    %v8811 = vshrl.u32 %v8810, 7
    %v8812 = vsub.s32 0, %v8811
    %v8813 = vrot.slane %v8808, %v8812
    %v8819 = vunpack.c.l.b16 %v8803
    %v8820 = vunpack.c.l.b16 %v8804
    %v8821 = vunpack.c.l.b16 %v8805
    %v8822 = vunpack.c.l.b16 %v8806
    %v8823 = vpack.c.b16 %v8820, %v8819
    %v8824 = vpack.c.b16 %v8822, %v8821
    %v8828 = vsel %vm5074, %v8801, 0
    %8830 = vmatprep.subr.bf16.mxu0 0
    %8831 = vmatpush1.bf16.msra.mxu0 %v8823
    %8832 = vmatprep.subr.bf16.mxu0 0
    %8833 = vmatpush1.bf16.msra.mxu0 %v8824
    %8834 = vmatprep.subr.bf16.mxu0 0
    %8835 = vmatpush1.bf16.msra.mxu0 0
    %8836 = vmatprep.subr.bf16.mxu0 0
    %8837 = vmatpush1.bf16.msra.mxu0 0
    %8838 = vmatprep.subr.bf16.mxu0 0
    %8839 = vmatpush1.bf16.msra.mxu0 0
    %8840 = vmatprep.subr.bf16.mxu0 0
    %8841 = vmatpush1.bf16.msra.mxu0 0
    %8842 = vmatprep.subr.bf16.mxu0 0
    %8843 = vmatpush1.bf16.msra.mxu0 0
    %8844 = vmatprep.subr.bf16.mxu0 0
    %8845 = vmatpush1.bf16.msra.mxu0 0
    %8846 = vmatprep.subr.bf16.mxu0 0
    %8847 = vmatpush1.bf16.msra.mxu0 0
    %8848 = vmatprep.subr.bf16.mxu0 0
    %8849 = vmatpush1.bf16.msra.mxu0 0
    %8850 = vmatprep.subr.bf16.mxu0 0
    %8851 = vmatpush1.bf16.msra.mxu0 0
    %8852 = vmatprep.subr.bf16.mxu0 0
    %8853 = vmatpush1.bf16.msra.mxu0 0
    %8854 = vmatprep.subr.bf16.mxu0 0
    %8855 = vmatpush1.bf16.msra.mxu0 0
    %8856 = vmatprep.subr.bf16.mxu0 0
    %8857 = vmatpush1.bf16.msra.mxu0 0
    %8858 = vmatprep.subr.bf16.mxu0 0
    %8859 = vmatpush1.bf16.msra.mxu0 0
    %8860 = vmatprep.subr.bf16.mxu0 0
    %8861 = vmatpush1.bf16.msra.mxu0 0
    %8862 = vmatprep.mubr.bf16.mxu0 0
    %8863 = vmatmul.mubr.bf16.gmra.mrb[0].mxu0 %v8828
    %v8864 = vpop.f32.mrb[0].mxu0
    %v8865 = vadd.f32 %v8813, %v8864
    %v8866 = vpop.f32.mrb[0].mxu0
    %v8867 = vpop.f32.mrb[0].mxu0
    %v8868 = vpop.f32.mrb[0].mxu0
    %8869 = vdwg.mxu0
    %v8870 = vmax.f32 %v8865, 0.0
    %v8871 = vpack.c.bf16 %v8870, %v8870
    %s8872 = scalar_lea.vmem %s18, 128
    %v8873 = vld [vmem:[%s8872] sm:$0xf]
    %v8874 = vld [vmem:[%s8872 + $0x4] sm:$0xf]
    %v8875 = vld [vmem:[%s8872 + $0x8] sm:$0xf]
    %v8876 = vld [vmem:[%s8872 + $0xc] sm:$0xf]
    %v8877 = vld [vmem:[%s8872 + $0x10] sm:$0xf]
    %v8878 = vld [vmem:[%s8872 + $0x14] sm:$0xf]
    %v8879 = vld [vmem:[%s8872 + $0x18] sm:$0xf]
    %v8880 = vld [vmem:[%s8872 + $0x1c] sm:$0xf]
    %v8881 = vld [vmem:[%s8872 + $0x20] sm:$0xf]
    %v8882 = vld [vmem:[%s8872 + $0x24] sm:$0xf]
    %v8883 = vld [vmem:[%s8872 + $0x28] sm:$0xf]
    %v8884 = vld [vmem:[%s8872 + $0x2c] sm:$0xf]
    %v8885 = vld [vmem:[%s8872 + $0x30] sm:$0xf]
    %v8886 = vld [vmem:[%s8872 + $0x34] sm:$0xf]
    %v8887 = vld [vmem:[%s8872 + $0x38] sm:$0xf]
    %v8888 = vld [vmem:[%s8872 + $0x3c] sm:$0xf]
    %s8889 = scalar_lea.vmem %s19, 2
    %v8890 = vld [vmem:[%s8889] sm:$0x1]
    %v8892 = vlaneseq
    %v8893 = vshrl.u32 %v8892, 7
    %v8894 = vsub.s32 0, %v8893
    %v8895 = vrot.slane %v8890, %v8894
    %v8913 = vunpack.c.l.b16 %v8873
    %v8914 = vunpack.c.l.b16 %v8874
    %v8915 = vunpack.c.l.b16 %v8875
    %v8916 = vunpack.c.l.b16 %v8876
    %v8917 = vunpack.c.l.b16 %v8877
    %v8918 = vunpack.c.l.b16 %v8878
    %v8919 = vunpack.c.l.b16 %v8879
    %v8920 = vunpack.c.l.b16 %v8880
    %v8921 = vunpack.c.l.b16 %v8881
    %v8922 = vunpack.c.l.b16 %v8882
    %v8923 = vunpack.c.l.b16 %v8883
    %v8924 = vunpack.c.l.b16 %v8884
    %v8925 = vunpack.c.l.b16 %v8885
    %v8926 = vunpack.c.l.b16 %v8886
    %v8927 = vunpack.c.l.b16 %v8887
    %v8928 = vunpack.c.l.b16 %v8888
    %v8929 = vpack.c.b16 %v8914, %v8913
    %v8930 = vpack.c.b16 %v8916, %v8915
    %v8931 = vpack.c.b16 %v8918, %v8917
    %v8932 = vpack.c.b16 %v8920, %v8919
    %v8933 = vpack.c.b16 %v8922, %v8921
    %v8934 = vpack.c.b16 %v8924, %v8923
    %v8935 = vpack.c.b16 %v8926, %v8925
    %v8936 = vpack.c.b16 %v8928, %v8927
    %8945 = vmatprep.subr.bf16.mxu0 0
    %8946 = vmatpush1.bf16.msra.mxu0 %v8929
    %8947 = vmatprep.subr.bf16.mxu0 0
    %8948 = vmatpush1.bf16.msra.mxu0 %v8930
    %8949 = vmatprep.subr.bf16.mxu0 0
    %8950 = vmatpush1.bf16.msra.mxu0 %v8931
    %8951 = vmatprep.subr.bf16.mxu0 0
    %8952 = vmatpush1.bf16.msra.mxu0 %v8932
    %8953 = vmatprep.subr.bf16.mxu0 0
    %8954 = vmatpush1.bf16.msra.mxu0 %v8933
    %8955 = vmatprep.subr.bf16.mxu0 0
    %8956 = vmatpush1.bf16.msra.mxu0 %v8934
    %8957 = vmatprep.subr.bf16.mxu0 0
    %8958 = vmatpush1.bf16.msra.mxu0 %v8935
    %8959 = vmatprep.subr.bf16.mxu0 0
    %8960 = vmatpush1.bf16.msra.mxu0 %v8936
    %8961 = vmatprep.subr.bf16.mxu0 0
    %8962 = vmatpush1.bf16.msra.mxu0 0
    %8963 = vmatprep.subr.bf16.mxu0 0
    %8964 = vmatpush1.bf16.msra.mxu0 0
    %8965 = vmatprep.subr.bf16.mxu0 0
    %8966 = vmatpush1.bf16.msra.mxu0 0
    %8967 = vmatprep.subr.bf16.mxu0 0
    %8968 = vmatpush1.bf16.msra.mxu0 0
    %8969 = vmatprep.subr.bf16.mxu0 0
    %8970 = vmatpush1.bf16.msra.mxu0 0
    %8971 = vmatprep.subr.bf16.mxu0 0
    %8972 = vmatpush1.bf16.msra.mxu0 0
    %8973 = vmatprep.subr.bf16.mxu0 0
    %8974 = vmatpush1.bf16.msra.mxu0 0
    %8975 = vmatprep.subr.bf16.mxu0 0
    %8976 = vmatpush1.bf16.msra.mxu0 0
    %8977 = vmatprep.mubr.bf16.mxu0 0
    %8978 = vmatmul.mubr.bf16.gmra.mrb[0].mxu0 %v8871
    %v8979 = vpop.f32.mrb[0].mxu0
    %v8980 = vadd.f32 %v8895, %v8979
    %v8981 = vpop.f32.mrb[0].mxu0
    %v8982 = vpop.f32.mrb[0].mxu0
    %v8983 = vpop.f32.mrb[0].mxu0
    %8984 = vdwg.mxu0
    %v8985 = vadd.f32 %v8800, %v8980
    %s8986 = scalar_lea.vmem %s22, 2
    %v8987 = vld [vmem:[%s8986] sm:$0x1]
    %s8988 = scalar_lea.vmem %s23, 2
    %v8989 = vld [vmem:[%s8988] sm:$0x1]
    %v8990 = vsel %vm5074, %v8985, 0.0
    %8991 = vadd.xlane.f32.xlu0 %v8990
    %v8992 = vpop.xlane.xlu0 %8991
    %v8993 = vmul.f32 %v8992, %v7170
    %v8994 = vsub.f32 %v8985, %v8993
    %v8995 = vmul.f32 %v8994, %v8994
    %v8996 = vsel %vm5074, %v8995, 0.0
    %8997 = vadd.xlane.f32.xlu0 %v8996
    %v8998 = vpop.xlane.xlu0 %8997
    %v8999 = vmul.f32 %v8998, %v7170
    %v9000 = vadd.f32 %v8999, 1e-05
    %v9001 = vrsqrt.pop %v9000
    %v9002 = vmul.f32 %v8994, %v9001
    %v9004 = vlaneseq
    %v9005 = vshrl.u32 %v9004, 7
    %v9006 = vsub.s32 0, %v9005
    %v9007 = vrot.slane %v8987, %v9006
    %v9009 = vmul.f32 %v9002, %v9007
    %v9011 = vlaneseq
    %v9012 = vshrl.u32 %v9011, 7
    %v9013 = vsub.s32 0, %v9012
    %v9014 = vrot.slane %v8989, %v9013
    %v9016 = vadd.f32 %v9009, %v9014
    %9017 = vst.msk [vmem:[#allocation2] sm:$0xff] %vm5074, %v9016
    // Predicated region
    $region98: #{encoder_forward.1} parent=1 // pred_check
      _
    $region99: #{encoder_forward.1} parent=1 // pred_check_branch
      %9019 = sbr.rel (0) target = $region101
    $region100: #{encoder_forward.1} parent=1 // pred_region
      %s9021 = ssub.s32 128, 128
      %9022 = vsyncadd [#allocation3], %s9021
      %s9024 = sshll.u32 [#allocation2], 4
      %s9025 = int_to_ptr.vmem [resolvable:$true] %s9024
      %9027 = dma.vmem_to_hbm [thread:$0]  %s9025, 128, %s24, [#allocation3]
    $region101: #{encoder_forward.1} parent=1 // pred_fallthru
      _
    // Predicated region
    $region102: #{encoder_forward.1} parent=1 // pred_check
      _
    $region103: #{encoder_forward.1} parent=1 // pred_check_branch
      %9029 = sbr.rel (0) target = $region105
    $region104: #{encoder_forward.1} parent=1 // pred_region
      %9030 = dma.done [#allocation3], 128
    $region105: #{encoder_forward.1} parent=1 // pred_fallthru
      _
    %9031 = vsyncpa [#allocation3], 1

</llo_original>
